<compile_context>
chip_gen: v5e
topology: v5e:2x2
jax: 0.10.0
libtpu: 0.0.40
codegen_flags: <defaults>
</compile_context>

<pallas_src>
import functools

import jax
import jax.numpy as jnp
from jax import lax
from jax.experimental import pallas as pl
from jax.experimental.pallas import tpu as pltpu

# f32-accurate MXU passes (parity with torch f32). bf16 operands are the next
# perf lever if relaxed precision is acceptable.
_PREC = jax.lax.Precision.HIGHEST


# ---------------------------------------------------------------------------
# Kernel 1: fused 3x3 valid conv + bias + ReLU + 2x2/2 max-pool (one image/step)
# ---------------------------------------------------------------------------
def _conv_relu_pool_kernel(x_ref, w_ref, b_ref, o_ref, *, C, OC, OW, PH, PW):
    """x:[H,W,C]  w:[9,C,OC]  b:[1,OC]  o:[PH,PW,OC] = pool(relu(conv(x)+b))."""
    # 0/1 selection matrices that extract even / odd conv columns via a matmul
    # (avoids strided value slices / reshapes inside the kernel).
    r_ids = lax.broadcasted_iota(jnp.int32, (PW, OW), 0)
    c_ids = lax.broadcasted_iota(jnp.int32, (PW, OW), 1)
    sel_even = (c_ids == 2 * r_ids).astype(jnp.float32)        # [PW, OW]
    sel_odd = (c_ids == 2 * r_ids + 1).astype(jnp.float32)     # [PW, OW]
    bias = b_ref[...]                                          # [1, OC]

    @pl.loop(0, PH)
    def _(ph):
        # Bias-free conv rows 2*ph and 2*ph+1, accumulated over the 9 taps
        # (in-kernel im2col: each tap is a shifted [OW, C] slice of the tile).
        row_acc = []
        for r in range(2):
            acc = jnp.zeros((OW, OC), jnp.float32)
            for i in range(3):
                h = 2 * ph + r + i
                for j in range(3):
                    patch = x_ref[h, pl.ds(j, OW), :]          # [OW, C]
                    w_tap = w_ref[3 * i + j]                   # [C, OC]
                    if C == 1:
                        acc = acc + patch * w_tap              # outer product (VPU)
                    else:
                        acc = acc + jnp.dot(
                            patch, w_tap,
                            preferred_element_type=jnp.float32,
                            precision=_PREC)
            row_acc.append(acc)
        rowmax = jnp.maximum(row_acc[0], row_acc[1])           # max over the 2 rows
        even = jnp.dot(sel_even, rowmax,
                       preferred_element_type=jnp.float32, precision=_PREC)
        odd = jnp.dot(sel_odd, rowmax,
                      preferred_element_type=jnp.float32, precision=_PREC)
        pooled = jnp.maximum(even, odd)                        # [PW, OC]
        # per-channel bias + ReLU commute with the window max (monotone).
        o_ref[ph] = jnp.maximum(pooled + bias, 0.0)


def conv_relu_pool(x_nhwc, w_packed, b_row):
    """x:[N,H,W,C], w:[9,C,OC], b:[1,OC] -> [N,(H-2)//2,(W-2)//2,OC]."""
    N, H, W, C = x_nhwc.shape
    KK, C2, OC = w_packed.shape
    assert KK == 9 and C2 == C and b_row.shape == (1, OC)
    OH, OW = H - 2, W - 2
    PH, PW = OH // 2, OW // 2
    kernel = functools.partial(
        _conv_relu_pool_kernel, C=C, OC=OC, OW=OW, PH=PH, PW=PW)
    return pl.pallas_call(
        kernel,
        out_shape=jax.ShapeDtypeStruct((N, PH, PW, OC), jnp.float32),
        grid=(N,),
        in_specs=[
            pl.BlockSpec((None, H, W, C), lambda b: (b, 0, 0, 0)),
            pl.BlockSpec((KK, C, OC), lambda b: (0, 0, 0)),
            pl.BlockSpec((1, OC), lambda b: (0, 0)),
        ],
        out_specs=pl.BlockSpec((None, PH, PW, OC), lambda b: (b, 0, 0, 0)),
        compiler_params=pltpu.CompilerParams(dimension_semantics=("parallel",)),
    )(x_nhwc, w_packed, b_row)


# ---------------------------------------------------------------------------
# Kernel 2: fused MLP head  (fc1 + bias + ReLU + fc2 + bias)
# ---------------------------------------------------------------------------
def _mlp_head_kernel(x_ref, w1_ref, b1_ref, w2_ref, b2_ref, o_ref):
    h = jnp.dot(x_ref[...], w1_ref[...],
                preferred_element_type=jnp.float32, precision=_PREC) + b1_ref[...]
    h = jnp.maximum(h, 0.0)
    o = jnp.dot(h, w2_ref[...],
                preferred_element_type=jnp.float32, precision=_PREC) + b2_ref[...]
    o_ref[...] = o.astype(o_ref.dtype)


def _pick_block_m(m):
    for bm in (512, 256, 128, 64, 32, 16, 8):
        if m % bm == 0:
            return bm
    return m  # block == full dim is always legal


def mlp_head(x2d, w1, b1, w2, b2):
    M, K = x2d.shape
    K1, H = w1.shape
    H2, O = w2.shape
    assert K == K1 and H == H2
    bm = _pick_block_m(M)
    return pl.pallas_call(
        _mlp_head_kernel,
        out_shape=jax.ShapeDtypeStruct((M, O), jnp.float32),
        grid=(M // bm,),
        in_specs=[
            pl.BlockSpec((bm, K), lambda m: (m, 0)),
            pl.BlockSpec((K, H), lambda m: (0, 0)),
            pl.BlockSpec((1, H), lambda m: (0, 0)),
            pl.BlockSpec((H, O), lambda m: (0, 0)),
            pl.BlockSpec((1, O), lambda m: (0, 0)),
        ],
        out_specs=pl.BlockSpec((bm, O), lambda m: (m, 0)),
        compiler_params=pltpu.CompilerParams(dimension_semantics=("parallel",)),
    )(x2d, w1, b1, w2, b2)


# ---------------------------------------------------------------------------
# Parameters: PyTorch-style init + one-time packing for the kernels
# ---------------------------------------------------------------------------
def init_params(key):
    ks = jax.random.split(key, 8)

    def u(k, shape, fan_in):
        bound = 1.0 / jnp.sqrt(fan_in)
        return jax.random.uniform(k, shape, jnp.float32, -bound, bound)

    return {
        "conv1_w": u(ks[0], (16, 1, 3, 3), 1 * 3 * 3),
        "conv1_b": u(ks[1], (16,), 1 * 3 * 3),
        "conv2_w": u(ks[2], (32, 16, 3, 3), 16 * 3 * 3),
        "conv2_b": u(ks[3], (32,), 16 * 3 * 3),
        "fc1_w": u(ks[4], (120, 800), 800),   # PyTorch [out, in], in = c*25 + h*5 + w
        "fc1_b": u(ks[5], (120,), 800),
        "fc2_w": u(ks[6], (10, 120), 120),
        "fc2_b": u(ks[7], (10,), 120),
    }


def pack_params(params):
    """One-time weight packing (kernel-friendly layouts, flatten folded into fc1)."""
    def pack_conv(w):  # [OC, IC, 3, 3] -> [9, IC, OC], tap index = 3*i + j
        oc, ic, kh, kw = w.shape
        return jnp.transpose(w, (2, 3, 1, 0)).reshape(kh * kw, ic, oc)

    # fc1: torch flatten order is (c, h, w); our activation flatten is NHWC
    # (h, w, c) -> permute fc1_w rows once so no activation permute is needed.
    fc1 = params["fc1_w"].reshape(120, 32, 5, 5)            # [out, c, h, w]
    fc1 = jnp.transpose(fc1, (2, 3, 1, 0)).reshape(800, 120)  # rows = (h, w, c)

    return {
        "conv1_w": pack_conv(params["conv1_w"]),
        "conv1_b": params["conv1_b"].reshape(1, -1),
        "conv2_w": pack_conv(params["conv2_w"]),
        "conv2_b": params["conv2_b"].reshape(1, -1),
        "fc1_w": fc1,
        "fc1_b": params["fc1_b"].reshape(1, -1),
        "fc2_w": params["fc2_w"].T,                         # [120, 10]
        "fc2_b": params["fc2_b"].reshape(1, -1),
    }


# ---------------------------------------------------------------------------
# Forward pass (matches SimpleCNN.forward)
# ---------------------------------------------------------------------------
@jax.jit
def simple_cnn_forward(x_nchw, packed):
    x = jnp.transpose(x_nchw, (0, 2, 3, 1)).astype(jnp.float32)   # NCHW -> NHWC [N,28,28,1]
    x = conv_relu_pool(x, packed["conv1_w"], packed["conv1_b"])   # [N,13,13,16]
    x = conv_relu_pool(x, packed["conv2_w"], packed["conv2_b"])   # [N,5,5,32]
    x = x.reshape(x.shape[0], -1)                                 # [N,800] (h,w,c) order
    return mlp_head(x, packed["fc1_w"], packed["fc1_b"],
                    packed["fc2_w"], packed["fc2_b"])             # [N,10]


# ---------------------------------------------------------------------------
# Pure-JAX reference (matches the PyTorch module) for a correctness check
# ---------------------------------------------------------------------------
def reference_forward(x_nchw, params):
    x = x_nchw.astype(jnp.float32)

    def conv(x, w, b):
        y = lax.conv_general_dilated(
            x, w, window_strides=(1, 1), padding="VALID",
            dimension_numbers=("NCHW", "OIHW", "NCHW"), precision=_PREC)
        return jax.nn.relu(y + b.reshape(1, -1, 1, 1))

    def pool(x):  # 2x2, stride 2, floor mode
        n, c, h, w = x.shape
        x = x[:, :, : (h // 2) * 2, : (w // 2) * 2]
        return jnp.maximum(
            jnp.maximum(x[:, :, 0::2, 0::2], x[:, :, 0::2, 1::2]),
            jnp.maximum(x[:, :, 1::2, 0::2], x[:, :, 1::2, 1::2]))

    x = pool(conv(x, params["conv1_w"], params["conv1_b"]))
    x = pool(conv(x, params["conv2_w"], params["conv2_b"]))
    x = x.reshape(x.shape[0], -1)                                 # (c,h,w) order, like torch
    x = jax.nn.relu(jnp.dot(x, params["fc1_w"].T, precision=_PREC) + params["fc1_b"])
    return jnp.dot(x, params["fc2_w"].T, precision=_PREC) + params["fc2_b"]


if __name__ == "__main__":
    key = jax.random.PRNGKey(0)
    k_param, k_in = jax.random.split(key)

    params = init_params(k_param)
    packed = pack_params(params)

    # Spatial size is fixed at 28x28 by fc1 (32*5*5); keep batch small.
    x = jax.random.normal(k_in, (2, 1, 28, 28), jnp.float32)

    out = jax.block_until_ready(simple_cnn_forward(x, packed))
    assert out.shape == (2, 10), out.shape

    ref = jax.block_until_ready(reference_forward(x, params))
    err = float(jnp.max(jnp.abs(out - ref)))
    assert err < 5e-3, f"max abs err {err}"

    print("KERNEL_OK")
</pallas_src>

<mosaic_0001>
module attributes {stable_mosaic.version = 11 : i64} {
  func.func @_conv_relu_pool_kernel(%arg0: i32, %arg1: memref<1x28x28x1xf32, #tpu.memory_space<vmem>>, %arg2: memref<9x1x16xf32, #tpu.memory_space<vmem>>, %arg3: memref<1x16xf32, #tpu.memory_space<vmem>>, %arg4: memref<1x13x13x16xf32, #tpu.memory_space<vmem>>) attributes {dimension_semantics = [#tpu.dimension_semantics<parallel>], iteration_bounds = array<i64: 2>, scalar_prefetch = 0 : i64, scratch_operands = 0 : i64, tpu.core_type = #tpu.core_type<tc>, window_params = [{transform_indices = @transform_0, window_bounds = array<i64: 1, 28, 28, 1>}, {pipeline_mode = #tpu.pipeline_mode<synchronous>, transform_indices = @transform_1, window_bounds = array<i64: 9, 1, 16>}, {pipeline_mode = #tpu.pipeline_mode<synchronous>, transform_indices = @transform_2, window_bounds = array<i64: 1, 16>}, {transform_indices = @transform_3, window_bounds = array<i64: 1, 13, 13, 16>}]} {
    %0 = tpu.iota {dimensions = array<i32: 0>} : vector<13x26xi32>
    %1 = tpu.iota {dimensions = array<i32: 1>} : vector<13x26xi32>
    %c2_i32 = arith.constant 2 : i32
    %2 = vector.broadcast %c2_i32 : i32 to vector<13x26xi32>
    %3 = arith.muli %2, %0 : vector<13x26xi32>
    %4 = arith.cmpi eq, %1, %3 : vector<13x26xi32>
    %5 = arith.extui %4 : vector<13x26xi1> to vector<13x26xi32>
    %6 = arith.sitofp %5 : vector<13x26xi32> to vector<13x26xf32>
    %c2_i32_0 = arith.constant 2 : i32
    %7 = vector.broadcast %c2_i32_0 : i32 to vector<13x26xi32>
    %8 = arith.muli %7, %0 : vector<13x26xi32>
    %c1_i32 = arith.constant 1 : i32
    %9 = vector.broadcast %c1_i32 : i32 to vector<13x26xi32>
    %10 = arith.addi %8, %9 : vector<13x26xi32>
    %11 = arith.cmpi eq, %1, %10 : vector<13x26xi32>
    %12 = arith.extui %11 : vector<13x26xi1> to vector<13x26xi32>
    %13 = arith.sitofp %12 : vector<13x26xi32> to vector<13x26xf32>
    %c0 = arith.constant 0 : index
    %c0_1 = arith.constant 0 : index
    %14 = vector.load %arg3[%c0, %c0_1] : memref<1x16xf32, #tpu.memory_space<vmem>>, vector<1x16xf32>
    %c0_i32 = arith.constant 0 : i32
    %c13_i32 = arith.constant 13 : i32
    %15 = arith.addi %c0_i32, %c13_i32 : i32
    %c1_i32_2 = arith.constant 1 : i32
    scf.for %arg5 = %c0_i32 to %15 step %c1_i32_2  : i32 {
      %c1_i32_4 = arith.constant 1 : i32
      %16 = arith.muli %arg5, %c1_i32_4 : i32
      %c0_i32_5 = arith.constant 0 : i32
      %17 = arith.addi %c0_i32_5, %16 : i32
      %cst = arith.constant 0.000000e+00 : f32
      %18 = vector.broadcast %cst : f32 to vector<26x16xf32>
      %c2_i32_6 = arith.constant 2 : i32
      %19 = arith.muli %c2_i32_6, %17 : i32
      %c0_i32_7 = arith.constant 0 : i32
      %20 = arith.addi %19, %c0_i32_7 : i32
      %c0_i32_8 = arith.constant 0 : i32
      %21 = arith.addi %20, %c0_i32_8 : i32
      %c0_9 = arith.constant 0 : index
      %22 = arith.index_cast %21 : i32 to index
      %c0_10 = arith.constant 0 : index
      %c0_11 = arith.constant 0 : index
      %23 = vector.load %arg1[%c0_9, %22, %c0_10, %c0_11] : memref<1x28x28x1xf32, #tpu.memory_space<vmem>>, vector<1x1x26x1xf32>
      %24 = vector.shape_cast %23 : vector<1x1x26x1xf32> to vector<26x1xf32>
      %c0_12 = arith.constant 0 : index
      %c0_13 = arith.constant 0 : index
      %c0_14 = arith.constant 0 : index
      %25 = vector.load %arg2[%c0_12, %c0_13, %c0_14] : memref<9x1x16xf32, #tpu.memory_space<vmem>>, vector<1x1x16xf32>
      %26 = vector.shape_cast %25 : vector<1x1x16xf32> to vector<1x16xf32>
      %27 = vector.broadcast %24 : vector<26x1xf32> to vector<26x16xf32>
      %28 = vector.broadcast %26 : vector<1x16xf32> to vector<26x16xf32>
      %29 = arith.mulf %27, %28 : vector<26x16xf32>
      %30 = arith.addf %18, %29 : vector<26x16xf32>
      %c0_15 = arith.constant 0 : index
      %31 = arith.index_cast %21 : i32 to index
      %c1 = arith.constant 1 : index
      %c0_16 = arith.constant 0 : index
      %32 = vector.load %arg1[%c0_15, %31, %c1, %c0_16] : memref<1x28x28x1xf32, #tpu.memory_space<vmem>>, vector<1x1x26x1xf32>
      %33 = vector.shape_cast %32 : vector<1x1x26x1xf32> to vector<26x1xf32>
      %c1_17 = arith.constant 1 : index
      %c0_18 = arith.constant 0 : index
      %c0_19 = arith.constant 0 : index
      %34 = vector.load %arg2[%c1_17, %c0_18, %c0_19] : memref<9x1x16xf32, #tpu.memory_space<vmem>>, vector<1x1x16xf32>
      %35 = vector.shape_cast %34 : vector<1x1x16xf32> to vector<1x16xf32>
      %36 = vector.broadcast %33 : vector<26x1xf32> to vector<26x16xf32>
      %37 = vector.broadcast %35 : vector<1x16xf32> to vector<26x16xf32>
      %38 = arith.mulf %36, %37 : vector<26x16xf32>
      %39 = arith.addf %30, %38 : vector<26x16xf32>
      %c0_20 = arith.constant 0 : index
      %40 = arith.index_cast %21 : i32 to index
      %c2 = arith.constant 2 : index
      %c0_21 = arith.constant 0 : index
      %41 = vector.load %arg1[%c0_20, %40, %c2, %c0_21] : memref<1x28x28x1xf32, #tpu.memory_space<vmem>>, vector<1x1x26x1xf32>
      %42 = vector.shape_cast %41 : vector<1x1x26x1xf32> to vector<26x1xf32>
      %c2_22 = arith.constant 2 : index
      %c0_23 = arith.constant 0 : index
      %c0_24 = arith.constant 0 : index
      %43 = vector.load %arg2[%c2_22, %c0_23, %c0_24] : memref<9x1x16xf32, #tpu.memory_space<vmem>>, vector<1x1x16xf32>
      %44 = vector.shape_cast %43 : vector<1x1x16xf32> to vector<1x16xf32>
      %45 = vector.broadcast %42 : vector<26x1xf32> to vector<26x16xf32>
      %46 = vector.broadcast %44 : vector<1x16xf32> to vector<26x16xf32>
      %47 = arith.mulf %45, %46 : vector<26x16xf32>
      %48 = arith.addf %39, %47 : vector<26x16xf32>
      %c2_i32_25 = arith.constant 2 : i32
      %49 = arith.muli %c2_i32_25, %17 : i32
      %c0_i32_26 = arith.constant 0 : i32
      %50 = arith.addi %49, %c0_i32_26 : i32
      %c1_i32_27 = arith.constant 1 : i32
      %51 = arith.addi %50, %c1_i32_27 : i32
      %c0_28 = arith.constant 0 : index
      %52 = arith.index_cast %51 : i32 to index
      %c0_29 = arith.constant 0 : index
      %c0_30 = arith.constant 0 : index
      %53 = vector.load %arg1[%c0_28, %52, %c0_29, %c0_30] : memref<1x28x28x1xf32, #tpu.memory_space<vmem>>, vector<1x1x26x1xf32>
      %54 = vector.shape_cast %53 : vector<1x1x26x1xf32> to vector<26x1xf32>
      %c3 = arith.constant 3 : index
      %c0_31 = arith.constant 0 : index
      %c0_32 = arith.constant 0 : index
      %55 = vector.load %arg2[%c3, %c0_31, %c0_32] : memref<9x1x16xf32, #tpu.memory_space<vmem>>, vector<1x1x16xf32>
      %56 = vector.shape_cast %55 : vector<1x1x16xf32> to vector<1x16xf32>
      %57 = vector.broadcast %54 : vector<26x1xf32> to vector<26x16xf32>
      %58 = vector.broadcast %56 : vector<1x16xf32> to vector<26x16xf32>
      %59 = arith.mulf %57, %58 : vector<26x16xf32>
      %60 = arith.addf %48, %59 : vector<26x16xf32>
      %c0_33 = arith.constant 0 : index
      %61 = arith.index_cast %51 : i32 to index
      %c1_34 = arith.constant 1 : index
      %c0_35 = arith.constant 0 : index
      %62 = vector.load %arg1[%c0_33, %61, %c1_34, %c0_35] : memref<1x28x28x1xf32, #tpu.memory_space<vmem>>, vector<1x1x26x1xf32>
      %63 = vector.shape_cast %62 : vector<1x1x26x1xf32> to vector<26x1xf32>
      %c4 = arith.constant 4 : index
      %c0_36 = arith.constant 0 : index
      %c0_37 = arith.constant 0 : index
      %64 = vector.load %arg2[%c4, %c0_36, %c0_37] : memref<9x1x16xf32, #tpu.memory_space<vmem>>, vector<1x1x16xf32>
      %65 = vector.shape_cast %64 : vector<1x1x16xf32> to vector<1x16xf32>
      %66 = vector.broadcast %63 : vector<26x1xf32> to vector<26x16xf32>
      %67 = vector.broadcast %65 : vector<1x16xf32> to vector<26x16xf32>
      %68 = arith.mulf %66, %67 : vector<26x16xf32>
      %69 = arith.addf %60, %68 : vector<26x16xf32>
      %c0_38 = arith.constant 0 : index
      %70 = arith.index_cast %51 : i32 to index
      %c2_39 = arith.constant 2 : index
      %c0_40 = arith.constant 0 : index
      %71 = vector.load %arg1[%c0_38, %70, %c2_39, %c0_40] : memref<1x28x28x1xf32, #tpu.memory_space<vmem>>, vector<1x1x26x1xf32>
      %72 = vector.shape_cast %71 : vector<1x1x26x1xf32> to vector<26x1xf32>
      %c5 = arith.constant 5 : index
      %c0_41 = arith.constant 0 : index
      %c0_42 = arith.constant 0 : index
      %73 = vector.load %arg2[%c5, %c0_41, %c0_42] : memref<9x1x16xf32, #tpu.memory_space<vmem>>, vector<1x1x16xf32>
      %74 = vector.shape_cast %73 : vector<1x1x16xf32> to vector<1x16xf32>
      %75 = vector.broadcast %72 : vector<26x1xf32> to vector<26x16xf32>
      %76 = vector.broadcast %74 : vector<1x16xf32> to vector<26x16xf32>
      %77 = arith.mulf %75, %76 : vector<26x16xf32>
      %78 = arith.addf %69, %77 : vector<26x16xf32>
      %c2_i32_43 = arith.constant 2 : i32
      %79 = arith.muli %c2_i32_43, %17 : i32
      %c0_i32_44 = arith.constant 0 : i32
      %80 = arith.addi %79, %c0_i32_44 : i32
      %c2_i32_45 = arith.constant 2 : i32
      %81 = arith.addi %80, %c2_i32_45 : i32
      %c0_46 = arith.constant 0 : index
      %82 = arith.index_cast %81 : i32 to index
      %c0_47 = arith.constant 0 : index
      %c0_48 = arith.constant 0 : index
      %83 = vector.load %arg1[%c0_46, %82, %c0_47, %c0_48] : memref<1x28x28x1xf32, #tpu.memory_space<vmem>>, vector<1x1x26x1xf32>
      %84 = vector.shape_cast %83 : vector<1x1x26x1xf32> to vector<26x1xf32>
      %c6 = arith.constant 6 : index
      %c0_49 = arith.constant 0 : index
      %c0_50 = arith.constant 0 : index
      %85 = vector.load %arg2[%c6, %c0_49, %c0_50] : memref<9x1x16xf32, #tpu.memory_space<vmem>>, vector<1x1x16xf32>
      %86 = vector.shape_cast %85 : vector<1x1x16xf32> to vector<1x16xf32>
      %87 = vector.broadcast %84 : vector<26x1xf32> to vector<26x16xf32>
      %88 = vector.broadcast %86 : vector<1x16xf32> to vector<26x16xf32>
      %89 = arith.mulf %87, %88 : vector<26x16xf32>
      %90 = arith.addf %78, %89 : vector<26x16xf32>
      %c0_51 = arith.constant 0 : index
      %91 = arith.index_cast %81 : i32 to index
      %c1_52 = arith.constant 1 : index
      %c0_53 = arith.constant 0 : index
      %92 = vector.load %arg1[%c0_51, %91, %c1_52, %c0_53] : memref<1x28x28x1xf32, #tpu.memory_space<vmem>>, vector<1x1x26x1xf32>
      %93 = vector.shape_cast %92 : vector<1x1x26x1xf32> to vector<26x1xf32>
      %c7 = arith.constant 7 : index
      %c0_54 = arith.constant 0 : index
      %c0_55 = arith.constant 0 : index
      %94 = vector.load %arg2[%c7, %c0_54, %c0_55] : memref<9x1x16xf32, #tpu.memory_space<vmem>>, vector<1x1x16xf32>
      %95 = vector.shape_cast %94 : vector<1x1x16xf32> to vector<1x16xf32>
      %96 = vector.broadcast %93 : vector<26x1xf32> to vector<26x16xf32>
      %97 = vector.broadcast %95 : vector<1x16xf32> to vector<26x16xf32>
      %98 = arith.mulf %96, %97 : vector<26x16xf32>
      %99 = arith.addf %90, %98 : vector<26x16xf32>
      %c0_56 = arith.constant 0 : index
      %100 = arith.index_cast %81 : i32 to index
      %c2_57 = arith.constant 2 : index
      %c0_58 = arith.constant 0 : index
      %101 = vector.load %arg1[%c0_56, %100, %c2_57, %c0_58] : memref<1x28x28x1xf32, #tpu.memory_space<vmem>>, vector<1x1x26x1xf32>
      %102 = vector.shape_cast %101 : vector<1x1x26x1xf32> to vector<26x1xf32>
      %c8 = arith.constant 8 : index
      %c0_59 = arith.constant 0 : index
      %c0_60 = arith.constant 0 : index
      %103 = vector.load %arg2[%c8, %c0_59, %c0_60] : memref<9x1x16xf32, #tpu.memory_space<vmem>>, vector<1x1x16xf32>
      %104 = vector.shape_cast %103 : vector<1x1x16xf32> to vector<1x16xf32>
      %105 = vector.broadcast %102 : vector<26x1xf32> to vector<26x16xf32>
      %106 = vector.broadcast %104 : vector<1x16xf32> to vector<26x16xf32>
      %107 = arith.mulf %105, %106 : vector<26x16xf32>
      %108 = arith.addf %99, %107 : vector<26x16xf32>
      %cst_61 = arith.constant 0.000000e+00 : f32
      %109 = vector.broadcast %cst_61 : f32 to vector<26x16xf32>
      %c2_i32_62 = arith.constant 2 : i32
      %110 = arith.muli %c2_i32_62, %17 : i32
      %c1_i32_63 = arith.constant 1 : i32
      %111 = arith.addi %110, %c1_i32_63 : i32
      %c0_i32_64 = arith.constant 0 : i32
      %112 = arith.addi %111, %c0_i32_64 : i32
      %c0_65 = arith.constant 0 : index
      %113 = arith.index_cast %112 : i32 to index
      %c0_66 = arith.constant 0 : index
      %c0_67 = arith.constant 0 : index
      %114 = vector.load %arg1[%c0_65, %113, %c0_66, %c0_67] : memref<1x28x28x1xf32, #tpu.memory_space<vmem>>, vector<1x1x26x1xf32>
      %115 = vector.shape_cast %114 : vector<1x1x26x1xf32> to vector<26x1xf32>
      %c0_68 = arith.constant 0 : index
      %c0_69 = arith.constant 0 : index
      %c0_70 = arith.constant 0 : index
      %116 = vector.load %arg2[%c0_68, %c0_69, %c0_70] : memref<9x1x16xf32, #tpu.memory_space<vmem>>, vector<1x1x16xf32>
      %117 = vector.shape_cast %116 : vector<1x1x16xf32> to vector<1x16xf32>
      %118 = vector.broadcast %115 : vector<26x1xf32> to vector<26x16xf32>
      %119 = vector.broadcast %117 : vector<1x16xf32> to vector<26x16xf32>
      %120 = arith.mulf %118, %119 : vector<26x16xf32>
      %121 = arith.addf %109, %120 : vector<26x16xf32>
      %c0_71 = arith.constant 0 : index
      %122 = arith.index_cast %112 : i32 to index
      %c1_72 = arith.constant 1 : index
      %c0_73 = arith.constant 0 : index
      %123 = vector.load %arg1[%c0_71, %122, %c1_72, %c0_73] : memref<1x28x28x1xf32, #tpu.memory_space<vmem>>, vector<1x1x26x1xf32>
      %124 = vector.shape_cast %123 : vector<1x1x26x1xf32> to vector<26x1xf32>
      %c1_74 = arith.constant 1 : index
      %c0_75 = arith.constant 0 : index
      %c0_76 = arith.constant 0 : index
      %125 = vector.load %arg2[%c1_74, %c0_75, %c0_76] : memref<9x1x16xf32, #tpu.memory_space<vmem>>, vector<1x1x16xf32>
      %126 = vector.shape_cast %125 : vector<1x1x16xf32> to vector<1x16xf32>
      %127 = vector.broadcast %124 : vector<26x1xf32> to vector<26x16xf32>
      %128 = vector.broadcast %126 : vector<1x16xf32> to vector<26x16xf32>
      %129 = arith.mulf %127, %128 : vector<26x16xf32>
      %130 = arith.addf %121, %129 : vector<26x16xf32>
      %c0_77 = arith.constant 0 : index
      %131 = arith.index_cast %112 : i32 to index
      %c2_78 = arith.constant 2 : index
      %c0_79 = arith.constant 0 : index
      %132 = vector.load %arg1[%c0_77, %131, %c2_78, %c0_79] : memref<1x28x28x1xf32, #tpu.memory_space<vmem>>, vector<1x1x26x1xf32>
      %133 = vector.shape_cast %132 : vector<1x1x26x1xf32> to vector<26x1xf32>
      %c2_80 = arith.constant 2 : index
      %c0_81 = arith.constant 0 : index
      %c0_82 = arith.constant 0 : index
      %134 = vector.load %arg2[%c2_80, %c0_81, %c0_82] : memref<9x1x16xf32, #tpu.memory_space<vmem>>, vector<1x1x16xf32>
      %135 = vector.shape_cast %134 : vector<1x1x16xf32> to vector<1x16xf32>
      %136 = vector.broadcast %133 : vector<26x1xf32> to vector<26x16xf32>
      %137 = vector.broadcast %135 : vector<1x16xf32> to vector<26x16xf32>
      %138 = arith.mulf %136, %137 : vector<26x16xf32>
      %139 = arith.addf %130, %138 : vector<26x16xf32>
      %c2_i32_83 = arith.constant 2 : i32
      %140 = arith.muli %c2_i32_83, %17 : i32
      %c1_i32_84 = arith.constant 1 : i32
      %141 = arith.addi %140, %c1_i32_84 : i32
      %c1_i32_85 = arith.constant 1 : i32
      %142 = arith.addi %141, %c1_i32_85 : i32
      %c0_86 = arith.constant 0 : index
      %143 = arith.index_cast %142 : i32 to index
      %c0_87 = arith.constant 0 : index
      %c0_88 = arith.constant 0 : index
      %144 = vector.load %arg1[%c0_86, %143, %c0_87, %c0_88] : memref<1x28x28x1xf32, #tpu.memory_space<vmem>>, vector<1x1x26x1xf32>
      %145 = vector.shape_cast %144 : vector<1x1x26x1xf32> to vector<26x1xf32>
      %c3_89 = arith.constant 3 : index
      %c0_90 = arith.constant 0 : index
      %c0_91 = arith.constant 0 : index
      %146 = vector.load %arg2[%c3_89, %c0_90, %c0_91] : memref<9x1x16xf32, #tpu.memory_space<vmem>>, vector<1x1x16xf32>
      %147 = vector.shape_cast %146 : vector<1x1x16xf32> to vector<1x16xf32>
      %148 = vector.broadcast %145 : vector<26x1xf32> to vector<26x16xf32>
      %149 = vector.broadcast %147 : vector<1x16xf32> to vector<26x16xf32>
      %150 = arith.mulf %148, %149 : vector<26x16xf32>
      %151 = arith.addf %139, %150 : vector<26x16xf32>
      %c0_92 = arith.constant 0 : index
      %152 = arith.index_cast %142 : i32 to index
      %c1_93 = arith.constant 1 : index
      %c0_94 = arith.constant 0 : index
      %153 = vector.load %arg1[%c0_92, %152, %c1_93, %c0_94] : memref<1x28x28x1xf32, #tpu.memory_space<vmem>>, vector<1x1x26x1xf32>
      %154 = vector.shape_cast %153 : vector<1x1x26x1xf32> to vector<26x1xf32>
      %c4_95 = arith.constant 4 : index
      %c0_96 = arith.constant 0 : index
      %c0_97 = arith.constant 0 : index
      %155 = vector.load %arg2[%c4_95, %c0_96, %c0_97] : memref<9x1x16xf32, #tpu.memory_space<vmem>>, vector<1x1x16xf32>
      %156 = vector.shape_cast %155 : vector<1x1x16xf32> to vector<1x16xf32>
      %157 = vector.broadcast %154 : vector<26x1xf32> to vector<26x16xf32>
      %158 = vector.broadcast %156 : vector<1x16xf32> to vector<26x16xf32>
      %159 = arith.mulf %157, %158 : vector<26x16xf32>
      %160 = arith.addf %151, %159 : vector<26x16xf32>
      %c0_98 = arith.constant 0 : index
      %161 = arith.index_cast %142 : i32 to index
      %c2_99 = arith.constant 2 : index
      %c0_100 = arith.constant 0 : index
      %162 = vector.load %arg1[%c0_98, %161, %c2_99, %c0_100] : memref<1x28x28x1xf32, #tpu.memory_space<vmem>>, vector<1x1x26x1xf32>
      %163 = vector.shape_cast %162 : vector<1x1x26x1xf32> to vector<26x1xf32>
      %c5_101 = arith.constant 5 : index
      %c0_102 = arith.constant 0 : index
      %c0_103 = arith.constant 0 : index
      %164 = vector.load %arg2[%c5_101, %c0_102, %c0_103] : memref<9x1x16xf32, #tpu.memory_space<vmem>>, vector<1x1x16xf32>
      %165 = vector.shape_cast %164 : vector<1x1x16xf32> to vector<1x16xf32>
      %166 = vector.broadcast %163 : vector<26x1xf32> to vector<26x16xf32>
      %167 = vector.broadcast %165 : vector<1x16xf32> to vector<26x16xf32>
      %168 = arith.mulf %166, %167 : vector<26x16xf32>
      %169 = arith.addf %160, %168 : vector<26x16xf32>
      %c2_i32_104 = arith.constant 2 : i32
      %170 = arith.muli %c2_i32_104, %17 : i32
      %c1_i32_105 = arith.constant 1 : i32
      %171 = arith.addi %170, %c1_i32_105 : i32
      %c2_i32_106 = arith.constant 2 : i32
      %172 = arith.addi %171, %c2_i32_106 : i32
      %c0_107 = arith.constant 0 : index
      %173 = arith.index_cast %172 : i32 to index
      %c0_108 = arith.constant 0 : index
      %c0_109 = arith.constant 0 : index
      %174 = vector.load %arg1[%c0_107, %173, %c0_108, %c0_109] : memref<1x28x28x1xf32, #tpu.memory_space<vmem>>, vector<1x1x26x1xf32>
      %175 = vector.shape_cast %174 : vector<1x1x26x1xf32> to vector<26x1xf32>
      %c6_110 = arith.constant 6 : index
      %c0_111 = arith.constant 0 : index
      %c0_112 = arith.constant 0 : index
      %176 = vector.load %arg2[%c6_110, %c0_111, %c0_112] : memref<9x1x16xf32, #tpu.memory_space<vmem>>, vector<1x1x16xf32>
      %177 = vector.shape_cast %176 : vector<1x1x16xf32> to vector<1x16xf32>
      %178 = vector.broadcast %175 : vector<26x1xf32> to vector<26x16xf32>
      %179 = vector.broadcast %177 : vector<1x16xf32> to vector<26x16xf32>
      %180 = arith.mulf %178, %179 : vector<26x16xf32>
      %181 = arith.addf %169, %180 : vector<26x16xf32>
      %c0_113 = arith.constant 0 : index
      %182 = arith.index_cast %172 : i32 to index
      %c1_114 = arith.constant 1 : index
      %c0_115 = arith.constant 0 : index
      %183 = vector.load %arg1[%c0_113, %182, %c1_114, %c0_115] : memref<1x28x28x1xf32, #tpu.memory_space<vmem>>, vector<1x1x26x1xf32>
      %184 = vector.shape_cast %183 : vector<1x1x26x1xf32> to vector<26x1xf32>
      %c7_116 = arith.constant 7 : index
      %c0_117 = arith.constant 0 : index
      %c0_118 = arith.constant 0 : index
      %185 = vector.load %arg2[%c7_116, %c0_117, %c0_118] : memref<9x1x16xf32, #tpu.memory_space<vmem>>, vector<1x1x16xf32>
      %186 = vector.shape_cast %185 : vector<1x1x16xf32> to vector<1x16xf32>
      %187 = vector.broadcast %184 : vector<26x1xf32> to vector<26x16xf32>
      %188 = vector.broadcast %186 : vector<1x16xf32> to vector<26x16xf32>
      %189 = arith.mulf %187, %188 : vector<26x16xf32>
      %190 = arith.addf %181, %189 : vector<26x16xf32>
      %c0_119 = arith.constant 0 : index
      %191 = arith.index_cast %172 : i32 to index
      %c2_120 = arith.constant 2 : index
      %c0_121 = arith.constant 0 : index
      %192 = vector.load %arg1[%c0_119, %191, %c2_120, %c0_121] : memref<1x28x28x1xf32, #tpu.memory_space<vmem>>, vector<1x1x26x1xf32>
      %193 = vector.shape_cast %192 : vector<1x1x26x1xf32> to vector<26x1xf32>
      %c8_122 = arith.constant 8 : index
      %c0_123 = arith.constant 0 : index
      %c0_124 = arith.constant 0 : index
      %194 = vector.load %arg2[%c8_122, %c0_123, %c0_124] : memref<9x1x16xf32, #tpu.memory_space<vmem>>, vector<1x1x16xf32>
      %195 = vector.shape_cast %194 : vector<1x1x16xf32> to vector<1x16xf32>
      %196 = vector.broadcast %193 : vector<26x1xf32> to vector<26x16xf32>
      %197 = vector.broadcast %195 : vector<1x16xf32> to vector<26x16xf32>
      %198 = arith.mulf %196, %197 : vector<26x16xf32>
      %199 = arith.addf %190, %198 : vector<26x16xf32>
      %200 = arith.maximumf %108, %199 : vector<26x16xf32>
      %cst_125 = arith.constant dense<0.000000e+00> : vector<13x16xf32>
      %201 = tpu.matmul %6, %200, %cst_125 {dimension_numbers = #tpu.dot_dimension_numbers<[1], [0], [0], [1], [0, 0, 1, 1], [], []>, precision = #tpu.contract_precision<fp32>} : vector<13x26xf32>, vector<26x16xf32>, vector<13x16xf32> -> vector<13x16xf32>
      %cst_126 = arith.constant dense<0.000000e+00> : vector<13x16xf32>
      %202 = tpu.matmul %13, %200, %cst_126 {dimension_numbers = #tpu.dot_dimension_numbers<[1], [0], [0], [1], [0, 0, 1, 1], [], []>, precision = #tpu.contract_precision<fp32>} : vector<13x26xf32>, vector<26x16xf32>, vector<13x16xf32> -> vector<13x16xf32>
      %203 = arith.maximumf %201, %202 : vector<13x16xf32>
      %204 = vector.broadcast %14 : vector<1x16xf32> to vector<13x16xf32>
      %205 = arith.addf %203, %204 : vector<13x16xf32>
      %cst_127 = arith.constant 0.000000e+00 : f32
      %206 = vector.broadcast %cst_127 : f32 to vector<13x16xf32>
      %207 = arith.maximumf %205, %206 : vector<13x16xf32>
      %c0_128 = arith.constant 0 : index
      %208 = arith.index_cast %17 : i32 to index
      %c0_129 = arith.constant 0 : index
      %c0_130 = arith.constant 0 : index
      %209 = vector.load %arg4[%c0_128, %208, %c0_129, %c0_130] : memref<1x13x13x16xf32, #tpu.memory_space<vmem>>, vector<1x1x13x16xf32>
      %210 = vector.shape_cast %209 : vector<1x1x13x16xf32> to vector<13x16xf32>
      %211 = vector.shape_cast %207 : vector<13x16xf32> to vector<1x1x13x16xf32>
      tpu.vector_store %arg4[%c0_128, %208, %c0_129, %c0_130], %211 {strides = array<i32>} : memref<1x13x13x16xf32, #tpu.memory_space<vmem>>, vector<1x1x13x16xf32>,
    }
    %c13_i32_3 = arith.constant 13 : i32
    return
  }
  func.func @transform_0(%arg0: i32) -> (i32, i32, i32, i32) {
    %c0_i32 = arith.constant 0 : i32
    %c0_i32_0 = arith.constant 0 : i32
    %c0_i32_1 = arith.constant 0 : i32
    %c0_i32_2 = arith.constant 0 : i32
    return %arg0, %c0_i32, %c0_i32_0, %c0_i32_1 : i32, i32, i32, i32
  }
  func.func @transform_1(%arg0: i32) -> (i32, i32, i32) {
    %c0_i32 = arith.constant 0 : i32
    %c0_i32_0 = arith.constant 0 : i32
    %c0_i32_1 = arith.constant 0 : i32
    %c0_i32_2 = arith.constant 0 : i32
    return %c0_i32, %c0_i32_0, %c0_i32_1 : i32, i32, i32
  }
  func.func @transform_2(%arg0: i32) -> (i32, i32) {
    %c0_i32 = arith.constant 0 : i32
    %c0_i32_0 = arith.constant 0 : i32
    %c0_i32_1 = arith.constant 0 : i32
    return %c0_i32, %c0_i32_0 : i32, i32
  }
  func.func @transform_3(%arg0: i32) -> (i32, i32, i32, i32) {
    %c0_i32 = arith.constant 0 : i32
    %c0_i32_0 = arith.constant 0 : i32
    %c0_i32_1 = arith.constant 0 : i32
    %c0_i32_2 = arith.constant 0 : i32
    return %arg0, %c0_i32, %c0_i32_0, %c0_i32_1 : i32, i32, i32, i32
  }
}

module attributes {stable_mosaic.version = 11 : i64} {
  func.func @_conv_relu_pool_kernel(%arg0: i32, %arg1: memref<1x13x13x16xf32, #tpu.memory_space<vmem>>, %arg2: memref<9x16x32xf32, #tpu.memory_space<vmem>>, %arg3: memref<1x32xf32, #tpu.memory_space<vmem>>, %arg4: memref<1x5x5x32xf32, #tpu.memory_space<vmem>>) attributes {dimension_semantics = [#tpu.dimension_semantics<parallel>], iteration_bounds = array<i64: 2>, scalar_prefetch = 0 : i64, scratch_operands = 0 : i64, tpu.core_type = #tpu.core_type<tc>, window_params = [{transform_indices = @transform_0, window_bounds = array<i64: 1, 13, 13, 16>}, {pipeline_mode = #tpu.pipeline_mode<synchronous>, transform_indices = @transform_1, window_bounds = array<i64: 9, 16, 32>}, {pipeline_mode = #tpu.pipeline_mode<synchronous>, transform_indices = @transform_2, window_bounds = array<i64: 1, 32>}, {transform_indices = @transform_3, window_bounds = array<i64: 1, 5, 5, 32>}]} {
    %0 = tpu.iota {dimensions = array<i32: 0>} : vector<5x11xi32>
    %1 = tpu.iota {dimensions = array<i32: 1>} : vector<5x11xi32>
    %c2_i32 = arith.constant 2 : i32
    %2 = vector.broadcast %c2_i32 : i32 to vector<5x11xi32>
    %3 = arith.muli %2, %0 : vector<5x11xi32>
    %4 = arith.cmpi eq, %1, %3 : vector<5x11xi32>
    %5 = arith.extui %4 : vector<5x11xi1> to vector<5x11xi32>
    %6 = arith.sitofp %5 : vector<5x11xi32> to vector<5x11xf32>
    %c2_i32_0 = arith.constant 2 : i32
    %7 = vector.broadcast %c2_i32_0 : i32 to vector<5x11xi32>
    %8 = arith.muli %7, %0 : vector<5x11xi32>
    %c1_i32 = arith.constant 1 : i32
    %9 = vector.broadcast %c1_i32 : i32 to vector<5x11xi32>
    %10 = arith.addi %8, %9 : vector<5x11xi32>
    %11 = arith.cmpi eq, %1, %10 : vector<5x11xi32>
    %12 = arith.extui %11 : vector<5x11xi1> to vector<5x11xi32>
    %13 = arith.sitofp %12 : vector<5x11xi32> to vector<5x11xf32>
    %c0 = arith.constant 0 : index
    %c0_1 = arith.constant 0 : index
    %14 = vector.load %arg3[%c0, %c0_1] : memref<1x32xf32, #tpu.memory_space<vmem>>, vector<1x32xf32>
    %c0_i32 = arith.constant 0 : i32
    %c5_i32 = arith.constant 5 : i32
    %15 = arith.addi %c0_i32, %c5_i32 : i32
    %c1_i32_2 = arith.constant 1 : i32
    scf.for %arg5 = %c0_i32 to %15 step %c1_i32_2  : i32 {
      %c1_i32_4 = arith.constant 1 : i32
      %16 = arith.muli %arg5, %c1_i32_4 : i32
      %c0_i32_5 = arith.constant 0 : i32
      %17 = arith.addi %c0_i32_5, %16 : i32
      %cst = arith.constant 0.000000e+00 : f32
      %18 = vector.broadcast %cst : f32 to vector<11x32xf32>
      %c2_i32_6 = arith.constant 2 : i32
      %19 = arith.muli %c2_i32_6, %17 : i32
      %c0_i32_7 = arith.constant 0 : i32
      %20 = arith.addi %19, %c0_i32_7 : i32
      %c0_i32_8 = arith.constant 0 : i32
      %21 = arith.addi %20, %c0_i32_8 : i32
      %c0_9 = arith.constant 0 : index
      %22 = arith.index_cast %21 : i32 to index
      %c0_10 = arith.constant 0 : index
      %c0_11 = arith.constant 0 : index
      %23 = vector.load %arg1[%c0_9, %22, %c0_10, %c0_11] : memref<1x13x13x16xf32, #tpu.memory_space<vmem>>, vector<1x1x11x16xf32>
      %24 = vector.shape_cast %23 : vector<1x1x11x16xf32> to vector<11x16xf32>
      %c0_12 = arith.constant 0 : index
      %c0_13 = arith.constant 0 : index
      %c0_14 = arith.constant 0 : index
      %25 = vector.load %arg2[%c0_12, %c0_13, %c0_14] : memref<9x16x32xf32, #tpu.memory_space<vmem>>, vector<1x16x32xf32>
      %26 = vector.shape_cast %25 : vector<1x16x32xf32> to vector<16x32xf32>
      %cst_15 = arith.constant dense<0.000000e+00> : vector<11x32xf32>
      %27 = tpu.matmul %24, %26, %cst_15 {dimension_numbers = #tpu.dot_dimension_numbers<[1], [0], [0], [1], [0, 0, 1, 1], [], []>, precision = #tpu.contract_precision<fp32>} : vector<11x16xf32>, vector<16x32xf32>, vector<11x32xf32> -> vector<11x32xf32>
      %28 = arith.addf %18, %27 : vector<11x32xf32>
      %c0_16 = arith.constant 0 : index
      %29 = arith.index_cast %21 : i32 to index
      %c1 = arith.constant 1 : index
      %c0_17 = arith.constant 0 : index
      %30 = vector.load %arg1[%c0_16, %29, %c1, %c0_17] : memref<1x13x13x16xf32, #tpu.memory_space<vmem>>, vector<1x1x11x16xf32>
      %31 = vector.shape_cast %30 : vector<1x1x11x16xf32> to vector<11x16xf32>
      %c1_18 = arith.constant 1 : index
      %c0_19 = arith.constant 0 : index
      %c0_20 = arith.constant 0 : index
      %32 = vector.load %arg2[%c1_18, %c0_19, %c0_20] : memref<9x16x32xf32, #tpu.memory_space<vmem>>, vector<1x16x32xf32>
      %33 = vector.shape_cast %32 : vector<1x16x32xf32> to vector<16x32xf32>
      %cst_21 = arith.constant dense<0.000000e+00> : vector<11x32xf32>
      %34 = tpu.matmul %31, %33, %cst_21 {dimension_numbers = #tpu.dot_dimension_numbers<[1], [0], [0], [1], [0, 0, 1, 1], [], []>, precision = #tpu.contract_precision<fp32>} : vector<11x16xf32>, vector<16x32xf32>, vector<11x32xf32> -> vector<11x32xf32>
      %35 = arith.addf %28, %34 : vector<11x32xf32>
      %c0_22 = arith.constant 0 : index
      %36 = arith.index_cast %21 : i32 to index
      %c2 = arith.constant 2 : index
      %c0_23 = arith.constant 0 : index
      %37 = vector.load %arg1[%c0_22, %36, %c2, %c0_23] : memref<1x13x13x16xf32, #tpu.memory_space<vmem>>, vector<1x1x11x16xf32>
      %38 = vector.shape_cast %37 : vector<1x1x11x16xf32> to vector<11x16xf32>
      %c2_24 = arith.constant 2 : index
      %c0_25 = arith.constant 0 : index
      %c0_26 = arith.constant 0 : index
      %39 = vector.load %arg2[%c2_24, %c0_25, %c0_26] : memref<9x16x32xf32, #tpu.memory_space<vmem>>, vector<1x16x32xf32>
      %40 = vector.shape_cast %39 : vector<1x16x32xf32> to vector<16x32xf32>
      %cst_27 = arith.constant dense<0.000000e+00> : vector<11x32xf32>
      %41 = tpu.matmul %38, %40, %cst_27 {dimension_numbers = #tpu.dot_dimension_numbers<[1], [0], [0], [1], [0, 0, 1, 1], [], []>, precision = #tpu.contract_precision<fp32>} : vector<11x16xf32>, vector<16x32xf32>, vector<11x32xf32> -> vector<11x32xf32>
      %42 = arith.addf %35, %41 : vector<11x32xf32>
      %c2_i32_28 = arith.constant 2 : i32
      %43 = arith.muli %c2_i32_28, %17 : i32
      %c0_i32_29 = arith.constant 0 : i32
      %44 = arith.addi %43, %c0_i32_29 : i32
      %c1_i32_30 = arith.constant 1 : i32
      %45 = arith.addi %44, %c1_i32_30 : i32
      %c0_31 = arith.constant 0 : index
      %46 = arith.index_cast %45 : i32 to index
      %c0_32 = arith.constant 0 : index
      %c0_33 = arith.constant 0 : index
      %47 = vector.load %arg1[%c0_31, %46, %c0_32, %c0_33] : memref<1x13x13x16xf32, #tpu.memory_space<vmem>>, vector<1x1x11x16xf32>
      %48 = vector.shape_cast %47 : vector<1x1x11x16xf32> to vector<11x16xf32>
      %c3 = arith.constant 3 : index
      %c0_34 = arith.constant 0 : index
      %c0_35 = arith.constant 0 : index
      %49 = vector.load %arg2[%c3, %c0_34, %c0_35] : memref<9x16x32xf32, #tpu.memory_space<vmem>>, vector<1x16x32xf32>
      %50 = vector.shape_cast %49 : vector<1x16x32xf32> to vector<16x32xf32>
      %cst_36 = arith.constant dense<0.000000e+00> : vector<11x32xf32>
      %51 = tpu.matmul %48, %50, %cst_36 {dimension_numbers = #tpu.dot_dimension_numbers<[1], [0], [0], [1], [0, 0, 1, 1], [], []>, precision = #tpu.contract_precision<fp32>} : vector<11x16xf32>, vector<16x32xf32>, vector<11x32xf32> -> vector<11x32xf32>
      %52 = arith.addf %42, %51 : vector<11x32xf32>
      %c0_37 = arith.constant 0 : index
      %53 = arith.index_cast %45 : i32 to index
      %c1_38 = arith.constant 1 : index
      %c0_39 = arith.constant 0 : index
      %54 = vector.load %arg1[%c0_37, %53, %c1_38, %c0_39] : memref<1x13x13x16xf32, #tpu.memory_space<vmem>>, vector<1x1x11x16xf32>
      %55 = vector.shape_cast %54 : vector<1x1x11x16xf32> to vector<11x16xf32>
      %c4 = arith.constant 4 : index
      %c0_40 = arith.constant 0 : index
      %c0_41 = arith.constant 0 : index
      %56 = vector.load %arg2[%c4, %c0_40, %c0_41] : memref<9x16x32xf32, #tpu.memory_space<vmem>>, vector<1x16x32xf32>
      %57 = vector.shape_cast %56 : vector<1x16x32xf32> to vector<16x32xf32>
      %cst_42 = arith.constant dense<0.000000e+00> : vector<11x32xf32>
      %58 = tpu.matmul %55, %57, %cst_42 {dimension_numbers = #tpu.dot_dimension_numbers<[1], [0], [0], [1], [0, 0, 1, 1], [], []>, precision = #tpu.contract_precision<fp32>} : vector<11x16xf32>, vector<16x32xf32>, vector<11x32xf32> -> vector<11x32xf32>
      %59 = arith.addf %52, %58 : vector<11x32xf32>
      %c0_43 = arith.constant 0 : index
      %60 = arith.index_cast %45 : i32 to index
      %c2_44 = arith.constant 2 : index
      %c0_45 = arith.constant 0 : index
      %61 = vector.load %arg1[%c0_43, %60, %c2_44, %c0_45] : memref<1x13x13x16xf32, #tpu.memory_space<vmem>>, vector<1x1x11x16xf32>
      %62 = vector.shape_cast %61 : vector<1x1x11x16xf32> to vector<11x16xf32>
      %c5 = arith.constant 5 : index
      %c0_46 = arith.constant 0 : index
      %c0_47 = arith.constant 0 : index
      %63 = vector.load %arg2[%c5, %c0_46, %c0_47] : memref<9x16x32xf32, #tpu.memory_space<vmem>>, vector<1x16x32xf32>
      %64 = vector.shape_cast %63 : vector<1x16x32xf32> to vector<16x32xf32>
      %cst_48 = arith.constant dense<0.000000e+00> : vector<11x32xf32>
      %65 = tpu.matmul %62, %64, %cst_48 {dimension_numbers = #tpu.dot_dimension_numbers<[1], [0], [0], [1], [0, 0, 1, 1], [], []>, precision = #tpu.contract_precision<fp32>} : vector<11x16xf32>, vector<16x32xf32>, vector<11x32xf32> -> vector<11x32xf32>
      %66 = arith.addf %59, %65 : vector<11x32xf32>
      %c2_i32_49 = arith.constant 2 : i32
      %67 = arith.muli %c2_i32_49, %17 : i32
      %c0_i32_50 = arith.constant 0 : i32
      %68 = arith.addi %67, %c0_i32_50 : i32
      %c2_i32_51 = arith.constant 2 : i32
      %69 = arith.addi %68, %c2_i32_51 : i32
      %c0_52 = arith.constant 0 : index
      %70 = arith.index_cast %69 : i32 to index
      %c0_53 = arith.constant 0 : index
      %c0_54 = arith.constant 0 : index
      %71 = vector.load %arg1[%c0_52, %70, %c0_53, %c0_54] : memref<1x13x13x16xf32, #tpu.memory_space<vmem>>, vector<1x1x11x16xf32>
      %72 = vector.shape_cast %71 : vector<1x1x11x16xf32> to vector<11x16xf32>
      %c6 = arith.constant 6 : index
      %c0_55 = arith.constant 0 : index
      %c0_56 = arith.constant 0 : index
      %73 = vector.load %arg2[%c6, %c0_55, %c0_56] : memref<9x16x32xf32, #tpu.memory_space<vmem>>, vector<1x16x32xf32>
      %74 = vector.shape_cast %73 : vector<1x16x32xf32> to vector<16x32xf32>
      %cst_57 = arith.constant dense<0.000000e+00> : vector<11x32xf32>
      %75 = tpu.matmul %72, %74, %cst_57 {dimension_numbers = #tpu.dot_dimension_numbers<[1], [0], [0], [1], [0, 0, 1, 1], [], []>, precision = #tpu.contract_precision<fp32>} : vector<11x16xf32>, vector<16x32xf32>, vector<11x32xf32> -> vector<11x32xf32>
      %76 = arith.addf %66, %75 : vector<11x32xf32>
      %c0_58 = arith.constant 0 : index
      %77 = arith.index_cast %69 : i32 to index
      %c1_59 = arith.constant 1 : index
      %c0_60 = arith.constant 0 : index
      %78 = vector.load %arg1[%c0_58, %77, %c1_59, %c0_60] : memref<1x13x13x16xf32, #tpu.memory_space<vmem>>, vector<1x1x11x16xf32>
      %79 = vector.shape_cast %78 : vector<1x1x11x16xf32> to vector<11x16xf32>
      %c7 = arith.constant 7 : index
      %c0_61 = arith.constant 0 : index
      %c0_62 = arith.constant 0 : index
      %80 = vector.load %arg2[%c7, %c0_61, %c0_62] : memref<9x16x32xf32, #tpu.memory_space<vmem>>, vector<1x16x32xf32>
      %81 = vector.shape_cast %80 : vector<1x16x32xf32> to vector<16x32xf32>
      %cst_63 = arith.constant dense<0.000000e+00> : vector<11x32xf32>
      %82 = tpu.matmul %79, %81, %cst_63 {dimension_numbers = #tpu.dot_dimension_numbers<[1], [0], [0], [1], [0, 0, 1, 1], [], []>, precision = #tpu.contract_precision<fp32>} : vector<11x16xf32>, vector<16x32xf32>, vector<11x32xf32> -> vector<11x32xf32>
      %83 = arith.addf %76, %82 : vector<11x32xf32>
      %c0_64 = arith.constant 0 : index
      %84 = arith.index_cast %69 : i32 to index
      %c2_65 = arith.constant 2 : index
      %c0_66 = arith.constant 0 : index
      %85 = vector.load %arg1[%c0_64, %84, %c2_65, %c0_66] : memref<1x13x13x16xf32, #tpu.memory_space<vmem>>, vector<1x1x11x16xf32>
      %86 = vector.shape_cast %85 : vector<1x1x11x16xf32> to vector<11x16xf32>
      %c8 = arith.constant 8 : index
      %c0_67 = arith.constant 0 : index
      %c0_68 = arith.constant 0 : index
      %87 = vector.load %arg2[%c8, %c0_67, %c0_68] : memref<9x16x32xf32, #tpu.memory_space<vmem>>, vector<1x16x32xf32>
      %88 = vector.shape_cast %87 : vector<1x16x32xf32> to vector<16x32xf32>
      %cst_69 = arith.constant dense<0.000000e+00> : vector<11x32xf32>
      %89 = tpu.matmul %86, %88, %cst_69 {dimension_numbers = #tpu.dot_dimension_numbers<[1], [0], [0], [1], [0, 0, 1, 1], [], []>, precision = #tpu.contract_precision<fp32>} : vector<11x16xf32>, vector<16x32xf32>, vector<11x32xf32> -> vector<11x32xf32>
      %90 = arith.addf %83, %89 : vector<11x32xf32>
      %cst_70 = arith.constant 0.000000e+00 : f32
      %91 = vector.broadcast %cst_70 : f32 to vector<11x32xf32>
      %c2_i32_71 = arith.constant 2 : i32
      %92 = arith.muli %c2_i32_71, %17 : i32
      %c1_i32_72 = arith.constant 1 : i32
      %93 = arith.addi %92, %c1_i32_72 : i32
      %c0_i32_73 = arith.constant 0 : i32
      %94 = arith.addi %93, %c0_i32_73 : i32
      %c0_74 = arith.constant 0 : index
      %95 = arith.index_cast %94 : i32 to index
      %c0_75 = arith.constant 0 : index
      %c0_76 = arith.constant 0 : index
      %96 = vector.load %arg1[%c0_74, %95, %c0_75, %c0_76] : memref<1x13x13x16xf32, #tpu.memory_space<vmem>>, vector<1x1x11x16xf32>
      %97 = vector.shape_cast %96 : vector<1x1x11x16xf32> to vector<11x16xf32>
      %c0_77 = arith.constant 0 : index
      %c0_78 = arith.constant 0 : index
      %c0_79 = arith.constant 0 : index
      %98 = vector.load %arg2[%c0_77, %c0_78, %c0_79] : memref<9x16x32xf32, #tpu.memory_space<vmem>>, vector<1x16x32xf32>
      %99 = vector.shape_cast %98 : vector<1x16x32xf32> to vector<16x32xf32>
      %cst_80 = arith.constant dense<0.000000e+00> : vector<11x32xf32>
      %100 = tpu.matmul %97, %99, %cst_80 {dimension_numbers = #tpu.dot_dimension_numbers<[1], [0], [0], [1], [0, 0, 1, 1], [], []>, precision = #tpu.contract_precision<fp32>} : vector<11x16xf32>, vector<16x32xf32>, vector<11x32xf32> -> vector<11x32xf32>
      %101 = arith.addf %91, %100 : vector<11x32xf32>
      %c0_81 = arith.constant 0 : index
      %102 = arith.index_cast %94 : i32 to index
      %c1_82 = arith.constant 1 : index
      %c0_83 = arith.constant 0 : index
      %103 = vector.load %arg1[%c0_81, %102, %c1_82, %c0_83] : memref<1x13x13x16xf32, #tpu.memory_space<vmem>>, vector<1x1x11x16xf32>
      %104 = vector.shape_cast %103 : vector<1x1x11x16xf32> to vector<11x16xf32>
      %c1_84 = arith.constant 1 : index
      %c0_85 = arith.constant 0 : index
      %c0_86 = arith.constant 0 : index
      %105 = vector.load %arg2[%c1_84, %c0_85, %c0_86] : memref<9x16x32xf32, #tpu.memory_space<vmem>>, vector<1x16x32xf32>
      %106 = vector.shape_cast %105 : vector<1x16x32xf32> to vector<16x32xf32>
      %cst_87 = arith.constant dense<0.000000e+00> : vector<11x32xf32>
      %107 = tpu.matmul %104, %106, %cst_87 {dimension_numbers = #tpu.dot_dimension_numbers<[1], [0], [0], [1], [0, 0, 1, 1], [], []>, precision = #tpu.contract_precision<fp32>} : vector<11x16xf32>, vector<16x32xf32>, vector<11x32xf32> -> vector<11x32xf32>
      %108 = arith.addf %101, %107 : vector<11x32xf32>
      %c0_88 = arith.constant 0 : index
      %109 = arith.index_cast %94 : i32 to index
      %c2_89 = arith.constant 2 : index
      %c0_90 = arith.constant 0 : index
      %110 = vector.load %arg1[%c0_88, %109, %c2_89, %c0_90] : memref<1x13x13x16xf32, #tpu.memory_space<vmem>>, vector<1x1x11x16xf32>
      %111 = vector.shape_cast %110 : vector<1x1x11x16xf32> to vector<11x16xf32>
      %c2_91 = arith.constant 2 : index
      %c0_92 = arith.constant 0 : index
      %c0_93 = arith.constant 0 : index
      %112 = vector.load %arg2[%c2_91, %c0_92, %c0_93] : memref<9x16x32xf32, #tpu.memory_space<vmem>>, vector<1x16x32xf32>
      %113 = vector.shape_cast %112 : vector<1x16x32xf32> to vector<16x32xf32>
      %cst_94 = arith.constant dense<0.000000e+00> : vector<11x32xf32>
      %114 = tpu.matmul %111, %113, %cst_94 {dimension_numbers = #tpu.dot_dimension_numbers<[1], [0], [0], [1], [0, 0, 1, 1], [], []>, precision = #tpu.contract_precision<fp32>} : vector<11x16xf32>, vector<16x32xf32>, vector<11x32xf32> -> vector<11x32xf32>
      %115 = arith.addf %108, %114 : vector<11x32xf32>
      %c2_i32_95 = arith.constant 2 : i32
      %116 = arith.muli %c2_i32_95, %17 : i32
      %c1_i32_96 = arith.constant 1 : i32
      %117 = arith.addi %116, %c1_i32_96 : i32
      %c1_i32_97 = arith.constant 1 : i32
      %118 = arith.addi %117, %c1_i32_97 : i32
      %c0_98 = arith.constant 0 : index
      %119 = arith.index_cast %118 : i32 to index
      %c0_99 = arith.constant 0 : index
      %c0_100 = arith.constant 0 : index
      %120 = vector.load %arg1[%c0_98, %119, %c0_99, %c0_100] : memref<1x13x13x16xf32, #tpu.memory_space<vmem>>, vector<1x1x11x16xf32>
      %121 = vector.shape_cast %120 : vector<1x1x11x16xf32> to vector<11x16xf32>
      %c3_101 = arith.constant 3 : index
      %c0_102 = arith.constant 0 : index
      %c0_103 = arith.constant 0 : index
      %122 = vector.load %arg2[%c3_101, %c0_102, %c0_103] : memref<9x16x32xf32, #tpu.memory_space<vmem>>, vector<1x16x32xf32>
      %123 = vector.shape_cast %122 : vector<1x16x32xf32> to vector<16x32xf32>
      %cst_104 = arith.constant dense<0.000000e+00> : vector<11x32xf32>
      %124 = tpu.matmul %121, %123, %cst_104 {dimension_numbers = #tpu.dot_dimension_numbers<[1], [0], [0], [1], [0, 0, 1, 1], [], []>, precision = #tpu.contract_precision<fp32>} : vector<11x16xf32>, vector<16x32xf32>, vector<11x32xf32> -> vector<11x32xf32>
      %125 = arith.addf %115, %124 : vector<11x32xf32>
      %c0_105 = arith.constant 0 : index
      %126 = arith.index_cast %118 : i32 to index
      %c1_106 = arith.constant 1 : index
      %c0_107 = arith.constant 0 : index
      %127 = vector.load %arg1[%c0_105, %126, %c1_106, %c0_107] : memref<1x13x13x16xf32, #tpu.memory_space<vmem>>, vector<1x1x11x16xf32>
      %128 = vector.shape_cast %127 : vector<1x1x11x16xf32> to vector<11x16xf32>
      %c4_108 = arith.constant 4 : index
      %c0_109 = arith.constant 0 : index
      %c0_110 = arith.constant 0 : index
      %129 = vector.load %arg2[%c4_108, %c0_109, %c0_110] : memref<9x16x32xf32, #tpu.memory_space<vmem>>, vector<1x16x32xf32>
      %130 = vector.shape_cast %129 : vector<1x16x32xf32> to vector<16x32xf32>
      %cst_111 = arith.constant dense<0.000000e+00> : vector<11x32xf32>
      %131 = tpu.matmul %128, %130, %cst_111 {dimension_numbers = #tpu.dot_dimension_numbers<[1], [0], [0], [1], [0, 0, 1, 1], [], []>, precision = #tpu.contract_precision<fp32>} : vector<11x16xf32>, vector<16x32xf32>, vector<11x32xf32> -> vector<11x32xf32>
      %132 = arith.addf %125, %131 : vector<11x32xf32>
      %c0_112 = arith.constant 0 : index
      %133 = arith.index_cast %118 : i32 to index
      %c2_113 = arith.constant 2 : index
      %c0_114 = arith.constant 0 : index
      %134 = vector.load %arg1[%c0_112, %133, %c2_113, %c0_114] : memref<1x13x13x16xf32, #tpu.memory_space<vmem>>, vector<1x1x11x16xf32>
      %135 = vector.shape_cast %134 : vector<1x1x11x16xf32> to vector<11x16xf32>
      %c5_115 = arith.constant 5 : index
      %c0_116 = arith.constant 0 : index
      %c0_117 = arith.constant 0 : index
      %136 = vector.load %arg2[%c5_115, %c0_116, %c0_117] : memref<9x16x32xf32, #tpu.memory_space<vmem>>, vector<1x16x32xf32>
      %137 = vector.shape_cast %136 : vector<1x16x32xf32> to vector<16x32xf32>
      %cst_118 = arith.constant dense<0.000000e+00> : vector<11x32xf32>
      %138 = tpu.matmul %135, %137, %cst_118 {dimension_numbers = #tpu.dot_dimension_numbers<[1], [0], [0], [1], [0, 0, 1, 1], [], []>, precision = #tpu.contract_precision<fp32>} : vector<11x16xf32>, vector<16x32xf32>, vector<11x32xf32> -> vector<11x32xf32>
      %139 = arith.addf %132, %138 : vector<11x32xf32>
      %c2_i32_119 = arith.constant 2 : i32
      %140 = arith.muli %c2_i32_119, %17 : i32
      %c1_i32_120 = arith.constant 1 : i32
      %141 = arith.addi %140, %c1_i32_120 : i32
      %c2_i32_121 = arith.constant 2 : i32
      %142 = arith.addi %141, %c2_i32_121 : i32
      %c0_122 = arith.constant 0 : index
      %143 = arith.index_cast %142 : i32 to index
      %c0_123 = arith.constant 0 : index
      %c0_124 = arith.constant 0 : index
      %144 = vector.load %arg1[%c0_122, %143, %c0_123, %c0_124] : memref<1x13x13x16xf32, #tpu.memory_space<vmem>>, vector<1x1x11x16xf32>
      %145 = vector.shape_cast %144 : vector<1x1x11x16xf32> to vector<11x16xf32>
      %c6_125 = arith.constant 6 : index
      %c0_126 = arith.constant 0 : index
      %c0_127 = arith.constant 0 : index
      %146 = vector.load %arg2[%c6_125, %c0_126, %c0_127] : memref<9x16x32xf32, #tpu.memory_space<vmem>>, vector<1x16x32xf32>
      %147 = vector.shape_cast %146 : vector<1x16x32xf32> to vector<16x32xf32>
      %cst_128 = arith.constant dense<0.000000e+00> : vector<11x32xf32>
      %148 = tpu.matmul %145, %147, %cst_128 {dimension_numbers = #tpu.dot_dimension_numbers<[1], [0], [0], [1], [0, 0, 1, 1], [], []>, precision = #tpu.contract_precision<fp32>} : vector<11x16xf32>, vector<16x32xf32>, vector<11x32xf32> -> vector<11x32xf32>
      %149 = arith.addf %139, %148 : vector<11x32xf32>
      %c0_129 = arith.constant 0 : index
      %150 = arith.index_cast %142 : i32 to index
      %c1_130 = arith.constant 1 : index
      %c0_131 = arith.constant 0 : index
      %151 = vector.load %arg1[%c0_129, %150, %c1_130, %c0_131] : memref<1x13x13x16xf32, #tpu.memory_space<vmem>>, vector<1x1x11x16xf32>
      %152 = vector.shape_cast %151 : vector<1x1x11x16xf32> to vector<11x16xf32>
      %c7_132 = arith.constant 7 : index
      %c0_133 = arith.constant 0 : index
      %c0_134 = arith.constant 0 : index
      %153 = vector.load %arg2[%c7_132, %c0_133, %c0_134] : memref<9x16x32xf32, #tpu.memory_space<vmem>>, vector<1x16x32xf32>
      %154 = vector.shape_cast %153 : vector<1x16x32xf32> to vector<16x32xf32>
      %cst_135 = arith.constant dense<0.000000e+00> : vector<11x32xf32>
      %155 = tpu.matmul %152, %154, %cst_135 {dimension_numbers = #tpu.dot_dimension_numbers<[1], [0], [0], [1], [0, 0, 1, 1], [], []>, precision = #tpu.contract_precision<fp32>} : vector<11x16xf32>, vector<16x32xf32>, vector<11x32xf32> -> vector<11x32xf32>
      %156 = arith.addf %149, %155 : vector<11x32xf32>
      %c0_136 = arith.constant 0 : index
      %157 = arith.index_cast %142 : i32 to index
      %c2_137 = arith.constant 2 : index
      %c0_138 = arith.constant 0 : index
      %158 = vector.load %arg1[%c0_136, %157, %c2_137, %c0_138] : memref<1x13x13x16xf32, #tpu.memory_space<vmem>>, vector<1x1x11x16xf32>
      %159 = vector.shape_cast %158 : vector<1x1x11x16xf32> to vector<11x16xf32>
      %c8_139 = arith.constant 8 : index
      %c0_140 = arith.constant 0 : index
      %c0_141 = arith.constant 0 : index
      %160 = vector.load %arg2[%c8_139, %c0_140, %c0_141] : memref<9x16x32xf32, #tpu.memory_space<vmem>>, vector<1x16x32xf32>
      %161 = vector.shape_cast %160 : vector<1x16x32xf32> to vector<16x32xf32>
      %cst_142 = arith.constant dense<0.000000e+00> : vector<11x32xf32>
      %162 = tpu.matmul %159, %161, %cst_142 {dimension_numbers = #tpu.dot_dimension_numbers<[1], [0], [0], [1], [0, 0, 1, 1], [], []>, precision = #tpu.contract_precision<fp32>} : vector<11x16xf32>, vector<16x32xf32>, vector<11x32xf32> -> vector<11x32xf32>
      %163 = arith.addf %156, %162 : vector<11x32xf32>
      %164 = arith.maximumf %90, %163 : vector<11x32xf32>
      %cst_143 = arith.constant dense<0.000000e+00> : vector<5x32xf32>
      %165 = tpu.matmul %6, %164, %cst_143 {dimension_numbers = #tpu.dot_dimension_numbers<[1], [0], [0], [1], [0, 0, 1, 1], [], []>, precision = #tpu.contract_precision<fp32>} : vector<5x11xf32>, vector<11x32xf32>, vector<5x32xf32> -> vector<5x32xf32>
      %cst_144 = arith.constant dense<0.000000e+00> : vector<5x32xf32>
      %166 = tpu.matmul %13, %164, %cst_144 {dimension_numbers = #tpu.dot_dimension_numbers<[1], [0], [0], [1], [0, 0, 1, 1], [], []>, precision = #tpu.contract_precision<fp32>} : vector<5x11xf32>, vector<11x32xf32>, vector<5x32xf32> -> vector<5x32xf32>
      %167 = arith.maximumf %165, %166 : vector<5x32xf32>
      %168 = vector.broadcast %14 : vector<1x32xf32> to vector<5x32xf32>
      %169 = arith.addf %167, %168 : vector<5x32xf32>
      %cst_145 = arith.constant 0.000000e+00 : f32
      %170 = vector.broadcast %cst_145 : f32 to vector<5x32xf32>
      %171 = arith.maximumf %169, %170 : vector<5x32xf32>
      %c0_146 = arith.constant 0 : index
      %172 = arith.index_cast %17 : i32 to index
      %c0_147 = arith.constant 0 : index
      %c0_148 = arith.constant 0 : index
      %173 = vector.load %arg4[%c0_146, %172, %c0_147, %c0_148] : memref<1x5x5x32xf32, #tpu.memory_space<vmem>>, vector<1x1x5x32xf32>
      %174 = vector.shape_cast %173 : vector<1x1x5x32xf32> to vector<5x32xf32>
      %175 = vector.shape_cast %171 : vector<5x32xf32> to vector<1x1x5x32xf32>
      tpu.vector_store %arg4[%c0_146, %172, %c0_147, %c0_148], %175 {strides = array<i32>} : memref<1x5x5x32xf32, #tpu.memory_space<vmem>>, vector<1x1x5x32xf32>,
    }
    %c5_i32_3 = arith.constant 5 : i32
    return
  }
  func.func @transform_0(%arg0: i32) -> (i32, i32, i32, i32) {
    %c0_i32 = arith.constant 0 : i32
    %c0_i32_0 = arith.constant 0 : i32
    %c0_i32_1 = arith.constant 0 : i32
    %c0_i32_2 = arith.constant 0 : i32
    return %arg0, %c0_i32, %c0_i32_0, %c0_i32_1 : i32, i32, i32, i32
  }
  func.func @transform_1(%arg0: i32) -> (i32, i32, i32) {
    %c0_i32 = arith.constant 0 : i32
    %c0_i32_0 = arith.constant 0 : i32
    %c0_i32_1 = arith.constant 0 : i32
    %c0_i32_2 = arith.constant 0 : i32
    return %c0_i32, %c0_i32_0, %c0_i32_1 : i32, i32, i32
  }
  func.func @transform_2(%arg0: i32) -> (i32, i32) {
    %c0_i32 = arith.constant 0 : i32
    %c0_i32_0 = arith.constant 0 : i32
    %c0_i32_1 = arith.constant 0 : i32
    return %c0_i32, %c0_i32_0 : i32, i32
  }
  func.func @transform_3(%arg0: i32) -> (i32, i32, i32, i32) {
    %c0_i32 = arith.constant 0 : i32
    %c0_i32_0 = arith.constant 0 : i32
    %c0_i32_1 = arith.constant 0 : i32
    %c0_i32_2 = arith.constant 0 : i32
    return %arg0, %c0_i32, %c0_i32_0, %c0_i32_1 : i32, i32, i32, i32
  }
}

module attributes {stable_mosaic.version = 11 : i64} {
  func.func @_mlp_head_kernel(%arg0: i32, %arg1: memref<2x800xf32, #tpu.memory_space<vmem>>, %arg2: memref<800x120xf32, #tpu.memory_space<vmem>>, %arg3: memref<1x120xf32, #tpu.memory_space<vmem>>, %arg4: memref<120x10xf32, #tpu.memory_space<vmem>>, %arg5: memref<1x10xf32, #tpu.memory_space<vmem>>, %arg6: memref<2x10xf32, #tpu.memory_space<vmem>>) attributes {dimension_semantics = [#tpu.dimension_semantics<parallel>], iteration_bounds = array<i64: 1>, scalar_prefetch = 0 : i64, scratch_operands = 0 : i64, tpu.core_type = #tpu.core_type<tc>, window_params = [{transform_indices = @transform_0, window_bounds = array<i64: 2, 800>}, {pipeline_mode = #tpu.pipeline_mode<synchronous>, transform_indices = @transform_1, window_bounds = array<i64: 800, 120>}, {pipeline_mode = #tpu.pipeline_mode<synchronous>, transform_indices = @transform_2, window_bounds = array<i64: 1, 120>}, {pipeline_mode = #tpu.pipeline_mode<synchronous>, transform_indices = @transform_3, window_bounds = array<i64: 120, 10>}, {pipeline_mode = #tpu.pipeline_mode<synchronous>, transform_indices = @transform_4, window_bounds = array<i64: 1, 10>}, {transform_indices = @transform_5, window_bounds = array<i64: 2, 10>}]} {
    %c0 = arith.constant 0 : index
    %c0_0 = arith.constant 0 : index
    %0 = vector.load %arg1[%c0, %c0_0] : memref<2x800xf32, #tpu.memory_space<vmem>>, vector<2x800xf32>
    %c0_1 = arith.constant 0 : index
    %c0_2 = arith.constant 0 : index
    %1 = vector.load %arg2[%c0_1, %c0_2] : memref<800x120xf32, #tpu.memory_space<vmem>>, vector<800x120xf32>
    %cst = arith.constant dense<0.000000e+00> : vector<2x120xf32>
    %2 = tpu.matmul %0, %1, %cst {dimension_numbers = #tpu.dot_dimension_numbers<[1], [0], [0], [1], [0, 0, 1, 1], [], []>, precision = #tpu.contract_precision<fp32>} : vector<2x800xf32>, vector<800x120xf32>, vector<2x120xf32> -> vector<2x120xf32>
    %c0_3 = arith.constant 0 : index
    %c0_4 = arith.constant 0 : index
    %3 = vector.load %arg3[%c0_3, %c0_4] : memref<1x120xf32, #tpu.memory_space<vmem>>, vector<1x120xf32>
    %4 = vector.broadcast %3 : vector<1x120xf32> to vector<2x120xf32>
    %5 = arith.addf %2, %4 : vector<2x120xf32>
    %cst_5 = arith.constant 0.000000e+00 : f32
    %6 = vector.broadcast %cst_5 : f32 to vector<2x120xf32>
    %7 = arith.maximumf %5, %6 : vector<2x120xf32>
    %c0_6 = arith.constant 0 : index
    %c0_7 = arith.constant 0 : index
    %8 = vector.load %arg4[%c0_6, %c0_7] : memref<120x10xf32, #tpu.memory_space<vmem>>, vector<120x10xf32>
    %cst_8 = arith.constant dense<0.000000e+00> : vector<2x10xf32>
    %9 = tpu.matmul %7, %8, %cst_8 {dimension_numbers = #tpu.dot_dimension_numbers<[1], [0], [0], [1], [0, 0, 1, 1], [], []>, precision = #tpu.contract_precision<fp32>} : vector<2x120xf32>, vector<120x10xf32>, vector<2x10xf32> -> vector<2x10xf32>
    %c0_9 = arith.constant 0 : index
    %c0_10 = arith.constant 0 : index
    %10 = vector.load %arg5[%c0_9, %c0_10] : memref<1x10xf32, #tpu.memory_space<vmem>>, vector<1x10xf32>
    %11 = vector.broadcast %10 : vector<1x10xf32> to vector<2x10xf32>
    %12 = arith.addf %9, %11 : vector<2x10xf32>
    %c0_11 = arith.constant 0 : index
    %c0_12 = arith.constant 0 : index
    %13 = vector.load %arg6[%c0_11, %c0_12] : memref<2x10xf32, #tpu.memory_space<vmem>>, vector<2x10xf32>
    tpu.vector_store %arg6[%c0_11, %c0_12], %12 {strides = array<i32>} : memref<2x10xf32, #tpu.memory_space<vmem>>, vector<2x10xf32>,
    return
  }
  func.func @transform_0(%arg0: i32) -> (i32, i32) {
    %c0_i32 = arith.constant 0 : i32
    %c0_i32_0 = arith.constant 0 : i32
    return %arg0, %c0_i32 : i32, i32
  }
  func.func @transform_1(%arg0: i32) -> (i32, i32) {
    %c0_i32 = arith.constant 0 : i32
    %c0_i32_0 = arith.constant 0 : i32
    %c0_i32_1 = arith.constant 0 : i32
    return %c0_i32, %c0_i32_0 : i32, i32
  }
  func.func @transform_2(%arg0: i32) -> (i32, i32) {
    %c0_i32 = arith.constant 0 : i32
    %c0_i32_0 = arith.constant 0 : i32
    %c0_i32_1 = arith.constant 0 : i32
    return %c0_i32, %c0_i32_0 : i32, i32
  }
  func.func @transform_3(%arg0: i32) -> (i32, i32) {
    %c0_i32 = arith.constant 0 : i32
    %c0_i32_0 = arith.constant 0 : i32
    %c0_i32_1 = arith.constant 0 : i32
    return %c0_i32, %c0_i32_0 : i32, i32
  }
  func.func @transform_4(%arg0: i32) -> (i32, i32) {
    %c0_i32 = arith.constant 0 : i32
    %c0_i32_0 = arith.constant 0 : i32
    %c0_i32_1 = arith.constant 0 : i32
    return %c0_i32, %c0_i32_0 : i32, i32
  }
  func.func @transform_5(%arg0: i32) -> (i32, i32) {
    %c0_i32 = arith.constant 0 : i32
    %c0_i32_0 = arith.constant 0 : i32
    return %arg0, %c0_i32 : i32, i32
  }
}

</mosaic_0001>

<llo_original>
// kernel: simple_cnn_forward.3
$region0: #{simple_cnn_forward.3}
  #allocation0 [shape = 'u32[]', space=smem, size = 0x4, offset = 0x4, fixed_abs, tag = 'smem constant byte address 0x4 - core index']
  #allocation1 [shape = 'u32[72,128]{1,0:T(1,128)}', space=vmem, size = 0x9000, scoped, tag = 'internal scratch']
  %s0 = inlined_call_operand.vmem [shape: f32[2,28,28,1], index: 0, kind: input, shape index: {}]
  %s1 = inlined_call_operand.vmem [shape: f32[9,1,16], index: 1, kind: input, shape index: {}]
  %s2 = inlined_call_operand.vmem [shape: f32[1,16], index: 2, kind: input, shape index: {}]
  %s3 = inlined_call_operand.vmem [shape: f32[2,13,13,16], index: 3, kind: output, shape index: {}]
  %s4 = sld [smem:[#allocation0]]
  $region52: #{simple_cnn_forward.3} parent=0
    _
  %s6 = ssub.s32 1, %s4
  %s7 = scalar_select 0, %s6, %s4
  loop: start=0, step=1, limit=4
  $region2: #{simple_cnn_forward.3} parent=0 // loop_pre_header
    _
  $region3: #{simple_cnn_forward.3} parent=0 // loop_header
    %s9 = sphi 0, %s13
    %p10 = scmp.ge.s32.totalorder %s9, 4
    %s19 = sphi 0, %s21
    %s22 = sphi 0, %s19
    %s23 = sphi 0, %s22
    %s39 = sphi 0, %s23
    %s43 = sphi 0, %s43
    %s45 = sphi 0, %s43
    %s46 = sphi 0, %s45
    %s60 = sphi 0, %s46
    %s64 = sphi 0, %s64
    %s66 = sphi 0, %s64
    %s67 = sphi 0, %s66
    %s81 = sphi 0, %s67
    %s87 = sphi 0, %s89
    %s90 = sphi 0, %s87
    %s91 = sphi 0, %s90
    %s107 = sphi 0, %s91
  $region4: #{simple_cnn_forward.3} parent=0 // loop_header_branch
    %12 = sbr.rel (%p10) target = $region8
  $region5: #{simple_cnn_forward.3} parent=0 // loop_body
    %s14 = ssub.s32 %s9, 1
    %s15 = ssub.s32 %s9, 2
    %s16 = sadd.s32 %s9, 1
    %s17 = ssub.s32 %s9, %s16
    %p18 = scmp.eq.s32.totalorder %s17, 0
    %s20 = sadd.s32 %s19, 1
    %s21 = scalar_select %p18, %s19, %s20
    %p24 = pneg %p18
    %p25 = scmp.eq.s32.totalorder %s9, 1
    %p26 = por %p24, %p25
    %p27 = scmp.ne.s32.totalorder %s19, %s22
    %p28 = scmp.eq.s32.totalorder %s9, 0
    %p29 = por %p27, %p28
    %p30 = scmp.ne.s32.totalorder %s19, %s22
    %p31 = scmp.eq.s32.totalorder %s14, 1
    %p32 = por %p30, %p31
    %p33 = scmp.ne.s32.totalorder %s22, %s23
    %p34 = scmp.eq.s32.totalorder %s14, 0
    %p35 = por %p33, %p34
    %p36 = scmp.ne.s32.totalorder %s22, %s23
    %p37 = scmp.eq.s32.totalorder %s15, 1
    %p38 = por %p36, %p37
    %p40 = scmp.ne.s32.totalorder %s23, %s39
    %p41 = scmp.eq.s32.totalorder %s15, 0
    %p42 = por %p40, %p41
    %s44 = sadd.s32 %s43, 1
    %p47 = scmp.eq.s32.totalorder %s9, 1
    %p48 = scmp.ne.s32.totalorder %s43, %s45
    %p49 = scmp.eq.s32.totalorder %s9, 0
    %p50 = por %p48, %p49
    %p51 = scmp.ne.s32.totalorder %s43, %s45
    %p52 = scmp.eq.s32.totalorder %s14, 1
    %p53 = por %p51, %p52
    %p54 = scmp.ne.s32.totalorder %s45, %s46
    %p55 = scmp.eq.s32.totalorder %s14, 0
    %p56 = por %p54, %p55
    %p57 = scmp.ne.s32.totalorder %s45, %s46
    %p58 = scmp.eq.s32.totalorder %s15, 1
    %p59 = por %p57, %p58
    %p61 = scmp.ne.s32.totalorder %s46, %s60
    %p62 = scmp.eq.s32.totalorder %s15, 0
    %p63 = por %p61, %p62
    %s65 = sadd.s32 %s64, 1
    %p68 = scmp.eq.s32.totalorder %s9, 1
    %p69 = scmp.ne.s32.totalorder %s64, %s66
    %p70 = scmp.eq.s32.totalorder %s9, 0
    %p71 = por %p69, %p70
    %p72 = scmp.ne.s32.totalorder %s64, %s66
    %p73 = scmp.eq.s32.totalorder %s14, 1
    %p74 = por %p72, %p73
    %p75 = scmp.ne.s32.totalorder %s66, %s67
    %p76 = scmp.eq.s32.totalorder %s14, 0
    %p77 = por %p75, %p76
    %p78 = scmp.ne.s32.totalorder %s66, %s67
    %p79 = scmp.eq.s32.totalorder %s15, 1
    %p80 = por %p78, %p79
    %p82 = scmp.ne.s32.totalorder %s67, %s81
    %p83 = scmp.eq.s32.totalorder %s15, 0
    %p84 = por %p82, %p83
    %s85 = ssub.s32 %s9, %s16
    %p86 = scmp.eq.s32.totalorder %s85, 0
    %s88 = sadd.s32 %s87, 1
    %s89 = scalar_select %p86, %s87, %s88
    %p92 = pneg %p86
    %p93 = scmp.eq.s32.totalorder %s9, 1
    %p94 = por %p92, %p93
    %p95 = scmp.ne.s32.totalorder %s87, %s90
    %p96 = scmp.eq.s32.totalorder %s9, 0
    %p97 = por %p95, %p96
    %p98 = scmp.ne.s32.totalorder %s87, %s90
    %p99 = scmp.eq.s32.totalorder %s14, 1
    %p100 = por %p98, %p99
    %p101 = scmp.ne.s32.totalorder %s90, %s91
    %p102 = scmp.eq.s32.totalorder %s14, 0
    %p103 = por %p101, %p102
    %p104 = scmp.ne.s32.totalorder %s90, %s91
    %p105 = scmp.eq.s32.totalorder %s15, 1
    %p106 = por %p104, %p105
    %p108 = scmp.ne.s32.totalorder %s91, %s107
    %p109 = scmp.eq.s32.totalorder %s15, 0
    %p110 = por %p108, %p109
    %p111 = scmp.le.s32.totalorder 1, %s9
    %p112 = scmp.lt.s32.totalorder %s9, 3
    %p113 = pnand %p111, %p112
    %p114 = pneg %p113
    // Predicated region
    $region9: #{simple_cnn_forward.3} parent=5 // pred_check
      _
    $region10: #{simple_cnn_forward.3} parent=5 // pred_check_branch
      %116 = sbr.rel (%p113) target = $region12
    $region11: #{simple_cnn_forward.3} parent=5 // pred_region
      %s117 = ssub.s32 %s9, 1
      // Predicated region
      $region13: #{simple_cnn_forward.3} parent=11 // pred_check
        %p118 = pneg %p56
      $region14: #{simple_cnn_forward.3} parent=11 // pred_check_branch
        %120 = sbr.rel (%p118) target = $region16
      $region15: #{simple_cnn_forward.3} parent=11 // pred_region
        _
      $region16: #{simple_cnn_forward.3} parent=11 // pred_fallthru
        _
      // Predicated region
      $region17: #{simple_cnn_forward.3} parent=11 // pred_check
        %p121 = pneg %p77
      $region18: #{simple_cnn_forward.3} parent=11 // pred_check_branch
        %123 = sbr.rel (%p121) target = $region20
      $region19: #{simple_cnn_forward.3} parent=11 // pred_region
        _
      $region20: #{simple_cnn_forward.3} parent=11 // pred_fallthru
        _
    $region12: #{simple_cnn_forward.3} parent=5 // pred_fallthru
      _
    %p124 = scmp.lt.s32.totalorder %s9, 2
    // Predicated region
    $region21: #{simple_cnn_forward.3} parent=5 // pred_check
      %p125 = pneg %p124
    $region22: #{simple_cnn_forward.3} parent=5 // pred_check_branch
      %127 = sbr.rel (%p125) target = $region24
    $region23: #{simple_cnn_forward.3} parent=5 // pred_region
      // Predicated region
      $region25: #{simple_cnn_forward.3} parent=23 // pred_check
        %p128 = pneg %p29
      $region26: #{simple_cnn_forward.3} parent=23 // pred_check_branch
        %130 = sbr.rel (%p128) target = $region28
      $region27: #{simple_cnn_forward.3} parent=23 // pred_region
        %p131 = scmp.lt.s32.totalorder %s9, 1
        %s132 = scalar_select %p131, %s9, 1
        %s133 = smul.addr %s132, 112
        %s134 = smul.addr %s133, 8
        %s135 = scalar_lea.vmem %s0, %s134
      $region28: #{simple_cnn_forward.3} parent=23 // pred_fallthru
        _
    $region24: #{simple_cnn_forward.3} parent=5 // pred_fallthru
      _
    %p136 = scmp.le.s32.totalorder 1, %s9
    %p137 = scmp.lt.s32.totalorder %s9, 3
    %p138 = pnand %p136, %p137
    %p139 = pneg %p138
    // Predicated region
    $region29: #{simple_cnn_forward.3} parent=5 // pred_check
      _
    $region30: #{simple_cnn_forward.3} parent=5 // pred_check_branch
      %141 = sbr.rel (%p138) target = $region32
    $region31: #{simple_cnn_forward.3} parent=5 // pred_region
      %s142 = ssub.s32 %s9, 1
      %p143 = scmp.lt.s32.totalorder %s14, 1
      %s144 = scalar_select %p143, %s14, 1
      %s145 = smul.addr %s144, 112
      %s146 = smul.addr %s145, 8
      %s147 = scalar_lea.vmem %s0, %s146
      %p148 = pneg %p35
      %p149 = pneg %p32
      %p150 = pneg %p56
      %p151 = pneg %p53
      %p152 = pneg %p77
      %p153 = pneg %p74
      %p154 = pneg %p103
      %p155 = pneg %p100
      %p156 = scmp.lt.s32.totalorder %s14, 1
      %s157 = scalar_select %p156, %s14, 1
      %s158 = smul.addr %s157, 26
      %s159 = smul.addr %s158, 8
      %s160 = scalar_lea.vmem %s3, %s159
      %p161 = scmp.lt.s32.totalorder %s14, 1
      %s162 = scalar_select %p161, %s14, 1
      %s163 = smul.addr %s162, 112
      %s164 = smul.addr %s163, 8
      %s165 = scalar_lea.vmem %s0, %s164
      %p166 = scmp.lt.s32.totalorder %s14, 1
      %s167 = scalar_select %p166, %s14, 1
      %s168 = smul.addr %s167, 26
      %s169 = smul.addr %s168, 8
      %s170 = scalar_lea.vmem %s3, %s169
      %v171 = vlaneseq
      %v172 = vshrl.u32 %v171, 7
      %v173 = vadd.s32 %v172, 8
      %v174 = vlaneseq
      %v175 = vand.u32 %v174, 127
      %v176 = vmul.u32 %v172, 2
      %v177 = vmul.u32 %v173, 2
      %vm178 = vcmp.eq.s32.totalorder %v175, %v176
      %vm179 = vcmp.eq.s32.totalorder %v175, %v177
      %v180 = vsel %vm178, 1, 0
      %v181 = vsel %vm179, 1, 0
      %v182 = vcvt.s32.f32 %v180
      %v183 = vcvt.s32.f32 %v181
      %v184 = vadd.s32 %v176, 1
      %v185 = vadd.s32 %v177, 1
      %vm186 = vcmp.eq.s32.totalorder %v175, %v184
      %vm187 = vcmp.eq.s32.totalorder %v175, %v185
      %v188 = vsel %vm186, 1, 0
      %v189 = vsel %vm187, 1, 0
      %v190 = vcvt.s32.f32 %v188
      %v191 = vcvt.s32.f32 %v189
      %v192 = vld [vmem:[%s2] sm:$0x1]
      loop: start=0, step=1, limit=13
      $region33: #{simple_cnn_forward.3} parent=31 // loop_pre_header
        _
      $region34: #{simple_cnn_forward.3} parent=31 // loop_header
        %s194 = sphi 0, %s198
        %p195 = scmp.ge.s32.totalorder %s194, 13
      $region35: #{simple_cnn_forward.3} parent=31 // loop_header_branch
        %197 = sbr.rel (%p195) target = $region39
      $region36: #{simple_cnn_forward.3} parent=31 // loop_body
        %s199 = smul.u32 %s194, 2
        %s200 = smul.u32 %s199, 32
        %s201 = scalar_lea.vmem %s165, %s200
        %v202 = vld [vmem:[%s201] sm:$0xff]
        %v203 = vld [vmem:[%s201 + $0x8] sm:$0xff]
        %v204 = vld [vmem:[%s201 + $0x10] sm:$0xff]
        %v205 = vld [vmem:[%s201 + $0x18] sm:$0x3]
        %v206 = vld [vmem:[%s1] sm:$0x1]
        %208 = vset.pattern.permute.xlu0 0
        %209 = vperm.xlu0 %208, %v202
        %v210 = vpop.permute.xlu0 %209
        %213 = vset.pattern.permute.xlu0 0
        %214 = vperm.xlu0 %213, %v203
        %v215 = vpop.permute.xlu0 %214
        %218 = vset.pattern.permute.xlu0 0
        %219 = vperm.xlu0 %218, %v204
        %v220 = vpop.permute.xlu0 %219
        %223 = vset.pattern.permute.xlu0 0
        %224 = vperm.xlu0 %223, %v205
        %v225 = vpop.permute.xlu0 %224
        %v228 = vperm.slane %v206, 0
        %v230 = vmul.f32 %v210, %v228
        %v231 = vmul.f32 %v215, %v228
        %v232 = vmul.f32 %v220, %v228
        %v233 = vmul.f32 %v225, %v228
        %v234 = vadd.f32 %v230, 0.0
        %v235 = vadd.f32 %v231, 0.0
        %v236 = vadd.f32 %v232, 0.0
        %v237 = vadd.f32 %v233, 0.0
        %v238 = vld [vmem:[%s201 + $0x1] sm:$0xff]
        %v239 = vld [vmem:[%s201 + $0x9] sm:$0xff]
        %v240 = vld [vmem:[%s201 + $0x11] sm:$0xff]
        %v241 = vld [vmem:[%s201 + $0x19] sm:$0x3]
        %s242 = scalar_lea.vmem %s1, 1
        %v243 = vld [vmem:[%s242] sm:$0x1]
        %245 = vset.pattern.permute.xlu0 0
        %246 = vperm.xlu0 %245, %v238
        %v247 = vpop.permute.xlu0 %246
        %250 = vset.pattern.permute.xlu0 0
        %251 = vperm.xlu0 %250, %v239
        %v252 = vpop.permute.xlu0 %251
        %255 = vset.pattern.permute.xlu0 0
        %256 = vperm.xlu0 %255, %v240
        %v257 = vpop.permute.xlu0 %256
        %260 = vset.pattern.permute.xlu0 0
        %261 = vperm.xlu0 %260, %v241
        %v262 = vpop.permute.xlu0 %261
        %v265 = vperm.slane %v243, 0
        %v267 = vmul.f32 %v247, %v265
        %v268 = vmul.f32 %v252, %v265
        %v269 = vmul.f32 %v257, %v265
        %v270 = vmul.f32 %v262, %v265
        %v271 = vadd.f32 %v234, %v267
        %v272 = vadd.f32 %v235, %v268
        %v273 = vadd.f32 %v236, %v269
        %v274 = vadd.f32 %v237, %v270
        %v275 = vld [vmem:[%s201 + $0x2] sm:$0xff]
        %v276 = vld [vmem:[%s201 + $0xa] sm:$0xff]
        %v277 = vld [vmem:[%s201 + $0x12] sm:$0xff]
        %v278 = vld [vmem:[%s201 + $0x1a] sm:$0x3]
        %s279 = scalar_lea.vmem %s1, 2
        %v280 = vld [vmem:[%s279] sm:$0x1]
        %282 = vset.pattern.permute.xlu0 0
        %283 = vperm.xlu0 %282, %v275
        %v284 = vpop.permute.xlu0 %283
        %287 = vset.pattern.permute.xlu0 0
        %288 = vperm.xlu0 %287, %v276
        %v289 = vpop.permute.xlu0 %288
        %292 = vset.pattern.permute.xlu0 0
        %293 = vperm.xlu0 %292, %v277
        %v294 = vpop.permute.xlu0 %293
        %297 = vset.pattern.permute.xlu0 0
        %298 = vperm.xlu0 %297, %v278
        %v299 = vpop.permute.xlu0 %298
        %v302 = vperm.slane %v280, 0
        %v304 = vmul.f32 %v284, %v302
        %v305 = vmul.f32 %v289, %v302
        %v306 = vmul.f32 %v294, %v302
        %v307 = vmul.f32 %v299, %v302
        %v308 = vadd.f32 %v271, %v304
        %v309 = vadd.f32 %v272, %v305
        %v310 = vadd.f32 %v273, %v306
        %v311 = vadd.f32 %v274, %v307
        %s312 = sadd.s32 %s199, 1
        %s313 = smul.u32 %s312, 32
        %s314 = scalar_lea.vmem %s165, %s313
        %v315 = vld [vmem:[%s314] sm:$0xff]
        %v316 = vld [vmem:[%s314 + $0x8] sm:$0xff]
        %v317 = vld [vmem:[%s314 + $0x10] sm:$0xff]
        %v318 = vld [vmem:[%s314 + $0x18] sm:$0x3]
        %s319 = scalar_lea.vmem %s1, 3
        %v320 = vld [vmem:[%s319] sm:$0x1]
        %322 = vset.pattern.permute.xlu0 0
        %323 = vperm.xlu0 %322, %v315
        %v324 = vpop.permute.xlu0 %323
        %327 = vset.pattern.permute.xlu0 0
        %328 = vperm.xlu0 %327, %v316
        %v329 = vpop.permute.xlu0 %328
        %332 = vset.pattern.permute.xlu0 0
        %333 = vperm.xlu0 %332, %v317
        %v334 = vpop.permute.xlu0 %333
        %337 = vset.pattern.permute.xlu0 0
        %338 = vperm.xlu0 %337, %v318
        %v339 = vpop.permute.xlu0 %338
        %v342 = vperm.slane %v320, 0
        %v344 = vmul.f32 %v324, %v342
        %v345 = vmul.f32 %v329, %v342
        %v346 = vmul.f32 %v334, %v342
        %v347 = vmul.f32 %v339, %v342
        %v348 = vadd.f32 %v308, %v344
        %v349 = vadd.f32 %v309, %v345
        %v350 = vadd.f32 %v310, %v346
        %v351 = vadd.f32 %v311, %v347
        %v352 = vld [vmem:[%s314 + $0x1] sm:$0xff]
        %v353 = vld [vmem:[%s314 + $0x9] sm:$0xff]
        %v354 = vld [vmem:[%s314 + $0x11] sm:$0xff]
        %v355 = vld [vmem:[%s314 + $0x19] sm:$0x3]
        %s356 = scalar_lea.vmem %s1, 4
        %v357 = vld [vmem:[%s356] sm:$0x1]
        %359 = vset.pattern.permute.xlu0 0
        %360 = vperm.xlu0 %359, %v352
        %v361 = vpop.permute.xlu0 %360
        %364 = vset.pattern.permute.xlu0 0
        %365 = vperm.xlu0 %364, %v353
        %v366 = vpop.permute.xlu0 %365
        %369 = vset.pattern.permute.xlu0 0
        %370 = vperm.xlu0 %369, %v354
        %v371 = vpop.permute.xlu0 %370
        %374 = vset.pattern.permute.xlu0 0
        %375 = vperm.xlu0 %374, %v355
        %v376 = vpop.permute.xlu0 %375
        %v379 = vperm.slane %v357, 0
        %v381 = vmul.f32 %v361, %v379
        %v382 = vmul.f32 %v366, %v379
        %v383 = vmul.f32 %v371, %v379
        %v384 = vmul.f32 %v376, %v379
        %v385 = vadd.f32 %v348, %v381
        %v386 = vadd.f32 %v349, %v382
        %v387 = vadd.f32 %v350, %v383
        %v388 = vadd.f32 %v351, %v384
        %v389 = vld [vmem:[%s314 + $0x2] sm:$0xff]
        %v390 = vld [vmem:[%s314 + $0xa] sm:$0xff]
        %v391 = vld [vmem:[%s314 + $0x12] sm:$0xff]
        %v392 = vld [vmem:[%s314 + $0x1a] sm:$0x3]
        %s393 = scalar_lea.vmem %s1, 5
        %v394 = vld [vmem:[%s393] sm:$0x1]
        %396 = vset.pattern.permute.xlu0 0
        %397 = vperm.xlu0 %396, %v389
        %v398 = vpop.permute.xlu0 %397
        %401 = vset.pattern.permute.xlu0 0
        %402 = vperm.xlu0 %401, %v390
        %v403 = vpop.permute.xlu0 %402
        %406 = vset.pattern.permute.xlu0 0
        %407 = vperm.xlu0 %406, %v391
        %v408 = vpop.permute.xlu0 %407
        %411 = vset.pattern.permute.xlu0 0
        %412 = vperm.xlu0 %411, %v392
        %v413 = vpop.permute.xlu0 %412
        %v416 = vperm.slane %v394, 0
        %v418 = vmul.f32 %v398, %v416
        %v419 = vmul.f32 %v403, %v416
        %v420 = vmul.f32 %v408, %v416
        %v421 = vmul.f32 %v413, %v416
        %v422 = vadd.f32 %v385, %v418
        %v423 = vadd.f32 %v386, %v419
        %v424 = vadd.f32 %v387, %v420
        %v425 = vadd.f32 %v388, %v421
        %s426 = sadd.s32 %s199, 2
        %s427 = smul.u32 %s426, 32
        %s428 = scalar_lea.vmem %s165, %s427
        %v429 = vld [vmem:[%s428] sm:$0xff]
        %v430 = vld [vmem:[%s428 + $0x8] sm:$0xff]
        %v431 = vld [vmem:[%s428 + $0x10] sm:$0xff]
        %v432 = vld [vmem:[%s428 + $0x18] sm:$0x3]
        %s433 = scalar_lea.vmem %s1, 6
        %v434 = vld [vmem:[%s433] sm:$0x1]
        %436 = vset.pattern.permute.xlu0 0
        %437 = vperm.xlu0 %436, %v429
        %v438 = vpop.permute.xlu0 %437
        %441 = vset.pattern.permute.xlu0 0
        %442 = vperm.xlu0 %441, %v430
        %v443 = vpop.permute.xlu0 %442
        %446 = vset.pattern.permute.xlu0 0
        %447 = vperm.xlu0 %446, %v431
        %v448 = vpop.permute.xlu0 %447
        %451 = vset.pattern.permute.xlu0 0
        %452 = vperm.xlu0 %451, %v432
        %v453 = vpop.permute.xlu0 %452
        %v456 = vperm.slane %v434, 0
        %v458 = vmul.f32 %v438, %v456
        %v459 = vmul.f32 %v443, %v456
        %v460 = vmul.f32 %v448, %v456
        %v461 = vmul.f32 %v453, %v456
        %v462 = vadd.f32 %v422, %v458
        %v463 = vadd.f32 %v423, %v459
        %v464 = vadd.f32 %v424, %v460
        %v465 = vadd.f32 %v425, %v461
        %v466 = vld [vmem:[%s428 + $0x1] sm:$0xff]
        %v467 = vld [vmem:[%s428 + $0x9] sm:$0xff]
        %v468 = vld [vmem:[%s428 + $0x11] sm:$0xff]
        %v469 = vld [vmem:[%s428 + $0x19] sm:$0x3]
        %s470 = scalar_lea.vmem %s1, 7
        %v471 = vld [vmem:[%s470] sm:$0x1]
        %473 = vset.pattern.permute.xlu0 0
        %474 = vperm.xlu0 %473, %v466
        %v475 = vpop.permute.xlu0 %474
        %478 = vset.pattern.permute.xlu0 0
        %479 = vperm.xlu0 %478, %v467
        %v480 = vpop.permute.xlu0 %479
        %483 = vset.pattern.permute.xlu0 0
        %484 = vperm.xlu0 %483, %v468
        %v485 = vpop.permute.xlu0 %484
        %488 = vset.pattern.permute.xlu0 0
        %489 = vperm.xlu0 %488, %v469
        %v490 = vpop.permute.xlu0 %489
        %v493 = vperm.slane %v471, 0
        %v495 = vmul.f32 %v475, %v493
        %v496 = vmul.f32 %v480, %v493
        %v497 = vmul.f32 %v485, %v493
        %v498 = vmul.f32 %v490, %v493
        %v499 = vadd.f32 %v462, %v495
        %v500 = vadd.f32 %v463, %v496
        %v501 = vadd.f32 %v464, %v497
        %v502 = vadd.f32 %v465, %v498
        %v503 = vld [vmem:[%s428 + $0x2] sm:$0xff]
        %v504 = vld [vmem:[%s428 + $0xa] sm:$0xff]
        %v505 = vld [vmem:[%s428 + $0x12] sm:$0xff]
        %v506 = vld [vmem:[%s428 + $0x1a] sm:$0x3]
        %s507 = scalar_lea.vmem %s1, 8
        %v508 = vld [vmem:[%s507] sm:$0x1]
        %510 = vset.pattern.permute.xlu0 0
        %511 = vperm.xlu0 %510, %v503
        %v512 = vpop.permute.xlu0 %511
        %515 = vset.pattern.permute.xlu0 0
        %516 = vperm.xlu0 %515, %v504
        %v517 = vpop.permute.xlu0 %516
        %520 = vset.pattern.permute.xlu0 0
        %521 = vperm.xlu0 %520, %v505
        %v522 = vpop.permute.xlu0 %521
        %525 = vset.pattern.permute.xlu0 0
        %526 = vperm.xlu0 %525, %v506
        %v527 = vpop.permute.xlu0 %526
        %v530 = vperm.slane %v508, 0
        %v532 = vmul.f32 %v512, %v530
        %v533 = vmul.f32 %v517, %v530
        %v534 = vmul.f32 %v522, %v530
        %v535 = vmul.f32 %v527, %v530
        %v536 = vadd.f32 %v499, %v532
        %v537 = vadd.f32 %v500, %v533
        %v538 = vadd.f32 %v501, %v534
        %v539 = vadd.f32 %v502, %v535
        %v540 = vmul.f32 %v324, %v228
        %v541 = vmul.f32 %v329, %v228
        %v542 = vmul.f32 %v334, %v228
        %v543 = vmul.f32 %v339, %v228
        %v544 = vadd.f32 %v540, 0.0
        %v545 = vadd.f32 %v541, 0.0
        %v546 = vadd.f32 %v542, 0.0
        %v547 = vadd.f32 %v543, 0.0
        %v548 = vmul.f32 %v361, %v265
        %v549 = vmul.f32 %v366, %v265
        %v550 = vmul.f32 %v371, %v265
        %v551 = vmul.f32 %v376, %v265
        %v552 = vadd.f32 %v544, %v548
        %v553 = vadd.f32 %v545, %v549
        %v554 = vadd.f32 %v546, %v550
        %v555 = vadd.f32 %v547, %v551
        %v556 = vmul.f32 %v398, %v302
        %v557 = vmul.f32 %v403, %v302
        %v558 = vmul.f32 %v408, %v302
        %v559 = vmul.f32 %v413, %v302
        %v560 = vadd.f32 %v552, %v556
        %v561 = vadd.f32 %v553, %v557
        %v562 = vadd.f32 %v554, %v558
        %v563 = vadd.f32 %v555, %v559
        %v564 = vmul.f32 %v438, %v342
        %v565 = vmul.f32 %v443, %v342
        %v566 = vmul.f32 %v448, %v342
        %v567 = vmul.f32 %v453, %v342
        %v568 = vadd.f32 %v560, %v564
        %v569 = vadd.f32 %v561, %v565
        %v570 = vadd.f32 %v562, %v566
        %v571 = vadd.f32 %v563, %v567
        %v572 = vmul.f32 %v475, %v379
        %v573 = vmul.f32 %v480, %v379
        %v574 = vmul.f32 %v485, %v379
        %v575 = vmul.f32 %v490, %v379
        %v576 = vadd.f32 %v568, %v572
        %v577 = vadd.f32 %v569, %v573
        %v578 = vadd.f32 %v570, %v574
        %v579 = vadd.f32 %v571, %v575
        %v580 = vmul.f32 %v512, %v416
        %v581 = vmul.f32 %v517, %v416
        %v582 = vmul.f32 %v522, %v416
        %v583 = vmul.f32 %v527, %v416
        %v584 = vadd.f32 %v576, %v580
        %v585 = vadd.f32 %v577, %v581
        %v586 = vadd.f32 %v578, %v582
        %v587 = vadd.f32 %v579, %v583
        %s588 = sadd.s32 %s199, 3
        %s589 = smul.u32 %s588, 32
        %s590 = scalar_lea.vmem %s165, %s589
        %v591 = vld [vmem:[%s590] sm:$0xff]
        %v592 = vld [vmem:[%s590 + $0x8] sm:$0xff]
        %v593 = vld [vmem:[%s590 + $0x10] sm:$0xff]
        %v594 = vld [vmem:[%s590 + $0x18] sm:$0x3]
        %596 = vset.pattern.permute.xlu0 0
        %597 = vperm.xlu0 %596, %v591
        %v598 = vpop.permute.xlu0 %597
        %601 = vset.pattern.permute.xlu0 0
        %602 = vperm.xlu0 %601, %v592
        %v603 = vpop.permute.xlu0 %602
        %606 = vset.pattern.permute.xlu0 0
        %607 = vperm.xlu0 %606, %v593
        %v608 = vpop.permute.xlu0 %607
        %611 = vset.pattern.permute.xlu0 0
        %612 = vperm.xlu0 %611, %v594
        %v613 = vpop.permute.xlu0 %612
        %v615 = vmul.f32 %v598, %v456
        %v616 = vmul.f32 %v603, %v456
        %v617 = vmul.f32 %v608, %v456
        %v618 = vmul.f32 %v613, %v456
        %v619 = vadd.f32 %v584, %v615
        %v620 = vadd.f32 %v585, %v616
        %v621 = vadd.f32 %v586, %v617
        %v622 = vadd.f32 %v587, %v618
        %v623 = vld [vmem:[%s590 + $0x1] sm:$0xff]
        %v624 = vld [vmem:[%s590 + $0x9] sm:$0xff]
        %v625 = vld [vmem:[%s590 + $0x11] sm:$0xff]
        %v626 = vld [vmem:[%s590 + $0x19] sm:$0x3]
        %628 = vset.pattern.permute.xlu0 0
        %629 = vperm.xlu0 %628, %v623
        %v630 = vpop.permute.xlu0 %629
        %633 = vset.pattern.permute.xlu0 0
        %634 = vperm.xlu0 %633, %v624
        %v635 = vpop.permute.xlu0 %634
        %638 = vset.pattern.permute.xlu0 0
        %639 = vperm.xlu0 %638, %v625
        %v640 = vpop.permute.xlu0 %639
        %643 = vset.pattern.permute.xlu0 0
        %644 = vperm.xlu0 %643, %v626
        %v645 = vpop.permute.xlu0 %644
        %v647 = vmul.f32 %v630, %v493
        %v648 = vmul.f32 %v635, %v493
        %v649 = vmul.f32 %v640, %v493
        %v650 = vmul.f32 %v645, %v493
        %v651 = vadd.f32 %v619, %v647
        %v652 = vadd.f32 %v620, %v648
        %v653 = vadd.f32 %v621, %v649
        %v654 = vadd.f32 %v622, %v650
        %v655 = vld [vmem:[%s590 + $0x2] sm:$0xff]
        %v656 = vld [vmem:[%s590 + $0xa] sm:$0xff]
        %v657 = vld [vmem:[%s590 + $0x12] sm:$0xff]
        %v658 = vld [vmem:[%s590 + $0x1a] sm:$0x3]
        %660 = vset.pattern.permute.xlu0 0
        %661 = vperm.xlu0 %660, %v655
        %v662 = vpop.permute.xlu0 %661
        %665 = vset.pattern.permute.xlu0 0
        %666 = vperm.xlu0 %665, %v656
        %v667 = vpop.permute.xlu0 %666
        %670 = vset.pattern.permute.xlu0 0
        %671 = vperm.xlu0 %670, %v657
        %v672 = vpop.permute.xlu0 %671
        %675 = vset.pattern.permute.xlu0 0
        %676 = vperm.xlu0 %675, %v658
        %v677 = vpop.permute.xlu0 %676
        %v679 = vmul.f32 %v662, %v530
        %v680 = vmul.f32 %v667, %v530
        %v681 = vmul.f32 %v672, %v530
        %v682 = vmul.f32 %v677, %v530
        %v683 = vadd.f32 %v651, %v679
        %v684 = vadd.f32 %v652, %v680
        %v685 = vadd.f32 %v653, %v681
        %v686 = vadd.f32 %v654, %v682
        %v687 = vmax.f32 %v536, %v683
        %v688 = vmax.f32 %v537, %v684
        %v689 = vmax.f32 %v538, %v685
        %v690 = vmax.f32 %v539, %v686
        %vm691 = vcmask 211968
        %v693 = vsel %vm691, %v182, 0
        %v696 = vsel %vm691, %v183, 0
        %vm698 = vcmask 1041408
        %v700 = vsel %vm698, %v690, 0
        %702 = vmatpush.msra.mxu0 0.0
        %703 = vmatpush.msra.mxu0 0.0
        %704 = vmatpush.msra.mxu0 0.0
        %705 = vmatpush.msra.mxu0 0.0
        %706 = vmatpush.msra.mxu0 0.0
        %707 = vmatpush.msra.mxu0 0.0
        %708 = vmatpush.msra.mxu0 0.0
        %709 = vmatpush.msra.mxu0 0.0
        %710 = vmatpush.msra.mxu0 0.0
        %711 = vmatpush.msra.mxu0 0.0
        %712 = vmatpush.msra.mxu0 0.0
        %713 = vmatpush.msra.mxu0 0.0
        %v714 = vand.u32 %v700, 4294901760
        %715 = vmatpush.msra.mxu0 %v714
        %v716 = vand.u32 %v689, 4294901760
        %717 = vmatpush.msra.mxu0 %v716
        %v718 = vand.u32 %v688, 4294901760
        %719 = vmatpush.msra.mxu0 %v718
        %v720 = vand.u32 %v687, 4294901760
        %721 = vmatpush.msra.mxu0 %v720
        %v722 = vand.u32 %v693, 4294901760
        %v723 = vsub.f32 %v693, %v722
        %v724 = vand.u32 %v723, 4294901760
        %v725 = vsub.f32 %v723, %v724
        %v726 = vand.u32 %v725, 4294901760
        %727 = vmatmul.f32.gmra.mxu0 %v726
        %v728 = vpop.f32.mrf.mxu0
        %v729 = vadd.f32 0.0, %v728
        %v730 = vand.u32 %v696, 4294901760
        %v731 = vsub.f32 %v696, %v730
        %v732 = vand.u32 %v731, 4294901760
        %v733 = vsub.f32 %v731, %v732
        %v734 = vand.u32 %v733, 4294901760
        %735 = vmatmul.f32.gmra.mxu0 %v734
        %v736 = vpop.f32.mrf.mxu0
        %v737 = vadd.f32 0.0, %v736
        %738 = vdwg.mxu0
        %739 = vmatpush.msra.mxu0 0.0
        %740 = vmatpush.msra.mxu0 0.0
        %741 = vmatpush.msra.mxu0 0.0
        %742 = vmatpush.msra.mxu0 0.0
        %743 = vmatpush.msra.mxu0 0.0
        %744 = vmatpush.msra.mxu0 0.0
        %745 = vmatpush.msra.mxu0 0.0
        %746 = vmatpush.msra.mxu0 0.0
        %747 = vmatpush.msra.mxu0 0.0
        %748 = vmatpush.msra.mxu0 0.0
        %749 = vmatpush.msra.mxu0 0.0
        %750 = vmatpush.msra.mxu0 0.0
        %v751 = vand.u32 %v700, 4294901760
        %v752 = vsub.f32 %v700, %v751
        %v753 = vand.u32 %v752, 4294901760
        %v754 = vsub.f32 %v752, %v753
        %v755 = vand.u32 %v754, 4294901760
        %756 = vmatpush.msra.mxu0 %v755
        %v757 = vand.u32 %v689, 4294901760
        %v758 = vsub.f32 %v689, %v757
        %v759 = vand.u32 %v758, 4294901760
        %v760 = vsub.f32 %v758, %v759
        %v761 = vand.u32 %v760, 4294901760
        %762 = vmatpush.msra.mxu0 %v761
        %v763 = vand.u32 %v688, 4294901760
        %v764 = vsub.f32 %v688, %v763
        %v765 = vand.u32 %v764, 4294901760
        %v766 = vsub.f32 %v764, %v765
        %v767 = vand.u32 %v766, 4294901760
        %768 = vmatpush.msra.mxu0 %v767
        %v769 = vand.u32 %v687, 4294901760
        %v770 = vsub.f32 %v687, %v769
        %v771 = vand.u32 %v770, 4294901760
        %v772 = vsub.f32 %v770, %v771
        %v773 = vand.u32 %v772, 4294901760
        %774 = vmatpush.msra.mxu0 %v773
        %v775 = vand.u32 %v693, 4294901760
        %776 = vmatmul.f32.gmra.mxu0 %v775
        %v777 = vpop.f32.mrf.mxu0
        %v778 = vadd.f32 %v729, %v777
        %v779 = vand.u32 %v696, 4294901760
        %780 = vmatmul.f32.gmra.mxu0 %v779
        %v781 = vpop.f32.mrf.mxu0
        %v782 = vadd.f32 %v737, %v781
        %783 = vdwg.mxu0
        %784 = vmatpush.msra.mxu0 0.0
        %785 = vmatpush.msra.mxu0 0.0
        %786 = vmatpush.msra.mxu0 0.0
        %787 = vmatpush.msra.mxu0 0.0
        %788 = vmatpush.msra.mxu0 0.0
        %789 = vmatpush.msra.mxu0 0.0
        %790 = vmatpush.msra.mxu0 0.0
        %791 = vmatpush.msra.mxu0 0.0
        %792 = vmatpush.msra.mxu0 0.0
        %793 = vmatpush.msra.mxu0 0.0
        %794 = vmatpush.msra.mxu0 0.0
        %795 = vmatpush.msra.mxu0 0.0
        %v796 = vand.u32 %v700, 4294901760
        %v797 = vsub.f32 %v700, %v796
        %798 = vmatpush.msra.mxu0 %v797
        %v799 = vand.u32 %v689, 4294901760
        %v800 = vsub.f32 %v689, %v799
        %801 = vmatpush.msra.mxu0 %v800
        %v802 = vand.u32 %v688, 4294901760
        %v803 = vsub.f32 %v688, %v802
        %804 = vmatpush.msra.mxu0 %v803
        %v805 = vand.u32 %v687, 4294901760
        %v806 = vsub.f32 %v687, %v805
        %807 = vmatpush.msra.mxu0 %v806
        %v808 = vand.u32 %v693, 4294901760
        %v809 = vsub.f32 %v693, %v808
        %810 = vmatmul.f32.gmra.mxu0 %v809
        %v811 = vpop.f32.mrf.mxu0
        %v812 = vadd.f32 %v778, %v811
        %v813 = vand.u32 %v696, 4294901760
        %v814 = vsub.f32 %v696, %v813
        %815 = vmatmul.f32.gmra.mxu0 %v814
        %v816 = vpop.f32.mrf.mxu0
        %v817 = vadd.f32 %v782, %v816
        %818 = vdwg.mxu0
        %819 = vmatpush.msra.mxu0 0.0
        %820 = vmatpush.msra.mxu0 0.0
        %821 = vmatpush.msra.mxu0 0.0
        %822 = vmatpush.msra.mxu0 0.0
        %823 = vmatpush.msra.mxu0 0.0
        %824 = vmatpush.msra.mxu0 0.0
        %825 = vmatpush.msra.mxu0 0.0
        %826 = vmatpush.msra.mxu0 0.0
        %827 = vmatpush.msra.mxu0 0.0
        %828 = vmatpush.msra.mxu0 0.0
        %829 = vmatpush.msra.mxu0 0.0
        %830 = vmatpush.msra.mxu0 0.0
        %v831 = vand.u32 %v700, 4294901760
        %832 = vmatpush.msra.mxu0 %v831
        %v833 = vand.u32 %v689, 4294901760
        %834 = vmatpush.msra.mxu0 %v833
        %v835 = vand.u32 %v688, 4294901760
        %836 = vmatpush.msra.mxu0 %v835
        %v837 = vand.u32 %v687, 4294901760
        %838 = vmatpush.msra.mxu0 %v837
        %v839 = vand.u32 %v693, 4294901760
        %v840 = vsub.f32 %v693, %v839
        %v841 = vand.u32 %v840, 4294901760
        %842 = vmatmul.f32.gmra.mxu0 %v841
        %v843 = vpop.f32.mrf.mxu0
        %v844 = vadd.f32 %v812, %v843
        %v845 = vand.u32 %v696, 4294901760
        %v846 = vsub.f32 %v696, %v845
        %v847 = vand.u32 %v846, 4294901760
        %848 = vmatmul.f32.gmra.mxu0 %v847
        %v849 = vpop.f32.mrf.mxu0
        %v850 = vadd.f32 %v817, %v849
        %851 = vdwg.mxu0
        %852 = vmatpush.msra.mxu0 0.0
        %853 = vmatpush.msra.mxu0 0.0
        %854 = vmatpush.msra.mxu0 0.0
        %855 = vmatpush.msra.mxu0 0.0
        %856 = vmatpush.msra.mxu0 0.0
        %857 = vmatpush.msra.mxu0 0.0
        %858 = vmatpush.msra.mxu0 0.0
        %859 = vmatpush.msra.mxu0 0.0
        %860 = vmatpush.msra.mxu0 0.0
        %861 = vmatpush.msra.mxu0 0.0
        %862 = vmatpush.msra.mxu0 0.0
        %863 = vmatpush.msra.mxu0 0.0
        %v864 = vand.u32 %v700, 4294901760
        %v865 = vsub.f32 %v700, %v864
        %v866 = vand.u32 %v865, 4294901760
        %867 = vmatpush.msra.mxu0 %v866
        %v868 = vand.u32 %v689, 4294901760
        %v869 = vsub.f32 %v689, %v868
        %v870 = vand.u32 %v869, 4294901760
        %871 = vmatpush.msra.mxu0 %v870
        %v872 = vand.u32 %v688, 4294901760
        %v873 = vsub.f32 %v688, %v872
        %v874 = vand.u32 %v873, 4294901760
        %875 = vmatpush.msra.mxu0 %v874
        %v876 = vand.u32 %v687, 4294901760
        %v877 = vsub.f32 %v687, %v876
        %v878 = vand.u32 %v877, 4294901760
        %879 = vmatpush.msra.mxu0 %v878
        %v880 = vand.u32 %v693, 4294901760
        %881 = vmatmul.f32.gmra.mxu0 %v880
        %v882 = vpop.f32.mrf.mxu0
        %v883 = vadd.f32 %v844, %v882
        %v884 = vand.u32 %v696, 4294901760
        %885 = vmatmul.f32.gmra.mxu0 %v884
        %v886 = vpop.f32.mrf.mxu0
        %v887 = vadd.f32 %v850, %v886
        %888 = vdwg.mxu0
        %889 = vmatpush.msra.mxu0 0.0
        %890 = vmatpush.msra.mxu0 0.0
        %891 = vmatpush.msra.mxu0 0.0
        %892 = vmatpush.msra.mxu0 0.0
        %893 = vmatpush.msra.mxu0 0.0
        %894 = vmatpush.msra.mxu0 0.0
        %895 = vmatpush.msra.mxu0 0.0
        %896 = vmatpush.msra.mxu0 0.0
        %897 = vmatpush.msra.mxu0 0.0
        %898 = vmatpush.msra.mxu0 0.0
        %899 = vmatpush.msra.mxu0 0.0
        %900 = vmatpush.msra.mxu0 0.0
        %v901 = vand.u32 %v700, 4294901760
        %902 = vmatpush.msra.mxu0 %v901
        %v903 = vand.u32 %v689, 4294901760
        %904 = vmatpush.msra.mxu0 %v903
        %v905 = vand.u32 %v688, 4294901760
        %906 = vmatpush.msra.mxu0 %v905
        %v907 = vand.u32 %v687, 4294901760
        %908 = vmatpush.msra.mxu0 %v907
        %v909 = vand.u32 %v693, 4294901760
        %910 = vmatmul.f32.gmra.mxu0 %v909
        %v911 = vpop.f32.mrf.mxu0
        %v912 = vadd.f32 %v883, %v911
        %v913 = vand.u32 %v696, 4294901760
        %914 = vmatmul.f32.gmra.mxu0 %v913
        %v915 = vpop.f32.mrf.mxu0
        %v916 = vadd.f32 %v887, %v915
        %917 = vdwg.mxu0
        %v919 = vsel %vm691, %v190, 0
        %v922 = vsel %vm691, %v191, 0
        %924 = vmatpush.msra.mxu0 0.0
        %925 = vmatpush.msra.mxu0 0.0
        %926 = vmatpush.msra.mxu0 0.0
        %927 = vmatpush.msra.mxu0 0.0
        %928 = vmatpush.msra.mxu0 0.0
        %929 = vmatpush.msra.mxu0 0.0
        %930 = vmatpush.msra.mxu0 0.0
        %931 = vmatpush.msra.mxu0 0.0
        %932 = vmatpush.msra.mxu0 0.0
        %933 = vmatpush.msra.mxu0 0.0
        %934 = vmatpush.msra.mxu0 0.0
        %935 = vmatpush.msra.mxu0 0.0
        %v936 = vand.u32 %v700, 4294901760
        %937 = vmatpush.msra.mxu0 %v936
        %v938 = vand.u32 %v689, 4294901760
        %939 = vmatpush.msra.mxu0 %v938
        %v940 = vand.u32 %v688, 4294901760
        %941 = vmatpush.msra.mxu0 %v940
        %v942 = vand.u32 %v687, 4294901760
        %943 = vmatpush.msra.mxu0 %v942
        %v944 = vand.u32 %v919, 4294901760
        %v945 = vsub.f32 %v919, %v944
        %v946 = vand.u32 %v945, 4294901760
        %v947 = vsub.f32 %v945, %v946
        %v948 = vand.u32 %v947, 4294901760
        %949 = vmatmul.f32.gmra.mxu0 %v948
        %v950 = vpop.f32.mrf.mxu0
        %v951 = vadd.f32 0.0, %v950
        %v952 = vand.u32 %v922, 4294901760
        %v953 = vsub.f32 %v922, %v952
        %v954 = vand.u32 %v953, 4294901760
        %v955 = vsub.f32 %v953, %v954
        %v956 = vand.u32 %v955, 4294901760
        %957 = vmatmul.f32.gmra.mxu0 %v956
        %v958 = vpop.f32.mrf.mxu0
        %v959 = vadd.f32 0.0, %v958
        %960 = vdwg.mxu0
        %961 = vmatpush.msra.mxu0 0.0
        %962 = vmatpush.msra.mxu0 0.0
        %963 = vmatpush.msra.mxu0 0.0
        %964 = vmatpush.msra.mxu0 0.0
        %965 = vmatpush.msra.mxu0 0.0
        %966 = vmatpush.msra.mxu0 0.0
        %967 = vmatpush.msra.mxu0 0.0
        %968 = vmatpush.msra.mxu0 0.0
        %969 = vmatpush.msra.mxu0 0.0
        %970 = vmatpush.msra.mxu0 0.0
        %971 = vmatpush.msra.mxu0 0.0
        %972 = vmatpush.msra.mxu0 0.0
        %v973 = vand.u32 %v700, 4294901760
        %v974 = vsub.f32 %v700, %v973
        %v975 = vand.u32 %v974, 4294901760
        %v976 = vsub.f32 %v974, %v975
        %v977 = vand.u32 %v976, 4294901760
        %978 = vmatpush.msra.mxu0 %v977
        %v979 = vand.u32 %v689, 4294901760
        %v980 = vsub.f32 %v689, %v979
        %v981 = vand.u32 %v980, 4294901760
        %v982 = vsub.f32 %v980, %v981
        %v983 = vand.u32 %v982, 4294901760
        %984 = vmatpush.msra.mxu0 %v983
        %v985 = vand.u32 %v688, 4294901760
        %v986 = vsub.f32 %v688, %v985
        %v987 = vand.u32 %v986, 4294901760
        %v988 = vsub.f32 %v986, %v987
        %v989 = vand.u32 %v988, 4294901760
        %990 = vmatpush.msra.mxu0 %v989
        %v991 = vand.u32 %v687, 4294901760
        %v992 = vsub.f32 %v687, %v991
        %v993 = vand.u32 %v992, 4294901760
        %v994 = vsub.f32 %v992, %v993
        %v995 = vand.u32 %v994, 4294901760
        %996 = vmatpush.msra.mxu0 %v995
        %v997 = vand.u32 %v919, 4294901760
        %998 = vmatmul.f32.gmra.mxu0 %v997
        %v999 = vpop.f32.mrf.mxu0
        %v1000 = vadd.f32 %v951, %v999
        %v1001 = vand.u32 %v922, 4294901760
        %1002 = vmatmul.f32.gmra.mxu0 %v1001
        %v1003 = vpop.f32.mrf.mxu0
        %v1004 = vadd.f32 %v959, %v1003
        %1005 = vdwg.mxu0
        %1006 = vmatpush.msra.mxu0 0.0
        %1007 = vmatpush.msra.mxu0 0.0
        %1008 = vmatpush.msra.mxu0 0.0
        %1009 = vmatpush.msra.mxu0 0.0
        %1010 = vmatpush.msra.mxu0 0.0
        %1011 = vmatpush.msra.mxu0 0.0
        %1012 = vmatpush.msra.mxu0 0.0
        %1013 = vmatpush.msra.mxu0 0.0
        %1014 = vmatpush.msra.mxu0 0.0
        %1015 = vmatpush.msra.mxu0 0.0
        %1016 = vmatpush.msra.mxu0 0.0
        %1017 = vmatpush.msra.mxu0 0.0
        %v1018 = vand.u32 %v700, 4294901760
        %v1019 = vsub.f32 %v700, %v1018
        %1020 = vmatpush.msra.mxu0 %v1019
        %v1021 = vand.u32 %v689, 4294901760
        %v1022 = vsub.f32 %v689, %v1021
        %1023 = vmatpush.msra.mxu0 %v1022
        %v1024 = vand.u32 %v688, 4294901760
        %v1025 = vsub.f32 %v688, %v1024
        %1026 = vmatpush.msra.mxu0 %v1025
        %v1027 = vand.u32 %v687, 4294901760
        %v1028 = vsub.f32 %v687, %v1027
        %1029 = vmatpush.msra.mxu0 %v1028
        %v1030 = vand.u32 %v919, 4294901760
        %v1031 = vsub.f32 %v919, %v1030
        %1032 = vmatmul.f32.gmra.mxu0 %v1031
        %v1033 = vpop.f32.mrf.mxu0
        %v1034 = vadd.f32 %v1000, %v1033
        %v1035 = vand.u32 %v922, 4294901760
        %v1036 = vsub.f32 %v922, %v1035
        %1037 = vmatmul.f32.gmra.mxu0 %v1036
        %v1038 = vpop.f32.mrf.mxu0
        %v1039 = vadd.f32 %v1004, %v1038
        %1040 = vdwg.mxu0
        %1041 = vmatpush.msra.mxu0 0.0
        %1042 = vmatpush.msra.mxu0 0.0
        %1043 = vmatpush.msra.mxu0 0.0
        %1044 = vmatpush.msra.mxu0 0.0
        %1045 = vmatpush.msra.mxu0 0.0
        %1046 = vmatpush.msra.mxu0 0.0
        %1047 = vmatpush.msra.mxu0 0.0
        %1048 = vmatpush.msra.mxu0 0.0
        %1049 = vmatpush.msra.mxu0 0.0
        %1050 = vmatpush.msra.mxu0 0.0
        %1051 = vmatpush.msra.mxu0 0.0
        %1052 = vmatpush.msra.mxu0 0.0
        %v1053 = vand.u32 %v700, 4294901760
        %1054 = vmatpush.msra.mxu0 %v1053
        %v1055 = vand.u32 %v689, 4294901760
        %1056 = vmatpush.msra.mxu0 %v1055
        %v1057 = vand.u32 %v688, 4294901760
        %1058 = vmatpush.msra.mxu0 %v1057
        %v1059 = vand.u32 %v687, 4294901760
        %1060 = vmatpush.msra.mxu0 %v1059
        %v1061 = vand.u32 %v919, 4294901760
        %v1062 = vsub.f32 %v919, %v1061
        %v1063 = vand.u32 %v1062, 4294901760
        %1064 = vmatmul.f32.gmra.mxu0 %v1063
        %v1065 = vpop.f32.mrf.mxu0
        %v1066 = vadd.f32 %v1034, %v1065
        %v1067 = vand.u32 %v922, 4294901760
        %v1068 = vsub.f32 %v922, %v1067
        %v1069 = vand.u32 %v1068, 4294901760
        %1070 = vmatmul.f32.gmra.mxu0 %v1069
        %v1071 = vpop.f32.mrf.mxu0
        %v1072 = vadd.f32 %v1039, %v1071
        %1073 = vdwg.mxu0
        %1074 = vmatpush.msra.mxu0 0.0
        %1075 = vmatpush.msra.mxu0 0.0
        %1076 = vmatpush.msra.mxu0 0.0
        %1077 = vmatpush.msra.mxu0 0.0
        %1078 = vmatpush.msra.mxu0 0.0
        %1079 = vmatpush.msra.mxu0 0.0
        %1080 = vmatpush.msra.mxu0 0.0
        %1081 = vmatpush.msra.mxu0 0.0
        %1082 = vmatpush.msra.mxu0 0.0
        %1083 = vmatpush.msra.mxu0 0.0
        %1084 = vmatpush.msra.mxu0 0.0
        %1085 = vmatpush.msra.mxu0 0.0
        %v1086 = vand.u32 %v700, 4294901760
        %v1087 = vsub.f32 %v700, %v1086
        %v1088 = vand.u32 %v1087, 4294901760
        %1089 = vmatpush.msra.mxu0 %v1088
        %v1090 = vand.u32 %v689, 4294901760
        %v1091 = vsub.f32 %v689, %v1090
        %v1092 = vand.u32 %v1091, 4294901760
        %1093 = vmatpush.msra.mxu0 %v1092
        %v1094 = vand.u32 %v688, 4294901760
        %v1095 = vsub.f32 %v688, %v1094
        %v1096 = vand.u32 %v1095, 4294901760
        %1097 = vmatpush.msra.mxu0 %v1096
        %v1098 = vand.u32 %v687, 4294901760
        %v1099 = vsub.f32 %v687, %v1098
        %v1100 = vand.u32 %v1099, 4294901760
        %1101 = vmatpush.msra.mxu0 %v1100
        %v1102 = vand.u32 %v919, 4294901760
        %1103 = vmatmul.f32.gmra.mxu0 %v1102
        %v1104 = vpop.f32.mrf.mxu0
        %v1105 = vadd.f32 %v1066, %v1104
        %v1106 = vand.u32 %v922, 4294901760
        %1107 = vmatmul.f32.gmra.mxu0 %v1106
        %v1108 = vpop.f32.mrf.mxu0
        %v1109 = vadd.f32 %v1072, %v1108
        %1110 = vdwg.mxu0
        %1111 = vmatpush.msra.mxu0 0.0
        %1112 = vmatpush.msra.mxu0 0.0
        %1113 = vmatpush.msra.mxu0 0.0
        %1114 = vmatpush.msra.mxu0 0.0
        %1115 = vmatpush.msra.mxu0 0.0
        %1116 = vmatpush.msra.mxu0 0.0
        %1117 = vmatpush.msra.mxu0 0.0
        %1118 = vmatpush.msra.mxu0 0.0
        %1119 = vmatpush.msra.mxu0 0.0
        %1120 = vmatpush.msra.mxu0 0.0
        %1121 = vmatpush.msra.mxu0 0.0
        %1122 = vmatpush.msra.mxu0 0.0
        %v1123 = vand.u32 %v700, 4294901760
        %1124 = vmatpush.msra.mxu0 %v1123
        %v1125 = vand.u32 %v689, 4294901760
        %1126 = vmatpush.msra.mxu0 %v1125
        %v1127 = vand.u32 %v688, 4294901760
        %1128 = vmatpush.msra.mxu0 %v1127
        %v1129 = vand.u32 %v687, 4294901760
        %1130 = vmatpush.msra.mxu0 %v1129
        %v1131 = vand.u32 %v919, 4294901760
        %1132 = vmatmul.f32.gmra.mxu0 %v1131
        %v1133 = vpop.f32.mrf.mxu0
        %v1134 = vadd.f32 %v1105, %v1133
        %v1135 = vand.u32 %v922, 4294901760
        %1136 = vmatmul.f32.gmra.mxu0 %v1135
        %v1137 = vpop.f32.mrf.mxu0
        %v1138 = vadd.f32 %v1109, %v1137
        %1139 = vdwg.mxu0
        %v1140 = vmax.f32 %v912, %v1134
        %v1141 = vmax.f32 %v916, %v1138
        %v1143 = vperm.slane %v192, 0
        %v1145 = vadd.f32 %v1140, %v1143
        %v1146 = vadd.f32 %v1141, %v1143
        %v1147 = vmax.f32 %v1145, 0.0
        %v1148 = vmax.f32 %v1146, 0.0
        %s1149 = smul.u32 %s194, 16
        %s1150 = scalar_lea.vmem %s170, %s1149
        %vm1151 = vcmask 130048
        %1152 = vst.msk [vmem:[%s1150] sm:$0xff] %vm1151, %v1147
        %vm1153 = vcmask 126976
        %1154 = vst.msk [vmem:[%s1150 + $0x8] sm:$0x1f] %vm1153, %v1148
      $region37: #{simple_cnn_forward.3} parent=31 // loop_footer
        %s198 = sadd.s32 1, %s194
      $region38: #{simple_cnn_forward.3} parent=31 // loop_footer_branch
        %193 = sbr.rel target = $region34
      $region39: #{simple_cnn_forward.3} parent=31 // loop_exit
        _
      %p1155 = scmp.lt.s32.totalorder %s14, 1
      %s1156 = scalar_select %p1155, %s14, 1
      %s1157 = smul.addr %s1156, 26
      %s1158 = smul.addr %s1157, 8
      %s1159 = scalar_lea.vmem %s3, %s1158
      // Predicated region
      $region40: #{simple_cnn_forward.3} parent=31 // pred_check
        %p1160 = pneg %p100
      $region41: #{simple_cnn_forward.3} parent=31 // pred_check_branch
        %1162 = sbr.rel (%p1160) target = $region43
      $region42: #{simple_cnn_forward.3} parent=31 // pred_region
        _
      $region43: #{simple_cnn_forward.3} parent=31 // pred_fallthru
        _
    $region32: #{simple_cnn_forward.3} parent=5 // pred_fallthru
      _
    %p1163 = scmp.le.s32.totalorder 2, %s9
    // Predicated region
    $region44: #{simple_cnn_forward.3} parent=5 // pred_check
      %p1164 = pneg %p1163
    $region45: #{simple_cnn_forward.3} parent=5 // pred_check_branch
      %1166 = sbr.rel (%p1164) target = $region47
    $region46: #{simple_cnn_forward.3} parent=5 // pred_region
      %s1167 = ssub.s32 %s9, 2
      // Predicated region
      $region48: #{simple_cnn_forward.3} parent=46 // pred_check
        %p1168 = pneg %p106
      $region49: #{simple_cnn_forward.3} parent=46 // pred_check_branch
        %1170 = sbr.rel (%p1168) target = $region51
      $region50: #{simple_cnn_forward.3} parent=46 // pred_region
        %p1171 = scmp.lt.s32.totalorder %s15, 1
        %s1172 = scalar_select %p1171, %s15, 1
        %s1173 = smul.addr %s1172, 26
        %s1174 = smul.addr %s1173, 8
        %s1175 = scalar_lea.vmem %s3, %s1174
      $region51: #{simple_cnn_forward.3} parent=46 // pred_fallthru
        _
    $region47: #{simple_cnn_forward.3} parent=5 // pred_fallthru
      _
  $region6: #{simple_cnn_forward.3} parent=0 // loop_footer
    %s13 = sadd.s32 1, %s9
  $region7: #{simple_cnn_forward.3} parent=0 // loop_footer_branch
    %8 = sbr.rel target = $region3
  $region8: #{simple_cnn_forward.3} parent=0 // loop_exit
    _

// kernel: simple_cnn_forward.5
$region0: #{simple_cnn_forward.5}
  #allocation0 [shape = 'u32[]', space=smem, size = 0x4, offset = 0x4, fixed_abs, tag = 'smem constant byte address 0x4 - core index']
  #allocation1 [shape = 'u32[72,128]{1,0:T(1,128)}', space=vmem, size = 0x9000, scoped, tag = 'internal scratch']
  %s0 = inlined_call_operand.vmem [shape: f32[2,800], index: 0, kind: input, shape index: {}]
  %s1 = inlined_call_operand.vmem [shape: f32[800,120], index: 1, kind: input, shape index: {}]
  %s2 = inlined_call_operand.vmem [shape: f32[1,120], index: 2, kind: input, shape index: {}]
  %s3 = inlined_call_operand.vmem [shape: f32[120,10], index: 3, kind: input, shape index: {}]
  %s4 = inlined_call_operand.vmem [shape: f32[1,10], index: 4, kind: input, shape index: {}]
  %s5 = inlined_call_operand.hbm [shape: f32[2,10], index: 5, kind: output, shape index: {}]
  %s6 = sld [smem:[#allocation0]]
  $region30: #{simple_cnn_forward.5} parent=0
    _
  %s8 = ssub.s32 1, %s6
  %s9 = scalar_select 0, %s8, %s6
  $region1: #{simple_cnn_forward.5} parent=0
    #allocation2 [shape = 'u8[1024]{0}', space=vmem, size = 0x400, scoped, tag = 'output window, operand 0, single buffered']
    #allocation3 [shape = 's32[1]{0}', space=sflag, size = 0x4, scoped, tag = 'scoped memory for simple_cnn_forward.5']
    %10 = vsyncpa [#allocation3], 0
    // Predicated region
    $region2: #{simple_cnn_forward.5} parent=1 // pred_check
      _
    $region3: #{simple_cnn_forward.5} parent=1 // pred_check_branch
      %12 = sbr.rel (0) target = $region5
    $region4: #{simple_cnn_forward.5} parent=1 // pred_region
      _
    $region5: #{simple_cnn_forward.5} parent=1 // pred_fallthru
      _
    // Predicated region
    $region6: #{simple_cnn_forward.5} parent=1 // pred_check
      _
    $region7: #{simple_cnn_forward.5} parent=1 // pred_check_branch
      %14 = sbr.rel (0) target = $region9
    $region8: #{simple_cnn_forward.5} parent=1 // pred_region
      _
    $region9: #{simple_cnn_forward.5} parent=1 // pred_fallthru
      _
    // Predicated region
    $region10: #{simple_cnn_forward.5} parent=1 // pred_check
      _
    $region11: #{simple_cnn_forward.5} parent=1 // pred_check_branch
      %16 = sbr.rel (0) target = $region13
    $region12: #{simple_cnn_forward.5} parent=1 // pred_region
      _
    $region13: #{simple_cnn_forward.5} parent=1 // pred_fallthru
      _
    // Predicated region
    $region14: #{simple_cnn_forward.5} parent=1 // pred_check
      _
    $region15: #{simple_cnn_forward.5} parent=1 // pred_check_branch
      %18 = sbr.rel (0) target = $region17
    $region16: #{simple_cnn_forward.5} parent=1 // pred_region
      _
    $region17: #{simple_cnn_forward.5} parent=1 // pred_fallthru
      _
    // Predicated region
    $region18: #{simple_cnn_forward.5} parent=1 // pred_check
      _
    $region19: #{simple_cnn_forward.5} parent=1 // pred_check_branch
      %20 = sbr.rel (0) target = $region21
    $region20: #{simple_cnn_forward.5} parent=1 // pred_region
      _
    $region21: #{simple_cnn_forward.5} parent=1 // pred_fallthru
      _
    %v21 = vld [vmem:[%s0] sm:$0xff]
    %v22 = vld [vmem:[%s0 + $0x8] sm:$0x3f]
    %v23 = vld [vmem:[%s1] sm:$0xff]
    %v24 = vld [vmem:[%s1 + $0x8] sm:$0xff]
    %v25 = vld [vmem:[%s1 + $0x10] sm:$0xff]
    %v26 = vld [vmem:[%s1 + $0x18] sm:$0xff]
    %v27 = vld [vmem:[%s1 + $0x20] sm:$0xff]
    %v28 = vld [vmem:[%s1 + $0x28] sm:$0xff]
    %v29 = vld [vmem:[%s1 + $0x30] sm:$0xff]
    %v30 = vld [vmem:[%s1 + $0x38] sm:$0xff]
    %v31 = vld [vmem:[%s1 + $0x40] sm:$0xff]
    %v32 = vld [vmem:[%s1 + $0x48] sm:$0xff]
    %v33 = vld [vmem:[%s1 + $0x50] sm:$0xff]
    %v34 = vld [vmem:[%s1 + $0x58] sm:$0xff]
    %v35 = vld [vmem:[%s1 + $0x60] sm:$0xff]
    %v36 = vld [vmem:[%s1 + $0x68] sm:$0xff]
    %v37 = vld [vmem:[%s1 + $0x70] sm:$0xff]
    %v38 = vld [vmem:[%s1 + $0x78] sm:$0xff]
    %v39 = vld [vmem:[%s1 + $0x80] sm:$0xff]
    %v40 = vld [vmem:[%s1 + $0x88] sm:$0xff]
    %v41 = vld [vmem:[%s1 + $0x90] sm:$0xff]
    %v42 = vld [vmem:[%s1 + $0x98] sm:$0xff]
    %v43 = vld [vmem:[%s1 + $0xa0] sm:$0xff]
    %v44 = vld [vmem:[%s1 + $0xa8] sm:$0xff]
    %v45 = vld [vmem:[%s1 + $0xb0] sm:$0xff]
    %v46 = vld [vmem:[%s1 + $0xb8] sm:$0xff]
    %v47 = vld [vmem:[%s1 + $0xc0] sm:$0xff]
    %v48 = vld [vmem:[%s1 + $0xc8] sm:$0xff]
    %v49 = vld [vmem:[%s1 + $0xd0] sm:$0xff]
    %v50 = vld [vmem:[%s1 + $0xd8] sm:$0xff]
    %v51 = vld [vmem:[%s1 + $0xe0] sm:$0xff]
    %v52 = vld [vmem:[%s1 + $0xe8] sm:$0xff]
    %v53 = vld [vmem:[%s1 + $0xf0] sm:$0xff]
    %v54 = vld [vmem:[%s1 + $0xf8] sm:$0xff]
    %v55 = vld [vmem:[%s1 + $0x100] sm:$0xff]
    %v56 = vld [vmem:[%s1 + $0x108] sm:$0xff]
    %v57 = vld [vmem:[%s1 + $0x110] sm:$0xff]
    %v58 = vld [vmem:[%s1 + $0x118] sm:$0xff]
    %v59 = vld [vmem:[%s1 + $0x120] sm:$0xff]
    %v60 = vld [vmem:[%s1 + $0x128] sm:$0xff]
    %v61 = vld [vmem:[%s1 + $0x130] sm:$0xff]
    %v62 = vld [vmem:[%s1 + $0x138] sm:$0xff]
    %v63 = vld [vmem:[%s1 + $0x140] sm:$0xff]
    %v64 = vld [vmem:[%s1 + $0x148] sm:$0xff]
    %v65 = vld [vmem:[%s1 + $0x150] sm:$0xff]
    %v66 = vld [vmem:[%s1 + $0x158] sm:$0xff]
    %v67 = vld [vmem:[%s1 + $0x160] sm:$0xff]
    %v68 = vld [vmem:[%s1 + $0x168] sm:$0xff]
    %v69 = vld [vmem:[%s1 + $0x170] sm:$0xff]
    %v70 = vld [vmem:[%s1 + $0x178] sm:$0xff]
    %v71 = vld [vmem:[%s1 + $0x180] sm:$0xff]
    %v72 = vld [vmem:[%s1 + $0x188] sm:$0xff]
    %v73 = vld [vmem:[%s1 + $0x190] sm:$0xff]
    %v74 = vld [vmem:[%s1 + $0x198] sm:$0xff]
    %v75 = vld [vmem:[%s1 + $0x1a0] sm:$0xff]
    %v76 = vld [vmem:[%s1 + $0x1a8] sm:$0xff]
    %v77 = vld [vmem:[%s1 + $0x1b0] sm:$0xff]
    %v78 = vld [vmem:[%s1 + $0x1b8] sm:$0xff]
    %v79 = vld [vmem:[%s1 + $0x1c0] sm:$0xff]
    %v80 = vld [vmem:[%s1 + $0x1c8] sm:$0xff]
    %v81 = vld [vmem:[%s1 + $0x1d0] sm:$0xff]
    %v82 = vld [vmem:[%s1 + $0x1d8] sm:$0xff]
    %v83 = vld [vmem:[%s1 + $0x1e0] sm:$0xff]
    %v84 = vld [vmem:[%s1 + $0x1e8] sm:$0xff]
    %v85 = vld [vmem:[%s1 + $0x1f0] sm:$0xff]
    %v86 = vld [vmem:[%s1 + $0x1f8] sm:$0xff]
    %v87 = vld [vmem:[%s1 + $0x200] sm:$0xff]
    %v88 = vld [vmem:[%s1 + $0x208] sm:$0xff]
    %v89 = vld [vmem:[%s1 + $0x210] sm:$0xff]
    %v90 = vld [vmem:[%s1 + $0x218] sm:$0xff]
    %v91 = vld [vmem:[%s1 + $0x220] sm:$0xff]
    %v92 = vld [vmem:[%s1 + $0x228] sm:$0xff]
    %v93 = vld [vmem:[%s1 + $0x230] sm:$0xff]
    %v94 = vld [vmem:[%s1 + $0x238] sm:$0xff]
    %v95 = vld [vmem:[%s1 + $0x240] sm:$0xff]
    %v96 = vld [vmem:[%s1 + $0x248] sm:$0xff]
    %v97 = vld [vmem:[%s1 + $0x250] sm:$0xff]
    %v98 = vld [vmem:[%s1 + $0x258] sm:$0xff]
    %v99 = vld [vmem:[%s1 + $0x260] sm:$0xff]
    %v100 = vld [vmem:[%s1 + $0x268] sm:$0xff]
    %v101 = vld [vmem:[%s1 + $0x270] sm:$0xff]
    %v102 = vld [vmem:[%s1 + $0x278] sm:$0xff]
    %v103 = vld [vmem:[%s1 + $0x280] sm:$0xff]
    %v104 = vld [vmem:[%s1 + $0x288] sm:$0xff]
    %v105 = vld [vmem:[%s1 + $0x290] sm:$0xff]
    %v106 = vld [vmem:[%s1 + $0x298] sm:$0xff]
    %v107 = vld [vmem:[%s1 + $0x2a0] sm:$0xff]
    %v108 = vld [vmem:[%s1 + $0x2a8] sm:$0xff]
    %v109 = vld [vmem:[%s1 + $0x2b0] sm:$0xff]
    %v110 = vld [vmem:[%s1 + $0x2b8] sm:$0xff]
    %v111 = vld [vmem:[%s1 + $0x2c0] sm:$0xff]
    %v112 = vld [vmem:[%s1 + $0x2c8] sm:$0xff]
    %v113 = vld [vmem:[%s1 + $0x2d0] sm:$0xff]
    %v114 = vld [vmem:[%s1 + $0x2d8] sm:$0xff]
    %v115 = vld [vmem:[%s1 + $0x2e0] sm:$0xff]
    %v116 = vld [vmem:[%s1 + $0x2e8] sm:$0xff]
    %v117 = vld [vmem:[%s1 + $0x2f0] sm:$0xff]
    %v118 = vld [vmem:[%s1 + $0x2f8] sm:$0xff]
    %v119 = vld [vmem:[%s1 + $0x300] sm:$0xff]
    %v120 = vld [vmem:[%s1 + $0x308] sm:$0xff]
    %v121 = vld [vmem:[%s1 + $0x310] sm:$0xff]
    %v122 = vld [vmem:[%s1 + $0x318] sm:$0xff]
    %v123 = vld [vmem:[%s2] sm:$0x1]
    %v125 = vperm.slane %v123, 0
    %129 = vst [vmem:[#allocation1] ss:$4 sm:$0xff] %v21
    %s130 = scalar_lea.vmem [#allocation1], 32
    %131 = vst [vmem:[%s130] ss:$4 sm:$0xff] %v22
    %v132 = vld.sshfl [vmem:[#allocation1] sm:$0xff pattern:$0x73625140]
    %v133 = vld.sshfl [vmem:[#allocation1 + $0x8] sm:$0xff pattern:$0x73625140]
    %v134 = vld.sshfl [vmem:[#allocation1 + $0x10] sm:$0xff pattern:$0x73625140]
    %v135 = vld.sshfl [vmem:[#allocation1 + $0x18] sm:$0xff pattern:$0x73625140]
    %v136 = vld.sshfl [vmem:[#allocation1 + $0x20] sm:$0xff pattern:$0x73625140]
    %v137 = vld.sshfl [vmem:[#allocation1 + $0x28] sm:$0xff pattern:$0x73625140]
    %v138 = vld.sshfl [vmem:[#allocation1 + $0x30] sm:$0xff pattern:$0x73625140]
    %vm145 = vcmask 261120
    %v146 = vsel %vm145, %v138, 0
    %v148 = vand.u32 %v38, 4294901760
    %149 = vmatpush.msra.mxu0 %v148
    %v150 = vand.u32 %v37, 4294901760
    %151 = vmatpush.msra.mxu0 %v150
    %v152 = vand.u32 %v36, 4294901760
    %153 = vmatpush.msra.mxu0 %v152
    %v154 = vand.u32 %v35, 4294901760
    %155 = vmatpush.msra.mxu0 %v154
    %v156 = vand.u32 %v34, 4294901760
    %157 = vmatpush.msra.mxu0 %v156
    %v158 = vand.u32 %v33, 4294901760
    %159 = vmatpush.msra.mxu0 %v158
    %v160 = vand.u32 %v32, 4294901760
    %161 = vmatpush.msra.mxu0 %v160
    %v162 = vand.u32 %v31, 4294901760
    %163 = vmatpush.msra.mxu0 %v162
    %v164 = vand.u32 %v30, 4294901760
    %165 = vmatpush.msra.mxu0 %v164
    %v166 = vand.u32 %v29, 4294901760
    %167 = vmatpush.msra.mxu0 %v166
    %v168 = vand.u32 %v28, 4294901760
    %169 = vmatpush.msra.mxu0 %v168
    %v170 = vand.u32 %v27, 4294901760
    %171 = vmatpush.msra.mxu0 %v170
    %v172 = vand.u32 %v26, 4294901760
    %173 = vmatpush.msra.mxu0 %v172
    %v174 = vand.u32 %v25, 4294901760
    %175 = vmatpush.msra.mxu0 %v174
    %v176 = vand.u32 %v24, 4294901760
    %177 = vmatpush.msra.mxu0 %v176
    %v178 = vand.u32 %v23, 4294901760
    %179 = vmatpush.msra.mxu0 %v178
    %v180 = vand.u32 %v132, 4294901760
    %v181 = vsub.f32 %v132, %v180
    %v182 = vand.u32 %v181, 4294901760
    %v183 = vsub.f32 %v181, %v182
    %v184 = vand.u32 %v183, 4294901760
    %185 = vmatmul.f32.gmra.mxu0 %v184
    %v186 = vpop.f32.mrf.mxu0
    %v187 = vadd.f32 %v125, %v186
    %188 = vdwg.mxu0
    %v189 = vand.u32 %v38, 4294901760
    %v190 = vsub.f32 %v38, %v189
    %v191 = vand.u32 %v190, 4294901760
    %v192 = vsub.f32 %v190, %v191
    %v193 = vand.u32 %v192, 4294901760
    %194 = vmatpush.msra.mxu0 %v193
    %v195 = vand.u32 %v37, 4294901760
    %v196 = vsub.f32 %v37, %v195
    %v197 = vand.u32 %v196, 4294901760
    %v198 = vsub.f32 %v196, %v197
    %v199 = vand.u32 %v198, 4294901760
    %200 = vmatpush.msra.mxu0 %v199
    %v201 = vand.u32 %v36, 4294901760
    %v202 = vsub.f32 %v36, %v201
    %v203 = vand.u32 %v202, 4294901760
    %v204 = vsub.f32 %v202, %v203
    %v205 = vand.u32 %v204, 4294901760
    %206 = vmatpush.msra.mxu0 %v205
    %v207 = vand.u32 %v35, 4294901760
    %v208 = vsub.f32 %v35, %v207
    %v209 = vand.u32 %v208, 4294901760
    %v210 = vsub.f32 %v208, %v209
    %v211 = vand.u32 %v210, 4294901760
    %212 = vmatpush.msra.mxu0 %v211
    %v213 = vand.u32 %v34, 4294901760
    %v214 = vsub.f32 %v34, %v213
    %v215 = vand.u32 %v214, 4294901760
    %v216 = vsub.f32 %v214, %v215
    %v217 = vand.u32 %v216, 4294901760
    %218 = vmatpush.msra.mxu0 %v217
    %v219 = vand.u32 %v33, 4294901760
    %v220 = vsub.f32 %v33, %v219
    %v221 = vand.u32 %v220, 4294901760
    %v222 = vsub.f32 %v220, %v221
    %v223 = vand.u32 %v222, 4294901760
    %224 = vmatpush.msra.mxu0 %v223
    %v225 = vand.u32 %v32, 4294901760
    %v226 = vsub.f32 %v32, %v225
    %v227 = vand.u32 %v226, 4294901760
    %v228 = vsub.f32 %v226, %v227
    %v229 = vand.u32 %v228, 4294901760
    %230 = vmatpush.msra.mxu0 %v229
    %v231 = vand.u32 %v31, 4294901760
    %v232 = vsub.f32 %v31, %v231
    %v233 = vand.u32 %v232, 4294901760
    %v234 = vsub.f32 %v232, %v233
    %v235 = vand.u32 %v234, 4294901760
    %236 = vmatpush.msra.mxu0 %v235
    %v237 = vand.u32 %v30, 4294901760
    %v238 = vsub.f32 %v30, %v237
    %v239 = vand.u32 %v238, 4294901760
    %v240 = vsub.f32 %v238, %v239
    %v241 = vand.u32 %v240, 4294901760
    %242 = vmatpush.msra.mxu0 %v241
    %v243 = vand.u32 %v29, 4294901760
    %v244 = vsub.f32 %v29, %v243
    %v245 = vand.u32 %v244, 4294901760
    %v246 = vsub.f32 %v244, %v245
    %v247 = vand.u32 %v246, 4294901760
    %248 = vmatpush.msra.mxu0 %v247
    %v249 = vand.u32 %v28, 4294901760
    %v250 = vsub.f32 %v28, %v249
    %v251 = vand.u32 %v250, 4294901760
    %v252 = vsub.f32 %v250, %v251
    %v253 = vand.u32 %v252, 4294901760
    %254 = vmatpush.msra.mxu0 %v253
    %v255 = vand.u32 %v27, 4294901760
    %v256 = vsub.f32 %v27, %v255
    %v257 = vand.u32 %v256, 4294901760
    %v258 = vsub.f32 %v256, %v257
    %v259 = vand.u32 %v258, 4294901760
    %260 = vmatpush.msra.mxu0 %v259
    %v261 = vand.u32 %v26, 4294901760
    %v262 = vsub.f32 %v26, %v261
    %v263 = vand.u32 %v262, 4294901760
    %v264 = vsub.f32 %v262, %v263
    %v265 = vand.u32 %v264, 4294901760
    %266 = vmatpush.msra.mxu0 %v265
    %v267 = vand.u32 %v25, 4294901760
    %v268 = vsub.f32 %v25, %v267
    %v269 = vand.u32 %v268, 4294901760
    %v270 = vsub.f32 %v268, %v269
    %v271 = vand.u32 %v270, 4294901760
    %272 = vmatpush.msra.mxu0 %v271
    %v273 = vand.u32 %v24, 4294901760
    %v274 = vsub.f32 %v24, %v273
    %v275 = vand.u32 %v274, 4294901760
    %v276 = vsub.f32 %v274, %v275
    %v277 = vand.u32 %v276, 4294901760
    %278 = vmatpush.msra.mxu0 %v277
    %v279 = vand.u32 %v23, 4294901760
    %v280 = vsub.f32 %v23, %v279
    %v281 = vand.u32 %v280, 4294901760
    %v282 = vsub.f32 %v280, %v281
    %v283 = vand.u32 %v282, 4294901760
    %284 = vmatpush.msra.mxu0 %v283
    %v285 = vand.u32 %v132, 4294901760
    %286 = vmatmul.f32.gmra.mxu0 %v285
    %v287 = vpop.f32.mrf.mxu0
    %v288 = vadd.f32 %v187, %v287
    %289 = vdwg.mxu0
    %v290 = vand.u32 %v38, 4294901760
    %v291 = vsub.f32 %v38, %v290
    %292 = vmatpush.msra.mxu0 %v291
    %v293 = vand.u32 %v37, 4294901760
    %v294 = vsub.f32 %v37, %v293
    %295 = vmatpush.msra.mxu0 %v294
    %v296 = vand.u32 %v36, 4294901760
    %v297 = vsub.f32 %v36, %v296
    %298 = vmatpush.msra.mxu0 %v297
    %v299 = vand.u32 %v35, 4294901760
    %v300 = vsub.f32 %v35, %v299
    %301 = vmatpush.msra.mxu0 %v300
    %v302 = vand.u32 %v34, 4294901760
    %v303 = vsub.f32 %v34, %v302
    %304 = vmatpush.msra.mxu0 %v303
    %v305 = vand.u32 %v33, 4294901760
    %v306 = vsub.f32 %v33, %v305
    %307 = vmatpush.msra.mxu0 %v306
    %v308 = vand.u32 %v32, 4294901760
    %v309 = vsub.f32 %v32, %v308
    %310 = vmatpush.msra.mxu0 %v309
    %v311 = vand.u32 %v31, 4294901760
    %v312 = vsub.f32 %v31, %v311
    %313 = vmatpush.msra.mxu0 %v312
    %v314 = vand.u32 %v30, 4294901760
    %v315 = vsub.f32 %v30, %v314
    %316 = vmatpush.msra.mxu0 %v315
    %v317 = vand.u32 %v29, 4294901760
    %v318 = vsub.f32 %v29, %v317
    %319 = vmatpush.msra.mxu0 %v318
    %v320 = vand.u32 %v28, 4294901760
    %v321 = vsub.f32 %v28, %v320
    %322 = vmatpush.msra.mxu0 %v321
    %v323 = vand.u32 %v27, 4294901760
    %v324 = vsub.f32 %v27, %v323
    %325 = vmatpush.msra.mxu0 %v324
    %v326 = vand.u32 %v26, 4294901760
    %v327 = vsub.f32 %v26, %v326
    %328 = vmatpush.msra.mxu0 %v327
    %v329 = vand.u32 %v25, 4294901760
    %v330 = vsub.f32 %v25, %v329
    %331 = vmatpush.msra.mxu0 %v330
    %v332 = vand.u32 %v24, 4294901760
    %v333 = vsub.f32 %v24, %v332
    %334 = vmatpush.msra.mxu0 %v333
    %v335 = vand.u32 %v23, 4294901760
    %v336 = vsub.f32 %v23, %v335
    %337 = vmatpush.msra.mxu0 %v336
    %v338 = vand.u32 %v132, 4294901760
    %v339 = vsub.f32 %v132, %v338
    %340 = vmatmul.f32.gmra.mxu0 %v339
    %v341 = vpop.f32.mrf.mxu0
    %v342 = vadd.f32 %v288, %v341
    %343 = vdwg.mxu0
    %v344 = vand.u32 %v38, 4294901760
    %345 = vmatpush.msra.mxu0 %v344
    %v346 = vand.u32 %v37, 4294901760
    %347 = vmatpush.msra.mxu0 %v346
    %v348 = vand.u32 %v36, 4294901760
    %349 = vmatpush.msra.mxu0 %v348
    %v350 = vand.u32 %v35, 4294901760
    %351 = vmatpush.msra.mxu0 %v350
    %v352 = vand.u32 %v34, 4294901760
    %353 = vmatpush.msra.mxu0 %v352
    %v354 = vand.u32 %v33, 4294901760
    %355 = vmatpush.msra.mxu0 %v354
    %v356 = vand.u32 %v32, 4294901760
    %357 = vmatpush.msra.mxu0 %v356
    %v358 = vand.u32 %v31, 4294901760
    %359 = vmatpush.msra.mxu0 %v358
    %v360 = vand.u32 %v30, 4294901760
    %361 = vmatpush.msra.mxu0 %v360
    %v362 = vand.u32 %v29, 4294901760
    %363 = vmatpush.msra.mxu0 %v362
    %v364 = vand.u32 %v28, 4294901760
    %365 = vmatpush.msra.mxu0 %v364
    %v366 = vand.u32 %v27, 4294901760
    %367 = vmatpush.msra.mxu0 %v366
    %v368 = vand.u32 %v26, 4294901760
    %369 = vmatpush.msra.mxu0 %v368
    %v370 = vand.u32 %v25, 4294901760
    %371 = vmatpush.msra.mxu0 %v370
    %v372 = vand.u32 %v24, 4294901760
    %373 = vmatpush.msra.mxu0 %v372
    %v374 = vand.u32 %v23, 4294901760
    %375 = vmatpush.msra.mxu0 %v374
    %v376 = vand.u32 %v132, 4294901760
    %v377 = vsub.f32 %v132, %v376
    %v378 = vand.u32 %v377, 4294901760
    %379 = vmatmul.f32.gmra.mxu0 %v378
    %v380 = vpop.f32.mrf.mxu0
    %v381 = vadd.f32 %v342, %v380
    %382 = vdwg.mxu0
    %v383 = vand.u32 %v38, 4294901760
    %v384 = vsub.f32 %v38, %v383
    %v385 = vand.u32 %v384, 4294901760
    %386 = vmatpush.msra.mxu0 %v385
    %v387 = vand.u32 %v37, 4294901760
    %v388 = vsub.f32 %v37, %v387
    %v389 = vand.u32 %v388, 4294901760
    %390 = vmatpush.msra.mxu0 %v389
    %v391 = vand.u32 %v36, 4294901760
    %v392 = vsub.f32 %v36, %v391
    %v393 = vand.u32 %v392, 4294901760
    %394 = vmatpush.msra.mxu0 %v393
    %v395 = vand.u32 %v35, 4294901760
    %v396 = vsub.f32 %v35, %v395
    %v397 = vand.u32 %v396, 4294901760
    %398 = vmatpush.msra.mxu0 %v397
    %v399 = vand.u32 %v34, 4294901760
    %v400 = vsub.f32 %v34, %v399
    %v401 = vand.u32 %v400, 4294901760
    %402 = vmatpush.msra.mxu0 %v401
    %v403 = vand.u32 %v33, 4294901760
    %v404 = vsub.f32 %v33, %v403
    %v405 = vand.u32 %v404, 4294901760
    %406 = vmatpush.msra.mxu0 %v405
    %v407 = vand.u32 %v32, 4294901760
    %v408 = vsub.f32 %v32, %v407
    %v409 = vand.u32 %v408, 4294901760
    %410 = vmatpush.msra.mxu0 %v409
    %v411 = vand.u32 %v31, 4294901760
    %v412 = vsub.f32 %v31, %v411
    %v413 = vand.u32 %v412, 4294901760
    %414 = vmatpush.msra.mxu0 %v413
    %v415 = vand.u32 %v30, 4294901760
    %v416 = vsub.f32 %v30, %v415
    %v417 = vand.u32 %v416, 4294901760
    %418 = vmatpush.msra.mxu0 %v417
    %v419 = vand.u32 %v29, 4294901760
    %v420 = vsub.f32 %v29, %v419
    %v421 = vand.u32 %v420, 4294901760
    %422 = vmatpush.msra.mxu0 %v421
    %v423 = vand.u32 %v28, 4294901760
    %v424 = vsub.f32 %v28, %v423
    %v425 = vand.u32 %v424, 4294901760
    %426 = vmatpush.msra.mxu0 %v425
    %v427 = vand.u32 %v27, 4294901760
    %v428 = vsub.f32 %v27, %v427
    %v429 = vand.u32 %v428, 4294901760
    %430 = vmatpush.msra.mxu0 %v429
    %v431 = vand.u32 %v26, 4294901760
    %v432 = vsub.f32 %v26, %v431
    %v433 = vand.u32 %v432, 4294901760
    %434 = vmatpush.msra.mxu0 %v433
    %v435 = vand.u32 %v25, 4294901760
    %v436 = vsub.f32 %v25, %v435
    %v437 = vand.u32 %v436, 4294901760
    %438 = vmatpush.msra.mxu0 %v437
    %v439 = vand.u32 %v24, 4294901760
    %v440 = vsub.f32 %v24, %v439
    %v441 = vand.u32 %v440, 4294901760
    %442 = vmatpush.msra.mxu0 %v441
    %v443 = vand.u32 %v23, 4294901760
    %v444 = vsub.f32 %v23, %v443
    %v445 = vand.u32 %v444, 4294901760
    %446 = vmatpush.msra.mxu0 %v445
    %v447 = vand.u32 %v132, 4294901760
    %448 = vmatmul.f32.gmra.mxu0 %v447
    %v449 = vpop.f32.mrf.mxu0
    %v450 = vadd.f32 %v381, %v449
    %451 = vdwg.mxu0
    %v452 = vand.u32 %v38, 4294901760
    %453 = vmatpush.msra.mxu0 %v452
    %v454 = vand.u32 %v37, 4294901760
    %455 = vmatpush.msra.mxu0 %v454
    %v456 = vand.u32 %v36, 4294901760
    %457 = vmatpush.msra.mxu0 %v456
    %v458 = vand.u32 %v35, 4294901760
    %459 = vmatpush.msra.mxu0 %v458
    %v460 = vand.u32 %v34, 4294901760
    %461 = vmatpush.msra.mxu0 %v460
    %v462 = vand.u32 %v33, 4294901760
    %463 = vmatpush.msra.mxu0 %v462
    %v464 = vand.u32 %v32, 4294901760
    %465 = vmatpush.msra.mxu0 %v464
    %v466 = vand.u32 %v31, 4294901760
    %467 = vmatpush.msra.mxu0 %v466
    %v468 = vand.u32 %v30, 4294901760
    %469 = vmatpush.msra.mxu0 %v468
    %v470 = vand.u32 %v29, 4294901760
    %471 = vmatpush.msra.mxu0 %v470
    %v472 = vand.u32 %v28, 4294901760
    %473 = vmatpush.msra.mxu0 %v472
    %v474 = vand.u32 %v27, 4294901760
    %475 = vmatpush.msra.mxu0 %v474
    %v476 = vand.u32 %v26, 4294901760
    %477 = vmatpush.msra.mxu0 %v476
    %v478 = vand.u32 %v25, 4294901760
    %479 = vmatpush.msra.mxu0 %v478
    %v480 = vand.u32 %v24, 4294901760
    %481 = vmatpush.msra.mxu0 %v480
    %v482 = vand.u32 %v23, 4294901760
    %483 = vmatpush.msra.mxu0 %v482
    %v484 = vand.u32 %v132, 4294901760
    %485 = vmatmul.f32.gmra.mxu0 %v484
    %v486 = vpop.f32.mrf.mxu0
    %v487 = vadd.f32 %v450, %v486
    %488 = vdwg.mxu0
    %v489 = vand.u32 %v54, 4294901760
    %490 = vmatpush.msra.mxu0 %v489
    %v491 = vand.u32 %v53, 4294901760
    %492 = vmatpush.msra.mxu0 %v491
    %v493 = vand.u32 %v52, 4294901760
    %494 = vmatpush.msra.mxu0 %v493
    %v495 = vand.u32 %v51, 4294901760
    %496 = vmatpush.msra.mxu0 %v495
    %v497 = vand.u32 %v50, 4294901760
    %498 = vmatpush.msra.mxu0 %v497
    %v499 = vand.u32 %v49, 4294901760
    %500 = vmatpush.msra.mxu0 %v499
    %v501 = vand.u32 %v48, 4294901760
    %502 = vmatpush.msra.mxu0 %v501
    %v503 = vand.u32 %v47, 4294901760
    %504 = vmatpush.msra.mxu0 %v503
    %v505 = vand.u32 %v46, 4294901760
    %506 = vmatpush.msra.mxu0 %v505
    %v507 = vand.u32 %v45, 4294901760
    %508 = vmatpush.msra.mxu0 %v507
    %v509 = vand.u32 %v44, 4294901760
    %510 = vmatpush.msra.mxu0 %v509
    %v511 = vand.u32 %v43, 4294901760
    %512 = vmatpush.msra.mxu0 %v511
    %v513 = vand.u32 %v42, 4294901760
    %514 = vmatpush.msra.mxu0 %v513
    %v515 = vand.u32 %v41, 4294901760
    %516 = vmatpush.msra.mxu0 %v515
    %v517 = vand.u32 %v40, 4294901760
    %518 = vmatpush.msra.mxu0 %v517
    %v519 = vand.u32 %v39, 4294901760
    %520 = vmatpush.msra.mxu0 %v519
    %v521 = vand.u32 %v133, 4294901760
    %v522 = vsub.f32 %v133, %v521
    %v523 = vand.u32 %v522, 4294901760
    %v524 = vsub.f32 %v522, %v523
    %v525 = vand.u32 %v524, 4294901760
    %526 = vmatmul.f32.gmra.mxu0 %v525
    %v527 = vpop.f32.mrf.mxu0
    %v528 = vadd.f32 %v487, %v527
    %529 = vdwg.mxu0
    %v530 = vand.u32 %v54, 4294901760
    %v531 = vsub.f32 %v54, %v530
    %v532 = vand.u32 %v531, 4294901760
    %v533 = vsub.f32 %v531, %v532
    %v534 = vand.u32 %v533, 4294901760
    %535 = vmatpush.msra.mxu0 %v534
    %v536 = vand.u32 %v53, 4294901760
    %v537 = vsub.f32 %v53, %v536
    %v538 = vand.u32 %v537, 4294901760
    %v539 = vsub.f32 %v537, %v538
    %v540 = vand.u32 %v539, 4294901760
    %541 = vmatpush.msra.mxu0 %v540
    %v542 = vand.u32 %v52, 4294901760
    %v543 = vsub.f32 %v52, %v542
    %v544 = vand.u32 %v543, 4294901760
    %v545 = vsub.f32 %v543, %v544
    %v546 = vand.u32 %v545, 4294901760
    %547 = vmatpush.msra.mxu0 %v546
    %v548 = vand.u32 %v51, 4294901760
    %v549 = vsub.f32 %v51, %v548
    %v550 = vand.u32 %v549, 4294901760
    %v551 = vsub.f32 %v549, %v550
    %v552 = vand.u32 %v551, 4294901760
    %553 = vmatpush.msra.mxu0 %v552
    %v554 = vand.u32 %v50, 4294901760
    %v555 = vsub.f32 %v50, %v554
    %v556 = vand.u32 %v555, 4294901760
    %v557 = vsub.f32 %v555, %v556
    %v558 = vand.u32 %v557, 4294901760
    %559 = vmatpush.msra.mxu0 %v558
    %v560 = vand.u32 %v49, 4294901760
    %v561 = vsub.f32 %v49, %v560
    %v562 = vand.u32 %v561, 4294901760
    %v563 = vsub.f32 %v561, %v562
    %v564 = vand.u32 %v563, 4294901760
    %565 = vmatpush.msra.mxu0 %v564
    %v566 = vand.u32 %v48, 4294901760
    %v567 = vsub.f32 %v48, %v566
    %v568 = vand.u32 %v567, 4294901760
    %v569 = vsub.f32 %v567, %v568
    %v570 = vand.u32 %v569, 4294901760
    %571 = vmatpush.msra.mxu0 %v570
    %v572 = vand.u32 %v47, 4294901760
    %v573 = vsub.f32 %v47, %v572
    %v574 = vand.u32 %v573, 4294901760
    %v575 = vsub.f32 %v573, %v574
    %v576 = vand.u32 %v575, 4294901760
    %577 = vmatpush.msra.mxu0 %v576
    %v578 = vand.u32 %v46, 4294901760
    %v579 = vsub.f32 %v46, %v578
    %v580 = vand.u32 %v579, 4294901760
    %v581 = vsub.f32 %v579, %v580
    %v582 = vand.u32 %v581, 4294901760
    %583 = vmatpush.msra.mxu0 %v582
    %v584 = vand.u32 %v45, 4294901760
    %v585 = vsub.f32 %v45, %v584
    %v586 = vand.u32 %v585, 4294901760
    %v587 = vsub.f32 %v585, %v586
    %v588 = vand.u32 %v587, 4294901760
    %589 = vmatpush.msra.mxu0 %v588
    %v590 = vand.u32 %v44, 4294901760
    %v591 = vsub.f32 %v44, %v590
    %v592 = vand.u32 %v591, 4294901760
    %v593 = vsub.f32 %v591, %v592
    %v594 = vand.u32 %v593, 4294901760
    %595 = vmatpush.msra.mxu0 %v594
    %v596 = vand.u32 %v43, 4294901760
    %v597 = vsub.f32 %v43, %v596
    %v598 = vand.u32 %v597, 4294901760
    %v599 = vsub.f32 %v597, %v598
    %v600 = vand.u32 %v599, 4294901760
    %601 = vmatpush.msra.mxu0 %v600
    %v602 = vand.u32 %v42, 4294901760
    %v603 = vsub.f32 %v42, %v602
    %v604 = vand.u32 %v603, 4294901760
    %v605 = vsub.f32 %v603, %v604
    %v606 = vand.u32 %v605, 4294901760
    %607 = vmatpush.msra.mxu0 %v606
    %v608 = vand.u32 %v41, 4294901760
    %v609 = vsub.f32 %v41, %v608
    %v610 = vand.u32 %v609, 4294901760
    %v611 = vsub.f32 %v609, %v610
    %v612 = vand.u32 %v611, 4294901760
    %613 = vmatpush.msra.mxu0 %v612
    %v614 = vand.u32 %v40, 4294901760
    %v615 = vsub.f32 %v40, %v614
    %v616 = vand.u32 %v615, 4294901760
    %v617 = vsub.f32 %v615, %v616
    %v618 = vand.u32 %v617, 4294901760
    %619 = vmatpush.msra.mxu0 %v618
    %v620 = vand.u32 %v39, 4294901760
    %v621 = vsub.f32 %v39, %v620
    %v622 = vand.u32 %v621, 4294901760
    %v623 = vsub.f32 %v621, %v622
    %v624 = vand.u32 %v623, 4294901760
    %625 = vmatpush.msra.mxu0 %v624
    %v626 = vand.u32 %v133, 4294901760
    %627 = vmatmul.f32.gmra.mxu0 %v626
    %v628 = vpop.f32.mrf.mxu0
    %v629 = vadd.f32 %v528, %v628
    %630 = vdwg.mxu0
    %v631 = vand.u32 %v54, 4294901760
    %v632 = vsub.f32 %v54, %v631
    %633 = vmatpush.msra.mxu0 %v632
    %v634 = vand.u32 %v53, 4294901760
    %v635 = vsub.f32 %v53, %v634
    %636 = vmatpush.msra.mxu0 %v635
    %v637 = vand.u32 %v52, 4294901760
    %v638 = vsub.f32 %v52, %v637
    %639 = vmatpush.msra.mxu0 %v638
    %v640 = vand.u32 %v51, 4294901760
    %v641 = vsub.f32 %v51, %v640
    %642 = vmatpush.msra.mxu0 %v641
    %v643 = vand.u32 %v50, 4294901760
    %v644 = vsub.f32 %v50, %v643
    %645 = vmatpush.msra.mxu0 %v644
    %v646 = vand.u32 %v49, 4294901760
    %v647 = vsub.f32 %v49, %v646
    %648 = vmatpush.msra.mxu0 %v647
    %v649 = vand.u32 %v48, 4294901760
    %v650 = vsub.f32 %v48, %v649
    %651 = vmatpush.msra.mxu0 %v650
    %v652 = vand.u32 %v47, 4294901760
    %v653 = vsub.f32 %v47, %v652
    %654 = vmatpush.msra.mxu0 %v653
    %v655 = vand.u32 %v46, 4294901760
    %v656 = vsub.f32 %v46, %v655
    %657 = vmatpush.msra.mxu0 %v656
    %v658 = vand.u32 %v45, 4294901760
    %v659 = vsub.f32 %v45, %v658
    %660 = vmatpush.msra.mxu0 %v659
    %v661 = vand.u32 %v44, 4294901760
    %v662 = vsub.f32 %v44, %v661
    %663 = vmatpush.msra.mxu0 %v662
    %v664 = vand.u32 %v43, 4294901760
    %v665 = vsub.f32 %v43, %v664
    %666 = vmatpush.msra.mxu0 %v665
    %v667 = vand.u32 %v42, 4294901760
    %v668 = vsub.f32 %v42, %v667
    %669 = vmatpush.msra.mxu0 %v668
    %v670 = vand.u32 %v41, 4294901760
    %v671 = vsub.f32 %v41, %v670
    %672 = vmatpush.msra.mxu0 %v671
    %v673 = vand.u32 %v40, 4294901760
    %v674 = vsub.f32 %v40, %v673
    %675 = vmatpush.msra.mxu0 %v674
    %v676 = vand.u32 %v39, 4294901760
    %v677 = vsub.f32 %v39, %v676
    %678 = vmatpush.msra.mxu0 %v677
    %v679 = vand.u32 %v133, 4294901760
    %v680 = vsub.f32 %v133, %v679
    %681 = vmatmul.f32.gmra.mxu0 %v680
    %v682 = vpop.f32.mrf.mxu0
    %v683 = vadd.f32 %v629, %v682
    %684 = vdwg.mxu0
    %v685 = vand.u32 %v54, 4294901760
    %686 = vmatpush.msra.mxu0 %v685
    %v687 = vand.u32 %v53, 4294901760
    %688 = vmatpush.msra.mxu0 %v687
    %v689 = vand.u32 %v52, 4294901760
    %690 = vmatpush.msra.mxu0 %v689
    %v691 = vand.u32 %v51, 4294901760
    %692 = vmatpush.msra.mxu0 %v691
    %v693 = vand.u32 %v50, 4294901760
    %694 = vmatpush.msra.mxu0 %v693
    %v695 = vand.u32 %v49, 4294901760
    %696 = vmatpush.msra.mxu0 %v695
    %v697 = vand.u32 %v48, 4294901760
    %698 = vmatpush.msra.mxu0 %v697
    %v699 = vand.u32 %v47, 4294901760
    %700 = vmatpush.msra.mxu0 %v699
    %v701 = vand.u32 %v46, 4294901760
    %702 = vmatpush.msra.mxu0 %v701
    %v703 = vand.u32 %v45, 4294901760
    %704 = vmatpush.msra.mxu0 %v703
    %v705 = vand.u32 %v44, 4294901760
    %706 = vmatpush.msra.mxu0 %v705
    %v707 = vand.u32 %v43, 4294901760
    %708 = vmatpush.msra.mxu0 %v707
    %v709 = vand.u32 %v42, 4294901760
    %710 = vmatpush.msra.mxu0 %v709
    %v711 = vand.u32 %v41, 4294901760
    %712 = vmatpush.msra.mxu0 %v711
    %v713 = vand.u32 %v40, 4294901760
    %714 = vmatpush.msra.mxu0 %v713
    %v715 = vand.u32 %v39, 4294901760
    %716 = vmatpush.msra.mxu0 %v715
    %v717 = vand.u32 %v133, 4294901760
    %v718 = vsub.f32 %v133, %v717
    %v719 = vand.u32 %v718, 4294901760
    %720 = vmatmul.f32.gmra.mxu0 %v719
    %v721 = vpop.f32.mrf.mxu0
    %v722 = vadd.f32 %v683, %v721
    %723 = vdwg.mxu0
    %v724 = vand.u32 %v54, 4294901760
    %v725 = vsub.f32 %v54, %v724
    %v726 = vand.u32 %v725, 4294901760
    %727 = vmatpush.msra.mxu0 %v726
    %v728 = vand.u32 %v53, 4294901760
    %v729 = vsub.f32 %v53, %v728
    %v730 = vand.u32 %v729, 4294901760
    %731 = vmatpush.msra.mxu0 %v730
    %v732 = vand.u32 %v52, 4294901760
    %v733 = vsub.f32 %v52, %v732
    %v734 = vand.u32 %v733, 4294901760
    %735 = vmatpush.msra.mxu0 %v734
    %v736 = vand.u32 %v51, 4294901760
    %v737 = vsub.f32 %v51, %v736
    %v738 = vand.u32 %v737, 4294901760
    %739 = vmatpush.msra.mxu0 %v738
    %v740 = vand.u32 %v50, 4294901760
    %v741 = vsub.f32 %v50, %v740
    %v742 = vand.u32 %v741, 4294901760
    %743 = vmatpush.msra.mxu0 %v742
    %v744 = vand.u32 %v49, 4294901760
    %v745 = vsub.f32 %v49, %v744
    %v746 = vand.u32 %v745, 4294901760
    %747 = vmatpush.msra.mxu0 %v746
    %v748 = vand.u32 %v48, 4294901760
    %v749 = vsub.f32 %v48, %v748
    %v750 = vand.u32 %v749, 4294901760
    %751 = vmatpush.msra.mxu0 %v750
    %v752 = vand.u32 %v47, 4294901760
    %v753 = vsub.f32 %v47, %v752
    %v754 = vand.u32 %v753, 4294901760
    %755 = vmatpush.msra.mxu0 %v754
    %v756 = vand.u32 %v46, 4294901760
    %v757 = vsub.f32 %v46, %v756
    %v758 = vand.u32 %v757, 4294901760
    %759 = vmatpush.msra.mxu0 %v758
    %v760 = vand.u32 %v45, 4294901760
    %v761 = vsub.f32 %v45, %v760
    %v762 = vand.u32 %v761, 4294901760
    %763 = vmatpush.msra.mxu0 %v762
    %v764 = vand.u32 %v44, 4294901760
    %v765 = vsub.f32 %v44, %v764
    %v766 = vand.u32 %v765, 4294901760
    %767 = vmatpush.msra.mxu0 %v766
    %v768 = vand.u32 %v43, 4294901760
    %v769 = vsub.f32 %v43, %v768
    %v770 = vand.u32 %v769, 4294901760
    %771 = vmatpush.msra.mxu0 %v770
    %v772 = vand.u32 %v42, 4294901760
    %v773 = vsub.f32 %v42, %v772
    %v774 = vand.u32 %v773, 4294901760
    %775 = vmatpush.msra.mxu0 %v774
    %v776 = vand.u32 %v41, 4294901760
    %v777 = vsub.f32 %v41, %v776
    %v778 = vand.u32 %v777, 4294901760
    %779 = vmatpush.msra.mxu0 %v778
    %v780 = vand.u32 %v40, 4294901760
    %v781 = vsub.f32 %v40, %v780
    %v782 = vand.u32 %v781, 4294901760
    %783 = vmatpush.msra.mxu0 %v782
    %v784 = vand.u32 %v39, 4294901760
    %v785 = vsub.f32 %v39, %v784
    %v786 = vand.u32 %v785, 4294901760
    %787 = vmatpush.msra.mxu0 %v786
    %v788 = vand.u32 %v133, 4294901760
    %789 = vmatmul.f32.gmra.mxu0 %v788
    %v790 = vpop.f32.mrf.mxu0
    %v791 = vadd.f32 %v722, %v790
    %792 = vdwg.mxu0
    %v793 = vand.u32 %v54, 4294901760
    %794 = vmatpush.msra.mxu0 %v793
    %v795 = vand.u32 %v53, 4294901760
    %796 = vmatpush.msra.mxu0 %v795
    %v797 = vand.u32 %v52, 4294901760
    %798 = vmatpush.msra.mxu0 %v797
    %v799 = vand.u32 %v51, 4294901760
    %800 = vmatpush.msra.mxu0 %v799
    %v801 = vand.u32 %v50, 4294901760
    %802 = vmatpush.msra.mxu0 %v801
    %v803 = vand.u32 %v49, 4294901760
    %804 = vmatpush.msra.mxu0 %v803
    %v805 = vand.u32 %v48, 4294901760
    %806 = vmatpush.msra.mxu0 %v805
    %v807 = vand.u32 %v47, 4294901760
    %808 = vmatpush.msra.mxu0 %v807
    %v809 = vand.u32 %v46, 4294901760
    %810 = vmatpush.msra.mxu0 %v809
    %v811 = vand.u32 %v45, 4294901760
    %812 = vmatpush.msra.mxu0 %v811
    %v813 = vand.u32 %v44, 4294901760
    %814 = vmatpush.msra.mxu0 %v813
    %v815 = vand.u32 %v43, 4294901760
    %816 = vmatpush.msra.mxu0 %v815
    %v817 = vand.u32 %v42, 4294901760
    %818 = vmatpush.msra.mxu0 %v817
    %v819 = vand.u32 %v41, 4294901760
    %820 = vmatpush.msra.mxu0 %v819
    %v821 = vand.u32 %v40, 4294901760
    %822 = vmatpush.msra.mxu0 %v821
    %v823 = vand.u32 %v39, 4294901760
    %824 = vmatpush.msra.mxu0 %v823
    %v825 = vand.u32 %v133, 4294901760
    %826 = vmatmul.f32.gmra.mxu0 %v825
    %v827 = vpop.f32.mrf.mxu0
    %v828 = vadd.f32 %v791, %v827
    %829 = vdwg.mxu0
    %v830 = vand.u32 %v70, 4294901760
    %831 = vmatpush.msra.mxu0 %v830
    %v832 = vand.u32 %v69, 4294901760
    %833 = vmatpush.msra.mxu0 %v832
    %v834 = vand.u32 %v68, 4294901760
    %835 = vmatpush.msra.mxu0 %v834
    %v836 = vand.u32 %v67, 4294901760
    %837 = vmatpush.msra.mxu0 %v836
    %v838 = vand.u32 %v66, 4294901760
    %839 = vmatpush.msra.mxu0 %v838
    %v840 = vand.u32 %v65, 4294901760
    %841 = vmatpush.msra.mxu0 %v840
    %v842 = vand.u32 %v64, 4294901760
    %843 = vmatpush.msra.mxu0 %v842
    %v844 = vand.u32 %v63, 4294901760
    %845 = vmatpush.msra.mxu0 %v844
    %v846 = vand.u32 %v62, 4294901760
    %847 = vmatpush.msra.mxu0 %v846
    %v848 = vand.u32 %v61, 4294901760
    %849 = vmatpush.msra.mxu0 %v848
    %v850 = vand.u32 %v60, 4294901760
    %851 = vmatpush.msra.mxu0 %v850
    %v852 = vand.u32 %v59, 4294901760
    %853 = vmatpush.msra.mxu0 %v852
    %v854 = vand.u32 %v58, 4294901760
    %855 = vmatpush.msra.mxu0 %v854
    %v856 = vand.u32 %v57, 4294901760
    %857 = vmatpush.msra.mxu0 %v856
    %v858 = vand.u32 %v56, 4294901760
    %859 = vmatpush.msra.mxu0 %v858
    %v860 = vand.u32 %v55, 4294901760
    %861 = vmatpush.msra.mxu0 %v860
    %v862 = vand.u32 %v134, 4294901760
    %v863 = vsub.f32 %v134, %v862
    %v864 = vand.u32 %v863, 4294901760
    %v865 = vsub.f32 %v863, %v864
    %v866 = vand.u32 %v865, 4294901760
    %867 = vmatmul.f32.gmra.mxu0 %v866
    %v868 = vpop.f32.mrf.mxu0
    %v869 = vadd.f32 %v828, %v868
    %870 = vdwg.mxu0
    %v871 = vand.u32 %v70, 4294901760
    %v872 = vsub.f32 %v70, %v871
    %v873 = vand.u32 %v872, 4294901760
    %v874 = vsub.f32 %v872, %v873
    %v875 = vand.u32 %v874, 4294901760
    %876 = vmatpush.msra.mxu0 %v875
    %v877 = vand.u32 %v69, 4294901760
    %v878 = vsub.f32 %v69, %v877
    %v879 = vand.u32 %v878, 4294901760
    %v880 = vsub.f32 %v878, %v879
    %v881 = vand.u32 %v880, 4294901760
    %882 = vmatpush.msra.mxu0 %v881
    %v883 = vand.u32 %v68, 4294901760
    %v884 = vsub.f32 %v68, %v883
    %v885 = vand.u32 %v884, 4294901760
    %v886 = vsub.f32 %v884, %v885
    %v887 = vand.u32 %v886, 4294901760
    %888 = vmatpush.msra.mxu0 %v887
    %v889 = vand.u32 %v67, 4294901760
    %v890 = vsub.f32 %v67, %v889
    %v891 = vand.u32 %v890, 4294901760
    %v892 = vsub.f32 %v890, %v891
    %v893 = vand.u32 %v892, 4294901760
    %894 = vmatpush.msra.mxu0 %v893
    %v895 = vand.u32 %v66, 4294901760
    %v896 = vsub.f32 %v66, %v895
    %v897 = vand.u32 %v896, 4294901760
    %v898 = vsub.f32 %v896, %v897
    %v899 = vand.u32 %v898, 4294901760
    %900 = vmatpush.msra.mxu0 %v899
    %v901 = vand.u32 %v65, 4294901760
    %v902 = vsub.f32 %v65, %v901
    %v903 = vand.u32 %v902, 4294901760
    %v904 = vsub.f32 %v902, %v903
    %v905 = vand.u32 %v904, 4294901760
    %906 = vmatpush.msra.mxu0 %v905
    %v907 = vand.u32 %v64, 4294901760
    %v908 = vsub.f32 %v64, %v907
    %v909 = vand.u32 %v908, 4294901760
    %v910 = vsub.f32 %v908, %v909
    %v911 = vand.u32 %v910, 4294901760
    %912 = vmatpush.msra.mxu0 %v911
    %v913 = vand.u32 %v63, 4294901760
    %v914 = vsub.f32 %v63, %v913
    %v915 = vand.u32 %v914, 4294901760
    %v916 = vsub.f32 %v914, %v915
    %v917 = vand.u32 %v916, 4294901760
    %918 = vmatpush.msra.mxu0 %v917
    %v919 = vand.u32 %v62, 4294901760
    %v920 = vsub.f32 %v62, %v919
    %v921 = vand.u32 %v920, 4294901760
    %v922 = vsub.f32 %v920, %v921
    %v923 = vand.u32 %v922, 4294901760
    %924 = vmatpush.msra.mxu0 %v923
    %v925 = vand.u32 %v61, 4294901760
    %v926 = vsub.f32 %v61, %v925
    %v927 = vand.u32 %v926, 4294901760
    %v928 = vsub.f32 %v926, %v927
    %v929 = vand.u32 %v928, 4294901760
    %930 = vmatpush.msra.mxu0 %v929
    %v931 = vand.u32 %v60, 4294901760
    %v932 = vsub.f32 %v60, %v931
    %v933 = vand.u32 %v932, 4294901760
    %v934 = vsub.f32 %v932, %v933
    %v935 = vand.u32 %v934, 4294901760
    %936 = vmatpush.msra.mxu0 %v935
    %v937 = vand.u32 %v59, 4294901760
    %v938 = vsub.f32 %v59, %v937
    %v939 = vand.u32 %v938, 4294901760
    %v940 = vsub.f32 %v938, %v939
    %v941 = vand.u32 %v940, 4294901760
    %942 = vmatpush.msra.mxu0 %v941
    %v943 = vand.u32 %v58, 4294901760
    %v944 = vsub.f32 %v58, %v943
    %v945 = vand.u32 %v944, 4294901760
    %v946 = vsub.f32 %v944, %v945
    %v947 = vand.u32 %v946, 4294901760
    %948 = vmatpush.msra.mxu0 %v947
    %v949 = vand.u32 %v57, 4294901760
    %v950 = vsub.f32 %v57, %v949
    %v951 = vand.u32 %v950, 4294901760
    %v952 = vsub.f32 %v950, %v951
    %v953 = vand.u32 %v952, 4294901760
    %954 = vmatpush.msra.mxu0 %v953
    %v955 = vand.u32 %v56, 4294901760
    %v956 = vsub.f32 %v56, %v955
    %v957 = vand.u32 %v956, 4294901760
    %v958 = vsub.f32 %v956, %v957
    %v959 = vand.u32 %v958, 4294901760
    %960 = vmatpush.msra.mxu0 %v959
    %v961 = vand.u32 %v55, 4294901760
    %v962 = vsub.f32 %v55, %v961
    %v963 = vand.u32 %v962, 4294901760
    %v964 = vsub.f32 %v962, %v963
    %v965 = vand.u32 %v964, 4294901760
    %966 = vmatpush.msra.mxu0 %v965
    %v967 = vand.u32 %v134, 4294901760
    %968 = vmatmul.f32.gmra.mxu0 %v967
    %v969 = vpop.f32.mrf.mxu0
    %v970 = vadd.f32 %v869, %v969
    %971 = vdwg.mxu0
    %v972 = vand.u32 %v70, 4294901760
    %v973 = vsub.f32 %v70, %v972
    %974 = vmatpush.msra.mxu0 %v973
    %v975 = vand.u32 %v69, 4294901760
    %v976 = vsub.f32 %v69, %v975
    %977 = vmatpush.msra.mxu0 %v976
    %v978 = vand.u32 %v68, 4294901760
    %v979 = vsub.f32 %v68, %v978
    %980 = vmatpush.msra.mxu0 %v979
    %v981 = vand.u32 %v67, 4294901760
    %v982 = vsub.f32 %v67, %v981
    %983 = vmatpush.msra.mxu0 %v982
    %v984 = vand.u32 %v66, 4294901760
    %v985 = vsub.f32 %v66, %v984
    %986 = vmatpush.msra.mxu0 %v985
    %v987 = vand.u32 %v65, 4294901760
    %v988 = vsub.f32 %v65, %v987
    %989 = vmatpush.msra.mxu0 %v988
    %v990 = vand.u32 %v64, 4294901760
    %v991 = vsub.f32 %v64, %v990
    %992 = vmatpush.msra.mxu0 %v991
    %v993 = vand.u32 %v63, 4294901760
    %v994 = vsub.f32 %v63, %v993
    %995 = vmatpush.msra.mxu0 %v994
    %v996 = vand.u32 %v62, 4294901760
    %v997 = vsub.f32 %v62, %v996
    %998 = vmatpush.msra.mxu0 %v997
    %v999 = vand.u32 %v61, 4294901760
    %v1000 = vsub.f32 %v61, %v999
    %1001 = vmatpush.msra.mxu0 %v1000
    %v1002 = vand.u32 %v60, 4294901760
    %v1003 = vsub.f32 %v60, %v1002
    %1004 = vmatpush.msra.mxu0 %v1003
    %v1005 = vand.u32 %v59, 4294901760
    %v1006 = vsub.f32 %v59, %v1005
    %1007 = vmatpush.msra.mxu0 %v1006
    %v1008 = vand.u32 %v58, 4294901760
    %v1009 = vsub.f32 %v58, %v1008
    %1010 = vmatpush.msra.mxu0 %v1009
    %v1011 = vand.u32 %v57, 4294901760
    %v1012 = vsub.f32 %v57, %v1011
    %1013 = vmatpush.msra.mxu0 %v1012
    %v1014 = vand.u32 %v56, 4294901760
    %v1015 = vsub.f32 %v56, %v1014
    %1016 = vmatpush.msra.mxu0 %v1015
    %v1017 = vand.u32 %v55, 4294901760
    %v1018 = vsub.f32 %v55, %v1017
    %1019 = vmatpush.msra.mxu0 %v1018
    %v1020 = vand.u32 %v134, 4294901760
    %v1021 = vsub.f32 %v134, %v1020
    %1022 = vmatmul.f32.gmra.mxu0 %v1021
    %v1023 = vpop.f32.mrf.mxu0
    %v1024 = vadd.f32 %v970, %v1023
    %1025 = vdwg.mxu0
    %v1026 = vand.u32 %v70, 4294901760
    %1027 = vmatpush.msra.mxu0 %v1026
    %v1028 = vand.u32 %v69, 4294901760
    %1029 = vmatpush.msra.mxu0 %v1028
    %v1030 = vand.u32 %v68, 4294901760
    %1031 = vmatpush.msra.mxu0 %v1030
    %v1032 = vand.u32 %v67, 4294901760
    %1033 = vmatpush.msra.mxu0 %v1032
    %v1034 = vand.u32 %v66, 4294901760
    %1035 = vmatpush.msra.mxu0 %v1034
    %v1036 = vand.u32 %v65, 4294901760
    %1037 = vmatpush.msra.mxu0 %v1036
    %v1038 = vand.u32 %v64, 4294901760
    %1039 = vmatpush.msra.mxu0 %v1038
    %v1040 = vand.u32 %v63, 4294901760
    %1041 = vmatpush.msra.mxu0 %v1040
    %v1042 = vand.u32 %v62, 4294901760
    %1043 = vmatpush.msra.mxu0 %v1042
    %v1044 = vand.u32 %v61, 4294901760
    %1045 = vmatpush.msra.mxu0 %v1044
    %v1046 = vand.u32 %v60, 4294901760
    %1047 = vmatpush.msra.mxu0 %v1046
    %v1048 = vand.u32 %v59, 4294901760
    %1049 = vmatpush.msra.mxu0 %v1048
    %v1050 = vand.u32 %v58, 4294901760
    %1051 = vmatpush.msra.mxu0 %v1050
    %v1052 = vand.u32 %v57, 4294901760
    %1053 = vmatpush.msra.mxu0 %v1052
    %v1054 = vand.u32 %v56, 4294901760
    %1055 = vmatpush.msra.mxu0 %v1054
    %v1056 = vand.u32 %v55, 4294901760
    %1057 = vmatpush.msra.mxu0 %v1056
    %v1058 = vand.u32 %v134, 4294901760
    %v1059 = vsub.f32 %v134, %v1058
    %v1060 = vand.u32 %v1059, 4294901760
    %1061 = vmatmul.f32.gmra.mxu0 %v1060
    %v1062 = vpop.f32.mrf.mxu0
    %v1063 = vadd.f32 %v1024, %v1062
    %1064 = vdwg.mxu0
    %v1065 = vand.u32 %v70, 4294901760
    %v1066 = vsub.f32 %v70, %v1065
    %v1067 = vand.u32 %v1066, 4294901760
    %1068 = vmatpush.msra.mxu0 %v1067
    %v1069 = vand.u32 %v69, 4294901760
    %v1070 = vsub.f32 %v69, %v1069
    %v1071 = vand.u32 %v1070, 4294901760
    %1072 = vmatpush.msra.mxu0 %v1071
    %v1073 = vand.u32 %v68, 4294901760
    %v1074 = vsub.f32 %v68, %v1073
    %v1075 = vand.u32 %v1074, 4294901760
    %1076 = vmatpush.msra.mxu0 %v1075
    %v1077 = vand.u32 %v67, 4294901760
    %v1078 = vsub.f32 %v67, %v1077
    %v1079 = vand.u32 %v1078, 4294901760
    %1080 = vmatpush.msra.mxu0 %v1079
    %v1081 = vand.u32 %v66, 4294901760
    %v1082 = vsub.f32 %v66, %v1081
    %v1083 = vand.u32 %v1082, 4294901760
    %1084 = vmatpush.msra.mxu0 %v1083
    %v1085 = vand.u32 %v65, 4294901760
    %v1086 = vsub.f32 %v65, %v1085
    %v1087 = vand.u32 %v1086, 4294901760
    %1088 = vmatpush.msra.mxu0 %v1087
    %v1089 = vand.u32 %v64, 4294901760
    %v1090 = vsub.f32 %v64, %v1089
    %v1091 = vand.u32 %v1090, 4294901760
    %1092 = vmatpush.msra.mxu0 %v1091
    %v1093 = vand.u32 %v63, 4294901760
    %v1094 = vsub.f32 %v63, %v1093
    %v1095 = vand.u32 %v1094, 4294901760
    %1096 = vmatpush.msra.mxu0 %v1095
    %v1097 = vand.u32 %v62, 4294901760
    %v1098 = vsub.f32 %v62, %v1097
    %v1099 = vand.u32 %v1098, 4294901760
    %1100 = vmatpush.msra.mxu0 %v1099
    %v1101 = vand.u32 %v61, 4294901760
    %v1102 = vsub.f32 %v61, %v1101
    %v1103 = vand.u32 %v1102, 4294901760
    %1104 = vmatpush.msra.mxu0 %v1103
    %v1105 = vand.u32 %v60, 4294901760
    %v1106 = vsub.f32 %v60, %v1105
    %v1107 = vand.u32 %v1106, 4294901760
    %1108 = vmatpush.msra.mxu0 %v1107
    %v1109 = vand.u32 %v59, 4294901760
    %v1110 = vsub.f32 %v59, %v1109
    %v1111 = vand.u32 %v1110, 4294901760
    %1112 = vmatpush.msra.mxu0 %v1111
    %v1113 = vand.u32 %v58, 4294901760
    %v1114 = vsub.f32 %v58, %v1113
    %v1115 = vand.u32 %v1114, 4294901760
    %1116 = vmatpush.msra.mxu0 %v1115
    %v1117 = vand.u32 %v57, 4294901760
    %v1118 = vsub.f32 %v57, %v1117
    %v1119 = vand.u32 %v1118, 4294901760
    %1120 = vmatpush.msra.mxu0 %v1119
    %v1121 = vand.u32 %v56, 4294901760
    %v1122 = vsub.f32 %v56, %v1121
    %v1123 = vand.u32 %v1122, 4294901760
    %1124 = vmatpush.msra.mxu0 %v1123
    %v1125 = vand.u32 %v55, 4294901760
    %v1126 = vsub.f32 %v55, %v1125
    %v1127 = vand.u32 %v1126, 4294901760
    %1128 = vmatpush.msra.mxu0 %v1127
    %v1129 = vand.u32 %v134, 4294901760
    %1130 = vmatmul.f32.gmra.mxu0 %v1129
    %v1131 = vpop.f32.mrf.mxu0
    %v1132 = vadd.f32 %v1063, %v1131
    %1133 = vdwg.mxu0
    %v1134 = vand.u32 %v70, 4294901760
    %1135 = vmatpush.msra.mxu0 %v1134
    %v1136 = vand.u32 %v69, 4294901760
    %1137 = vmatpush.msra.mxu0 %v1136
    %v1138 = vand.u32 %v68, 4294901760
    %1139 = vmatpush.msra.mxu0 %v1138
    %v1140 = vand.u32 %v67, 4294901760
    %1141 = vmatpush.msra.mxu0 %v1140
    %v1142 = vand.u32 %v66, 4294901760
    %1143 = vmatpush.msra.mxu0 %v1142
    %v1144 = vand.u32 %v65, 4294901760
    %1145 = vmatpush.msra.mxu0 %v1144
    %v1146 = vand.u32 %v64, 4294901760
    %1147 = vmatpush.msra.mxu0 %v1146
    %v1148 = vand.u32 %v63, 4294901760
    %1149 = vmatpush.msra.mxu0 %v1148
    %v1150 = vand.u32 %v62, 4294901760
    %1151 = vmatpush.msra.mxu0 %v1150
    %v1152 = vand.u32 %v61, 4294901760
    %1153 = vmatpush.msra.mxu0 %v1152
    %v1154 = vand.u32 %v60, 4294901760
    %1155 = vmatpush.msra.mxu0 %v1154
    %v1156 = vand.u32 %v59, 4294901760
    %1157 = vmatpush.msra.mxu0 %v1156
    %v1158 = vand.u32 %v58, 4294901760
    %1159 = vmatpush.msra.mxu0 %v1158
    %v1160 = vand.u32 %v57, 4294901760
    %1161 = vmatpush.msra.mxu0 %v1160
    %v1162 = vand.u32 %v56, 4294901760
    %1163 = vmatpush.msra.mxu0 %v1162
    %v1164 = vand.u32 %v55, 4294901760
    %1165 = vmatpush.msra.mxu0 %v1164
    %v1166 = vand.u32 %v134, 4294901760
    %1167 = vmatmul.f32.gmra.mxu0 %v1166
    %v1168 = vpop.f32.mrf.mxu0
    %v1169 = vadd.f32 %v1132, %v1168
    %1170 = vdwg.mxu0
    %v1171 = vand.u32 %v86, 4294901760
    %1172 = vmatpush.msra.mxu0 %v1171
    %v1173 = vand.u32 %v85, 4294901760
    %1174 = vmatpush.msra.mxu0 %v1173
    %v1175 = vand.u32 %v84, 4294901760
    %1176 = vmatpush.msra.mxu0 %v1175
    %v1177 = vand.u32 %v83, 4294901760
    %1178 = vmatpush.msra.mxu0 %v1177
    %v1179 = vand.u32 %v82, 4294901760
    %1180 = vmatpush.msra.mxu0 %v1179
    %v1181 = vand.u32 %v81, 4294901760
    %1182 = vmatpush.msra.mxu0 %v1181
    %v1183 = vand.u32 %v80, 4294901760
    %1184 = vmatpush.msra.mxu0 %v1183
    %v1185 = vand.u32 %v79, 4294901760
    %1186 = vmatpush.msra.mxu0 %v1185
    %v1187 = vand.u32 %v78, 4294901760
    %1188 = vmatpush.msra.mxu0 %v1187
    %v1189 = vand.u32 %v77, 4294901760
    %1190 = vmatpush.msra.mxu0 %v1189
    %v1191 = vand.u32 %v76, 4294901760
    %1192 = vmatpush.msra.mxu0 %v1191
    %v1193 = vand.u32 %v75, 4294901760
    %1194 = vmatpush.msra.mxu0 %v1193
    %v1195 = vand.u32 %v74, 4294901760
    %1196 = vmatpush.msra.mxu0 %v1195
    %v1197 = vand.u32 %v73, 4294901760
    %1198 = vmatpush.msra.mxu0 %v1197
    %v1199 = vand.u32 %v72, 4294901760
    %1200 = vmatpush.msra.mxu0 %v1199
    %v1201 = vand.u32 %v71, 4294901760
    %1202 = vmatpush.msra.mxu0 %v1201
    %v1203 = vand.u32 %v135, 4294901760
    %v1204 = vsub.f32 %v135, %v1203
    %v1205 = vand.u32 %v1204, 4294901760
    %v1206 = vsub.f32 %v1204, %v1205
    %v1207 = vand.u32 %v1206, 4294901760
    %1208 = vmatmul.f32.gmra.mxu0 %v1207
    %v1209 = vpop.f32.mrf.mxu0
    %v1210 = vadd.f32 %v1169, %v1209
    %1211 = vdwg.mxu0
    %v1212 = vand.u32 %v86, 4294901760
    %v1213 = vsub.f32 %v86, %v1212
    %v1214 = vand.u32 %v1213, 4294901760
    %v1215 = vsub.f32 %v1213, %v1214
    %v1216 = vand.u32 %v1215, 4294901760
    %1217 = vmatpush.msra.mxu0 %v1216
    %v1218 = vand.u32 %v85, 4294901760
    %v1219 = vsub.f32 %v85, %v1218
    %v1220 = vand.u32 %v1219, 4294901760
    %v1221 = vsub.f32 %v1219, %v1220
    %v1222 = vand.u32 %v1221, 4294901760
    %1223 = vmatpush.msra.mxu0 %v1222
    %v1224 = vand.u32 %v84, 4294901760
    %v1225 = vsub.f32 %v84, %v1224
    %v1226 = vand.u32 %v1225, 4294901760
    %v1227 = vsub.f32 %v1225, %v1226
    %v1228 = vand.u32 %v1227, 4294901760
    %1229 = vmatpush.msra.mxu0 %v1228
    %v1230 = vand.u32 %v83, 4294901760
    %v1231 = vsub.f32 %v83, %v1230
    %v1232 = vand.u32 %v1231, 4294901760
    %v1233 = vsub.f32 %v1231, %v1232
    %v1234 = vand.u32 %v1233, 4294901760
    %1235 = vmatpush.msra.mxu0 %v1234
    %v1236 = vand.u32 %v82, 4294901760
    %v1237 = vsub.f32 %v82, %v1236
    %v1238 = vand.u32 %v1237, 4294901760
    %v1239 = vsub.f32 %v1237, %v1238
    %v1240 = vand.u32 %v1239, 4294901760
    %1241 = vmatpush.msra.mxu0 %v1240
    %v1242 = vand.u32 %v81, 4294901760
    %v1243 = vsub.f32 %v81, %v1242
    %v1244 = vand.u32 %v1243, 4294901760
    %v1245 = vsub.f32 %v1243, %v1244
    %v1246 = vand.u32 %v1245, 4294901760
    %1247 = vmatpush.msra.mxu0 %v1246
    %v1248 = vand.u32 %v80, 4294901760
    %v1249 = vsub.f32 %v80, %v1248
    %v1250 = vand.u32 %v1249, 4294901760
    %v1251 = vsub.f32 %v1249, %v1250
    %v1252 = vand.u32 %v1251, 4294901760
    %1253 = vmatpush.msra.mxu0 %v1252
    %v1254 = vand.u32 %v79, 4294901760
    %v1255 = vsub.f32 %v79, %v1254
    %v1256 = vand.u32 %v1255, 4294901760
    %v1257 = vsub.f32 %v1255, %v1256
    %v1258 = vand.u32 %v1257, 4294901760
    %1259 = vmatpush.msra.mxu0 %v1258
    %v1260 = vand.u32 %v78, 4294901760
    %v1261 = vsub.f32 %v78, %v1260
    %v1262 = vand.u32 %v1261, 4294901760
    %v1263 = vsub.f32 %v1261, %v1262
    %v1264 = vand.u32 %v1263, 4294901760
    %1265 = vmatpush.msra.mxu0 %v1264
    %v1266 = vand.u32 %v77, 4294901760
    %v1267 = vsub.f32 %v77, %v1266
    %v1268 = vand.u32 %v1267, 4294901760
    %v1269 = vsub.f32 %v1267, %v1268
    %v1270 = vand.u32 %v1269, 4294901760
    %1271 = vmatpush.msra.mxu0 %v1270
    %v1272 = vand.u32 %v76, 4294901760
    %v1273 = vsub.f32 %v76, %v1272
    %v1274 = vand.u32 %v1273, 4294901760
    %v1275 = vsub.f32 %v1273, %v1274
    %v1276 = vand.u32 %v1275, 4294901760
    %1277 = vmatpush.msra.mxu0 %v1276
    %v1278 = vand.u32 %v75, 4294901760
    %v1279 = vsub.f32 %v75, %v1278
    %v1280 = vand.u32 %v1279, 4294901760
    %v1281 = vsub.f32 %v1279, %v1280
    %v1282 = vand.u32 %v1281, 4294901760
    %1283 = vmatpush.msra.mxu0 %v1282
    %v1284 = vand.u32 %v74, 4294901760
    %v1285 = vsub.f32 %v74, %v1284
    %v1286 = vand.u32 %v1285, 4294901760
    %v1287 = vsub.f32 %v1285, %v1286
    %v1288 = vand.u32 %v1287, 4294901760
    %1289 = vmatpush.msra.mxu0 %v1288
    %v1290 = vand.u32 %v73, 4294901760
    %v1291 = vsub.f32 %v73, %v1290
    %v1292 = vand.u32 %v1291, 4294901760
    %v1293 = vsub.f32 %v1291, %v1292
    %v1294 = vand.u32 %v1293, 4294901760
    %1295 = vmatpush.msra.mxu0 %v1294
    %v1296 = vand.u32 %v72, 4294901760
    %v1297 = vsub.f32 %v72, %v1296
    %v1298 = vand.u32 %v1297, 4294901760
    %v1299 = vsub.f32 %v1297, %v1298
    %v1300 = vand.u32 %v1299, 4294901760
    %1301 = vmatpush.msra.mxu0 %v1300
    %v1302 = vand.u32 %v71, 4294901760
    %v1303 = vsub.f32 %v71, %v1302
    %v1304 = vand.u32 %v1303, 4294901760
    %v1305 = vsub.f32 %v1303, %v1304
    %v1306 = vand.u32 %v1305, 4294901760
    %1307 = vmatpush.msra.mxu0 %v1306
    %v1308 = vand.u32 %v135, 4294901760
    %1309 = vmatmul.f32.gmra.mxu0 %v1308
    %v1310 = vpop.f32.mrf.mxu0
    %v1311 = vadd.f32 %v1210, %v1310
    %1312 = vdwg.mxu0
    %v1313 = vand.u32 %v86, 4294901760
    %v1314 = vsub.f32 %v86, %v1313
    %1315 = vmatpush.msra.mxu0 %v1314
    %v1316 = vand.u32 %v85, 4294901760
    %v1317 = vsub.f32 %v85, %v1316
    %1318 = vmatpush.msra.mxu0 %v1317
    %v1319 = vand.u32 %v84, 4294901760
    %v1320 = vsub.f32 %v84, %v1319
    %1321 = vmatpush.msra.mxu0 %v1320
    %v1322 = vand.u32 %v83, 4294901760
    %v1323 = vsub.f32 %v83, %v1322
    %1324 = vmatpush.msra.mxu0 %v1323
    %v1325 = vand.u32 %v82, 4294901760
    %v1326 = vsub.f32 %v82, %v1325
    %1327 = vmatpush.msra.mxu0 %v1326
    %v1328 = vand.u32 %v81, 4294901760
    %v1329 = vsub.f32 %v81, %v1328
    %1330 = vmatpush.msra.mxu0 %v1329
    %v1331 = vand.u32 %v80, 4294901760
    %v1332 = vsub.f32 %v80, %v1331
    %1333 = vmatpush.msra.mxu0 %v1332
    %v1334 = vand.u32 %v79, 4294901760
    %v1335 = vsub.f32 %v79, %v1334
    %1336 = vmatpush.msra.mxu0 %v1335
    %v1337 = vand.u32 %v78, 4294901760
    %v1338 = vsub.f32 %v78, %v1337
    %1339 = vmatpush.msra.mxu0 %v1338
    %v1340 = vand.u32 %v77, 4294901760
    %v1341 = vsub.f32 %v77, %v1340
    %1342 = vmatpush.msra.mxu0 %v1341
    %v1343 = vand.u32 %v76, 4294901760
    %v1344 = vsub.f32 %v76, %v1343
    %1345 = vmatpush.msra.mxu0 %v1344
    %v1346 = vand.u32 %v75, 4294901760
    %v1347 = vsub.f32 %v75, %v1346
    %1348 = vmatpush.msra.mxu0 %v1347
    %v1349 = vand.u32 %v74, 4294901760
    %v1350 = vsub.f32 %v74, %v1349
    %1351 = vmatpush.msra.mxu0 %v1350
    %v1352 = vand.u32 %v73, 4294901760
    %v1353 = vsub.f32 %v73, %v1352
    %1354 = vmatpush.msra.mxu0 %v1353
    %v1355 = vand.u32 %v72, 4294901760
    %v1356 = vsub.f32 %v72, %v1355
    %1357 = vmatpush.msra.mxu0 %v1356
    %v1358 = vand.u32 %v71, 4294901760
    %v1359 = vsub.f32 %v71, %v1358
    %1360 = vmatpush.msra.mxu0 %v1359
    %v1361 = vand.u32 %v135, 4294901760
    %v1362 = vsub.f32 %v135, %v1361
    %1363 = vmatmul.f32.gmra.mxu0 %v1362
    %v1364 = vpop.f32.mrf.mxu0
    %v1365 = vadd.f32 %v1311, %v1364
    %1366 = vdwg.mxu0
    %v1367 = vand.u32 %v86, 4294901760
    %1368 = vmatpush.msra.mxu0 %v1367
    %v1369 = vand.u32 %v85, 4294901760
    %1370 = vmatpush.msra.mxu0 %v1369
    %v1371 = vand.u32 %v84, 4294901760
    %1372 = vmatpush.msra.mxu0 %v1371
    %v1373 = vand.u32 %v83, 4294901760
    %1374 = vmatpush.msra.mxu0 %v1373
    %v1375 = vand.u32 %v82, 4294901760
    %1376 = vmatpush.msra.mxu0 %v1375
    %v1377 = vand.u32 %v81, 4294901760
    %1378 = vmatpush.msra.mxu0 %v1377
    %v1379 = vand.u32 %v80, 4294901760
    %1380 = vmatpush.msra.mxu0 %v1379
    %v1381 = vand.u32 %v79, 4294901760
    %1382 = vmatpush.msra.mxu0 %v1381
    %v1383 = vand.u32 %v78, 4294901760
    %1384 = vmatpush.msra.mxu0 %v1383
    %v1385 = vand.u32 %v77, 4294901760
    %1386 = vmatpush.msra.mxu0 %v1385
    %v1387 = vand.u32 %v76, 4294901760
    %1388 = vmatpush.msra.mxu0 %v1387
    %v1389 = vand.u32 %v75, 4294901760
    %1390 = vmatpush.msra.mxu0 %v1389
    %v1391 = vand.u32 %v74, 4294901760
    %1392 = vmatpush.msra.mxu0 %v1391
    %v1393 = vand.u32 %v73, 4294901760
    %1394 = vmatpush.msra.mxu0 %v1393
    %v1395 = vand.u32 %v72, 4294901760
    %1396 = vmatpush.msra.mxu0 %v1395
    %v1397 = vand.u32 %v71, 4294901760
    %1398 = vmatpush.msra.mxu0 %v1397
    %v1399 = vand.u32 %v135, 4294901760
    %v1400 = vsub.f32 %v135, %v1399
    %v1401 = vand.u32 %v1400, 4294901760
    %1402 = vmatmul.f32.gmra.mxu0 %v1401
    %v1403 = vpop.f32.mrf.mxu0
    %v1404 = vadd.f32 %v1365, %v1403
    %1405 = vdwg.mxu0
    %v1406 = vand.u32 %v86, 4294901760
    %v1407 = vsub.f32 %v86, %v1406
    %v1408 = vand.u32 %v1407, 4294901760
    %1409 = vmatpush.msra.mxu0 %v1408
    %v1410 = vand.u32 %v85, 4294901760
    %v1411 = vsub.f32 %v85, %v1410
    %v1412 = vand.u32 %v1411, 4294901760
    %1413 = vmatpush.msra.mxu0 %v1412
    %v1414 = vand.u32 %v84, 4294901760
    %v1415 = vsub.f32 %v84, %v1414
    %v1416 = vand.u32 %v1415, 4294901760
    %1417 = vmatpush.msra.mxu0 %v1416
    %v1418 = vand.u32 %v83, 4294901760
    %v1419 = vsub.f32 %v83, %v1418
    %v1420 = vand.u32 %v1419, 4294901760
    %1421 = vmatpush.msra.mxu0 %v1420
    %v1422 = vand.u32 %v82, 4294901760
    %v1423 = vsub.f32 %v82, %v1422
    %v1424 = vand.u32 %v1423, 4294901760
    %1425 = vmatpush.msra.mxu0 %v1424
    %v1426 = vand.u32 %v81, 4294901760
    %v1427 = vsub.f32 %v81, %v1426
    %v1428 = vand.u32 %v1427, 4294901760
    %1429 = vmatpush.msra.mxu0 %v1428
    %v1430 = vand.u32 %v80, 4294901760
    %v1431 = vsub.f32 %v80, %v1430
    %v1432 = vand.u32 %v1431, 4294901760
    %1433 = vmatpush.msra.mxu0 %v1432
    %v1434 = vand.u32 %v79, 4294901760
    %v1435 = vsub.f32 %v79, %v1434
    %v1436 = vand.u32 %v1435, 4294901760
    %1437 = vmatpush.msra.mxu0 %v1436
    %v1438 = vand.u32 %v78, 4294901760
    %v1439 = vsub.f32 %v78, %v1438
    %v1440 = vand.u32 %v1439, 4294901760
    %1441 = vmatpush.msra.mxu0 %v1440
    %v1442 = vand.u32 %v77, 4294901760
    %v1443 = vsub.f32 %v77, %v1442
    %v1444 = vand.u32 %v1443, 4294901760
    %1445 = vmatpush.msra.mxu0 %v1444
    %v1446 = vand.u32 %v76, 4294901760
    %v1447 = vsub.f32 %v76, %v1446
    %v1448 = vand.u32 %v1447, 4294901760
    %1449 = vmatpush.msra.mxu0 %v1448
    %v1450 = vand.u32 %v75, 4294901760
    %v1451 = vsub.f32 %v75, %v1450
    %v1452 = vand.u32 %v1451, 4294901760
    %1453 = vmatpush.msra.mxu0 %v1452
    %v1454 = vand.u32 %v74, 4294901760
    %v1455 = vsub.f32 %v74, %v1454
    %v1456 = vand.u32 %v1455, 4294901760
    %1457 = vmatpush.msra.mxu0 %v1456
    %v1458 = vand.u32 %v73, 4294901760
    %v1459 = vsub.f32 %v73, %v1458
    %v1460 = vand.u32 %v1459, 4294901760
    %1461 = vmatpush.msra.mxu0 %v1460
    %v1462 = vand.u32 %v72, 4294901760
    %v1463 = vsub.f32 %v72, %v1462
    %v1464 = vand.u32 %v1463, 4294901760
    %1465 = vmatpush.msra.mxu0 %v1464
    %v1466 = vand.u32 %v71, 4294901760
    %v1467 = vsub.f32 %v71, %v1466
    %v1468 = vand.u32 %v1467, 4294901760
    %1469 = vmatpush.msra.mxu0 %v1468
    %v1470 = vand.u32 %v135, 4294901760
    %1471 = vmatmul.f32.gmra.mxu0 %v1470
    %v1472 = vpop.f32.mrf.mxu0
    %v1473 = vadd.f32 %v1404, %v1472
    %1474 = vdwg.mxu0
    %v1475 = vand.u32 %v86, 4294901760
    %1476 = vmatpush.msra.mxu0 %v1475
    %v1477 = vand.u32 %v85, 4294901760
    %1478 = vmatpush.msra.mxu0 %v1477
    %v1479 = vand.u32 %v84, 4294901760
    %1480 = vmatpush.msra.mxu0 %v1479
    %v1481 = vand.u32 %v83, 4294901760
    %1482 = vmatpush.msra.mxu0 %v1481
    %v1483 = vand.u32 %v82, 4294901760
    %1484 = vmatpush.msra.mxu0 %v1483
    %v1485 = vand.u32 %v81, 4294901760
    %1486 = vmatpush.msra.mxu0 %v1485
    %v1487 = vand.u32 %v80, 4294901760
    %1488 = vmatpush.msra.mxu0 %v1487
    %v1489 = vand.u32 %v79, 4294901760
    %1490 = vmatpush.msra.mxu0 %v1489
    %v1491 = vand.u32 %v78, 4294901760
    %1492 = vmatpush.msra.mxu0 %v1491
    %v1493 = vand.u32 %v77, 4294901760
    %1494 = vmatpush.msra.mxu0 %v1493
    %v1495 = vand.u32 %v76, 4294901760
    %1496 = vmatpush.msra.mxu0 %v1495
    %v1497 = vand.u32 %v75, 4294901760
    %1498 = vmatpush.msra.mxu0 %v1497
    %v1499 = vand.u32 %v74, 4294901760
    %1500 = vmatpush.msra.mxu0 %v1499
    %v1501 = vand.u32 %v73, 4294901760
    %1502 = vmatpush.msra.mxu0 %v1501
    %v1503 = vand.u32 %v72, 4294901760
    %1504 = vmatpush.msra.mxu0 %v1503
    %v1505 = vand.u32 %v71, 4294901760
    %1506 = vmatpush.msra.mxu0 %v1505
    %v1507 = vand.u32 %v135, 4294901760
    %1508 = vmatmul.f32.gmra.mxu0 %v1507
    %v1509 = vpop.f32.mrf.mxu0
    %v1510 = vadd.f32 %v1473, %v1509
    %1511 = vdwg.mxu0
    %v1512 = vand.u32 %v102, 4294901760
    %1513 = vmatpush.msra.mxu0 %v1512
    %v1514 = vand.u32 %v101, 4294901760
    %1515 = vmatpush.msra.mxu0 %v1514
    %v1516 = vand.u32 %v100, 4294901760
    %1517 = vmatpush.msra.mxu0 %v1516
    %v1518 = vand.u32 %v99, 4294901760
    %1519 = vmatpush.msra.mxu0 %v1518
    %v1520 = vand.u32 %v98, 4294901760
    %1521 = vmatpush.msra.mxu0 %v1520
    %v1522 = vand.u32 %v97, 4294901760
    %1523 = vmatpush.msra.mxu0 %v1522
    %v1524 = vand.u32 %v96, 4294901760
    %1525 = vmatpush.msra.mxu0 %v1524
    %v1526 = vand.u32 %v95, 4294901760
    %1527 = vmatpush.msra.mxu0 %v1526
    %v1528 = vand.u32 %v94, 4294901760
    %1529 = vmatpush.msra.mxu0 %v1528
    %v1530 = vand.u32 %v93, 4294901760
    %1531 = vmatpush.msra.mxu0 %v1530
    %v1532 = vand.u32 %v92, 4294901760
    %1533 = vmatpush.msra.mxu0 %v1532
    %v1534 = vand.u32 %v91, 4294901760
    %1535 = vmatpush.msra.mxu0 %v1534
    %v1536 = vand.u32 %v90, 4294901760
    %1537 = vmatpush.msra.mxu0 %v1536
    %v1538 = vand.u32 %v89, 4294901760
    %1539 = vmatpush.msra.mxu0 %v1538
    %v1540 = vand.u32 %v88, 4294901760
    %1541 = vmatpush.msra.mxu0 %v1540
    %v1542 = vand.u32 %v87, 4294901760
    %1543 = vmatpush.msra.mxu0 %v1542
    %v1544 = vand.u32 %v136, 4294901760
    %v1545 = vsub.f32 %v136, %v1544
    %v1546 = vand.u32 %v1545, 4294901760
    %v1547 = vsub.f32 %v1545, %v1546
    %v1548 = vand.u32 %v1547, 4294901760
    %1549 = vmatmul.f32.gmra.mxu0 %v1548
    %v1550 = vpop.f32.mrf.mxu0
    %v1551 = vadd.f32 %v1510, %v1550
    %1552 = vdwg.mxu0
    %v1553 = vand.u32 %v102, 4294901760
    %v1554 = vsub.f32 %v102, %v1553
    %v1555 = vand.u32 %v1554, 4294901760
    %v1556 = vsub.f32 %v1554, %v1555
    %v1557 = vand.u32 %v1556, 4294901760
    %1558 = vmatpush.msra.mxu0 %v1557
    %v1559 = vand.u32 %v101, 4294901760
    %v1560 = vsub.f32 %v101, %v1559
    %v1561 = vand.u32 %v1560, 4294901760
    %v1562 = vsub.f32 %v1560, %v1561
    %v1563 = vand.u32 %v1562, 4294901760
    %1564 = vmatpush.msra.mxu0 %v1563
    %v1565 = vand.u32 %v100, 4294901760
    %v1566 = vsub.f32 %v100, %v1565
    %v1567 = vand.u32 %v1566, 4294901760
    %v1568 = vsub.f32 %v1566, %v1567
    %v1569 = vand.u32 %v1568, 4294901760
    %1570 = vmatpush.msra.mxu0 %v1569
    %v1571 = vand.u32 %v99, 4294901760
    %v1572 = vsub.f32 %v99, %v1571
    %v1573 = vand.u32 %v1572, 4294901760
    %v1574 = vsub.f32 %v1572, %v1573
    %v1575 = vand.u32 %v1574, 4294901760
    %1576 = vmatpush.msra.mxu0 %v1575
    %v1577 = vand.u32 %v98, 4294901760
    %v1578 = vsub.f32 %v98, %v1577
    %v1579 = vand.u32 %v1578, 4294901760
    %v1580 = vsub.f32 %v1578, %v1579
    %v1581 = vand.u32 %v1580, 4294901760
    %1582 = vmatpush.msra.mxu0 %v1581
    %v1583 = vand.u32 %v97, 4294901760
    %v1584 = vsub.f32 %v97, %v1583
    %v1585 = vand.u32 %v1584, 4294901760
    %v1586 = vsub.f32 %v1584, %v1585
    %v1587 = vand.u32 %v1586, 4294901760
    %1588 = vmatpush.msra.mxu0 %v1587
    %v1589 = vand.u32 %v96, 4294901760
    %v1590 = vsub.f32 %v96, %v1589
    %v1591 = vand.u32 %v1590, 4294901760
    %v1592 = vsub.f32 %v1590, %v1591
    %v1593 = vand.u32 %v1592, 4294901760
    %1594 = vmatpush.msra.mxu0 %v1593
    %v1595 = vand.u32 %v95, 4294901760
    %v1596 = vsub.f32 %v95, %v1595
    %v1597 = vand.u32 %v1596, 4294901760
    %v1598 = vsub.f32 %v1596, %v1597
    %v1599 = vand.u32 %v1598, 4294901760
    %1600 = vmatpush.msra.mxu0 %v1599
    %v1601 = vand.u32 %v94, 4294901760
    %v1602 = vsub.f32 %v94, %v1601
    %v1603 = vand.u32 %v1602, 4294901760
    %v1604 = vsub.f32 %v1602, %v1603
    %v1605 = vand.u32 %v1604, 4294901760
    %1606 = vmatpush.msra.mxu0 %v1605
    %v1607 = vand.u32 %v93, 4294901760
    %v1608 = vsub.f32 %v93, %v1607
    %v1609 = vand.u32 %v1608, 4294901760
    %v1610 = vsub.f32 %v1608, %v1609
    %v1611 = vand.u32 %v1610, 4294901760
    %1612 = vmatpush.msra.mxu0 %v1611
    %v1613 = vand.u32 %v92, 4294901760
    %v1614 = vsub.f32 %v92, %v1613
    %v1615 = vand.u32 %v1614, 4294901760
    %v1616 = vsub.f32 %v1614, %v1615
    %v1617 = vand.u32 %v1616, 4294901760
    %1618 = vmatpush.msra.mxu0 %v1617
    %v1619 = vand.u32 %v91, 4294901760
    %v1620 = vsub.f32 %v91, %v1619
    %v1621 = vand.u32 %v1620, 4294901760
    %v1622 = vsub.f32 %v1620, %v1621
    %v1623 = vand.u32 %v1622, 4294901760
    %1624 = vmatpush.msra.mxu0 %v1623
    %v1625 = vand.u32 %v90, 4294901760
    %v1626 = vsub.f32 %v90, %v1625
    %v1627 = vand.u32 %v1626, 4294901760
    %v1628 = vsub.f32 %v1626, %v1627
    %v1629 = vand.u32 %v1628, 4294901760
    %1630 = vmatpush.msra.mxu0 %v1629
    %v1631 = vand.u32 %v89, 4294901760
    %v1632 = vsub.f32 %v89, %v1631
    %v1633 = vand.u32 %v1632, 4294901760
    %v1634 = vsub.f32 %v1632, %v1633
    %v1635 = vand.u32 %v1634, 4294901760
    %1636 = vmatpush.msra.mxu0 %v1635
    %v1637 = vand.u32 %v88, 4294901760
    %v1638 = vsub.f32 %v88, %v1637
    %v1639 = vand.u32 %v1638, 4294901760
    %v1640 = vsub.f32 %v1638, %v1639
    %v1641 = vand.u32 %v1640, 4294901760
    %1642 = vmatpush.msra.mxu0 %v1641
    %v1643 = vand.u32 %v87, 4294901760
    %v1644 = vsub.f32 %v87, %v1643
    %v1645 = vand.u32 %v1644, 4294901760
    %v1646 = vsub.f32 %v1644, %v1645
    %v1647 = vand.u32 %v1646, 4294901760
    %1648 = vmatpush.msra.mxu0 %v1647
    %v1649 = vand.u32 %v136, 4294901760
    %1650 = vmatmul.f32.gmra.mxu0 %v1649
    %v1651 = vpop.f32.mrf.mxu0
    %v1652 = vadd.f32 %v1551, %v1651
    %1653 = vdwg.mxu0
    %v1654 = vand.u32 %v102, 4294901760
    %v1655 = vsub.f32 %v102, %v1654
    %1656 = vmatpush.msra.mxu0 %v1655
    %v1657 = vand.u32 %v101, 4294901760
    %v1658 = vsub.f32 %v101, %v1657
    %1659 = vmatpush.msra.mxu0 %v1658
    %v1660 = vand.u32 %v100, 4294901760
    %v1661 = vsub.f32 %v100, %v1660
    %1662 = vmatpush.msra.mxu0 %v1661
    %v1663 = vand.u32 %v99, 4294901760
    %v1664 = vsub.f32 %v99, %v1663
    %1665 = vmatpush.msra.mxu0 %v1664
    %v1666 = vand.u32 %v98, 4294901760
    %v1667 = vsub.f32 %v98, %v1666
    %1668 = vmatpush.msra.mxu0 %v1667
    %v1669 = vand.u32 %v97, 4294901760
    %v1670 = vsub.f32 %v97, %v1669
    %1671 = vmatpush.msra.mxu0 %v1670
    %v1672 = vand.u32 %v96, 4294901760
    %v1673 = vsub.f32 %v96, %v1672
    %1674 = vmatpush.msra.mxu0 %v1673
    %v1675 = vand.u32 %v95, 4294901760
    %v1676 = vsub.f32 %v95, %v1675
    %1677 = vmatpush.msra.mxu0 %v1676
    %v1678 = vand.u32 %v94, 4294901760
    %v1679 = vsub.f32 %v94, %v1678
    %1680 = vmatpush.msra.mxu0 %v1679
    %v1681 = vand.u32 %v93, 4294901760
    %v1682 = vsub.f32 %v93, %v1681
    %1683 = vmatpush.msra.mxu0 %v1682
    %v1684 = vand.u32 %v92, 4294901760
    %v1685 = vsub.f32 %v92, %v1684
    %1686 = vmatpush.msra.mxu0 %v1685
    %v1687 = vand.u32 %v91, 4294901760
    %v1688 = vsub.f32 %v91, %v1687
    %1689 = vmatpush.msra.mxu0 %v1688
    %v1690 = vand.u32 %v90, 4294901760
    %v1691 = vsub.f32 %v90, %v1690
    %1692 = vmatpush.msra.mxu0 %v1691
    %v1693 = vand.u32 %v89, 4294901760
    %v1694 = vsub.f32 %v89, %v1693
    %1695 = vmatpush.msra.mxu0 %v1694
    %v1696 = vand.u32 %v88, 4294901760
    %v1697 = vsub.f32 %v88, %v1696
    %1698 = vmatpush.msra.mxu0 %v1697
    %v1699 = vand.u32 %v87, 4294901760
    %v1700 = vsub.f32 %v87, %v1699
    %1701 = vmatpush.msra.mxu0 %v1700
    %v1702 = vand.u32 %v136, 4294901760
    %v1703 = vsub.f32 %v136, %v1702
    %1704 = vmatmul.f32.gmra.mxu0 %v1703
    %v1705 = vpop.f32.mrf.mxu0
    %v1706 = vadd.f32 %v1652, %v1705
    %1707 = vdwg.mxu0
    %v1708 = vand.u32 %v102, 4294901760
    %1709 = vmatpush.msra.mxu0 %v1708
    %v1710 = vand.u32 %v101, 4294901760
    %1711 = vmatpush.msra.mxu0 %v1710
    %v1712 = vand.u32 %v100, 4294901760
    %1713 = vmatpush.msra.mxu0 %v1712
    %v1714 = vand.u32 %v99, 4294901760
    %1715 = vmatpush.msra.mxu0 %v1714
    %v1716 = vand.u32 %v98, 4294901760
    %1717 = vmatpush.msra.mxu0 %v1716
    %v1718 = vand.u32 %v97, 4294901760
    %1719 = vmatpush.msra.mxu0 %v1718
    %v1720 = vand.u32 %v96, 4294901760
    %1721 = vmatpush.msra.mxu0 %v1720
    %v1722 = vand.u32 %v95, 4294901760
    %1723 = vmatpush.msra.mxu0 %v1722
    %v1724 = vand.u32 %v94, 4294901760
    %1725 = vmatpush.msra.mxu0 %v1724
    %v1726 = vand.u32 %v93, 4294901760
    %1727 = vmatpush.msra.mxu0 %v1726
    %v1728 = vand.u32 %v92, 4294901760
    %1729 = vmatpush.msra.mxu0 %v1728
    %v1730 = vand.u32 %v91, 4294901760
    %1731 = vmatpush.msra.mxu0 %v1730
    %v1732 = vand.u32 %v90, 4294901760
    %1733 = vmatpush.msra.mxu0 %v1732
    %v1734 = vand.u32 %v89, 4294901760
    %1735 = vmatpush.msra.mxu0 %v1734
    %v1736 = vand.u32 %v88, 4294901760
    %1737 = vmatpush.msra.mxu0 %v1736
    %v1738 = vand.u32 %v87, 4294901760
    %1739 = vmatpush.msra.mxu0 %v1738
    %v1740 = vand.u32 %v136, 4294901760
    %v1741 = vsub.f32 %v136, %v1740
    %v1742 = vand.u32 %v1741, 4294901760
    %1743 = vmatmul.f32.gmra.mxu0 %v1742
    %v1744 = vpop.f32.mrf.mxu0
    %v1745 = vadd.f32 %v1706, %v1744
    %1746 = vdwg.mxu0
    %v1747 = vand.u32 %v102, 4294901760
    %v1748 = vsub.f32 %v102, %v1747
    %v1749 = vand.u32 %v1748, 4294901760
    %1750 = vmatpush.msra.mxu0 %v1749
    %v1751 = vand.u32 %v101, 4294901760
    %v1752 = vsub.f32 %v101, %v1751
    %v1753 = vand.u32 %v1752, 4294901760
    %1754 = vmatpush.msra.mxu0 %v1753
    %v1755 = vand.u32 %v100, 4294901760
    %v1756 = vsub.f32 %v100, %v1755
    %v1757 = vand.u32 %v1756, 4294901760
    %1758 = vmatpush.msra.mxu0 %v1757
    %v1759 = vand.u32 %v99, 4294901760
    %v1760 = vsub.f32 %v99, %v1759
    %v1761 = vand.u32 %v1760, 4294901760
    %1762 = vmatpush.msra.mxu0 %v1761
    %v1763 = vand.u32 %v98, 4294901760
    %v1764 = vsub.f32 %v98, %v1763
    %v1765 = vand.u32 %v1764, 4294901760
    %1766 = vmatpush.msra.mxu0 %v1765
    %v1767 = vand.u32 %v97, 4294901760
    %v1768 = vsub.f32 %v97, %v1767
    %v1769 = vand.u32 %v1768, 4294901760
    %1770 = vmatpush.msra.mxu0 %v1769
    %v1771 = vand.u32 %v96, 4294901760
    %v1772 = vsub.f32 %v96, %v1771
    %v1773 = vand.u32 %v1772, 4294901760
    %1774 = vmatpush.msra.mxu0 %v1773
    %v1775 = vand.u32 %v95, 4294901760
    %v1776 = vsub.f32 %v95, %v1775
    %v1777 = vand.u32 %v1776, 4294901760
    %1778 = vmatpush.msra.mxu0 %v1777
    %v1779 = vand.u32 %v94, 4294901760
    %v1780 = vsub.f32 %v94, %v1779
    %v1781 = vand.u32 %v1780, 4294901760
    %1782 = vmatpush.msra.mxu0 %v1781
    %v1783 = vand.u32 %v93, 4294901760
    %v1784 = vsub.f32 %v93, %v1783
    %v1785 = vand.u32 %v1784, 4294901760
    %1786 = vmatpush.msra.mxu0 %v1785
    %v1787 = vand.u32 %v92, 4294901760
    %v1788 = vsub.f32 %v92, %v1787
    %v1789 = vand.u32 %v1788, 4294901760
    %1790 = vmatpush.msra.mxu0 %v1789
    %v1791 = vand.u32 %v91, 4294901760
    %v1792 = vsub.f32 %v91, %v1791
    %v1793 = vand.u32 %v1792, 4294901760
    %1794 = vmatpush.msra.mxu0 %v1793
    %v1795 = vand.u32 %v90, 4294901760
    %v1796 = vsub.f32 %v90, %v1795
    %v1797 = vand.u32 %v1796, 4294901760
    %1798 = vmatpush.msra.mxu0 %v1797
    %v1799 = vand.u32 %v89, 4294901760
    %v1800 = vsub.f32 %v89, %v1799
    %v1801 = vand.u32 %v1800, 4294901760
    %1802 = vmatpush.msra.mxu0 %v1801
    %v1803 = vand.u32 %v88, 4294901760
    %v1804 = vsub.f32 %v88, %v1803
    %v1805 = vand.u32 %v1804, 4294901760
    %1806 = vmatpush.msra.mxu0 %v1805
    %v1807 = vand.u32 %v87, 4294901760
    %v1808 = vsub.f32 %v87, %v1807
    %v1809 = vand.u32 %v1808, 4294901760
    %1810 = vmatpush.msra.mxu0 %v1809
    %v1811 = vand.u32 %v136, 4294901760
    %1812 = vmatmul.f32.gmra.mxu0 %v1811
    %v1813 = vpop.f32.mrf.mxu0
    %v1814 = vadd.f32 %v1745, %v1813
    %1815 = vdwg.mxu0
    %v1816 = vand.u32 %v102, 4294901760
    %1817 = vmatpush.msra.mxu0 %v1816
    %v1818 = vand.u32 %v101, 4294901760
    %1819 = vmatpush.msra.mxu0 %v1818
    %v1820 = vand.u32 %v100, 4294901760
    %1821 = vmatpush.msra.mxu0 %v1820
    %v1822 = vand.u32 %v99, 4294901760
    %1823 = vmatpush.msra.mxu0 %v1822
    %v1824 = vand.u32 %v98, 4294901760
    %1825 = vmatpush.msra.mxu0 %v1824
    %v1826 = vand.u32 %v97, 4294901760
    %1827 = vmatpush.msra.mxu0 %v1826
    %v1828 = vand.u32 %v96, 4294901760
    %1829 = vmatpush.msra.mxu0 %v1828
    %v1830 = vand.u32 %v95, 4294901760
    %1831 = vmatpush.msra.mxu0 %v1830
    %v1832 = vand.u32 %v94, 4294901760
    %1833 = vmatpush.msra.mxu0 %v1832
    %v1834 = vand.u32 %v93, 4294901760
    %1835 = vmatpush.msra.mxu0 %v1834
    %v1836 = vand.u32 %v92, 4294901760
    %1837 = vmatpush.msra.mxu0 %v1836
    %v1838 = vand.u32 %v91, 4294901760
    %1839 = vmatpush.msra.mxu0 %v1838
    %v1840 = vand.u32 %v90, 4294901760
    %1841 = vmatpush.msra.mxu0 %v1840
    %v1842 = vand.u32 %v89, 4294901760
    %1843 = vmatpush.msra.mxu0 %v1842
    %v1844 = vand.u32 %v88, 4294901760
    %1845 = vmatpush.msra.mxu0 %v1844
    %v1846 = vand.u32 %v87, 4294901760
    %1847 = vmatpush.msra.mxu0 %v1846
    %v1848 = vand.u32 %v136, 4294901760
    %1849 = vmatmul.f32.gmra.mxu0 %v1848
    %v1850 = vpop.f32.mrf.mxu0
    %v1851 = vadd.f32 %v1814, %v1850
    %1852 = vdwg.mxu0
    %v1853 = vand.u32 %v118, 4294901760
    %1854 = vmatpush.msra.mxu0 %v1853
    %v1855 = vand.u32 %v117, 4294901760
    %1856 = vmatpush.msra.mxu0 %v1855
    %v1857 = vand.u32 %v116, 4294901760
    %1858 = vmatpush.msra.mxu0 %v1857
    %v1859 = vand.u32 %v115, 4294901760
    %1860 = vmatpush.msra.mxu0 %v1859
    %v1861 = vand.u32 %v114, 4294901760
    %1862 = vmatpush.msra.mxu0 %v1861
    %v1863 = vand.u32 %v113, 4294901760
    %1864 = vmatpush.msra.mxu0 %v1863
    %v1865 = vand.u32 %v112, 4294901760
    %1866 = vmatpush.msra.mxu0 %v1865
    %v1867 = vand.u32 %v111, 4294901760
    %1868 = vmatpush.msra.mxu0 %v1867
    %v1869 = vand.u32 %v110, 4294901760
    %1870 = vmatpush.msra.mxu0 %v1869
    %v1871 = vand.u32 %v109, 4294901760
    %1872 = vmatpush.msra.mxu0 %v1871
    %v1873 = vand.u32 %v108, 4294901760
    %1874 = vmatpush.msra.mxu0 %v1873
    %v1875 = vand.u32 %v107, 4294901760
    %1876 = vmatpush.msra.mxu0 %v1875
    %v1877 = vand.u32 %v106, 4294901760
    %1878 = vmatpush.msra.mxu0 %v1877
    %v1879 = vand.u32 %v105, 4294901760
    %1880 = vmatpush.msra.mxu0 %v1879
    %v1881 = vand.u32 %v104, 4294901760
    %1882 = vmatpush.msra.mxu0 %v1881
    %v1883 = vand.u32 %v103, 4294901760
    %1884 = vmatpush.msra.mxu0 %v1883
    %v1885 = vand.u32 %v137, 4294901760
    %v1886 = vsub.f32 %v137, %v1885
    %v1887 = vand.u32 %v1886, 4294901760
    %v1888 = vsub.f32 %v1886, %v1887
    %v1889 = vand.u32 %v1888, 4294901760
    %1890 = vmatmul.f32.gmra.mxu0 %v1889
    %v1891 = vpop.f32.mrf.mxu0
    %v1892 = vadd.f32 %v1851, %v1891
    %1893 = vdwg.mxu0
    %v1894 = vand.u32 %v118, 4294901760
    %v1895 = vsub.f32 %v118, %v1894
    %v1896 = vand.u32 %v1895, 4294901760
    %v1897 = vsub.f32 %v1895, %v1896
    %v1898 = vand.u32 %v1897, 4294901760
    %1899 = vmatpush.msra.mxu0 %v1898
    %v1900 = vand.u32 %v117, 4294901760
    %v1901 = vsub.f32 %v117, %v1900
    %v1902 = vand.u32 %v1901, 4294901760
    %v1903 = vsub.f32 %v1901, %v1902
    %v1904 = vand.u32 %v1903, 4294901760
    %1905 = vmatpush.msra.mxu0 %v1904
    %v1906 = vand.u32 %v116, 4294901760
    %v1907 = vsub.f32 %v116, %v1906
    %v1908 = vand.u32 %v1907, 4294901760
    %v1909 = vsub.f32 %v1907, %v1908
    %v1910 = vand.u32 %v1909, 4294901760
    %1911 = vmatpush.msra.mxu0 %v1910
    %v1912 = vand.u32 %v115, 4294901760
    %v1913 = vsub.f32 %v115, %v1912
    %v1914 = vand.u32 %v1913, 4294901760
    %v1915 = vsub.f32 %v1913, %v1914
    %v1916 = vand.u32 %v1915, 4294901760
    %1917 = vmatpush.msra.mxu0 %v1916
    %v1918 = vand.u32 %v114, 4294901760
    %v1919 = vsub.f32 %v114, %v1918
    %v1920 = vand.u32 %v1919, 4294901760
    %v1921 = vsub.f32 %v1919, %v1920
    %v1922 = vand.u32 %v1921, 4294901760
    %1923 = vmatpush.msra.mxu0 %v1922
    %v1924 = vand.u32 %v113, 4294901760
    %v1925 = vsub.f32 %v113, %v1924
    %v1926 = vand.u32 %v1925, 4294901760
    %v1927 = vsub.f32 %v1925, %v1926
    %v1928 = vand.u32 %v1927, 4294901760
    %1929 = vmatpush.msra.mxu0 %v1928
    %v1930 = vand.u32 %v112, 4294901760
    %v1931 = vsub.f32 %v112, %v1930
    %v1932 = vand.u32 %v1931, 4294901760
    %v1933 = vsub.f32 %v1931, %v1932
    %v1934 = vand.u32 %v1933, 4294901760
    %1935 = vmatpush.msra.mxu0 %v1934
    %v1936 = vand.u32 %v111, 4294901760
    %v1937 = vsub.f32 %v111, %v1936
    %v1938 = vand.u32 %v1937, 4294901760
    %v1939 = vsub.f32 %v1937, %v1938
    %v1940 = vand.u32 %v1939, 4294901760
    %1941 = vmatpush.msra.mxu0 %v1940
    %v1942 = vand.u32 %v110, 4294901760
    %v1943 = vsub.f32 %v110, %v1942
    %v1944 = vand.u32 %v1943, 4294901760
    %v1945 = vsub.f32 %v1943, %v1944
    %v1946 = vand.u32 %v1945, 4294901760
    %1947 = vmatpush.msra.mxu0 %v1946
    %v1948 = vand.u32 %v109, 4294901760
    %v1949 = vsub.f32 %v109, %v1948
    %v1950 = vand.u32 %v1949, 4294901760
    %v1951 = vsub.f32 %v1949, %v1950
    %v1952 = vand.u32 %v1951, 4294901760
    %1953 = vmatpush.msra.mxu0 %v1952
    %v1954 = vand.u32 %v108, 4294901760
    %v1955 = vsub.f32 %v108, %v1954
    %v1956 = vand.u32 %v1955, 4294901760
    %v1957 = vsub.f32 %v1955, %v1956
    %v1958 = vand.u32 %v1957, 4294901760
    %1959 = vmatpush.msra.mxu0 %v1958
    %v1960 = vand.u32 %v107, 4294901760
    %v1961 = vsub.f32 %v107, %v1960
    %v1962 = vand.u32 %v1961, 4294901760
    %v1963 = vsub.f32 %v1961, %v1962
    %v1964 = vand.u32 %v1963, 4294901760
    %1965 = vmatpush.msra.mxu0 %v1964
    %v1966 = vand.u32 %v106, 4294901760
    %v1967 = vsub.f32 %v106, %v1966
    %v1968 = vand.u32 %v1967, 4294901760
    %v1969 = vsub.f32 %v1967, %v1968
    %v1970 = vand.u32 %v1969, 4294901760
    %1971 = vmatpush.msra.mxu0 %v1970
    %v1972 = vand.u32 %v105, 4294901760
    %v1973 = vsub.f32 %v105, %v1972
    %v1974 = vand.u32 %v1973, 4294901760
    %v1975 = vsub.f32 %v1973, %v1974
    %v1976 = vand.u32 %v1975, 4294901760
    %1977 = vmatpush.msra.mxu0 %v1976
    %v1978 = vand.u32 %v104, 4294901760
    %v1979 = vsub.f32 %v104, %v1978
    %v1980 = vand.u32 %v1979, 4294901760
    %v1981 = vsub.f32 %v1979, %v1980
    %v1982 = vand.u32 %v1981, 4294901760
    %1983 = vmatpush.msra.mxu0 %v1982
    %v1984 = vand.u32 %v103, 4294901760
    %v1985 = vsub.f32 %v103, %v1984
    %v1986 = vand.u32 %v1985, 4294901760
    %v1987 = vsub.f32 %v1985, %v1986
    %v1988 = vand.u32 %v1987, 4294901760
    %1989 = vmatpush.msra.mxu0 %v1988
    %v1990 = vand.u32 %v137, 4294901760
    %1991 = vmatmul.f32.gmra.mxu0 %v1990
    %v1992 = vpop.f32.mrf.mxu0
    %v1993 = vadd.f32 %v1892, %v1992
    %1994 = vdwg.mxu0
    %v1995 = vand.u32 %v118, 4294901760
    %v1996 = vsub.f32 %v118, %v1995
    %1997 = vmatpush.msra.mxu0 %v1996
    %v1998 = vand.u32 %v117, 4294901760
    %v1999 = vsub.f32 %v117, %v1998
    %2000 = vmatpush.msra.mxu0 %v1999
    %v2001 = vand.u32 %v116, 4294901760
    %v2002 = vsub.f32 %v116, %v2001
    %2003 = vmatpush.msra.mxu0 %v2002
    %v2004 = vand.u32 %v115, 4294901760
    %v2005 = vsub.f32 %v115, %v2004
    %2006 = vmatpush.msra.mxu0 %v2005
    %v2007 = vand.u32 %v114, 4294901760
    %v2008 = vsub.f32 %v114, %v2007
    %2009 = vmatpush.msra.mxu0 %v2008
    %v2010 = vand.u32 %v113, 4294901760
    %v2011 = vsub.f32 %v113, %v2010
    %2012 = vmatpush.msra.mxu0 %v2011
    %v2013 = vand.u32 %v112, 4294901760
    %v2014 = vsub.f32 %v112, %v2013
    %2015 = vmatpush.msra.mxu0 %v2014
    %v2016 = vand.u32 %v111, 4294901760
    %v2017 = vsub.f32 %v111, %v2016
    %2018 = vmatpush.msra.mxu0 %v2017
    %v2019 = vand.u32 %v110, 4294901760
    %v2020 = vsub.f32 %v110, %v2019
    %2021 = vmatpush.msra.mxu0 %v2020
    %v2022 = vand.u32 %v109, 4294901760
    %v2023 = vsub.f32 %v109, %v2022
    %2024 = vmatpush.msra.mxu0 %v2023
    %v2025 = vand.u32 %v108, 4294901760
    %v2026 = vsub.f32 %v108, %v2025
    %2027 = vmatpush.msra.mxu0 %v2026
    %v2028 = vand.u32 %v107, 4294901760
    %v2029 = vsub.f32 %v107, %v2028
    %2030 = vmatpush.msra.mxu0 %v2029
    %v2031 = vand.u32 %v106, 4294901760
    %v2032 = vsub.f32 %v106, %v2031
    %2033 = vmatpush.msra.mxu0 %v2032
    %v2034 = vand.u32 %v105, 4294901760
    %v2035 = vsub.f32 %v105, %v2034
    %2036 = vmatpush.msra.mxu0 %v2035
    %v2037 = vand.u32 %v104, 4294901760
    %v2038 = vsub.f32 %v104, %v2037
    %2039 = vmatpush.msra.mxu0 %v2038
    %v2040 = vand.u32 %v103, 4294901760
    %v2041 = vsub.f32 %v103, %v2040
    %2042 = vmatpush.msra.mxu0 %v2041
    %v2043 = vand.u32 %v137, 4294901760
    %v2044 = vsub.f32 %v137, %v2043
    %2045 = vmatmul.f32.gmra.mxu0 %v2044
    %v2046 = vpop.f32.mrf.mxu0
    %v2047 = vadd.f32 %v1993, %v2046
    %2048 = vdwg.mxu0
    %v2049 = vand.u32 %v118, 4294901760
    %2050 = vmatpush.msra.mxu0 %v2049
    %v2051 = vand.u32 %v117, 4294901760
    %2052 = vmatpush.msra.mxu0 %v2051
    %v2053 = vand.u32 %v116, 4294901760
    %2054 = vmatpush.msra.mxu0 %v2053
    %v2055 = vand.u32 %v115, 4294901760
    %2056 = vmatpush.msra.mxu0 %v2055
    %v2057 = vand.u32 %v114, 4294901760
    %2058 = vmatpush.msra.mxu0 %v2057
    %v2059 = vand.u32 %v113, 4294901760
    %2060 = vmatpush.msra.mxu0 %v2059
    %v2061 = vand.u32 %v112, 4294901760
    %2062 = vmatpush.msra.mxu0 %v2061
    %v2063 = vand.u32 %v111, 4294901760
    %2064 = vmatpush.msra.mxu0 %v2063
    %v2065 = vand.u32 %v110, 4294901760
    %2066 = vmatpush.msra.mxu0 %v2065
    %v2067 = vand.u32 %v109, 4294901760
    %2068 = vmatpush.msra.mxu0 %v2067
    %v2069 = vand.u32 %v108, 4294901760
    %2070 = vmatpush.msra.mxu0 %v2069
    %v2071 = vand.u32 %v107, 4294901760
    %2072 = vmatpush.msra.mxu0 %v2071
    %v2073 = vand.u32 %v106, 4294901760
    %2074 = vmatpush.msra.mxu0 %v2073
    %v2075 = vand.u32 %v105, 4294901760
    %2076 = vmatpush.msra.mxu0 %v2075
    %v2077 = vand.u32 %v104, 4294901760
    %2078 = vmatpush.msra.mxu0 %v2077
    %v2079 = vand.u32 %v103, 4294901760
    %2080 = vmatpush.msra.mxu0 %v2079
    %v2081 = vand.u32 %v137, 4294901760
    %v2082 = vsub.f32 %v137, %v2081
    %v2083 = vand.u32 %v2082, 4294901760
    %2084 = vmatmul.f32.gmra.mxu0 %v2083
    %v2085 = vpop.f32.mrf.mxu0
    %v2086 = vadd.f32 %v2047, %v2085
    %2087 = vdwg.mxu0
    %v2088 = vand.u32 %v118, 4294901760
    %v2089 = vsub.f32 %v118, %v2088
    %v2090 = vand.u32 %v2089, 4294901760
    %2091 = vmatpush.msra.mxu0 %v2090
    %v2092 = vand.u32 %v117, 4294901760
    %v2093 = vsub.f32 %v117, %v2092
    %v2094 = vand.u32 %v2093, 4294901760
    %2095 = vmatpush.msra.mxu0 %v2094
    %v2096 = vand.u32 %v116, 4294901760
    %v2097 = vsub.f32 %v116, %v2096
    %v2098 = vand.u32 %v2097, 4294901760
    %2099 = vmatpush.msra.mxu0 %v2098
    %v2100 = vand.u32 %v115, 4294901760
    %v2101 = vsub.f32 %v115, %v2100
    %v2102 = vand.u32 %v2101, 4294901760
    %2103 = vmatpush.msra.mxu0 %v2102
    %v2104 = vand.u32 %v114, 4294901760
    %v2105 = vsub.f32 %v114, %v2104
    %v2106 = vand.u32 %v2105, 4294901760
    %2107 = vmatpush.msra.mxu0 %v2106
    %v2108 = vand.u32 %v113, 4294901760
    %v2109 = vsub.f32 %v113, %v2108
    %v2110 = vand.u32 %v2109, 4294901760
    %2111 = vmatpush.msra.mxu0 %v2110
    %v2112 = vand.u32 %v112, 4294901760
    %v2113 = vsub.f32 %v112, %v2112
    %v2114 = vand.u32 %v2113, 4294901760
    %2115 = vmatpush.msra.mxu0 %v2114
    %v2116 = vand.u32 %v111, 4294901760
    %v2117 = vsub.f32 %v111, %v2116
    %v2118 = vand.u32 %v2117, 4294901760
    %2119 = vmatpush.msra.mxu0 %v2118
    %v2120 = vand.u32 %v110, 4294901760
    %v2121 = vsub.f32 %v110, %v2120
    %v2122 = vand.u32 %v2121, 4294901760
    %2123 = vmatpush.msra.mxu0 %v2122
    %v2124 = vand.u32 %v109, 4294901760
    %v2125 = vsub.f32 %v109, %v2124
    %v2126 = vand.u32 %v2125, 4294901760
    %2127 = vmatpush.msra.mxu0 %v2126
    %v2128 = vand.u32 %v108, 4294901760
    %v2129 = vsub.f32 %v108, %v2128
    %v2130 = vand.u32 %v2129, 4294901760
    %2131 = vmatpush.msra.mxu0 %v2130
    %v2132 = vand.u32 %v107, 4294901760
    %v2133 = vsub.f32 %v107, %v2132
    %v2134 = vand.u32 %v2133, 4294901760
    %2135 = vmatpush.msra.mxu0 %v2134
    %v2136 = vand.u32 %v106, 4294901760
    %v2137 = vsub.f32 %v106, %v2136
    %v2138 = vand.u32 %v2137, 4294901760
    %2139 = vmatpush.msra.mxu0 %v2138
    %v2140 = vand.u32 %v105, 4294901760
    %v2141 = vsub.f32 %v105, %v2140
    %v2142 = vand.u32 %v2141, 4294901760
    %2143 = vmatpush.msra.mxu0 %v2142
    %v2144 = vand.u32 %v104, 4294901760
    %v2145 = vsub.f32 %v104, %v2144
    %v2146 = vand.u32 %v2145, 4294901760
    %2147 = vmatpush.msra.mxu0 %v2146
    %v2148 = vand.u32 %v103, 4294901760
    %v2149 = vsub.f32 %v103, %v2148
    %v2150 = vand.u32 %v2149, 4294901760
    %2151 = vmatpush.msra.mxu0 %v2150
    %v2152 = vand.u32 %v137, 4294901760
    %2153 = vmatmul.f32.gmra.mxu0 %v2152
    %v2154 = vpop.f32.mrf.mxu0
    %v2155 = vadd.f32 %v2086, %v2154
    %2156 = vdwg.mxu0
    %v2157 = vand.u32 %v118, 4294901760
    %2158 = vmatpush.msra.mxu0 %v2157
    %v2159 = vand.u32 %v117, 4294901760
    %2160 = vmatpush.msra.mxu0 %v2159
    %v2161 = vand.u32 %v116, 4294901760
    %2162 = vmatpush.msra.mxu0 %v2161
    %v2163 = vand.u32 %v115, 4294901760
    %2164 = vmatpush.msra.mxu0 %v2163
    %v2165 = vand.u32 %v114, 4294901760
    %2166 = vmatpush.msra.mxu0 %v2165
    %v2167 = vand.u32 %v113, 4294901760
    %2168 = vmatpush.msra.mxu0 %v2167
    %v2169 = vand.u32 %v112, 4294901760
    %2170 = vmatpush.msra.mxu0 %v2169
    %v2171 = vand.u32 %v111, 4294901760
    %2172 = vmatpush.msra.mxu0 %v2171
    %v2173 = vand.u32 %v110, 4294901760
    %2174 = vmatpush.msra.mxu0 %v2173
    %v2175 = vand.u32 %v109, 4294901760
    %2176 = vmatpush.msra.mxu0 %v2175
    %v2177 = vand.u32 %v108, 4294901760
    %2178 = vmatpush.msra.mxu0 %v2177
    %v2179 = vand.u32 %v107, 4294901760
    %2180 = vmatpush.msra.mxu0 %v2179
    %v2181 = vand.u32 %v106, 4294901760
    %2182 = vmatpush.msra.mxu0 %v2181
    %v2183 = vand.u32 %v105, 4294901760
    %2184 = vmatpush.msra.mxu0 %v2183
    %v2185 = vand.u32 %v104, 4294901760
    %2186 = vmatpush.msra.mxu0 %v2185
    %v2187 = vand.u32 %v103, 4294901760
    %2188 = vmatpush.msra.mxu0 %v2187
    %v2189 = vand.u32 %v137, 4294901760
    %2190 = vmatmul.f32.gmra.mxu0 %v2189
    %v2191 = vpop.f32.mrf.mxu0
    %v2192 = vadd.f32 %v2155, %v2191
    %2193 = vdwg.mxu0
    %2194 = vmatpush.msra.mxu0 0.0
    %2195 = vmatpush.msra.mxu0 0.0
    %2196 = vmatpush.msra.mxu0 0.0
    %2197 = vmatpush.msra.mxu0 0.0
    %2198 = vmatpush.msra.mxu0 0.0
    %2199 = vmatpush.msra.mxu0 0.0
    %2200 = vmatpush.msra.mxu0 0.0
    %2201 = vmatpush.msra.mxu0 0.0
    %2202 = vmatpush.msra.mxu0 0.0
    %2203 = vmatpush.msra.mxu0 0.0
    %2204 = vmatpush.msra.mxu0 0.0
    %2205 = vmatpush.msra.mxu0 0.0
    %v2206 = vand.u32 %v122, 4294901760
    %2207 = vmatpush.msra.mxu0 %v2206
    %v2208 = vand.u32 %v121, 4294901760
    %2209 = vmatpush.msra.mxu0 %v2208
    %v2210 = vand.u32 %v120, 4294901760
    %2211 = vmatpush.msra.mxu0 %v2210
    %v2212 = vand.u32 %v119, 4294901760
    %2213 = vmatpush.msra.mxu0 %v2212
    %v2214 = vand.u32 %v146, 4294901760
    %v2215 = vsub.f32 %v146, %v2214
    %v2216 = vand.u32 %v2215, 4294901760
    %v2217 = vsub.f32 %v2215, %v2216
    %v2218 = vand.u32 %v2217, 4294901760
    %2219 = vmatmul.f32.gmra.mxu0 %v2218
    %v2220 = vpop.f32.mrf.mxu0
    %v2221 = vadd.f32 %v2192, %v2220
    %2222 = vdwg.mxu0
    %2223 = vmatpush.msra.mxu0 0.0
    %2224 = vmatpush.msra.mxu0 0.0
    %2225 = vmatpush.msra.mxu0 0.0
    %2226 = vmatpush.msra.mxu0 0.0
    %2227 = vmatpush.msra.mxu0 0.0
    %2228 = vmatpush.msra.mxu0 0.0
    %2229 = vmatpush.msra.mxu0 0.0
    %2230 = vmatpush.msra.mxu0 0.0
    %2231 = vmatpush.msra.mxu0 0.0
    %2232 = vmatpush.msra.mxu0 0.0
    %2233 = vmatpush.msra.mxu0 0.0
    %2234 = vmatpush.msra.mxu0 0.0
    %v2235 = vand.u32 %v122, 4294901760
    %v2236 = vsub.f32 %v122, %v2235
    %v2237 = vand.u32 %v2236, 4294901760
    %v2238 = vsub.f32 %v2236, %v2237
    %v2239 = vand.u32 %v2238, 4294901760
    %2240 = vmatpush.msra.mxu0 %v2239
    %v2241 = vand.u32 %v121, 4294901760
    %v2242 = vsub.f32 %v121, %v2241
    %v2243 = vand.u32 %v2242, 4294901760
    %v2244 = vsub.f32 %v2242, %v2243
    %v2245 = vand.u32 %v2244, 4294901760
    %2246 = vmatpush.msra.mxu0 %v2245
    %v2247 = vand.u32 %v120, 4294901760
    %v2248 = vsub.f32 %v120, %v2247
    %v2249 = vand.u32 %v2248, 4294901760
    %v2250 = vsub.f32 %v2248, %v2249
    %v2251 = vand.u32 %v2250, 4294901760
    %2252 = vmatpush.msra.mxu0 %v2251
    %v2253 = vand.u32 %v119, 4294901760
    %v2254 = vsub.f32 %v119, %v2253
    %v2255 = vand.u32 %v2254, 4294901760
    %v2256 = vsub.f32 %v2254, %v2255
    %v2257 = vand.u32 %v2256, 4294901760
    %2258 = vmatpush.msra.mxu0 %v2257
    %v2259 = vand.u32 %v146, 4294901760
    %2260 = vmatmul.f32.gmra.mxu0 %v2259
    %v2261 = vpop.f32.mrf.mxu0
    %v2262 = vadd.f32 %v2221, %v2261
    %2263 = vdwg.mxu0
    %2264 = vmatpush.msra.mxu0 0.0
    %2265 = vmatpush.msra.mxu0 0.0
    %2266 = vmatpush.msra.mxu0 0.0
    %2267 = vmatpush.msra.mxu0 0.0
    %2268 = vmatpush.msra.mxu0 0.0
    %2269 = vmatpush.msra.mxu0 0.0
    %2270 = vmatpush.msra.mxu0 0.0
    %2271 = vmatpush.msra.mxu0 0.0
    %2272 = vmatpush.msra.mxu0 0.0
    %2273 = vmatpush.msra.mxu0 0.0
    %2274 = vmatpush.msra.mxu0 0.0
    %2275 = vmatpush.msra.mxu0 0.0
    %v2276 = vand.u32 %v122, 4294901760
    %v2277 = vsub.f32 %v122, %v2276
    %2278 = vmatpush.msra.mxu0 %v2277
    %v2279 = vand.u32 %v121, 4294901760
    %v2280 = vsub.f32 %v121, %v2279
    %2281 = vmatpush.msra.mxu0 %v2280
    %v2282 = vand.u32 %v120, 4294901760
    %v2283 = vsub.f32 %v120, %v2282
    %2284 = vmatpush.msra.mxu0 %v2283
    %v2285 = vand.u32 %v119, 4294901760
    %v2286 = vsub.f32 %v119, %v2285
    %2287 = vmatpush.msra.mxu0 %v2286
    %v2288 = vand.u32 %v146, 4294901760
    %v2289 = vsub.f32 %v146, %v2288
    %2290 = vmatmul.f32.gmra.mxu0 %v2289
    %v2291 = vpop.f32.mrf.mxu0
    %v2292 = vadd.f32 %v2262, %v2291
    %2293 = vdwg.mxu0
    %2294 = vmatpush.msra.mxu0 0.0
    %2295 = vmatpush.msra.mxu0 0.0
    %2296 = vmatpush.msra.mxu0 0.0
    %2297 = vmatpush.msra.mxu0 0.0
    %2298 = vmatpush.msra.mxu0 0.0
    %2299 = vmatpush.msra.mxu0 0.0
    %2300 = vmatpush.msra.mxu0 0.0
    %2301 = vmatpush.msra.mxu0 0.0
    %2302 = vmatpush.msra.mxu0 0.0
    %2303 = vmatpush.msra.mxu0 0.0
    %2304 = vmatpush.msra.mxu0 0.0
    %2305 = vmatpush.msra.mxu0 0.0
    %v2306 = vand.u32 %v122, 4294901760
    %2307 = vmatpush.msra.mxu0 %v2306
    %v2308 = vand.u32 %v121, 4294901760
    %2309 = vmatpush.msra.mxu0 %v2308
    %v2310 = vand.u32 %v120, 4294901760
    %2311 = vmatpush.msra.mxu0 %v2310
    %v2312 = vand.u32 %v119, 4294901760
    %2313 = vmatpush.msra.mxu0 %v2312
    %v2314 = vand.u32 %v146, 4294901760
    %v2315 = vsub.f32 %v146, %v2314
    %v2316 = vand.u32 %v2315, 4294901760
    %2317 = vmatmul.f32.gmra.mxu0 %v2316
    %v2318 = vpop.f32.mrf.mxu0
    %v2319 = vadd.f32 %v2292, %v2318
    %2320 = vdwg.mxu0
    %2321 = vmatpush.msra.mxu0 0.0
    %2322 = vmatpush.msra.mxu0 0.0
    %2323 = vmatpush.msra.mxu0 0.0
    %2324 = vmatpush.msra.mxu0 0.0
    %2325 = vmatpush.msra.mxu0 0.0
    %2326 = vmatpush.msra.mxu0 0.0
    %2327 = vmatpush.msra.mxu0 0.0
    %2328 = vmatpush.msra.mxu0 0.0
    %2329 = vmatpush.msra.mxu0 0.0
    %2330 = vmatpush.msra.mxu0 0.0
    %2331 = vmatpush.msra.mxu0 0.0
    %2332 = vmatpush.msra.mxu0 0.0
    %v2333 = vand.u32 %v122, 4294901760
    %v2334 = vsub.f32 %v122, %v2333
    %v2335 = vand.u32 %v2334, 4294901760
    %2336 = vmatpush.msra.mxu0 %v2335
    %v2337 = vand.u32 %v121, 4294901760
    %v2338 = vsub.f32 %v121, %v2337
    %v2339 = vand.u32 %v2338, 4294901760
    %2340 = vmatpush.msra.mxu0 %v2339
    %v2341 = vand.u32 %v120, 4294901760
    %v2342 = vsub.f32 %v120, %v2341
    %v2343 = vand.u32 %v2342, 4294901760
    %2344 = vmatpush.msra.mxu0 %v2343
    %v2345 = vand.u32 %v119, 4294901760
    %v2346 = vsub.f32 %v119, %v2345
    %v2347 = vand.u32 %v2346, 4294901760
    %2348 = vmatpush.msra.mxu0 %v2347
    %v2349 = vand.u32 %v146, 4294901760
    %2350 = vmatmul.f32.gmra.mxu0 %v2349
    %v2351 = vpop.f32.mrf.mxu0
    %v2352 = vadd.f32 %v2319, %v2351
    %2353 = vdwg.mxu0
    %2354 = vmatpush.msra.mxu0 0.0
    %2355 = vmatpush.msra.mxu0 0.0
    %2356 = vmatpush.msra.mxu0 0.0
    %2357 = vmatpush.msra.mxu0 0.0
    %2358 = vmatpush.msra.mxu0 0.0
    %2359 = vmatpush.msra.mxu0 0.0
    %2360 = vmatpush.msra.mxu0 0.0
    %2361 = vmatpush.msra.mxu0 0.0
    %2362 = vmatpush.msra.mxu0 0.0
    %2363 = vmatpush.msra.mxu0 0.0
    %2364 = vmatpush.msra.mxu0 0.0
    %2365 = vmatpush.msra.mxu0 0.0
    %v2366 = vand.u32 %v122, 4294901760
    %2367 = vmatpush.msra.mxu0 %v2366
    %v2368 = vand.u32 %v121, 4294901760
    %2369 = vmatpush.msra.mxu0 %v2368
    %v2370 = vand.u32 %v120, 4294901760
    %2371 = vmatpush.msra.mxu0 %v2370
    %v2372 = vand.u32 %v119, 4294901760
    %2373 = vmatpush.msra.mxu0 %v2372
    %v2374 = vand.u32 %v146, 4294901760
    %2375 = vmatmul.f32.gmra.mxu0 %v2374
    %v2376 = vpop.f32.mrf.mxu0
    %v2377 = vadd.f32 %v2352, %v2376
    %2378 = vdwg.mxu0
    %v2379 = vmax.f32 %v2377, 0.0
    %v2380 = vld [vmem:[%s3] sm:$0xff]
    %v2381 = vld [vmem:[%s3 + $0x8] sm:$0xff]
    %v2382 = vld [vmem:[%s3 + $0x10] sm:$0xff]
    %v2383 = vld [vmem:[%s3 + $0x18] sm:$0xff]
    %v2384 = vld [vmem:[%s3 + $0x20] sm:$0xff]
    %v2385 = vld [vmem:[%s3 + $0x28] sm:$0xff]
    %v2386 = vld [vmem:[%s3 + $0x30] sm:$0xff]
    %v2387 = vld [vmem:[%s3 + $0x38] sm:$0xff]
    %v2388 = vld [vmem:[%s3 + $0x40] sm:$0xff]
    %v2389 = vld [vmem:[%s3 + $0x48] sm:$0xff]
    %v2390 = vld [vmem:[%s3 + $0x50] sm:$0xff]
    %v2391 = vld [vmem:[%s3 + $0x58] sm:$0xff]
    %v2392 = vld [vmem:[%s3 + $0x60] sm:$0xff]
    %v2393 = vld [vmem:[%s3 + $0x68] sm:$0xff]
    %v2394 = vld [vmem:[%s3 + $0x70] sm:$0xff]
    %v2395 = vld [vmem:[%s4] sm:$0x1]
    %v2397 = vperm.slane %v2395, 0
    %vm2399 = vcmask 982016
    %v2401 = vsel %vm2399, %v2379, 0
    %2403 = vmatpush.msra.mxu0 0.0
    %v2404 = vand.u32 %v2394, 4294901760
    %2405 = vmatpush.msra.mxu0 %v2404
    %v2406 = vand.u32 %v2393, 4294901760
    %2407 = vmatpush.msra.mxu0 %v2406
    %v2408 = vand.u32 %v2392, 4294901760
    %2409 = vmatpush.msra.mxu0 %v2408
    %v2410 = vand.u32 %v2391, 4294901760
    %2411 = vmatpush.msra.mxu0 %v2410
    %v2412 = vand.u32 %v2390, 4294901760
    %2413 = vmatpush.msra.mxu0 %v2412
    %v2414 = vand.u32 %v2389, 4294901760
    %2415 = vmatpush.msra.mxu0 %v2414
    %v2416 = vand.u32 %v2388, 4294901760
    %2417 = vmatpush.msra.mxu0 %v2416
    %v2418 = vand.u32 %v2387, 4294901760
    %2419 = vmatpush.msra.mxu0 %v2418
    %v2420 = vand.u32 %v2386, 4294901760
    %2421 = vmatpush.msra.mxu0 %v2420
    %v2422 = vand.u32 %v2385, 4294901760
    %2423 = vmatpush.msra.mxu0 %v2422
    %v2424 = vand.u32 %v2384, 4294901760
    %2425 = vmatpush.msra.mxu0 %v2424
    %v2426 = vand.u32 %v2383, 4294901760
    %2427 = vmatpush.msra.mxu0 %v2426
    %v2428 = vand.u32 %v2382, 4294901760
    %2429 = vmatpush.msra.mxu0 %v2428
    %v2430 = vand.u32 %v2381, 4294901760
    %2431 = vmatpush.msra.mxu0 %v2430
    %v2432 = vand.u32 %v2380, 4294901760
    %2433 = vmatpush.msra.mxu0 %v2432
    %v2434 = vand.u32 %v2401, 4294901760
    %v2435 = vsub.f32 %v2401, %v2434
    %v2436 = vand.u32 %v2435, 4294901760
    %v2437 = vsub.f32 %v2435, %v2436
    %v2438 = vand.u32 %v2437, 4294901760
    %2439 = vmatmul.f32.gmra.mxu0 %v2438
    %v2440 = vpop.f32.mrf.mxu0
    %v2441 = vadd.f32 %v2397, %v2440
    %2442 = vdwg.mxu0
    %2443 = vmatpush.msra.mxu0 0.0
    %v2444 = vand.u32 %v2394, 4294901760
    %v2445 = vsub.f32 %v2394, %v2444
    %v2446 = vand.u32 %v2445, 4294901760
    %v2447 = vsub.f32 %v2445, %v2446
    %v2448 = vand.u32 %v2447, 4294901760
    %2449 = vmatpush.msra.mxu0 %v2448
    %v2450 = vand.u32 %v2393, 4294901760
    %v2451 = vsub.f32 %v2393, %v2450
    %v2452 = vand.u32 %v2451, 4294901760
    %v2453 = vsub.f32 %v2451, %v2452
    %v2454 = vand.u32 %v2453, 4294901760
    %2455 = vmatpush.msra.mxu0 %v2454
    %v2456 = vand.u32 %v2392, 4294901760
    %v2457 = vsub.f32 %v2392, %v2456
    %v2458 = vand.u32 %v2457, 4294901760
    %v2459 = vsub.f32 %v2457, %v2458
    %v2460 = vand.u32 %v2459, 4294901760
    %2461 = vmatpush.msra.mxu0 %v2460
    %v2462 = vand.u32 %v2391, 4294901760
    %v2463 = vsub.f32 %v2391, %v2462
    %v2464 = vand.u32 %v2463, 4294901760
    %v2465 = vsub.f32 %v2463, %v2464
    %v2466 = vand.u32 %v2465, 4294901760
    %2467 = vmatpush.msra.mxu0 %v2466
    %v2468 = vand.u32 %v2390, 4294901760
    %v2469 = vsub.f32 %v2390, %v2468
    %v2470 = vand.u32 %v2469, 4294901760
    %v2471 = vsub.f32 %v2469, %v2470
    %v2472 = vand.u32 %v2471, 4294901760
    %2473 = vmatpush.msra.mxu0 %v2472
    %v2474 = vand.u32 %v2389, 4294901760
    %v2475 = vsub.f32 %v2389, %v2474
    %v2476 = vand.u32 %v2475, 4294901760
    %v2477 = vsub.f32 %v2475, %v2476
    %v2478 = vand.u32 %v2477, 4294901760
    %2479 = vmatpush.msra.mxu0 %v2478
    %v2480 = vand.u32 %v2388, 4294901760
    %v2481 = vsub.f32 %v2388, %v2480
    %v2482 = vand.u32 %v2481, 4294901760
    %v2483 = vsub.f32 %v2481, %v2482
    %v2484 = vand.u32 %v2483, 4294901760
    %2485 = vmatpush.msra.mxu0 %v2484
    %v2486 = vand.u32 %v2387, 4294901760
    %v2487 = vsub.f32 %v2387, %v2486
    %v2488 = vand.u32 %v2487, 4294901760
    %v2489 = vsub.f32 %v2487, %v2488
    %v2490 = vand.u32 %v2489, 4294901760
    %2491 = vmatpush.msra.mxu0 %v2490
    %v2492 = vand.u32 %v2386, 4294901760
    %v2493 = vsub.f32 %v2386, %v2492
    %v2494 = vand.u32 %v2493, 4294901760
    %v2495 = vsub.f32 %v2493, %v2494
    %v2496 = vand.u32 %v2495, 4294901760
    %2497 = vmatpush.msra.mxu0 %v2496
    %v2498 = vand.u32 %v2385, 4294901760
    %v2499 = vsub.f32 %v2385, %v2498
    %v2500 = vand.u32 %v2499, 4294901760
    %v2501 = vsub.f32 %v2499, %v2500
    %v2502 = vand.u32 %v2501, 4294901760
    %2503 = vmatpush.msra.mxu0 %v2502
    %v2504 = vand.u32 %v2384, 4294901760
    %v2505 = vsub.f32 %v2384, %v2504
    %v2506 = vand.u32 %v2505, 4294901760
    %v2507 = vsub.f32 %v2505, %v2506
    %v2508 = vand.u32 %v2507, 4294901760
    %2509 = vmatpush.msra.mxu0 %v2508
    %v2510 = vand.u32 %v2383, 4294901760
    %v2511 = vsub.f32 %v2383, %v2510
    %v2512 = vand.u32 %v2511, 4294901760
    %v2513 = vsub.f32 %v2511, %v2512
    %v2514 = vand.u32 %v2513, 4294901760
    %2515 = vmatpush.msra.mxu0 %v2514
    %v2516 = vand.u32 %v2382, 4294901760
    %v2517 = vsub.f32 %v2382, %v2516
    %v2518 = vand.u32 %v2517, 4294901760
    %v2519 = vsub.f32 %v2517, %v2518
    %v2520 = vand.u32 %v2519, 4294901760
    %2521 = vmatpush.msra.mxu0 %v2520
    %v2522 = vand.u32 %v2381, 4294901760
    %v2523 = vsub.f32 %v2381, %v2522
    %v2524 = vand.u32 %v2523, 4294901760
    %v2525 = vsub.f32 %v2523, %v2524
    %v2526 = vand.u32 %v2525, 4294901760
    %2527 = vmatpush.msra.mxu0 %v2526
    %v2528 = vand.u32 %v2380, 4294901760
    %v2529 = vsub.f32 %v2380, %v2528
    %v2530 = vand.u32 %v2529, 4294901760
    %v2531 = vsub.f32 %v2529, %v2530
    %v2532 = vand.u32 %v2531, 4294901760
    %2533 = vmatpush.msra.mxu0 %v2532
    %v2534 = vand.u32 %v2401, 4294901760
    %2535 = vmatmul.f32.gmra.mxu0 %v2534
    %v2536 = vpop.f32.mrf.mxu0
    %v2537 = vadd.f32 %v2441, %v2536
    %2538 = vdwg.mxu0
    %2539 = vmatpush.msra.mxu0 0.0
    %v2540 = vand.u32 %v2394, 4294901760
    %v2541 = vsub.f32 %v2394, %v2540
    %2542 = vmatpush.msra.mxu0 %v2541
    %v2543 = vand.u32 %v2393, 4294901760
    %v2544 = vsub.f32 %v2393, %v2543
    %2545 = vmatpush.msra.mxu0 %v2544
    %v2546 = vand.u32 %v2392, 4294901760
    %v2547 = vsub.f32 %v2392, %v2546
    %2548 = vmatpush.msra.mxu0 %v2547
    %v2549 = vand.u32 %v2391, 4294901760
    %v2550 = vsub.f32 %v2391, %v2549
    %2551 = vmatpush.msra.mxu0 %v2550
    %v2552 = vand.u32 %v2390, 4294901760
    %v2553 = vsub.f32 %v2390, %v2552
    %2554 = vmatpush.msra.mxu0 %v2553
    %v2555 = vand.u32 %v2389, 4294901760
    %v2556 = vsub.f32 %v2389, %v2555
    %2557 = vmatpush.msra.mxu0 %v2556
    %v2558 = vand.u32 %v2388, 4294901760
    %v2559 = vsub.f32 %v2388, %v2558
    %2560 = vmatpush.msra.mxu0 %v2559
    %v2561 = vand.u32 %v2387, 4294901760
    %v2562 = vsub.f32 %v2387, %v2561
    %2563 = vmatpush.msra.mxu0 %v2562
    %v2564 = vand.u32 %v2386, 4294901760
    %v2565 = vsub.f32 %v2386, %v2564
    %2566 = vmatpush.msra.mxu0 %v2565
    %v2567 = vand.u32 %v2385, 4294901760
    %v2568 = vsub.f32 %v2385, %v2567
    %2569 = vmatpush.msra.mxu0 %v2568
    %v2570 = vand.u32 %v2384, 4294901760
    %v2571 = vsub.f32 %v2384, %v2570
    %2572 = vmatpush.msra.mxu0 %v2571
    %v2573 = vand.u32 %v2383, 4294901760
    %v2574 = vsub.f32 %v2383, %v2573
    %2575 = vmatpush.msra.mxu0 %v2574
    %v2576 = vand.u32 %v2382, 4294901760
    %v2577 = vsub.f32 %v2382, %v2576
    %2578 = vmatpush.msra.mxu0 %v2577
    %v2579 = vand.u32 %v2381, 4294901760
    %v2580 = vsub.f32 %v2381, %v2579
    %2581 = vmatpush.msra.mxu0 %v2580
    %v2582 = vand.u32 %v2380, 4294901760
    %v2583 = vsub.f32 %v2380, %v2582
    %2584 = vmatpush.msra.mxu0 %v2583
    %v2585 = vand.u32 %v2401, 4294901760
    %v2586 = vsub.f32 %v2401, %v2585
    %2587 = vmatmul.f32.gmra.mxu0 %v2586
    %v2588 = vpop.f32.mrf.mxu0
    %v2589 = vadd.f32 %v2537, %v2588
    %2590 = vdwg.mxu0
    %2591 = vmatpush.msra.mxu0 0.0
    %v2592 = vand.u32 %v2394, 4294901760
    %2593 = vmatpush.msra.mxu0 %v2592
    %v2594 = vand.u32 %v2393, 4294901760
    %2595 = vmatpush.msra.mxu0 %v2594
    %v2596 = vand.u32 %v2392, 4294901760
    %2597 = vmatpush.msra.mxu0 %v2596
    %v2598 = vand.u32 %v2391, 4294901760
    %2599 = vmatpush.msra.mxu0 %v2598
    %v2600 = vand.u32 %v2390, 4294901760
    %2601 = vmatpush.msra.mxu0 %v2600
    %v2602 = vand.u32 %v2389, 4294901760
    %2603 = vmatpush.msra.mxu0 %v2602
    %v2604 = vand.u32 %v2388, 4294901760
    %2605 = vmatpush.msra.mxu0 %v2604
    %v2606 = vand.u32 %v2387, 4294901760
    %2607 = vmatpush.msra.mxu0 %v2606
    %v2608 = vand.u32 %v2386, 4294901760
    %2609 = vmatpush.msra.mxu0 %v2608
    %v2610 = vand.u32 %v2385, 4294901760
    %2611 = vmatpush.msra.mxu0 %v2610
    %v2612 = vand.u32 %v2384, 4294901760
    %2613 = vmatpush.msra.mxu0 %v2612
    %v2614 = vand.u32 %v2383, 4294901760
    %2615 = vmatpush.msra.mxu0 %v2614
    %v2616 = vand.u32 %v2382, 4294901760
    %2617 = vmatpush.msra.mxu0 %v2616
    %v2618 = vand.u32 %v2381, 4294901760
    %2619 = vmatpush.msra.mxu0 %v2618
    %v2620 = vand.u32 %v2380, 4294901760
    %2621 = vmatpush.msra.mxu0 %v2620
    %v2622 = vand.u32 %v2401, 4294901760
    %v2623 = vsub.f32 %v2401, %v2622
    %v2624 = vand.u32 %v2623, 4294901760
    %2625 = vmatmul.f32.gmra.mxu0 %v2624
    %v2626 = vpop.f32.mrf.mxu0
    %v2627 = vadd.f32 %v2589, %v2626
    %2628 = vdwg.mxu0
    %2629 = vmatpush.msra.mxu0 0.0
    %v2630 = vand.u32 %v2394, 4294901760
    %v2631 = vsub.f32 %v2394, %v2630
    %v2632 = vand.u32 %v2631, 4294901760
    %2633 = vmatpush.msra.mxu0 %v2632
    %v2634 = vand.u32 %v2393, 4294901760
    %v2635 = vsub.f32 %v2393, %v2634
    %v2636 = vand.u32 %v2635, 4294901760
    %2637 = vmatpush.msra.mxu0 %v2636
    %v2638 = vand.u32 %v2392, 4294901760
    %v2639 = vsub.f32 %v2392, %v2638
    %v2640 = vand.u32 %v2639, 4294901760
    %2641 = vmatpush.msra.mxu0 %v2640
    %v2642 = vand.u32 %v2391, 4294901760
    %v2643 = vsub.f32 %v2391, %v2642
    %v2644 = vand.u32 %v2643, 4294901760
    %2645 = vmatpush.msra.mxu0 %v2644
    %v2646 = vand.u32 %v2390, 4294901760
    %v2647 = vsub.f32 %v2390, %v2646
    %v2648 = vand.u32 %v2647, 4294901760
    %2649 = vmatpush.msra.mxu0 %v2648
    %v2650 = vand.u32 %v2389, 4294901760
    %v2651 = vsub.f32 %v2389, %v2650
    %v2652 = vand.u32 %v2651, 4294901760
    %2653 = vmatpush.msra.mxu0 %v2652
    %v2654 = vand.u32 %v2388, 4294901760
    %v2655 = vsub.f32 %v2388, %v2654
    %v2656 = vand.u32 %v2655, 4294901760
    %2657 = vmatpush.msra.mxu0 %v2656
    %v2658 = vand.u32 %v2387, 4294901760
    %v2659 = vsub.f32 %v2387, %v2658
    %v2660 = vand.u32 %v2659, 4294901760
    %2661 = vmatpush.msra.mxu0 %v2660
    %v2662 = vand.u32 %v2386, 4294901760
    %v2663 = vsub.f32 %v2386, %v2662
    %v2664 = vand.u32 %v2663, 4294901760
    %2665 = vmatpush.msra.mxu0 %v2664
    %v2666 = vand.u32 %v2385, 4294901760
    %v2667 = vsub.f32 %v2385, %v2666
    %v2668 = vand.u32 %v2667, 4294901760
    %2669 = vmatpush.msra.mxu0 %v2668
    %v2670 = vand.u32 %v2384, 4294901760
    %v2671 = vsub.f32 %v2384, %v2670
    %v2672 = vand.u32 %v2671, 4294901760
    %2673 = vmatpush.msra.mxu0 %v2672
    %v2674 = vand.u32 %v2383, 4294901760
    %v2675 = vsub.f32 %v2383, %v2674
    %v2676 = vand.u32 %v2675, 4294901760
    %2677 = vmatpush.msra.mxu0 %v2676
    %v2678 = vand.u32 %v2382, 4294901760
    %v2679 = vsub.f32 %v2382, %v2678
    %v2680 = vand.u32 %v2679, 4294901760
    %2681 = vmatpush.msra.mxu0 %v2680
    %v2682 = vand.u32 %v2381, 4294901760
    %v2683 = vsub.f32 %v2381, %v2682
    %v2684 = vand.u32 %v2683, 4294901760
    %2685 = vmatpush.msra.mxu0 %v2684
    %v2686 = vand.u32 %v2380, 4294901760
    %v2687 = vsub.f32 %v2380, %v2686
    %v2688 = vand.u32 %v2687, 4294901760
    %2689 = vmatpush.msra.mxu0 %v2688
    %v2690 = vand.u32 %v2401, 4294901760
    %2691 = vmatmul.f32.gmra.mxu0 %v2690
    %v2692 = vpop.f32.mrf.mxu0
    %v2693 = vadd.f32 %v2627, %v2692
    %2694 = vdwg.mxu0
    %2695 = vmatpush.msra.mxu0 0.0
    %v2696 = vand.u32 %v2394, 4294901760
    %2697 = vmatpush.msra.mxu0 %v2696
    %v2698 = vand.u32 %v2393, 4294901760
    %2699 = vmatpush.msra.mxu0 %v2698
    %v2700 = vand.u32 %v2392, 4294901760
    %2701 = vmatpush.msra.mxu0 %v2700
    %v2702 = vand.u32 %v2391, 4294901760
    %2703 = vmatpush.msra.mxu0 %v2702
    %v2704 = vand.u32 %v2390, 4294901760
    %2705 = vmatpush.msra.mxu0 %v2704
    %v2706 = vand.u32 %v2389, 4294901760
    %2707 = vmatpush.msra.mxu0 %v2706
    %v2708 = vand.u32 %v2388, 4294901760
    %2709 = vmatpush.msra.mxu0 %v2708
    %v2710 = vand.u32 %v2387, 4294901760
    %2711 = vmatpush.msra.mxu0 %v2710
    %v2712 = vand.u32 %v2386, 4294901760
    %2713 = vmatpush.msra.mxu0 %v2712
    %v2714 = vand.u32 %v2385, 4294901760
    %2715 = vmatpush.msra.mxu0 %v2714
    %v2716 = vand.u32 %v2384, 4294901760
    %2717 = vmatpush.msra.mxu0 %v2716
    %v2718 = vand.u32 %v2383, 4294901760
    %2719 = vmatpush.msra.mxu0 %v2718
    %v2720 = vand.u32 %v2382, 4294901760
    %2721 = vmatpush.msra.mxu0 %v2720
    %v2722 = vand.u32 %v2381, 4294901760
    %2723 = vmatpush.msra.mxu0 %v2722
    %v2724 = vand.u32 %v2380, 4294901760
    %2725 = vmatpush.msra.mxu0 %v2724
    %v2726 = vand.u32 %v2401, 4294901760
    %2727 = vmatmul.f32.gmra.mxu0 %v2726
    %v2728 = vpop.f32.mrf.mxu0
    %v2729 = vadd.f32 %v2693, %v2728
    %2730 = vdwg.mxu0
    %vm2731 = vcmask 74752
    %2732 = vst.msk [vmem:[#allocation2] sm:$0x3] %vm2731, %v2729
    // Predicated region
    $region22: #{simple_cnn_forward.5} parent=1 // pred_check
      _
    $region23: #{simple_cnn_forward.5} parent=1 // pred_check_branch
      %2734 = sbr.rel (0) target = $region25
    $region24: #{simple_cnn_forward.5} parent=1 // pred_region
      %2736 = vsyncadd [#allocation3], 0
      %s2738 = sshll.u32 [#allocation2], 4
      %s2739 = int_to_ptr.vmem [resolvable:$true] %s2738
      %s2740 = sshll.u32 %s5, 4
      %s2741 = int_to_ptr.hbm [resolvable:$true] %s2740
      %2743 = dma.vmem_to_hbm [thread:$0]  %s2739, 32, %s2741, [#allocation3]
    $region25: #{simple_cnn_forward.5} parent=1 // pred_fallthru
      _
    // Predicated region
    $region26: #{simple_cnn_forward.5} parent=1 // pred_check
      _
    $region27: #{simple_cnn_forward.5} parent=1 // pred_check_branch
      %2745 = sbr.rel (0) target = $region29
    $region28: #{simple_cnn_forward.5} parent=1 // pred_region
      %2747 = dma.done [#allocation3], 32
    $region29: #{simple_cnn_forward.5} parent=1 // pred_fallthru
      _
    %2748 = vsyncpa [#allocation3], 1

// kernel: simple_cnn_forward.4
$region0: #{simple_cnn_forward.4}
  #allocation0 [shape = 'u32[]', space=smem, size = 0x4, offset = 0x4, fixed_abs, tag = 'smem constant byte address 0x4 - core index']
  #allocation1 [shape = 'u32[72,128]{1,0:T(1,128)}', space=vmem, size = 0x9000, scoped, tag = 'internal scratch']
  %s0 = inlined_call_operand.vmem [shape: f32[2,13,13,16], index: 0, kind: input, shape index: {}]
  %s1 = inlined_call_operand.vmem [shape: f32[9,16,32], index: 1, kind: input, shape index: {}]
  %s2 = inlined_call_operand.vmem [shape: f32[1,32], index: 2, kind: input, shape index: {}]
  %s3 = inlined_call_operand.vmem [shape: f32[2,5,5,32], index: 3, kind: output, shape index: {}]
  %s4 = sld [smem:[#allocation0]]
  $region52: #{simple_cnn_forward.4} parent=0
    _
  %s6 = ssub.s32 1, %s4
  %s7 = scalar_select 0, %s6, %s4
  loop: start=0, step=1, limit=4
  $region2: #{simple_cnn_forward.4} parent=0 // loop_pre_header
    _
  $region3: #{simple_cnn_forward.4} parent=0 // loop_header
    %s9 = sphi 0, %s13
    %p10 = scmp.ge.s32.totalorder %s9, 4
    %s19 = sphi 0, %s21
    %s22 = sphi 0, %s19
    %s23 = sphi 0, %s22
    %s39 = sphi 0, %s23
    %s43 = sphi 0, %s43
    %s45 = sphi 0, %s43
    %s46 = sphi 0, %s45
    %s60 = sphi 0, %s46
    %s64 = sphi 0, %s64
    %s66 = sphi 0, %s64
    %s67 = sphi 0, %s66
    %s81 = sphi 0, %s67
    %s87 = sphi 0, %s89
    %s90 = sphi 0, %s87
    %s91 = sphi 0, %s90
    %s107 = sphi 0, %s91
  $region4: #{simple_cnn_forward.4} parent=0 // loop_header_branch
    %12 = sbr.rel (%p10) target = $region8
  $region5: #{simple_cnn_forward.4} parent=0 // loop_body
    %s14 = ssub.s32 %s9, 1
    %s15 = ssub.s32 %s9, 2
    %s16 = sadd.s32 %s9, 1
    %s17 = ssub.s32 %s9, %s16
    %p18 = scmp.eq.s32.totalorder %s17, 0
    %s20 = sadd.s32 %s19, 1
    %s21 = scalar_select %p18, %s19, %s20
    %p24 = pneg %p18
    %p25 = scmp.eq.s32.totalorder %s9, 1
    %p26 = por %p24, %p25
    %p27 = scmp.ne.s32.totalorder %s19, %s22
    %p28 = scmp.eq.s32.totalorder %s9, 0
    %p29 = por %p27, %p28
    %p30 = scmp.ne.s32.totalorder %s19, %s22
    %p31 = scmp.eq.s32.totalorder %s14, 1
    %p32 = por %p30, %p31
    %p33 = scmp.ne.s32.totalorder %s22, %s23
    %p34 = scmp.eq.s32.totalorder %s14, 0
    %p35 = por %p33, %p34
    %p36 = scmp.ne.s32.totalorder %s22, %s23
    %p37 = scmp.eq.s32.totalorder %s15, 1
    %p38 = por %p36, %p37
    %p40 = scmp.ne.s32.totalorder %s23, %s39
    %p41 = scmp.eq.s32.totalorder %s15, 0
    %p42 = por %p40, %p41
    %s44 = sadd.s32 %s43, 1
    %p47 = scmp.eq.s32.totalorder %s9, 1
    %p48 = scmp.ne.s32.totalorder %s43, %s45
    %p49 = scmp.eq.s32.totalorder %s9, 0
    %p50 = por %p48, %p49
    %p51 = scmp.ne.s32.totalorder %s43, %s45
    %p52 = scmp.eq.s32.totalorder %s14, 1
    %p53 = por %p51, %p52
    %p54 = scmp.ne.s32.totalorder %s45, %s46
    %p55 = scmp.eq.s32.totalorder %s14, 0
    %p56 = por %p54, %p55
    %p57 = scmp.ne.s32.totalorder %s45, %s46
    %p58 = scmp.eq.s32.totalorder %s15, 1
    %p59 = por %p57, %p58
    %p61 = scmp.ne.s32.totalorder %s46, %s60
    %p62 = scmp.eq.s32.totalorder %s15, 0
    %p63 = por %p61, %p62
    %s65 = sadd.s32 %s64, 1
    %p68 = scmp.eq.s32.totalorder %s9, 1
    %p69 = scmp.ne.s32.totalorder %s64, %s66
    %p70 = scmp.eq.s32.totalorder %s9, 0
    %p71 = por %p69, %p70
    %p72 = scmp.ne.s32.totalorder %s64, %s66
    %p73 = scmp.eq.s32.totalorder %s14, 1
    %p74 = por %p72, %p73
    %p75 = scmp.ne.s32.totalorder %s66, %s67
    %p76 = scmp.eq.s32.totalorder %s14, 0
    %p77 = por %p75, %p76
    %p78 = scmp.ne.s32.totalorder %s66, %s67
    %p79 = scmp.eq.s32.totalorder %s15, 1
    %p80 = por %p78, %p79
    %p82 = scmp.ne.s32.totalorder %s67, %s81
    %p83 = scmp.eq.s32.totalorder %s15, 0
    %p84 = por %p82, %p83
    %s85 = ssub.s32 %s9, %s16
    %p86 = scmp.eq.s32.totalorder %s85, 0
    %s88 = sadd.s32 %s87, 1
    %s89 = scalar_select %p86, %s87, %s88
    %p92 = pneg %p86
    %p93 = scmp.eq.s32.totalorder %s9, 1
    %p94 = por %p92, %p93
    %p95 = scmp.ne.s32.totalorder %s87, %s90
    %p96 = scmp.eq.s32.totalorder %s9, 0
    %p97 = por %p95, %p96
    %p98 = scmp.ne.s32.totalorder %s87, %s90
    %p99 = scmp.eq.s32.totalorder %s14, 1
    %p100 = por %p98, %p99
    %p101 = scmp.ne.s32.totalorder %s90, %s91
    %p102 = scmp.eq.s32.totalorder %s14, 0
    %p103 = por %p101, %p102
    %p104 = scmp.ne.s32.totalorder %s90, %s91
    %p105 = scmp.eq.s32.totalorder %s15, 1
    %p106 = por %p104, %p105
    %p108 = scmp.ne.s32.totalorder %s91, %s107
    %p109 = scmp.eq.s32.totalorder %s15, 0
    %p110 = por %p108, %p109
    %p111 = scmp.le.s32.totalorder 1, %s9
    %p112 = scmp.lt.s32.totalorder %s9, 3
    %p113 = pnand %p111, %p112
    %p114 = pneg %p113
    // Predicated region
    $region9: #{simple_cnn_forward.4} parent=5 // pred_check
      _
    $region10: #{simple_cnn_forward.4} parent=5 // pred_check_branch
      %116 = sbr.rel (%p113) target = $region12
    $region11: #{simple_cnn_forward.4} parent=5 // pred_region
      %s117 = ssub.s32 %s9, 1
      // Predicated region
      $region13: #{simple_cnn_forward.4} parent=11 // pred_check
        %p118 = pneg %p56
      $region14: #{simple_cnn_forward.4} parent=11 // pred_check_branch
        %120 = sbr.rel (%p118) target = $region16
      $region15: #{simple_cnn_forward.4} parent=11 // pred_region
        _
      $region16: #{simple_cnn_forward.4} parent=11 // pred_fallthru
        _
      // Predicated region
      $region17: #{simple_cnn_forward.4} parent=11 // pred_check
        %p121 = pneg %p77
      $region18: #{simple_cnn_forward.4} parent=11 // pred_check_branch
        %123 = sbr.rel (%p121) target = $region20
      $region19: #{simple_cnn_forward.4} parent=11 // pred_region
        _
      $region20: #{simple_cnn_forward.4} parent=11 // pred_fallthru
        _
    $region12: #{simple_cnn_forward.4} parent=5 // pred_fallthru
      _
    %p124 = scmp.lt.s32.totalorder %s9, 2
    // Predicated region
    $region21: #{simple_cnn_forward.4} parent=5 // pred_check
      %p125 = pneg %p124
    $region22: #{simple_cnn_forward.4} parent=5 // pred_check_branch
      %127 = sbr.rel (%p125) target = $region24
    $region23: #{simple_cnn_forward.4} parent=5 // pred_region
      // Predicated region
      $region25: #{simple_cnn_forward.4} parent=23 // pred_check
        %p128 = pneg %p29
      $region26: #{simple_cnn_forward.4} parent=23 // pred_check_branch
        %130 = sbr.rel (%p128) target = $region28
      $region27: #{simple_cnn_forward.4} parent=23 // pred_region
        %p131 = scmp.lt.s32.totalorder %s9, 1
        %s132 = scalar_select %p131, %s9, 1
        %s133 = smul.addr %s132, 26
        %s134 = smul.addr %s133, 8
        %s135 = scalar_lea.vmem %s0, %s134
      $region28: #{simple_cnn_forward.4} parent=23 // pred_fallthru
        _
    $region24: #{simple_cnn_forward.4} parent=5 // pred_fallthru
      _
    %p136 = scmp.le.s32.totalorder 1, %s9
    %p137 = scmp.lt.s32.totalorder %s9, 3
    %p138 = pnand %p136, %p137
    %p139 = pneg %p138
    // Predicated region
    $region29: #{simple_cnn_forward.4} parent=5 // pred_check
      _
    $region30: #{simple_cnn_forward.4} parent=5 // pred_check_branch
      %141 = sbr.rel (%p138) target = $region32
    $region31: #{simple_cnn_forward.4} parent=5 // pred_region
      %s142 = ssub.s32 %s9, 1
      %p143 = scmp.lt.s32.totalorder %s14, 1
      %s144 = scalar_select %p143, %s14, 1
      %s145 = smul.addr %s144, 26
      %s146 = smul.addr %s145, 8
      %s147 = scalar_lea.vmem %s0, %s146
      %p148 = pneg %p35
      %p149 = pneg %p32
      %p150 = pneg %p56
      %p151 = pneg %p53
      %p152 = pneg %p77
      %p153 = pneg %p74
      %p154 = pneg %p103
      %p155 = pneg %p100
      %p156 = scmp.lt.s32.totalorder %s14, 1
      %s157 = scalar_select %p156, %s14, 1
      %s158 = smul.addr %s157, 5
      %s159 = smul.addr %s158, 8
      %s160 = scalar_lea.vmem %s3, %s159
      %p161 = scmp.lt.s32.totalorder %s14, 1
      %s162 = scalar_select %p161, %s14, 1
      %s163 = smul.addr %s162, 26
      %s164 = smul.addr %s163, 8
      %s165 = scalar_lea.vmem %s0, %s164
      %p166 = scmp.lt.s32.totalorder %s14, 1
      %s167 = scalar_select %p166, %s14, 1
      %s168 = smul.addr %s167, 5
      %s169 = smul.addr %s168, 8
      %s170 = scalar_lea.vmem %s3, %s169
      %v171 = vlaneseq
      %v172 = vshrl.u32 %v171, 7
      %v173 = vlaneseq
      %v174 = vand.u32 %v173, 127
      %v175 = vmul.u32 %v172, 2
      %vm176 = vcmp.eq.s32.totalorder %v174, %v175
      %v177 = vsel %vm176, 1, 0
      %v178 = vcvt.s32.f32 %v177
      %v179 = vadd.s32 %v175, 1
      %vm180 = vcmp.eq.s32.totalorder %v174, %v179
      %v181 = vsel %vm180, 1, 0
      %v182 = vcvt.s32.f32 %v181
      %v183 = vld [vmem:[%s2] sm:$0x1]
      loop: start=0, step=1, limit=5
      $region33: #{simple_cnn_forward.4} parent=31 // loop_pre_header
        _
      $region34: #{simple_cnn_forward.4} parent=31 // loop_header
        %s185 = sphi 0, %s189
        %p186 = scmp.ge.s32.totalorder %s185, 5
      $region35: #{simple_cnn_forward.4} parent=31 // loop_header_branch
        %188 = sbr.rel (%p186) target = $region39
      $region36: #{simple_cnn_forward.4} parent=31 // loop_body
        %s190 = smul.u32 %s185, 2
        %s191 = smul.u32 %s190, 16
        %s192 = scalar_lea.vmem %s165, %s191
        %v193 = vld [vmem:[%s192] sm:$0xff]
        %v194 = vld [vmem:[%s192 + $0x8] sm:$0x7]
        %v195 = vld [vmem:[%s1] sm:$0xff]
        %v196 = vld [vmem:[%s1 + $0x8] sm:$0xff]
        %v197 = vld [vmem:[%s192 + $0x1] sm:$0xff]
        %v198 = vld [vmem:[%s192 + $0x9] sm:$0x7]
        %s199 = scalar_lea.vmem %s1, 16
        %v200 = vld [vmem:[%s199] sm:$0xff]
        %v201 = vld [vmem:[%s199 + $0x8] sm:$0xff]
        %vm202 = vcmask 130048
        %v204 = vsel %vm202, %v197, 0
        %v207 = vsel %vm202, %v198, 0
        %209 = vmatpush.msra.mxu0 0.0
        %210 = vmatpush.msra.mxu0 0.0
        %211 = vmatpush.msra.mxu0 0.0
        %212 = vmatpush.msra.mxu0 0.0
        %213 = vmatpush.msra.mxu0 0.0
        %214 = vmatpush.msra.mxu0 0.0
        %215 = vmatpush.msra.mxu0 0.0
        %216 = vmatpush.msra.mxu0 0.0
        %217 = vmatpush.msra.mxu0 0.0
        %218 = vmatpush.msra.mxu0 0.0
        %219 = vmatpush.msra.mxu0 0.0
        %220 = vmatpush.msra.mxu0 0.0
        %221 = vmatpush.msra.mxu0 0.0
        %222 = vmatpush.msra.mxu0 0.0
        %v223 = vand.u32 %v201, 4294901760
        %224 = vmatpush.msra.mxu0 %v223
        %v225 = vand.u32 %v200, 4294901760
        %226 = vmatpush.msra.mxu0 %v225
        %v227 = vand.u32 %v204, 4294901760
        %v228 = vsub.f32 %v204, %v227
        %v229 = vand.u32 %v228, 4294901760
        %v230 = vsub.f32 %v228, %v229
        %v231 = vand.u32 %v230, 4294901760
        %232 = vmatmul.f32.gmra.mxu0 %v231
        %v233 = vpop.f32.mrf.mxu0
        %v234 = vadd.f32 0.0, %v233
        %v235 = vand.u32 %v207, 4294901760
        %v236 = vsub.f32 %v207, %v235
        %v237 = vand.u32 %v236, 4294901760
        %v238 = vsub.f32 %v236, %v237
        %v239 = vand.u32 %v238, 4294901760
        %240 = vmatmul.f32.gmra.mxu0 %v239
        %v241 = vpop.f32.mrf.mxu0
        %v242 = vadd.f32 0.0, %v241
        %243 = vdwg.mxu0
        %244 = vmatpush.msra.mxu0 0.0
        %245 = vmatpush.msra.mxu0 0.0
        %246 = vmatpush.msra.mxu0 0.0
        %247 = vmatpush.msra.mxu0 0.0
        %248 = vmatpush.msra.mxu0 0.0
        %249 = vmatpush.msra.mxu0 0.0
        %250 = vmatpush.msra.mxu0 0.0
        %251 = vmatpush.msra.mxu0 0.0
        %252 = vmatpush.msra.mxu0 0.0
        %253 = vmatpush.msra.mxu0 0.0
        %254 = vmatpush.msra.mxu0 0.0
        %255 = vmatpush.msra.mxu0 0.0
        %256 = vmatpush.msra.mxu0 0.0
        %257 = vmatpush.msra.mxu0 0.0
        %v258 = vand.u32 %v201, 4294901760
        %v259 = vsub.f32 %v201, %v258
        %v260 = vand.u32 %v259, 4294901760
        %v261 = vsub.f32 %v259, %v260
        %v262 = vand.u32 %v261, 4294901760
        %263 = vmatpush.msra.mxu0 %v262
        %v264 = vand.u32 %v200, 4294901760
        %v265 = vsub.f32 %v200, %v264
        %v266 = vand.u32 %v265, 4294901760
        %v267 = vsub.f32 %v265, %v266
        %v268 = vand.u32 %v267, 4294901760
        %269 = vmatpush.msra.mxu0 %v268
        %v270 = vand.u32 %v204, 4294901760
        %271 = vmatmul.f32.gmra.mxu0 %v270
        %v272 = vpop.f32.mrf.mxu0
        %v273 = vadd.f32 %v234, %v272
        %v274 = vand.u32 %v207, 4294901760
        %275 = vmatmul.f32.gmra.mxu0 %v274
        %v276 = vpop.f32.mrf.mxu0
        %v277 = vadd.f32 %v242, %v276
        %278 = vdwg.mxu0
        %279 = vmatpush.msra.mxu0 0.0
        %280 = vmatpush.msra.mxu0 0.0
        %281 = vmatpush.msra.mxu0 0.0
        %282 = vmatpush.msra.mxu0 0.0
        %283 = vmatpush.msra.mxu0 0.0
        %284 = vmatpush.msra.mxu0 0.0
        %285 = vmatpush.msra.mxu0 0.0
        %286 = vmatpush.msra.mxu0 0.0
        %287 = vmatpush.msra.mxu0 0.0
        %288 = vmatpush.msra.mxu0 0.0
        %289 = vmatpush.msra.mxu0 0.0
        %290 = vmatpush.msra.mxu0 0.0
        %291 = vmatpush.msra.mxu0 0.0
        %292 = vmatpush.msra.mxu0 0.0
        %v293 = vand.u32 %v201, 4294901760
        %v294 = vsub.f32 %v201, %v293
        %295 = vmatpush.msra.mxu0 %v294
        %v296 = vand.u32 %v200, 4294901760
        %v297 = vsub.f32 %v200, %v296
        %298 = vmatpush.msra.mxu0 %v297
        %v299 = vand.u32 %v204, 4294901760
        %v300 = vsub.f32 %v204, %v299
        %301 = vmatmul.f32.gmra.mxu0 %v300
        %v302 = vpop.f32.mrf.mxu0
        %v303 = vadd.f32 %v273, %v302
        %v304 = vand.u32 %v207, 4294901760
        %v305 = vsub.f32 %v207, %v304
        %306 = vmatmul.f32.gmra.mxu0 %v305
        %v307 = vpop.f32.mrf.mxu0
        %v308 = vadd.f32 %v277, %v307
        %309 = vdwg.mxu0
        %310 = vmatpush.msra.mxu0 0.0
        %311 = vmatpush.msra.mxu0 0.0
        %312 = vmatpush.msra.mxu0 0.0
        %313 = vmatpush.msra.mxu0 0.0
        %314 = vmatpush.msra.mxu0 0.0
        %315 = vmatpush.msra.mxu0 0.0
        %316 = vmatpush.msra.mxu0 0.0
        %317 = vmatpush.msra.mxu0 0.0
        %318 = vmatpush.msra.mxu0 0.0
        %319 = vmatpush.msra.mxu0 0.0
        %320 = vmatpush.msra.mxu0 0.0
        %321 = vmatpush.msra.mxu0 0.0
        %322 = vmatpush.msra.mxu0 0.0
        %323 = vmatpush.msra.mxu0 0.0
        %v324 = vand.u32 %v201, 4294901760
        %325 = vmatpush.msra.mxu0 %v324
        %v326 = vand.u32 %v200, 4294901760
        %327 = vmatpush.msra.mxu0 %v326
        %v328 = vand.u32 %v204, 4294901760
        %v329 = vsub.f32 %v204, %v328
        %v330 = vand.u32 %v329, 4294901760
        %331 = vmatmul.f32.gmra.mxu0 %v330
        %v332 = vpop.f32.mrf.mxu0
        %v333 = vadd.f32 %v303, %v332
        %v334 = vand.u32 %v207, 4294901760
        %v335 = vsub.f32 %v207, %v334
        %v336 = vand.u32 %v335, 4294901760
        %337 = vmatmul.f32.gmra.mxu0 %v336
        %v338 = vpop.f32.mrf.mxu0
        %v339 = vadd.f32 %v308, %v338
        %340 = vdwg.mxu0
        %341 = vmatpush.msra.mxu0 0.0
        %342 = vmatpush.msra.mxu0 0.0
        %343 = vmatpush.msra.mxu0 0.0
        %344 = vmatpush.msra.mxu0 0.0
        %345 = vmatpush.msra.mxu0 0.0
        %346 = vmatpush.msra.mxu0 0.0
        %347 = vmatpush.msra.mxu0 0.0
        %348 = vmatpush.msra.mxu0 0.0
        %349 = vmatpush.msra.mxu0 0.0
        %350 = vmatpush.msra.mxu0 0.0
        %351 = vmatpush.msra.mxu0 0.0
        %352 = vmatpush.msra.mxu0 0.0
        %353 = vmatpush.msra.mxu0 0.0
        %354 = vmatpush.msra.mxu0 0.0
        %v355 = vand.u32 %v201, 4294901760
        %v356 = vsub.f32 %v201, %v355
        %v357 = vand.u32 %v356, 4294901760
        %358 = vmatpush.msra.mxu0 %v357
        %v359 = vand.u32 %v200, 4294901760
        %v360 = vsub.f32 %v200, %v359
        %v361 = vand.u32 %v360, 4294901760
        %362 = vmatpush.msra.mxu0 %v361
        %v363 = vand.u32 %v204, 4294901760
        %364 = vmatmul.f32.gmra.mxu0 %v363
        %v365 = vpop.f32.mrf.mxu0
        %v366 = vadd.f32 %v333, %v365
        %v367 = vand.u32 %v207, 4294901760
        %368 = vmatmul.f32.gmra.mxu0 %v367
        %v369 = vpop.f32.mrf.mxu0
        %v370 = vadd.f32 %v339, %v369
        %371 = vdwg.mxu0
        %372 = vmatpush.msra.mxu0 0.0
        %373 = vmatpush.msra.mxu0 0.0
        %374 = vmatpush.msra.mxu0 0.0
        %375 = vmatpush.msra.mxu0 0.0
        %376 = vmatpush.msra.mxu0 0.0
        %377 = vmatpush.msra.mxu0 0.0
        %378 = vmatpush.msra.mxu0 0.0
        %379 = vmatpush.msra.mxu0 0.0
        %380 = vmatpush.msra.mxu0 0.0
        %381 = vmatpush.msra.mxu0 0.0
        %382 = vmatpush.msra.mxu0 0.0
        %383 = vmatpush.msra.mxu0 0.0
        %384 = vmatpush.msra.mxu0 0.0
        %385 = vmatpush.msra.mxu0 0.0
        %v386 = vand.u32 %v201, 4294901760
        %387 = vmatpush.msra.mxu0 %v386
        %v388 = vand.u32 %v200, 4294901760
        %389 = vmatpush.msra.mxu0 %v388
        %v390 = vand.u32 %v204, 4294901760
        %391 = vmatmul.f32.gmra.mxu0 %v390
        %v392 = vpop.f32.mrf.mxu0
        %v393 = vadd.f32 %v366, %v392
        %v394 = vand.u32 %v207, 4294901760
        %395 = vmatmul.f32.gmra.mxu0 %v394
        %v396 = vpop.f32.mrf.mxu0
        %v397 = vadd.f32 %v370, %v396
        %398 = vdwg.mxu0
        %v400 = vsel %vm202, %v193, 0
        %v403 = vsel %vm202, %v194, 0
        %405 = vmatpush.msra.mxu0 0.0
        %406 = vmatpush.msra.mxu0 0.0
        %407 = vmatpush.msra.mxu0 0.0
        %408 = vmatpush.msra.mxu0 0.0
        %409 = vmatpush.msra.mxu0 0.0
        %410 = vmatpush.msra.mxu0 0.0
        %411 = vmatpush.msra.mxu0 0.0
        %412 = vmatpush.msra.mxu0 0.0
        %413 = vmatpush.msra.mxu0 0.0
        %414 = vmatpush.msra.mxu0 0.0
        %415 = vmatpush.msra.mxu0 0.0
        %416 = vmatpush.msra.mxu0 0.0
        %417 = vmatpush.msra.mxu0 0.0
        %418 = vmatpush.msra.mxu0 0.0
        %v419 = vand.u32 %v196, 4294901760
        %420 = vmatpush.msra.mxu0 %v419
        %v421 = vand.u32 %v195, 4294901760
        %422 = vmatpush.msra.mxu0 %v421
        %v423 = vand.u32 %v400, 4294901760
        %v424 = vsub.f32 %v400, %v423
        %v425 = vand.u32 %v424, 4294901760
        %v426 = vsub.f32 %v424, %v425
        %v427 = vand.u32 %v426, 4294901760
        %428 = vmatmul.f32.gmra.mxu0 %v427
        %v429 = vpop.f32.mrf.mxu0
        %v430 = vadd.f32 %v393, %v429
        %v431 = vand.u32 %v403, 4294901760
        %v432 = vsub.f32 %v403, %v431
        %v433 = vand.u32 %v432, 4294901760
        %v434 = vsub.f32 %v432, %v433
        %v435 = vand.u32 %v434, 4294901760
        %436 = vmatmul.f32.gmra.mxu0 %v435
        %v437 = vpop.f32.mrf.mxu0
        %v438 = vadd.f32 %v397, %v437
        %439 = vdwg.mxu0
        %440 = vmatpush.msra.mxu0 0.0
        %441 = vmatpush.msra.mxu0 0.0
        %442 = vmatpush.msra.mxu0 0.0
        %443 = vmatpush.msra.mxu0 0.0
        %444 = vmatpush.msra.mxu0 0.0
        %445 = vmatpush.msra.mxu0 0.0
        %446 = vmatpush.msra.mxu0 0.0
        %447 = vmatpush.msra.mxu0 0.0
        %448 = vmatpush.msra.mxu0 0.0
        %449 = vmatpush.msra.mxu0 0.0
        %450 = vmatpush.msra.mxu0 0.0
        %451 = vmatpush.msra.mxu0 0.0
        %452 = vmatpush.msra.mxu0 0.0
        %453 = vmatpush.msra.mxu0 0.0
        %v454 = vand.u32 %v196, 4294901760
        %v455 = vsub.f32 %v196, %v454
        %v456 = vand.u32 %v455, 4294901760
        %v457 = vsub.f32 %v455, %v456
        %v458 = vand.u32 %v457, 4294901760
        %459 = vmatpush.msra.mxu0 %v458
        %v460 = vand.u32 %v195, 4294901760
        %v461 = vsub.f32 %v195, %v460
        %v462 = vand.u32 %v461, 4294901760
        %v463 = vsub.f32 %v461, %v462
        %v464 = vand.u32 %v463, 4294901760
        %465 = vmatpush.msra.mxu0 %v464
        %v466 = vand.u32 %v400, 4294901760
        %467 = vmatmul.f32.gmra.mxu0 %v466
        %v468 = vpop.f32.mrf.mxu0
        %v469 = vadd.f32 %v430, %v468
        %v470 = vand.u32 %v403, 4294901760
        %471 = vmatmul.f32.gmra.mxu0 %v470
        %v472 = vpop.f32.mrf.mxu0
        %v473 = vadd.f32 %v438, %v472
        %474 = vdwg.mxu0
        %475 = vmatpush.msra.mxu0 0.0
        %476 = vmatpush.msra.mxu0 0.0
        %477 = vmatpush.msra.mxu0 0.0
        %478 = vmatpush.msra.mxu0 0.0
        %479 = vmatpush.msra.mxu0 0.0
        %480 = vmatpush.msra.mxu0 0.0
        %481 = vmatpush.msra.mxu0 0.0
        %482 = vmatpush.msra.mxu0 0.0
        %483 = vmatpush.msra.mxu0 0.0
        %484 = vmatpush.msra.mxu0 0.0
        %485 = vmatpush.msra.mxu0 0.0
        %486 = vmatpush.msra.mxu0 0.0
        %487 = vmatpush.msra.mxu0 0.0
        %488 = vmatpush.msra.mxu0 0.0
        %v489 = vand.u32 %v196, 4294901760
        %v490 = vsub.f32 %v196, %v489
        %491 = vmatpush.msra.mxu0 %v490
        %v492 = vand.u32 %v195, 4294901760
        %v493 = vsub.f32 %v195, %v492
        %494 = vmatpush.msra.mxu0 %v493
        %v495 = vand.u32 %v400, 4294901760
        %v496 = vsub.f32 %v400, %v495
        %497 = vmatmul.f32.gmra.mxu0 %v496
        %v498 = vpop.f32.mrf.mxu0
        %v499 = vadd.f32 %v469, %v498
        %v500 = vand.u32 %v403, 4294901760
        %v501 = vsub.f32 %v403, %v500
        %502 = vmatmul.f32.gmra.mxu0 %v501
        %v503 = vpop.f32.mrf.mxu0
        %v504 = vadd.f32 %v473, %v503
        %505 = vdwg.mxu0
        %506 = vmatpush.msra.mxu0 0.0
        %507 = vmatpush.msra.mxu0 0.0
        %508 = vmatpush.msra.mxu0 0.0
        %509 = vmatpush.msra.mxu0 0.0
        %510 = vmatpush.msra.mxu0 0.0
        %511 = vmatpush.msra.mxu0 0.0
        %512 = vmatpush.msra.mxu0 0.0
        %513 = vmatpush.msra.mxu0 0.0
        %514 = vmatpush.msra.mxu0 0.0
        %515 = vmatpush.msra.mxu0 0.0
        %516 = vmatpush.msra.mxu0 0.0
        %517 = vmatpush.msra.mxu0 0.0
        %518 = vmatpush.msra.mxu0 0.0
        %519 = vmatpush.msra.mxu0 0.0
        %v520 = vand.u32 %v196, 4294901760
        %521 = vmatpush.msra.mxu0 %v520
        %v522 = vand.u32 %v195, 4294901760
        %523 = vmatpush.msra.mxu0 %v522
        %v524 = vand.u32 %v400, 4294901760
        %v525 = vsub.f32 %v400, %v524
        %v526 = vand.u32 %v525, 4294901760
        %527 = vmatmul.f32.gmra.mxu0 %v526
        %v528 = vpop.f32.mrf.mxu0
        %v529 = vadd.f32 %v499, %v528
        %v530 = vand.u32 %v403, 4294901760
        %v531 = vsub.f32 %v403, %v530
        %v532 = vand.u32 %v531, 4294901760
        %533 = vmatmul.f32.gmra.mxu0 %v532
        %v534 = vpop.f32.mrf.mxu0
        %v535 = vadd.f32 %v504, %v534
        %536 = vdwg.mxu0
        %537 = vmatpush.msra.mxu0 0.0
        %538 = vmatpush.msra.mxu0 0.0
        %539 = vmatpush.msra.mxu0 0.0
        %540 = vmatpush.msra.mxu0 0.0
        %541 = vmatpush.msra.mxu0 0.0
        %542 = vmatpush.msra.mxu0 0.0
        %543 = vmatpush.msra.mxu0 0.0
        %544 = vmatpush.msra.mxu0 0.0
        %545 = vmatpush.msra.mxu0 0.0
        %546 = vmatpush.msra.mxu0 0.0
        %547 = vmatpush.msra.mxu0 0.0
        %548 = vmatpush.msra.mxu0 0.0
        %549 = vmatpush.msra.mxu0 0.0
        %550 = vmatpush.msra.mxu0 0.0
        %v551 = vand.u32 %v196, 4294901760
        %v552 = vsub.f32 %v196, %v551
        %v553 = vand.u32 %v552, 4294901760
        %554 = vmatpush.msra.mxu0 %v553
        %v555 = vand.u32 %v195, 4294901760
        %v556 = vsub.f32 %v195, %v555
        %v557 = vand.u32 %v556, 4294901760
        %558 = vmatpush.msra.mxu0 %v557
        %v559 = vand.u32 %v400, 4294901760
        %560 = vmatmul.f32.gmra.mxu0 %v559
        %v561 = vpop.f32.mrf.mxu0
        %v562 = vadd.f32 %v529, %v561
        %v563 = vand.u32 %v403, 4294901760
        %564 = vmatmul.f32.gmra.mxu0 %v563
        %v565 = vpop.f32.mrf.mxu0
        %v566 = vadd.f32 %v535, %v565
        %567 = vdwg.mxu0
        %568 = vmatpush.msra.mxu0 0.0
        %569 = vmatpush.msra.mxu0 0.0
        %570 = vmatpush.msra.mxu0 0.0
        %571 = vmatpush.msra.mxu0 0.0
        %572 = vmatpush.msra.mxu0 0.0
        %573 = vmatpush.msra.mxu0 0.0
        %574 = vmatpush.msra.mxu0 0.0
        %575 = vmatpush.msra.mxu0 0.0
        %576 = vmatpush.msra.mxu0 0.0
        %577 = vmatpush.msra.mxu0 0.0
        %578 = vmatpush.msra.mxu0 0.0
        %579 = vmatpush.msra.mxu0 0.0
        %580 = vmatpush.msra.mxu0 0.0
        %581 = vmatpush.msra.mxu0 0.0
        %v582 = vand.u32 %v196, 4294901760
        %583 = vmatpush.msra.mxu0 %v582
        %v584 = vand.u32 %v195, 4294901760
        %585 = vmatpush.msra.mxu0 %v584
        %v586 = vand.u32 %v400, 4294901760
        %587 = vmatmul.f32.gmra.mxu0 %v586
        %v588 = vpop.f32.mrf.mxu0
        %v589 = vadd.f32 %v562, %v588
        %v590 = vand.u32 %v403, 4294901760
        %591 = vmatmul.f32.gmra.mxu0 %v590
        %v592 = vpop.f32.mrf.mxu0
        %v593 = vadd.f32 %v566, %v592
        %594 = vdwg.mxu0
        %v595 = vld [vmem:[%s192 + $0x2] sm:$0xff]
        %v596 = vld [vmem:[%s192 + $0xa] sm:$0x7]
        %s597 = scalar_lea.vmem %s1, 32
        %v598 = vld [vmem:[%s597] sm:$0xff]
        %v599 = vld [vmem:[%s597 + $0x8] sm:$0xff]
        %v601 = vsel %vm202, %v595, 0
        %v604 = vsel %vm202, %v596, 0
        %606 = vmatpush.msra.mxu0 0.0
        %607 = vmatpush.msra.mxu0 0.0
        %608 = vmatpush.msra.mxu0 0.0
        %609 = vmatpush.msra.mxu0 0.0
        %610 = vmatpush.msra.mxu0 0.0
        %611 = vmatpush.msra.mxu0 0.0
        %612 = vmatpush.msra.mxu0 0.0
        %613 = vmatpush.msra.mxu0 0.0
        %614 = vmatpush.msra.mxu0 0.0
        %615 = vmatpush.msra.mxu0 0.0
        %616 = vmatpush.msra.mxu0 0.0
        %617 = vmatpush.msra.mxu0 0.0
        %618 = vmatpush.msra.mxu0 0.0
        %619 = vmatpush.msra.mxu0 0.0
        %v620 = vand.u32 %v599, 4294901760
        %621 = vmatpush.msra.mxu0 %v620
        %v622 = vand.u32 %v598, 4294901760
        %623 = vmatpush.msra.mxu0 %v622
        %v624 = vand.u32 %v601, 4294901760
        %v625 = vsub.f32 %v601, %v624
        %v626 = vand.u32 %v625, 4294901760
        %v627 = vsub.f32 %v625, %v626
        %v628 = vand.u32 %v627, 4294901760
        %629 = vmatmul.f32.gmra.mxu0 %v628
        %v630 = vpop.f32.mrf.mxu0
        %v631 = vadd.f32 0.0, %v630
        %v632 = vand.u32 %v604, 4294901760
        %v633 = vsub.f32 %v604, %v632
        %v634 = vand.u32 %v633, 4294901760
        %v635 = vsub.f32 %v633, %v634
        %v636 = vand.u32 %v635, 4294901760
        %637 = vmatmul.f32.gmra.mxu0 %v636
        %v638 = vpop.f32.mrf.mxu0
        %v639 = vadd.f32 0.0, %v638
        %640 = vdwg.mxu0
        %641 = vmatpush.msra.mxu0 0.0
        %642 = vmatpush.msra.mxu0 0.0
        %643 = vmatpush.msra.mxu0 0.0
        %644 = vmatpush.msra.mxu0 0.0
        %645 = vmatpush.msra.mxu0 0.0
        %646 = vmatpush.msra.mxu0 0.0
        %647 = vmatpush.msra.mxu0 0.0
        %648 = vmatpush.msra.mxu0 0.0
        %649 = vmatpush.msra.mxu0 0.0
        %650 = vmatpush.msra.mxu0 0.0
        %651 = vmatpush.msra.mxu0 0.0
        %652 = vmatpush.msra.mxu0 0.0
        %653 = vmatpush.msra.mxu0 0.0
        %654 = vmatpush.msra.mxu0 0.0
        %v655 = vand.u32 %v599, 4294901760
        %v656 = vsub.f32 %v599, %v655
        %v657 = vand.u32 %v656, 4294901760
        %v658 = vsub.f32 %v656, %v657
        %v659 = vand.u32 %v658, 4294901760
        %660 = vmatpush.msra.mxu0 %v659
        %v661 = vand.u32 %v598, 4294901760
        %v662 = vsub.f32 %v598, %v661
        %v663 = vand.u32 %v662, 4294901760
        %v664 = vsub.f32 %v662, %v663
        %v665 = vand.u32 %v664, 4294901760
        %666 = vmatpush.msra.mxu0 %v665
        %v667 = vand.u32 %v601, 4294901760
        %668 = vmatmul.f32.gmra.mxu0 %v667
        %v669 = vpop.f32.mrf.mxu0
        %v670 = vadd.f32 %v631, %v669
        %v671 = vand.u32 %v604, 4294901760
        %672 = vmatmul.f32.gmra.mxu0 %v671
        %v673 = vpop.f32.mrf.mxu0
        %v674 = vadd.f32 %v639, %v673
        %675 = vdwg.mxu0
        %676 = vmatpush.msra.mxu0 0.0
        %677 = vmatpush.msra.mxu0 0.0
        %678 = vmatpush.msra.mxu0 0.0
        %679 = vmatpush.msra.mxu0 0.0
        %680 = vmatpush.msra.mxu0 0.0
        %681 = vmatpush.msra.mxu0 0.0
        %682 = vmatpush.msra.mxu0 0.0
        %683 = vmatpush.msra.mxu0 0.0
        %684 = vmatpush.msra.mxu0 0.0
        %685 = vmatpush.msra.mxu0 0.0
        %686 = vmatpush.msra.mxu0 0.0
        %687 = vmatpush.msra.mxu0 0.0
        %688 = vmatpush.msra.mxu0 0.0
        %689 = vmatpush.msra.mxu0 0.0
        %v690 = vand.u32 %v599, 4294901760
        %v691 = vsub.f32 %v599, %v690
        %692 = vmatpush.msra.mxu0 %v691
        %v693 = vand.u32 %v598, 4294901760
        %v694 = vsub.f32 %v598, %v693
        %695 = vmatpush.msra.mxu0 %v694
        %v696 = vand.u32 %v601, 4294901760
        %v697 = vsub.f32 %v601, %v696
        %698 = vmatmul.f32.gmra.mxu0 %v697
        %v699 = vpop.f32.mrf.mxu0
        %v700 = vadd.f32 %v670, %v699
        %v701 = vand.u32 %v604, 4294901760
        %v702 = vsub.f32 %v604, %v701
        %703 = vmatmul.f32.gmra.mxu0 %v702
        %v704 = vpop.f32.mrf.mxu0
        %v705 = vadd.f32 %v674, %v704
        %706 = vdwg.mxu0
        %707 = vmatpush.msra.mxu0 0.0
        %708 = vmatpush.msra.mxu0 0.0
        %709 = vmatpush.msra.mxu0 0.0
        %710 = vmatpush.msra.mxu0 0.0
        %711 = vmatpush.msra.mxu0 0.0
        %712 = vmatpush.msra.mxu0 0.0
        %713 = vmatpush.msra.mxu0 0.0
        %714 = vmatpush.msra.mxu0 0.0
        %715 = vmatpush.msra.mxu0 0.0
        %716 = vmatpush.msra.mxu0 0.0
        %717 = vmatpush.msra.mxu0 0.0
        %718 = vmatpush.msra.mxu0 0.0
        %719 = vmatpush.msra.mxu0 0.0
        %720 = vmatpush.msra.mxu0 0.0
        %v721 = vand.u32 %v599, 4294901760
        %722 = vmatpush.msra.mxu0 %v721
        %v723 = vand.u32 %v598, 4294901760
        %724 = vmatpush.msra.mxu0 %v723
        %v725 = vand.u32 %v601, 4294901760
        %v726 = vsub.f32 %v601, %v725
        %v727 = vand.u32 %v726, 4294901760
        %728 = vmatmul.f32.gmra.mxu0 %v727
        %v729 = vpop.f32.mrf.mxu0
        %v730 = vadd.f32 %v700, %v729
        %v731 = vand.u32 %v604, 4294901760
        %v732 = vsub.f32 %v604, %v731
        %v733 = vand.u32 %v732, 4294901760
        %734 = vmatmul.f32.gmra.mxu0 %v733
        %v735 = vpop.f32.mrf.mxu0
        %v736 = vadd.f32 %v705, %v735
        %737 = vdwg.mxu0
        %738 = vmatpush.msra.mxu0 0.0
        %739 = vmatpush.msra.mxu0 0.0
        %740 = vmatpush.msra.mxu0 0.0
        %741 = vmatpush.msra.mxu0 0.0
        %742 = vmatpush.msra.mxu0 0.0
        %743 = vmatpush.msra.mxu0 0.0
        %744 = vmatpush.msra.mxu0 0.0
        %745 = vmatpush.msra.mxu0 0.0
        %746 = vmatpush.msra.mxu0 0.0
        %747 = vmatpush.msra.mxu0 0.0
        %748 = vmatpush.msra.mxu0 0.0
        %749 = vmatpush.msra.mxu0 0.0
        %750 = vmatpush.msra.mxu0 0.0
        %751 = vmatpush.msra.mxu0 0.0
        %v752 = vand.u32 %v599, 4294901760
        %v753 = vsub.f32 %v599, %v752
        %v754 = vand.u32 %v753, 4294901760
        %755 = vmatpush.msra.mxu0 %v754
        %v756 = vand.u32 %v598, 4294901760
        %v757 = vsub.f32 %v598, %v756
        %v758 = vand.u32 %v757, 4294901760
        %759 = vmatpush.msra.mxu0 %v758
        %v760 = vand.u32 %v601, 4294901760
        %761 = vmatmul.f32.gmra.mxu0 %v760
        %v762 = vpop.f32.mrf.mxu0
        %v763 = vadd.f32 %v730, %v762
        %v764 = vand.u32 %v604, 4294901760
        %765 = vmatmul.f32.gmra.mxu0 %v764
        %v766 = vpop.f32.mrf.mxu0
        %v767 = vadd.f32 %v736, %v766
        %768 = vdwg.mxu0
        %769 = vmatpush.msra.mxu0 0.0
        %770 = vmatpush.msra.mxu0 0.0
        %771 = vmatpush.msra.mxu0 0.0
        %772 = vmatpush.msra.mxu0 0.0
        %773 = vmatpush.msra.mxu0 0.0
        %774 = vmatpush.msra.mxu0 0.0
        %775 = vmatpush.msra.mxu0 0.0
        %776 = vmatpush.msra.mxu0 0.0
        %777 = vmatpush.msra.mxu0 0.0
        %778 = vmatpush.msra.mxu0 0.0
        %779 = vmatpush.msra.mxu0 0.0
        %780 = vmatpush.msra.mxu0 0.0
        %781 = vmatpush.msra.mxu0 0.0
        %782 = vmatpush.msra.mxu0 0.0
        %v783 = vand.u32 %v599, 4294901760
        %784 = vmatpush.msra.mxu0 %v783
        %v785 = vand.u32 %v598, 4294901760
        %786 = vmatpush.msra.mxu0 %v785
        %v787 = vand.u32 %v601, 4294901760
        %788 = vmatmul.f32.gmra.mxu0 %v787
        %v789 = vpop.f32.mrf.mxu0
        %v790 = vadd.f32 %v763, %v789
        %v791 = vand.u32 %v604, 4294901760
        %792 = vmatmul.f32.gmra.mxu0 %v791
        %v793 = vpop.f32.mrf.mxu0
        %v794 = vadd.f32 %v767, %v793
        %795 = vdwg.mxu0
        %v796 = vadd.f32 %v589, %v790
        %v797 = vadd.f32 %v593, %v794
        %s798 = sadd.s32 %s190, 1
        %s799 = smul.u32 %s798, 16
        %s800 = scalar_lea.vmem %s165, %s799
        %v801 = vld [vmem:[%s800] sm:$0xff]
        %v802 = vld [vmem:[%s800 + $0x8] sm:$0x7]
        %s803 = scalar_lea.vmem %s1, 48
        %v804 = vld [vmem:[%s803] sm:$0xff]
        %v805 = vld [vmem:[%s803 + $0x8] sm:$0xff]
        %v807 = vsel %vm202, %v801, 0
        %v810 = vsel %vm202, %v802, 0
        %812 = vmatpush.msra.mxu0 0.0
        %813 = vmatpush.msra.mxu0 0.0
        %814 = vmatpush.msra.mxu0 0.0
        %815 = vmatpush.msra.mxu0 0.0
        %816 = vmatpush.msra.mxu0 0.0
        %817 = vmatpush.msra.mxu0 0.0
        %818 = vmatpush.msra.mxu0 0.0
        %819 = vmatpush.msra.mxu0 0.0
        %820 = vmatpush.msra.mxu0 0.0
        %821 = vmatpush.msra.mxu0 0.0
        %822 = vmatpush.msra.mxu0 0.0
        %823 = vmatpush.msra.mxu0 0.0
        %824 = vmatpush.msra.mxu0 0.0
        %825 = vmatpush.msra.mxu0 0.0
        %v826 = vand.u32 %v805, 4294901760
        %827 = vmatpush.msra.mxu0 %v826
        %v828 = vand.u32 %v804, 4294901760
        %829 = vmatpush.msra.mxu0 %v828
        %v830 = vand.u32 %v807, 4294901760
        %v831 = vsub.f32 %v807, %v830
        %v832 = vand.u32 %v831, 4294901760
        %v833 = vsub.f32 %v831, %v832
        %v834 = vand.u32 %v833, 4294901760
        %835 = vmatmul.f32.gmra.mxu0 %v834
        %v836 = vpop.f32.mrf.mxu0
        %v837 = vadd.f32 0.0, %v836
        %v838 = vand.u32 %v810, 4294901760
        %v839 = vsub.f32 %v810, %v838
        %v840 = vand.u32 %v839, 4294901760
        %v841 = vsub.f32 %v839, %v840
        %v842 = vand.u32 %v841, 4294901760
        %843 = vmatmul.f32.gmra.mxu0 %v842
        %v844 = vpop.f32.mrf.mxu0
        %v845 = vadd.f32 0.0, %v844
        %846 = vdwg.mxu0
        %847 = vmatpush.msra.mxu0 0.0
        %848 = vmatpush.msra.mxu0 0.0
        %849 = vmatpush.msra.mxu0 0.0
        %850 = vmatpush.msra.mxu0 0.0
        %851 = vmatpush.msra.mxu0 0.0
        %852 = vmatpush.msra.mxu0 0.0
        %853 = vmatpush.msra.mxu0 0.0
        %854 = vmatpush.msra.mxu0 0.0
        %855 = vmatpush.msra.mxu0 0.0
        %856 = vmatpush.msra.mxu0 0.0
        %857 = vmatpush.msra.mxu0 0.0
        %858 = vmatpush.msra.mxu0 0.0
        %859 = vmatpush.msra.mxu0 0.0
        %860 = vmatpush.msra.mxu0 0.0
        %v861 = vand.u32 %v805, 4294901760
        %v862 = vsub.f32 %v805, %v861
        %v863 = vand.u32 %v862, 4294901760
        %v864 = vsub.f32 %v862, %v863
        %v865 = vand.u32 %v864, 4294901760
        %866 = vmatpush.msra.mxu0 %v865
        %v867 = vand.u32 %v804, 4294901760
        %v868 = vsub.f32 %v804, %v867
        %v869 = vand.u32 %v868, 4294901760
        %v870 = vsub.f32 %v868, %v869
        %v871 = vand.u32 %v870, 4294901760
        %872 = vmatpush.msra.mxu0 %v871
        %v873 = vand.u32 %v807, 4294901760
        %874 = vmatmul.f32.gmra.mxu0 %v873
        %v875 = vpop.f32.mrf.mxu0
        %v876 = vadd.f32 %v837, %v875
        %v877 = vand.u32 %v810, 4294901760
        %878 = vmatmul.f32.gmra.mxu0 %v877
        %v879 = vpop.f32.mrf.mxu0
        %v880 = vadd.f32 %v845, %v879
        %881 = vdwg.mxu0
        %882 = vmatpush.msra.mxu0 0.0
        %883 = vmatpush.msra.mxu0 0.0
        %884 = vmatpush.msra.mxu0 0.0
        %885 = vmatpush.msra.mxu0 0.0
        %886 = vmatpush.msra.mxu0 0.0
        %887 = vmatpush.msra.mxu0 0.0
        %888 = vmatpush.msra.mxu0 0.0
        %889 = vmatpush.msra.mxu0 0.0
        %890 = vmatpush.msra.mxu0 0.0
        %891 = vmatpush.msra.mxu0 0.0
        %892 = vmatpush.msra.mxu0 0.0
        %893 = vmatpush.msra.mxu0 0.0
        %894 = vmatpush.msra.mxu0 0.0
        %895 = vmatpush.msra.mxu0 0.0
        %v896 = vand.u32 %v805, 4294901760
        %v897 = vsub.f32 %v805, %v896
        %898 = vmatpush.msra.mxu0 %v897
        %v899 = vand.u32 %v804, 4294901760
        %v900 = vsub.f32 %v804, %v899
        %901 = vmatpush.msra.mxu0 %v900
        %v902 = vand.u32 %v807, 4294901760
        %v903 = vsub.f32 %v807, %v902
        %904 = vmatmul.f32.gmra.mxu0 %v903
        %v905 = vpop.f32.mrf.mxu0
        %v906 = vadd.f32 %v876, %v905
        %v907 = vand.u32 %v810, 4294901760
        %v908 = vsub.f32 %v810, %v907
        %909 = vmatmul.f32.gmra.mxu0 %v908
        %v910 = vpop.f32.mrf.mxu0
        %v911 = vadd.f32 %v880, %v910
        %912 = vdwg.mxu0
        %913 = vmatpush.msra.mxu0 0.0
        %914 = vmatpush.msra.mxu0 0.0
        %915 = vmatpush.msra.mxu0 0.0
        %916 = vmatpush.msra.mxu0 0.0
        %917 = vmatpush.msra.mxu0 0.0
        %918 = vmatpush.msra.mxu0 0.0
        %919 = vmatpush.msra.mxu0 0.0
        %920 = vmatpush.msra.mxu0 0.0
        %921 = vmatpush.msra.mxu0 0.0
        %922 = vmatpush.msra.mxu0 0.0
        %923 = vmatpush.msra.mxu0 0.0
        %924 = vmatpush.msra.mxu0 0.0
        %925 = vmatpush.msra.mxu0 0.0
        %926 = vmatpush.msra.mxu0 0.0
        %v927 = vand.u32 %v805, 4294901760
        %928 = vmatpush.msra.mxu0 %v927
        %v929 = vand.u32 %v804, 4294901760
        %930 = vmatpush.msra.mxu0 %v929
        %v931 = vand.u32 %v807, 4294901760
        %v932 = vsub.f32 %v807, %v931
        %v933 = vand.u32 %v932, 4294901760
        %934 = vmatmul.f32.gmra.mxu0 %v933
        %v935 = vpop.f32.mrf.mxu0
        %v936 = vadd.f32 %v906, %v935
        %v937 = vand.u32 %v810, 4294901760
        %v938 = vsub.f32 %v810, %v937
        %v939 = vand.u32 %v938, 4294901760
        %940 = vmatmul.f32.gmra.mxu0 %v939
        %v941 = vpop.f32.mrf.mxu0
        %v942 = vadd.f32 %v911, %v941
        %943 = vdwg.mxu0
        %944 = vmatpush.msra.mxu0 0.0
        %945 = vmatpush.msra.mxu0 0.0
        %946 = vmatpush.msra.mxu0 0.0
        %947 = vmatpush.msra.mxu0 0.0
        %948 = vmatpush.msra.mxu0 0.0
        %949 = vmatpush.msra.mxu0 0.0
        %950 = vmatpush.msra.mxu0 0.0
        %951 = vmatpush.msra.mxu0 0.0
        %952 = vmatpush.msra.mxu0 0.0
        %953 = vmatpush.msra.mxu0 0.0
        %954 = vmatpush.msra.mxu0 0.0
        %955 = vmatpush.msra.mxu0 0.0
        %956 = vmatpush.msra.mxu0 0.0
        %957 = vmatpush.msra.mxu0 0.0
        %v958 = vand.u32 %v805, 4294901760
        %v959 = vsub.f32 %v805, %v958
        %v960 = vand.u32 %v959, 4294901760
        %961 = vmatpush.msra.mxu0 %v960
        %v962 = vand.u32 %v804, 4294901760
        %v963 = vsub.f32 %v804, %v962
        %v964 = vand.u32 %v963, 4294901760
        %965 = vmatpush.msra.mxu0 %v964
        %v966 = vand.u32 %v807, 4294901760
        %967 = vmatmul.f32.gmra.mxu0 %v966
        %v968 = vpop.f32.mrf.mxu0
        %v969 = vadd.f32 %v936, %v968
        %v970 = vand.u32 %v810, 4294901760
        %971 = vmatmul.f32.gmra.mxu0 %v970
        %v972 = vpop.f32.mrf.mxu0
        %v973 = vadd.f32 %v942, %v972
        %974 = vdwg.mxu0
        %975 = vmatpush.msra.mxu0 0.0
        %976 = vmatpush.msra.mxu0 0.0
        %977 = vmatpush.msra.mxu0 0.0
        %978 = vmatpush.msra.mxu0 0.0
        %979 = vmatpush.msra.mxu0 0.0
        %980 = vmatpush.msra.mxu0 0.0
        %981 = vmatpush.msra.mxu0 0.0
        %982 = vmatpush.msra.mxu0 0.0
        %983 = vmatpush.msra.mxu0 0.0
        %984 = vmatpush.msra.mxu0 0.0
        %985 = vmatpush.msra.mxu0 0.0
        %986 = vmatpush.msra.mxu0 0.0
        %987 = vmatpush.msra.mxu0 0.0
        %988 = vmatpush.msra.mxu0 0.0
        %v989 = vand.u32 %v805, 4294901760
        %990 = vmatpush.msra.mxu0 %v989
        %v991 = vand.u32 %v804, 4294901760
        %992 = vmatpush.msra.mxu0 %v991
        %v993 = vand.u32 %v807, 4294901760
        %994 = vmatmul.f32.gmra.mxu0 %v993
        %v995 = vpop.f32.mrf.mxu0
        %v996 = vadd.f32 %v969, %v995
        %v997 = vand.u32 %v810, 4294901760
        %998 = vmatmul.f32.gmra.mxu0 %v997
        %v999 = vpop.f32.mrf.mxu0
        %v1000 = vadd.f32 %v973, %v999
        %1001 = vdwg.mxu0
        %v1002 = vadd.f32 %v796, %v996
        %v1003 = vadd.f32 %v797, %v1000
        %v1004 = vld [vmem:[%s800 + $0x1] sm:$0xff]
        %v1005 = vld [vmem:[%s800 + $0x9] sm:$0x7]
        %s1006 = scalar_lea.vmem %s1, 64
        %v1007 = vld [vmem:[%s1006] sm:$0xff]
        %v1008 = vld [vmem:[%s1006 + $0x8] sm:$0xff]
        %v1010 = vsel %vm202, %v1004, 0
        %v1013 = vsel %vm202, %v1005, 0
        %1015 = vmatpush.msra.mxu0 0.0
        %1016 = vmatpush.msra.mxu0 0.0
        %1017 = vmatpush.msra.mxu0 0.0
        %1018 = vmatpush.msra.mxu0 0.0
        %1019 = vmatpush.msra.mxu0 0.0
        %1020 = vmatpush.msra.mxu0 0.0
        %1021 = vmatpush.msra.mxu0 0.0
        %1022 = vmatpush.msra.mxu0 0.0
        %1023 = vmatpush.msra.mxu0 0.0
        %1024 = vmatpush.msra.mxu0 0.0
        %1025 = vmatpush.msra.mxu0 0.0
        %1026 = vmatpush.msra.mxu0 0.0
        %1027 = vmatpush.msra.mxu0 0.0
        %1028 = vmatpush.msra.mxu0 0.0
        %v1029 = vand.u32 %v1008, 4294901760
        %1030 = vmatpush.msra.mxu0 %v1029
        %v1031 = vand.u32 %v1007, 4294901760
        %1032 = vmatpush.msra.mxu0 %v1031
        %v1033 = vand.u32 %v1010, 4294901760
        %v1034 = vsub.f32 %v1010, %v1033
        %v1035 = vand.u32 %v1034, 4294901760
        %v1036 = vsub.f32 %v1034, %v1035
        %v1037 = vand.u32 %v1036, 4294901760
        %1038 = vmatmul.f32.gmra.mxu0 %v1037
        %v1039 = vpop.f32.mrf.mxu0
        %v1040 = vadd.f32 0.0, %v1039
        %v1041 = vand.u32 %v1013, 4294901760
        %v1042 = vsub.f32 %v1013, %v1041
        %v1043 = vand.u32 %v1042, 4294901760
        %v1044 = vsub.f32 %v1042, %v1043
        %v1045 = vand.u32 %v1044, 4294901760
        %1046 = vmatmul.f32.gmra.mxu0 %v1045
        %v1047 = vpop.f32.mrf.mxu0
        %v1048 = vadd.f32 0.0, %v1047
        %1049 = vdwg.mxu0
        %1050 = vmatpush.msra.mxu0 0.0
        %1051 = vmatpush.msra.mxu0 0.0
        %1052 = vmatpush.msra.mxu0 0.0
        %1053 = vmatpush.msra.mxu0 0.0
        %1054 = vmatpush.msra.mxu0 0.0
        %1055 = vmatpush.msra.mxu0 0.0
        %1056 = vmatpush.msra.mxu0 0.0
        %1057 = vmatpush.msra.mxu0 0.0
        %1058 = vmatpush.msra.mxu0 0.0
        %1059 = vmatpush.msra.mxu0 0.0
        %1060 = vmatpush.msra.mxu0 0.0
        %1061 = vmatpush.msra.mxu0 0.0
        %1062 = vmatpush.msra.mxu0 0.0
        %1063 = vmatpush.msra.mxu0 0.0
        %v1064 = vand.u32 %v1008, 4294901760
        %v1065 = vsub.f32 %v1008, %v1064
        %v1066 = vand.u32 %v1065, 4294901760
        %v1067 = vsub.f32 %v1065, %v1066
        %v1068 = vand.u32 %v1067, 4294901760
        %1069 = vmatpush.msra.mxu0 %v1068
        %v1070 = vand.u32 %v1007, 4294901760
        %v1071 = vsub.f32 %v1007, %v1070
        %v1072 = vand.u32 %v1071, 4294901760
        %v1073 = vsub.f32 %v1071, %v1072
        %v1074 = vand.u32 %v1073, 4294901760
        %1075 = vmatpush.msra.mxu0 %v1074
        %v1076 = vand.u32 %v1010, 4294901760
        %1077 = vmatmul.f32.gmra.mxu0 %v1076
        %v1078 = vpop.f32.mrf.mxu0
        %v1079 = vadd.f32 %v1040, %v1078
        %v1080 = vand.u32 %v1013, 4294901760
        %1081 = vmatmul.f32.gmra.mxu0 %v1080
        %v1082 = vpop.f32.mrf.mxu0
        %v1083 = vadd.f32 %v1048, %v1082
        %1084 = vdwg.mxu0
        %1085 = vmatpush.msra.mxu0 0.0
        %1086 = vmatpush.msra.mxu0 0.0
        %1087 = vmatpush.msra.mxu0 0.0
        %1088 = vmatpush.msra.mxu0 0.0
        %1089 = vmatpush.msra.mxu0 0.0
        %1090 = vmatpush.msra.mxu0 0.0
        %1091 = vmatpush.msra.mxu0 0.0
        %1092 = vmatpush.msra.mxu0 0.0
        %1093 = vmatpush.msra.mxu0 0.0
        %1094 = vmatpush.msra.mxu0 0.0
        %1095 = vmatpush.msra.mxu0 0.0
        %1096 = vmatpush.msra.mxu0 0.0
        %1097 = vmatpush.msra.mxu0 0.0
        %1098 = vmatpush.msra.mxu0 0.0
        %v1099 = vand.u32 %v1008, 4294901760
        %v1100 = vsub.f32 %v1008, %v1099
        %1101 = vmatpush.msra.mxu0 %v1100
        %v1102 = vand.u32 %v1007, 4294901760
        %v1103 = vsub.f32 %v1007, %v1102
        %1104 = vmatpush.msra.mxu0 %v1103
        %v1105 = vand.u32 %v1010, 4294901760
        %v1106 = vsub.f32 %v1010, %v1105
        %1107 = vmatmul.f32.gmra.mxu0 %v1106
        %v1108 = vpop.f32.mrf.mxu0
        %v1109 = vadd.f32 %v1079, %v1108
        %v1110 = vand.u32 %v1013, 4294901760
        %v1111 = vsub.f32 %v1013, %v1110
        %1112 = vmatmul.f32.gmra.mxu0 %v1111
        %v1113 = vpop.f32.mrf.mxu0
        %v1114 = vadd.f32 %v1083, %v1113
        %1115 = vdwg.mxu0
        %1116 = vmatpush.msra.mxu0 0.0
        %1117 = vmatpush.msra.mxu0 0.0
        %1118 = vmatpush.msra.mxu0 0.0
        %1119 = vmatpush.msra.mxu0 0.0
        %1120 = vmatpush.msra.mxu0 0.0
        %1121 = vmatpush.msra.mxu0 0.0
        %1122 = vmatpush.msra.mxu0 0.0
        %1123 = vmatpush.msra.mxu0 0.0
        %1124 = vmatpush.msra.mxu0 0.0
        %1125 = vmatpush.msra.mxu0 0.0
        %1126 = vmatpush.msra.mxu0 0.0
        %1127 = vmatpush.msra.mxu0 0.0
        %1128 = vmatpush.msra.mxu0 0.0
        %1129 = vmatpush.msra.mxu0 0.0
        %v1130 = vand.u32 %v1008, 4294901760
        %1131 = vmatpush.msra.mxu0 %v1130
        %v1132 = vand.u32 %v1007, 4294901760
        %1133 = vmatpush.msra.mxu0 %v1132
        %v1134 = vand.u32 %v1010, 4294901760
        %v1135 = vsub.f32 %v1010, %v1134
        %v1136 = vand.u32 %v1135, 4294901760
        %1137 = vmatmul.f32.gmra.mxu0 %v1136
        %v1138 = vpop.f32.mrf.mxu0
        %v1139 = vadd.f32 %v1109, %v1138
        %v1140 = vand.u32 %v1013, 4294901760
        %v1141 = vsub.f32 %v1013, %v1140
        %v1142 = vand.u32 %v1141, 4294901760
        %1143 = vmatmul.f32.gmra.mxu0 %v1142
        %v1144 = vpop.f32.mrf.mxu0
        %v1145 = vadd.f32 %v1114, %v1144
        %1146 = vdwg.mxu0
        %1147 = vmatpush.msra.mxu0 0.0
        %1148 = vmatpush.msra.mxu0 0.0
        %1149 = vmatpush.msra.mxu0 0.0
        %1150 = vmatpush.msra.mxu0 0.0
        %1151 = vmatpush.msra.mxu0 0.0
        %1152 = vmatpush.msra.mxu0 0.0
        %1153 = vmatpush.msra.mxu0 0.0
        %1154 = vmatpush.msra.mxu0 0.0
        %1155 = vmatpush.msra.mxu0 0.0
        %1156 = vmatpush.msra.mxu0 0.0
        %1157 = vmatpush.msra.mxu0 0.0
        %1158 = vmatpush.msra.mxu0 0.0
        %1159 = vmatpush.msra.mxu0 0.0
        %1160 = vmatpush.msra.mxu0 0.0
        %v1161 = vand.u32 %v1008, 4294901760
        %v1162 = vsub.f32 %v1008, %v1161
        %v1163 = vand.u32 %v1162, 4294901760
        %1164 = vmatpush.msra.mxu0 %v1163
        %v1165 = vand.u32 %v1007, 4294901760
        %v1166 = vsub.f32 %v1007, %v1165
        %v1167 = vand.u32 %v1166, 4294901760
        %1168 = vmatpush.msra.mxu0 %v1167
        %v1169 = vand.u32 %v1010, 4294901760
        %1170 = vmatmul.f32.gmra.mxu0 %v1169
        %v1171 = vpop.f32.mrf.mxu0
        %v1172 = vadd.f32 %v1139, %v1171
        %v1173 = vand.u32 %v1013, 4294901760
        %1174 = vmatmul.f32.gmra.mxu0 %v1173
        %v1175 = vpop.f32.mrf.mxu0
        %v1176 = vadd.f32 %v1145, %v1175
        %1177 = vdwg.mxu0
        %1178 = vmatpush.msra.mxu0 0.0
        %1179 = vmatpush.msra.mxu0 0.0
        %1180 = vmatpush.msra.mxu0 0.0
        %1181 = vmatpush.msra.mxu0 0.0
        %1182 = vmatpush.msra.mxu0 0.0
        %1183 = vmatpush.msra.mxu0 0.0
        %1184 = vmatpush.msra.mxu0 0.0
        %1185 = vmatpush.msra.mxu0 0.0
        %1186 = vmatpush.msra.mxu0 0.0
        %1187 = vmatpush.msra.mxu0 0.0
        %1188 = vmatpush.msra.mxu0 0.0
        %1189 = vmatpush.msra.mxu0 0.0
        %1190 = vmatpush.msra.mxu0 0.0
        %1191 = vmatpush.msra.mxu0 0.0
        %v1192 = vand.u32 %v1008, 4294901760
        %1193 = vmatpush.msra.mxu0 %v1192
        %v1194 = vand.u32 %v1007, 4294901760
        %1195 = vmatpush.msra.mxu0 %v1194
        %v1196 = vand.u32 %v1010, 4294901760
        %1197 = vmatmul.f32.gmra.mxu0 %v1196
        %v1198 = vpop.f32.mrf.mxu0
        %v1199 = vadd.f32 %v1172, %v1198
        %v1200 = vand.u32 %v1013, 4294901760
        %1201 = vmatmul.f32.gmra.mxu0 %v1200
        %v1202 = vpop.f32.mrf.mxu0
        %v1203 = vadd.f32 %v1176, %v1202
        %1204 = vdwg.mxu0
        %v1205 = vadd.f32 %v1002, %v1199
        %v1206 = vadd.f32 %v1003, %v1203
        %v1207 = vld [vmem:[%s800 + $0x2] sm:$0xff]
        %v1208 = vld [vmem:[%s800 + $0xa] sm:$0x7]
        %s1209 = scalar_lea.vmem %s1, 80
        %v1210 = vld [vmem:[%s1209] sm:$0xff]
        %v1211 = vld [vmem:[%s1209 + $0x8] sm:$0xff]
        %v1213 = vsel %vm202, %v1207, 0
        %v1216 = vsel %vm202, %v1208, 0
        %1218 = vmatpush.msra.mxu0 0.0
        %1219 = vmatpush.msra.mxu0 0.0
        %1220 = vmatpush.msra.mxu0 0.0
        %1221 = vmatpush.msra.mxu0 0.0
        %1222 = vmatpush.msra.mxu0 0.0
        %1223 = vmatpush.msra.mxu0 0.0
        %1224 = vmatpush.msra.mxu0 0.0
        %1225 = vmatpush.msra.mxu0 0.0
        %1226 = vmatpush.msra.mxu0 0.0
        %1227 = vmatpush.msra.mxu0 0.0
        %1228 = vmatpush.msra.mxu0 0.0
        %1229 = vmatpush.msra.mxu0 0.0
        %1230 = vmatpush.msra.mxu0 0.0
        %1231 = vmatpush.msra.mxu0 0.0
        %v1232 = vand.u32 %v1211, 4294901760
        %1233 = vmatpush.msra.mxu0 %v1232
        %v1234 = vand.u32 %v1210, 4294901760
        %1235 = vmatpush.msra.mxu0 %v1234
        %v1236 = vand.u32 %v1213, 4294901760
        %v1237 = vsub.f32 %v1213, %v1236
        %v1238 = vand.u32 %v1237, 4294901760
        %v1239 = vsub.f32 %v1237, %v1238
        %v1240 = vand.u32 %v1239, 4294901760
        %1241 = vmatmul.f32.gmra.mxu0 %v1240
        %v1242 = vpop.f32.mrf.mxu0
        %v1243 = vadd.f32 0.0, %v1242
        %v1244 = vand.u32 %v1216, 4294901760
        %v1245 = vsub.f32 %v1216, %v1244
        %v1246 = vand.u32 %v1245, 4294901760
        %v1247 = vsub.f32 %v1245, %v1246
        %v1248 = vand.u32 %v1247, 4294901760
        %1249 = vmatmul.f32.gmra.mxu0 %v1248
        %v1250 = vpop.f32.mrf.mxu0
        %v1251 = vadd.f32 0.0, %v1250
        %1252 = vdwg.mxu0
        %1253 = vmatpush.msra.mxu0 0.0
        %1254 = vmatpush.msra.mxu0 0.0
        %1255 = vmatpush.msra.mxu0 0.0
        %1256 = vmatpush.msra.mxu0 0.0
        %1257 = vmatpush.msra.mxu0 0.0
        %1258 = vmatpush.msra.mxu0 0.0
        %1259 = vmatpush.msra.mxu0 0.0
        %1260 = vmatpush.msra.mxu0 0.0
        %1261 = vmatpush.msra.mxu0 0.0
        %1262 = vmatpush.msra.mxu0 0.0
        %1263 = vmatpush.msra.mxu0 0.0
        %1264 = vmatpush.msra.mxu0 0.0
        %1265 = vmatpush.msra.mxu0 0.0
        %1266 = vmatpush.msra.mxu0 0.0
        %v1267 = vand.u32 %v1211, 4294901760
        %v1268 = vsub.f32 %v1211, %v1267
        %v1269 = vand.u32 %v1268, 4294901760
        %v1270 = vsub.f32 %v1268, %v1269
        %v1271 = vand.u32 %v1270, 4294901760
        %1272 = vmatpush.msra.mxu0 %v1271
        %v1273 = vand.u32 %v1210, 4294901760
        %v1274 = vsub.f32 %v1210, %v1273
        %v1275 = vand.u32 %v1274, 4294901760
        %v1276 = vsub.f32 %v1274, %v1275
        %v1277 = vand.u32 %v1276, 4294901760
        %1278 = vmatpush.msra.mxu0 %v1277
        %v1279 = vand.u32 %v1213, 4294901760
        %1280 = vmatmul.f32.gmra.mxu0 %v1279
        %v1281 = vpop.f32.mrf.mxu0
        %v1282 = vadd.f32 %v1243, %v1281
        %v1283 = vand.u32 %v1216, 4294901760
        %1284 = vmatmul.f32.gmra.mxu0 %v1283
        %v1285 = vpop.f32.mrf.mxu0
        %v1286 = vadd.f32 %v1251, %v1285
        %1287 = vdwg.mxu0
        %1288 = vmatpush.msra.mxu0 0.0
        %1289 = vmatpush.msra.mxu0 0.0
        %1290 = vmatpush.msra.mxu0 0.0
        %1291 = vmatpush.msra.mxu0 0.0
        %1292 = vmatpush.msra.mxu0 0.0
        %1293 = vmatpush.msra.mxu0 0.0
        %1294 = vmatpush.msra.mxu0 0.0
        %1295 = vmatpush.msra.mxu0 0.0
        %1296 = vmatpush.msra.mxu0 0.0
        %1297 = vmatpush.msra.mxu0 0.0
        %1298 = vmatpush.msra.mxu0 0.0
        %1299 = vmatpush.msra.mxu0 0.0
        %1300 = vmatpush.msra.mxu0 0.0
        %1301 = vmatpush.msra.mxu0 0.0
        %v1302 = vand.u32 %v1211, 4294901760
        %v1303 = vsub.f32 %v1211, %v1302
        %1304 = vmatpush.msra.mxu0 %v1303
        %v1305 = vand.u32 %v1210, 4294901760
        %v1306 = vsub.f32 %v1210, %v1305
        %1307 = vmatpush.msra.mxu0 %v1306
        %v1308 = vand.u32 %v1213, 4294901760
        %v1309 = vsub.f32 %v1213, %v1308
        %1310 = vmatmul.f32.gmra.mxu0 %v1309
        %v1311 = vpop.f32.mrf.mxu0
        %v1312 = vadd.f32 %v1282, %v1311
        %v1313 = vand.u32 %v1216, 4294901760
        %v1314 = vsub.f32 %v1216, %v1313
        %1315 = vmatmul.f32.gmra.mxu0 %v1314
        %v1316 = vpop.f32.mrf.mxu0
        %v1317 = vadd.f32 %v1286, %v1316
        %1318 = vdwg.mxu0
        %1319 = vmatpush.msra.mxu0 0.0
        %1320 = vmatpush.msra.mxu0 0.0
        %1321 = vmatpush.msra.mxu0 0.0
        %1322 = vmatpush.msra.mxu0 0.0
        %1323 = vmatpush.msra.mxu0 0.0
        %1324 = vmatpush.msra.mxu0 0.0
        %1325 = vmatpush.msra.mxu0 0.0
        %1326 = vmatpush.msra.mxu0 0.0
        %1327 = vmatpush.msra.mxu0 0.0
        %1328 = vmatpush.msra.mxu0 0.0
        %1329 = vmatpush.msra.mxu0 0.0
        %1330 = vmatpush.msra.mxu0 0.0
        %1331 = vmatpush.msra.mxu0 0.0
        %1332 = vmatpush.msra.mxu0 0.0
        %v1333 = vand.u32 %v1211, 4294901760
        %1334 = vmatpush.msra.mxu0 %v1333
        %v1335 = vand.u32 %v1210, 4294901760
        %1336 = vmatpush.msra.mxu0 %v1335
        %v1337 = vand.u32 %v1213, 4294901760
        %v1338 = vsub.f32 %v1213, %v1337
        %v1339 = vand.u32 %v1338, 4294901760
        %1340 = vmatmul.f32.gmra.mxu0 %v1339
        %v1341 = vpop.f32.mrf.mxu0
        %v1342 = vadd.f32 %v1312, %v1341
        %v1343 = vand.u32 %v1216, 4294901760
        %v1344 = vsub.f32 %v1216, %v1343
        %v1345 = vand.u32 %v1344, 4294901760
        %1346 = vmatmul.f32.gmra.mxu0 %v1345
        %v1347 = vpop.f32.mrf.mxu0
        %v1348 = vadd.f32 %v1317, %v1347
        %1349 = vdwg.mxu0
        %1350 = vmatpush.msra.mxu0 0.0
        %1351 = vmatpush.msra.mxu0 0.0
        %1352 = vmatpush.msra.mxu0 0.0
        %1353 = vmatpush.msra.mxu0 0.0
        %1354 = vmatpush.msra.mxu0 0.0
        %1355 = vmatpush.msra.mxu0 0.0
        %1356 = vmatpush.msra.mxu0 0.0
        %1357 = vmatpush.msra.mxu0 0.0
        %1358 = vmatpush.msra.mxu0 0.0
        %1359 = vmatpush.msra.mxu0 0.0
        %1360 = vmatpush.msra.mxu0 0.0
        %1361 = vmatpush.msra.mxu0 0.0
        %1362 = vmatpush.msra.mxu0 0.0
        %1363 = vmatpush.msra.mxu0 0.0
        %v1364 = vand.u32 %v1211, 4294901760
        %v1365 = vsub.f32 %v1211, %v1364
        %v1366 = vand.u32 %v1365, 4294901760
        %1367 = vmatpush.msra.mxu0 %v1366
        %v1368 = vand.u32 %v1210, 4294901760
        %v1369 = vsub.f32 %v1210, %v1368
        %v1370 = vand.u32 %v1369, 4294901760
        %1371 = vmatpush.msra.mxu0 %v1370
        %v1372 = vand.u32 %v1213, 4294901760
        %1373 = vmatmul.f32.gmra.mxu0 %v1372
        %v1374 = vpop.f32.mrf.mxu0
        %v1375 = vadd.f32 %v1342, %v1374
        %v1376 = vand.u32 %v1216, 4294901760
        %1377 = vmatmul.f32.gmra.mxu0 %v1376
        %v1378 = vpop.f32.mrf.mxu0
        %v1379 = vadd.f32 %v1348, %v1378
        %1380 = vdwg.mxu0
        %1381 = vmatpush.msra.mxu0 0.0
        %1382 = vmatpush.msra.mxu0 0.0
        %1383 = vmatpush.msra.mxu0 0.0
        %1384 = vmatpush.msra.mxu0 0.0
        %1385 = vmatpush.msra.mxu0 0.0
        %1386 = vmatpush.msra.mxu0 0.0
        %1387 = vmatpush.msra.mxu0 0.0
        %1388 = vmatpush.msra.mxu0 0.0
        %1389 = vmatpush.msra.mxu0 0.0
        %1390 = vmatpush.msra.mxu0 0.0
        %1391 = vmatpush.msra.mxu0 0.0
        %1392 = vmatpush.msra.mxu0 0.0
        %1393 = vmatpush.msra.mxu0 0.0
        %1394 = vmatpush.msra.mxu0 0.0
        %v1395 = vand.u32 %v1211, 4294901760
        %1396 = vmatpush.msra.mxu0 %v1395
        %v1397 = vand.u32 %v1210, 4294901760
        %1398 = vmatpush.msra.mxu0 %v1397
        %v1399 = vand.u32 %v1213, 4294901760
        %1400 = vmatmul.f32.gmra.mxu0 %v1399
        %v1401 = vpop.f32.mrf.mxu0
        %v1402 = vadd.f32 %v1375, %v1401
        %v1403 = vand.u32 %v1216, 4294901760
        %1404 = vmatmul.f32.gmra.mxu0 %v1403
        %v1405 = vpop.f32.mrf.mxu0
        %v1406 = vadd.f32 %v1379, %v1405
        %1407 = vdwg.mxu0
        %v1408 = vadd.f32 %v1205, %v1402
        %v1409 = vadd.f32 %v1206, %v1406
        %s1410 = sadd.s32 %s190, 2
        %s1411 = smul.u32 %s1410, 16
        %s1412 = scalar_lea.vmem %s165, %s1411
        %v1413 = vld [vmem:[%s1412] sm:$0xff]
        %v1414 = vld [vmem:[%s1412 + $0x8] sm:$0x7]
        %s1415 = scalar_lea.vmem %s1, 96
        %v1416 = vld [vmem:[%s1415] sm:$0xff]
        %v1417 = vld [vmem:[%s1415 + $0x8] sm:$0xff]
        %v1419 = vsel %vm202, %v1413, 0
        %v1422 = vsel %vm202, %v1414, 0
        %1424 = vmatpush.msra.mxu0 0.0
        %1425 = vmatpush.msra.mxu0 0.0
        %1426 = vmatpush.msra.mxu0 0.0
        %1427 = vmatpush.msra.mxu0 0.0
        %1428 = vmatpush.msra.mxu0 0.0
        %1429 = vmatpush.msra.mxu0 0.0
        %1430 = vmatpush.msra.mxu0 0.0
        %1431 = vmatpush.msra.mxu0 0.0
        %1432 = vmatpush.msra.mxu0 0.0
        %1433 = vmatpush.msra.mxu0 0.0
        %1434 = vmatpush.msra.mxu0 0.0
        %1435 = vmatpush.msra.mxu0 0.0
        %1436 = vmatpush.msra.mxu0 0.0
        %1437 = vmatpush.msra.mxu0 0.0
        %v1438 = vand.u32 %v1417, 4294901760
        %1439 = vmatpush.msra.mxu0 %v1438
        %v1440 = vand.u32 %v1416, 4294901760
        %1441 = vmatpush.msra.mxu0 %v1440
        %v1442 = vand.u32 %v1419, 4294901760
        %v1443 = vsub.f32 %v1419, %v1442
        %v1444 = vand.u32 %v1443, 4294901760
        %v1445 = vsub.f32 %v1443, %v1444
        %v1446 = vand.u32 %v1445, 4294901760
        %1447 = vmatmul.f32.gmra.mxu0 %v1446
        %v1448 = vpop.f32.mrf.mxu0
        %v1449 = vadd.f32 0.0, %v1448
        %v1450 = vand.u32 %v1422, 4294901760
        %v1451 = vsub.f32 %v1422, %v1450
        %v1452 = vand.u32 %v1451, 4294901760
        %v1453 = vsub.f32 %v1451, %v1452
        %v1454 = vand.u32 %v1453, 4294901760
        %1455 = vmatmul.f32.gmra.mxu0 %v1454
        %v1456 = vpop.f32.mrf.mxu0
        %v1457 = vadd.f32 0.0, %v1456
        %1458 = vdwg.mxu0
        %1459 = vmatpush.msra.mxu0 0.0
        %1460 = vmatpush.msra.mxu0 0.0
        %1461 = vmatpush.msra.mxu0 0.0
        %1462 = vmatpush.msra.mxu0 0.0
        %1463 = vmatpush.msra.mxu0 0.0
        %1464 = vmatpush.msra.mxu0 0.0
        %1465 = vmatpush.msra.mxu0 0.0
        %1466 = vmatpush.msra.mxu0 0.0
        %1467 = vmatpush.msra.mxu0 0.0
        %1468 = vmatpush.msra.mxu0 0.0
        %1469 = vmatpush.msra.mxu0 0.0
        %1470 = vmatpush.msra.mxu0 0.0
        %1471 = vmatpush.msra.mxu0 0.0
        %1472 = vmatpush.msra.mxu0 0.0
        %v1473 = vand.u32 %v1417, 4294901760
        %v1474 = vsub.f32 %v1417, %v1473
        %v1475 = vand.u32 %v1474, 4294901760
        %v1476 = vsub.f32 %v1474, %v1475
        %v1477 = vand.u32 %v1476, 4294901760
        %1478 = vmatpush.msra.mxu0 %v1477
        %v1479 = vand.u32 %v1416, 4294901760
        %v1480 = vsub.f32 %v1416, %v1479
        %v1481 = vand.u32 %v1480, 4294901760
        %v1482 = vsub.f32 %v1480, %v1481
        %v1483 = vand.u32 %v1482, 4294901760
        %1484 = vmatpush.msra.mxu0 %v1483
        %v1485 = vand.u32 %v1419, 4294901760
        %1486 = vmatmul.f32.gmra.mxu0 %v1485
        %v1487 = vpop.f32.mrf.mxu0
        %v1488 = vadd.f32 %v1449, %v1487
        %v1489 = vand.u32 %v1422, 4294901760
        %1490 = vmatmul.f32.gmra.mxu0 %v1489
        %v1491 = vpop.f32.mrf.mxu0
        %v1492 = vadd.f32 %v1457, %v1491
        %1493 = vdwg.mxu0
        %1494 = vmatpush.msra.mxu0 0.0
        %1495 = vmatpush.msra.mxu0 0.0
        %1496 = vmatpush.msra.mxu0 0.0
        %1497 = vmatpush.msra.mxu0 0.0
        %1498 = vmatpush.msra.mxu0 0.0
        %1499 = vmatpush.msra.mxu0 0.0
        %1500 = vmatpush.msra.mxu0 0.0
        %1501 = vmatpush.msra.mxu0 0.0
        %1502 = vmatpush.msra.mxu0 0.0
        %1503 = vmatpush.msra.mxu0 0.0
        %1504 = vmatpush.msra.mxu0 0.0
        %1505 = vmatpush.msra.mxu0 0.0
        %1506 = vmatpush.msra.mxu0 0.0
        %1507 = vmatpush.msra.mxu0 0.0
        %v1508 = vand.u32 %v1417, 4294901760
        %v1509 = vsub.f32 %v1417, %v1508
        %1510 = vmatpush.msra.mxu0 %v1509
        %v1511 = vand.u32 %v1416, 4294901760
        %v1512 = vsub.f32 %v1416, %v1511
        %1513 = vmatpush.msra.mxu0 %v1512
        %v1514 = vand.u32 %v1419, 4294901760
        %v1515 = vsub.f32 %v1419, %v1514
        %1516 = vmatmul.f32.gmra.mxu0 %v1515
        %v1517 = vpop.f32.mrf.mxu0
        %v1518 = vadd.f32 %v1488, %v1517
        %v1519 = vand.u32 %v1422, 4294901760
        %v1520 = vsub.f32 %v1422, %v1519
        %1521 = vmatmul.f32.gmra.mxu0 %v1520
        %v1522 = vpop.f32.mrf.mxu0
        %v1523 = vadd.f32 %v1492, %v1522
        %1524 = vdwg.mxu0
        %1525 = vmatpush.msra.mxu0 0.0
        %1526 = vmatpush.msra.mxu0 0.0
        %1527 = vmatpush.msra.mxu0 0.0
        %1528 = vmatpush.msra.mxu0 0.0
        %1529 = vmatpush.msra.mxu0 0.0
        %1530 = vmatpush.msra.mxu0 0.0
        %1531 = vmatpush.msra.mxu0 0.0
        %1532 = vmatpush.msra.mxu0 0.0
        %1533 = vmatpush.msra.mxu0 0.0
        %1534 = vmatpush.msra.mxu0 0.0
        %1535 = vmatpush.msra.mxu0 0.0
        %1536 = vmatpush.msra.mxu0 0.0
        %1537 = vmatpush.msra.mxu0 0.0
        %1538 = vmatpush.msra.mxu0 0.0
        %v1539 = vand.u32 %v1417, 4294901760
        %1540 = vmatpush.msra.mxu0 %v1539
        %v1541 = vand.u32 %v1416, 4294901760
        %1542 = vmatpush.msra.mxu0 %v1541
        %v1543 = vand.u32 %v1419, 4294901760
        %v1544 = vsub.f32 %v1419, %v1543
        %v1545 = vand.u32 %v1544, 4294901760
        %1546 = vmatmul.f32.gmra.mxu0 %v1545
        %v1547 = vpop.f32.mrf.mxu0
        %v1548 = vadd.f32 %v1518, %v1547
        %v1549 = vand.u32 %v1422, 4294901760
        %v1550 = vsub.f32 %v1422, %v1549
        %v1551 = vand.u32 %v1550, 4294901760
        %1552 = vmatmul.f32.gmra.mxu0 %v1551
        %v1553 = vpop.f32.mrf.mxu0
        %v1554 = vadd.f32 %v1523, %v1553
        %1555 = vdwg.mxu0
        %1556 = vmatpush.msra.mxu0 0.0
        %1557 = vmatpush.msra.mxu0 0.0
        %1558 = vmatpush.msra.mxu0 0.0
        %1559 = vmatpush.msra.mxu0 0.0
        %1560 = vmatpush.msra.mxu0 0.0
        %1561 = vmatpush.msra.mxu0 0.0
        %1562 = vmatpush.msra.mxu0 0.0
        %1563 = vmatpush.msra.mxu0 0.0
        %1564 = vmatpush.msra.mxu0 0.0
        %1565 = vmatpush.msra.mxu0 0.0
        %1566 = vmatpush.msra.mxu0 0.0
        %1567 = vmatpush.msra.mxu0 0.0
        %1568 = vmatpush.msra.mxu0 0.0
        %1569 = vmatpush.msra.mxu0 0.0
        %v1570 = vand.u32 %v1417, 4294901760
        %v1571 = vsub.f32 %v1417, %v1570
        %v1572 = vand.u32 %v1571, 4294901760
        %1573 = vmatpush.msra.mxu0 %v1572
        %v1574 = vand.u32 %v1416, 4294901760
        %v1575 = vsub.f32 %v1416, %v1574
        %v1576 = vand.u32 %v1575, 4294901760
        %1577 = vmatpush.msra.mxu0 %v1576
        %v1578 = vand.u32 %v1419, 4294901760
        %1579 = vmatmul.f32.gmra.mxu0 %v1578
        %v1580 = vpop.f32.mrf.mxu0
        %v1581 = vadd.f32 %v1548, %v1580
        %v1582 = vand.u32 %v1422, 4294901760
        %1583 = vmatmul.f32.gmra.mxu0 %v1582
        %v1584 = vpop.f32.mrf.mxu0
        %v1585 = vadd.f32 %v1554, %v1584
        %1586 = vdwg.mxu0
        %1587 = vmatpush.msra.mxu0 0.0
        %1588 = vmatpush.msra.mxu0 0.0
        %1589 = vmatpush.msra.mxu0 0.0
        %1590 = vmatpush.msra.mxu0 0.0
        %1591 = vmatpush.msra.mxu0 0.0
        %1592 = vmatpush.msra.mxu0 0.0
        %1593 = vmatpush.msra.mxu0 0.0
        %1594 = vmatpush.msra.mxu0 0.0
        %1595 = vmatpush.msra.mxu0 0.0
        %1596 = vmatpush.msra.mxu0 0.0
        %1597 = vmatpush.msra.mxu0 0.0
        %1598 = vmatpush.msra.mxu0 0.0
        %1599 = vmatpush.msra.mxu0 0.0
        %1600 = vmatpush.msra.mxu0 0.0
        %v1601 = vand.u32 %v1417, 4294901760
        %1602 = vmatpush.msra.mxu0 %v1601
        %v1603 = vand.u32 %v1416, 4294901760
        %1604 = vmatpush.msra.mxu0 %v1603
        %v1605 = vand.u32 %v1419, 4294901760
        %1606 = vmatmul.f32.gmra.mxu0 %v1605
        %v1607 = vpop.f32.mrf.mxu0
        %v1608 = vadd.f32 %v1581, %v1607
        %v1609 = vand.u32 %v1422, 4294901760
        %1610 = vmatmul.f32.gmra.mxu0 %v1609
        %v1611 = vpop.f32.mrf.mxu0
        %v1612 = vadd.f32 %v1585, %v1611
        %1613 = vdwg.mxu0
        %v1614 = vadd.f32 %v1408, %v1608
        %v1615 = vadd.f32 %v1409, %v1612
        %v1616 = vld [vmem:[%s1412 + $0x1] sm:$0xff]
        %v1617 = vld [vmem:[%s1412 + $0x9] sm:$0x7]
        %s1618 = scalar_lea.vmem %s1, 112
        %v1619 = vld [vmem:[%s1618] sm:$0xff]
        %v1620 = vld [vmem:[%s1618 + $0x8] sm:$0xff]
        %v1622 = vsel %vm202, %v1616, 0
        %v1625 = vsel %vm202, %v1617, 0
        %1627 = vmatpush.msra.mxu0 0.0
        %1628 = vmatpush.msra.mxu0 0.0
        %1629 = vmatpush.msra.mxu0 0.0
        %1630 = vmatpush.msra.mxu0 0.0
        %1631 = vmatpush.msra.mxu0 0.0
        %1632 = vmatpush.msra.mxu0 0.0
        %1633 = vmatpush.msra.mxu0 0.0
        %1634 = vmatpush.msra.mxu0 0.0
        %1635 = vmatpush.msra.mxu0 0.0
        %1636 = vmatpush.msra.mxu0 0.0
        %1637 = vmatpush.msra.mxu0 0.0
        %1638 = vmatpush.msra.mxu0 0.0
        %1639 = vmatpush.msra.mxu0 0.0
        %1640 = vmatpush.msra.mxu0 0.0
        %v1641 = vand.u32 %v1620, 4294901760
        %1642 = vmatpush.msra.mxu0 %v1641
        %v1643 = vand.u32 %v1619, 4294901760
        %1644 = vmatpush.msra.mxu0 %v1643
        %v1645 = vand.u32 %v1622, 4294901760
        %v1646 = vsub.f32 %v1622, %v1645
        %v1647 = vand.u32 %v1646, 4294901760
        %v1648 = vsub.f32 %v1646, %v1647
        %v1649 = vand.u32 %v1648, 4294901760
        %1650 = vmatmul.f32.gmra.mxu0 %v1649
        %v1651 = vpop.f32.mrf.mxu0
        %v1652 = vadd.f32 0.0, %v1651
        %v1653 = vand.u32 %v1625, 4294901760
        %v1654 = vsub.f32 %v1625, %v1653
        %v1655 = vand.u32 %v1654, 4294901760
        %v1656 = vsub.f32 %v1654, %v1655
        %v1657 = vand.u32 %v1656, 4294901760
        %1658 = vmatmul.f32.gmra.mxu0 %v1657
        %v1659 = vpop.f32.mrf.mxu0
        %v1660 = vadd.f32 0.0, %v1659
        %1661 = vdwg.mxu0
        %1662 = vmatpush.msra.mxu0 0.0
        %1663 = vmatpush.msra.mxu0 0.0
        %1664 = vmatpush.msra.mxu0 0.0
        %1665 = vmatpush.msra.mxu0 0.0
        %1666 = vmatpush.msra.mxu0 0.0
        %1667 = vmatpush.msra.mxu0 0.0
        %1668 = vmatpush.msra.mxu0 0.0
        %1669 = vmatpush.msra.mxu0 0.0
        %1670 = vmatpush.msra.mxu0 0.0
        %1671 = vmatpush.msra.mxu0 0.0
        %1672 = vmatpush.msra.mxu0 0.0
        %1673 = vmatpush.msra.mxu0 0.0
        %1674 = vmatpush.msra.mxu0 0.0
        %1675 = vmatpush.msra.mxu0 0.0
        %v1676 = vand.u32 %v1620, 4294901760
        %v1677 = vsub.f32 %v1620, %v1676
        %v1678 = vand.u32 %v1677, 4294901760
        %v1679 = vsub.f32 %v1677, %v1678
        %v1680 = vand.u32 %v1679, 4294901760
        %1681 = vmatpush.msra.mxu0 %v1680
        %v1682 = vand.u32 %v1619, 4294901760
        %v1683 = vsub.f32 %v1619, %v1682
        %v1684 = vand.u32 %v1683, 4294901760
        %v1685 = vsub.f32 %v1683, %v1684
        %v1686 = vand.u32 %v1685, 4294901760
        %1687 = vmatpush.msra.mxu0 %v1686
        %v1688 = vand.u32 %v1622, 4294901760
        %1689 = vmatmul.f32.gmra.mxu0 %v1688
        %v1690 = vpop.f32.mrf.mxu0
        %v1691 = vadd.f32 %v1652, %v1690
        %v1692 = vand.u32 %v1625, 4294901760
        %1693 = vmatmul.f32.gmra.mxu0 %v1692
        %v1694 = vpop.f32.mrf.mxu0
        %v1695 = vadd.f32 %v1660, %v1694
        %1696 = vdwg.mxu0
        %1697 = vmatpush.msra.mxu0 0.0
        %1698 = vmatpush.msra.mxu0 0.0
        %1699 = vmatpush.msra.mxu0 0.0
        %1700 = vmatpush.msra.mxu0 0.0
        %1701 = vmatpush.msra.mxu0 0.0
        %1702 = vmatpush.msra.mxu0 0.0
        %1703 = vmatpush.msra.mxu0 0.0
        %1704 = vmatpush.msra.mxu0 0.0
        %1705 = vmatpush.msra.mxu0 0.0
        %1706 = vmatpush.msra.mxu0 0.0
        %1707 = vmatpush.msra.mxu0 0.0
        %1708 = vmatpush.msra.mxu0 0.0
        %1709 = vmatpush.msra.mxu0 0.0
        %1710 = vmatpush.msra.mxu0 0.0
        %v1711 = vand.u32 %v1620, 4294901760
        %v1712 = vsub.f32 %v1620, %v1711
        %1713 = vmatpush.msra.mxu0 %v1712
        %v1714 = vand.u32 %v1619, 4294901760
        %v1715 = vsub.f32 %v1619, %v1714
        %1716 = vmatpush.msra.mxu0 %v1715
        %v1717 = vand.u32 %v1622, 4294901760
        %v1718 = vsub.f32 %v1622, %v1717
        %1719 = vmatmul.f32.gmra.mxu0 %v1718
        %v1720 = vpop.f32.mrf.mxu0
        %v1721 = vadd.f32 %v1691, %v1720
        %v1722 = vand.u32 %v1625, 4294901760
        %v1723 = vsub.f32 %v1625, %v1722
        %1724 = vmatmul.f32.gmra.mxu0 %v1723
        %v1725 = vpop.f32.mrf.mxu0
        %v1726 = vadd.f32 %v1695, %v1725
        %1727 = vdwg.mxu0
        %1728 = vmatpush.msra.mxu0 0.0
        %1729 = vmatpush.msra.mxu0 0.0
        %1730 = vmatpush.msra.mxu0 0.0
        %1731 = vmatpush.msra.mxu0 0.0
        %1732 = vmatpush.msra.mxu0 0.0
        %1733 = vmatpush.msra.mxu0 0.0
        %1734 = vmatpush.msra.mxu0 0.0
        %1735 = vmatpush.msra.mxu0 0.0
        %1736 = vmatpush.msra.mxu0 0.0
        %1737 = vmatpush.msra.mxu0 0.0
        %1738 = vmatpush.msra.mxu0 0.0
        %1739 = vmatpush.msra.mxu0 0.0
        %1740 = vmatpush.msra.mxu0 0.0
        %1741 = vmatpush.msra.mxu0 0.0
        %v1742 = vand.u32 %v1620, 4294901760
        %1743 = vmatpush.msra.mxu0 %v1742
        %v1744 = vand.u32 %v1619, 4294901760
        %1745 = vmatpush.msra.mxu0 %v1744
        %v1746 = vand.u32 %v1622, 4294901760
        %v1747 = vsub.f32 %v1622, %v1746
        %v1748 = vand.u32 %v1747, 4294901760
        %1749 = vmatmul.f32.gmra.mxu0 %v1748
        %v1750 = vpop.f32.mrf.mxu0
        %v1751 = vadd.f32 %v1721, %v1750
        %v1752 = vand.u32 %v1625, 4294901760
        %v1753 = vsub.f32 %v1625, %v1752
        %v1754 = vand.u32 %v1753, 4294901760
        %1755 = vmatmul.f32.gmra.mxu0 %v1754
        %v1756 = vpop.f32.mrf.mxu0
        %v1757 = vadd.f32 %v1726, %v1756
        %1758 = vdwg.mxu0
        %1759 = vmatpush.msra.mxu0 0.0
        %1760 = vmatpush.msra.mxu0 0.0
        %1761 = vmatpush.msra.mxu0 0.0
        %1762 = vmatpush.msra.mxu0 0.0
        %1763 = vmatpush.msra.mxu0 0.0
        %1764 = vmatpush.msra.mxu0 0.0
        %1765 = vmatpush.msra.mxu0 0.0
        %1766 = vmatpush.msra.mxu0 0.0
        %1767 = vmatpush.msra.mxu0 0.0
        %1768 = vmatpush.msra.mxu0 0.0
        %1769 = vmatpush.msra.mxu0 0.0
        %1770 = vmatpush.msra.mxu0 0.0
        %1771 = vmatpush.msra.mxu0 0.0
        %1772 = vmatpush.msra.mxu0 0.0
        %v1773 = vand.u32 %v1620, 4294901760
        %v1774 = vsub.f32 %v1620, %v1773
        %v1775 = vand.u32 %v1774, 4294901760
        %1776 = vmatpush.msra.mxu0 %v1775
        %v1777 = vand.u32 %v1619, 4294901760
        %v1778 = vsub.f32 %v1619, %v1777
        %v1779 = vand.u32 %v1778, 4294901760
        %1780 = vmatpush.msra.mxu0 %v1779
        %v1781 = vand.u32 %v1622, 4294901760
        %1782 = vmatmul.f32.gmra.mxu0 %v1781
        %v1783 = vpop.f32.mrf.mxu0
        %v1784 = vadd.f32 %v1751, %v1783
        %v1785 = vand.u32 %v1625, 4294901760
        %1786 = vmatmul.f32.gmra.mxu0 %v1785
        %v1787 = vpop.f32.mrf.mxu0
        %v1788 = vadd.f32 %v1757, %v1787
        %1789 = vdwg.mxu0
        %1790 = vmatpush.msra.mxu0 0.0
        %1791 = vmatpush.msra.mxu0 0.0
        %1792 = vmatpush.msra.mxu0 0.0
        %1793 = vmatpush.msra.mxu0 0.0
        %1794 = vmatpush.msra.mxu0 0.0
        %1795 = vmatpush.msra.mxu0 0.0
        %1796 = vmatpush.msra.mxu0 0.0
        %1797 = vmatpush.msra.mxu0 0.0
        %1798 = vmatpush.msra.mxu0 0.0
        %1799 = vmatpush.msra.mxu0 0.0
        %1800 = vmatpush.msra.mxu0 0.0
        %1801 = vmatpush.msra.mxu0 0.0
        %1802 = vmatpush.msra.mxu0 0.0
        %1803 = vmatpush.msra.mxu0 0.0
        %v1804 = vand.u32 %v1620, 4294901760
        %1805 = vmatpush.msra.mxu0 %v1804
        %v1806 = vand.u32 %v1619, 4294901760
        %1807 = vmatpush.msra.mxu0 %v1806
        %v1808 = vand.u32 %v1622, 4294901760
        %1809 = vmatmul.f32.gmra.mxu0 %v1808
        %v1810 = vpop.f32.mrf.mxu0
        %v1811 = vadd.f32 %v1784, %v1810
        %v1812 = vand.u32 %v1625, 4294901760
        %1813 = vmatmul.f32.gmra.mxu0 %v1812
        %v1814 = vpop.f32.mrf.mxu0
        %v1815 = vadd.f32 %v1788, %v1814
        %1816 = vdwg.mxu0
        %v1817 = vadd.f32 %v1614, %v1811
        %v1818 = vadd.f32 %v1615, %v1815
        %v1819 = vld [vmem:[%s1412 + $0x2] sm:$0xff]
        %v1820 = vld [vmem:[%s1412 + $0xa] sm:$0x7]
        %s1821 = scalar_lea.vmem %s1, 128
        %v1822 = vld [vmem:[%s1821] sm:$0xff]
        %v1823 = vld [vmem:[%s1821 + $0x8] sm:$0xff]
        %v1825 = vsel %vm202, %v1819, 0
        %v1828 = vsel %vm202, %v1820, 0
        %1830 = vmatpush.msra.mxu0 0.0
        %1831 = vmatpush.msra.mxu0 0.0
        %1832 = vmatpush.msra.mxu0 0.0
        %1833 = vmatpush.msra.mxu0 0.0
        %1834 = vmatpush.msra.mxu0 0.0
        %1835 = vmatpush.msra.mxu0 0.0
        %1836 = vmatpush.msra.mxu0 0.0
        %1837 = vmatpush.msra.mxu0 0.0
        %1838 = vmatpush.msra.mxu0 0.0
        %1839 = vmatpush.msra.mxu0 0.0
        %1840 = vmatpush.msra.mxu0 0.0
        %1841 = vmatpush.msra.mxu0 0.0
        %1842 = vmatpush.msra.mxu0 0.0
        %1843 = vmatpush.msra.mxu0 0.0
        %v1844 = vand.u32 %v1823, 4294901760
        %1845 = vmatpush.msra.mxu0 %v1844
        %v1846 = vand.u32 %v1822, 4294901760
        %1847 = vmatpush.msra.mxu0 %v1846
        %v1848 = vand.u32 %v1825, 4294901760
        %v1849 = vsub.f32 %v1825, %v1848
        %v1850 = vand.u32 %v1849, 4294901760
        %v1851 = vsub.f32 %v1849, %v1850
        %v1852 = vand.u32 %v1851, 4294901760
        %1853 = vmatmul.f32.gmra.mxu0 %v1852
        %v1854 = vpop.f32.mrf.mxu0
        %v1855 = vadd.f32 0.0, %v1854
        %v1856 = vand.u32 %v1828, 4294901760
        %v1857 = vsub.f32 %v1828, %v1856
        %v1858 = vand.u32 %v1857, 4294901760
        %v1859 = vsub.f32 %v1857, %v1858
        %v1860 = vand.u32 %v1859, 4294901760
        %1861 = vmatmul.f32.gmra.mxu0 %v1860
        %v1862 = vpop.f32.mrf.mxu0
        %v1863 = vadd.f32 0.0, %v1862
        %1864 = vdwg.mxu0
        %1865 = vmatpush.msra.mxu0 0.0
        %1866 = vmatpush.msra.mxu0 0.0
        %1867 = vmatpush.msra.mxu0 0.0
        %1868 = vmatpush.msra.mxu0 0.0
        %1869 = vmatpush.msra.mxu0 0.0
        %1870 = vmatpush.msra.mxu0 0.0
        %1871 = vmatpush.msra.mxu0 0.0
        %1872 = vmatpush.msra.mxu0 0.0
        %1873 = vmatpush.msra.mxu0 0.0
        %1874 = vmatpush.msra.mxu0 0.0
        %1875 = vmatpush.msra.mxu0 0.0
        %1876 = vmatpush.msra.mxu0 0.0
        %1877 = vmatpush.msra.mxu0 0.0
        %1878 = vmatpush.msra.mxu0 0.0
        %v1879 = vand.u32 %v1823, 4294901760
        %v1880 = vsub.f32 %v1823, %v1879
        %v1881 = vand.u32 %v1880, 4294901760
        %v1882 = vsub.f32 %v1880, %v1881
        %v1883 = vand.u32 %v1882, 4294901760
        %1884 = vmatpush.msra.mxu0 %v1883
        %v1885 = vand.u32 %v1822, 4294901760
        %v1886 = vsub.f32 %v1822, %v1885
        %v1887 = vand.u32 %v1886, 4294901760
        %v1888 = vsub.f32 %v1886, %v1887
        %v1889 = vand.u32 %v1888, 4294901760
        %1890 = vmatpush.msra.mxu0 %v1889
        %v1891 = vand.u32 %v1825, 4294901760
        %1892 = vmatmul.f32.gmra.mxu0 %v1891
        %v1893 = vpop.f32.mrf.mxu0
        %v1894 = vadd.f32 %v1855, %v1893
        %v1895 = vand.u32 %v1828, 4294901760
        %1896 = vmatmul.f32.gmra.mxu0 %v1895
        %v1897 = vpop.f32.mrf.mxu0
        %v1898 = vadd.f32 %v1863, %v1897
        %1899 = vdwg.mxu0
        %1900 = vmatpush.msra.mxu0 0.0
        %1901 = vmatpush.msra.mxu0 0.0
        %1902 = vmatpush.msra.mxu0 0.0
        %1903 = vmatpush.msra.mxu0 0.0
        %1904 = vmatpush.msra.mxu0 0.0
        %1905 = vmatpush.msra.mxu0 0.0
        %1906 = vmatpush.msra.mxu0 0.0
        %1907 = vmatpush.msra.mxu0 0.0
        %1908 = vmatpush.msra.mxu0 0.0
        %1909 = vmatpush.msra.mxu0 0.0
        %1910 = vmatpush.msra.mxu0 0.0
        %1911 = vmatpush.msra.mxu0 0.0
        %1912 = vmatpush.msra.mxu0 0.0
        %1913 = vmatpush.msra.mxu0 0.0
        %v1914 = vand.u32 %v1823, 4294901760
        %v1915 = vsub.f32 %v1823, %v1914
        %1916 = vmatpush.msra.mxu0 %v1915
        %v1917 = vand.u32 %v1822, 4294901760
        %v1918 = vsub.f32 %v1822, %v1917
        %1919 = vmatpush.msra.mxu0 %v1918
        %v1920 = vand.u32 %v1825, 4294901760
        %v1921 = vsub.f32 %v1825, %v1920
        %1922 = vmatmul.f32.gmra.mxu0 %v1921
        %v1923 = vpop.f32.mrf.mxu0
        %v1924 = vadd.f32 %v1894, %v1923
        %v1925 = vand.u32 %v1828, 4294901760
        %v1926 = vsub.f32 %v1828, %v1925
        %1927 = vmatmul.f32.gmra.mxu0 %v1926
        %v1928 = vpop.f32.mrf.mxu0
        %v1929 = vadd.f32 %v1898, %v1928
        %1930 = vdwg.mxu0
        %1931 = vmatpush.msra.mxu0 0.0
        %1932 = vmatpush.msra.mxu0 0.0
        %1933 = vmatpush.msra.mxu0 0.0
        %1934 = vmatpush.msra.mxu0 0.0
        %1935 = vmatpush.msra.mxu0 0.0
        %1936 = vmatpush.msra.mxu0 0.0
        %1937 = vmatpush.msra.mxu0 0.0
        %1938 = vmatpush.msra.mxu0 0.0
        %1939 = vmatpush.msra.mxu0 0.0
        %1940 = vmatpush.msra.mxu0 0.0
        %1941 = vmatpush.msra.mxu0 0.0
        %1942 = vmatpush.msra.mxu0 0.0
        %1943 = vmatpush.msra.mxu0 0.0
        %1944 = vmatpush.msra.mxu0 0.0
        %v1945 = vand.u32 %v1823, 4294901760
        %1946 = vmatpush.msra.mxu0 %v1945
        %v1947 = vand.u32 %v1822, 4294901760
        %1948 = vmatpush.msra.mxu0 %v1947
        %v1949 = vand.u32 %v1825, 4294901760
        %v1950 = vsub.f32 %v1825, %v1949
        %v1951 = vand.u32 %v1950, 4294901760
        %1952 = vmatmul.f32.gmra.mxu0 %v1951
        %v1953 = vpop.f32.mrf.mxu0
        %v1954 = vadd.f32 %v1924, %v1953
        %v1955 = vand.u32 %v1828, 4294901760
        %v1956 = vsub.f32 %v1828, %v1955
        %v1957 = vand.u32 %v1956, 4294901760
        %1958 = vmatmul.f32.gmra.mxu0 %v1957
        %v1959 = vpop.f32.mrf.mxu0
        %v1960 = vadd.f32 %v1929, %v1959
        %1961 = vdwg.mxu0
        %1962 = vmatpush.msra.mxu0 0.0
        %1963 = vmatpush.msra.mxu0 0.0
        %1964 = vmatpush.msra.mxu0 0.0
        %1965 = vmatpush.msra.mxu0 0.0
        %1966 = vmatpush.msra.mxu0 0.0
        %1967 = vmatpush.msra.mxu0 0.0
        %1968 = vmatpush.msra.mxu0 0.0
        %1969 = vmatpush.msra.mxu0 0.0
        %1970 = vmatpush.msra.mxu0 0.0
        %1971 = vmatpush.msra.mxu0 0.0
        %1972 = vmatpush.msra.mxu0 0.0
        %1973 = vmatpush.msra.mxu0 0.0
        %1974 = vmatpush.msra.mxu0 0.0
        %1975 = vmatpush.msra.mxu0 0.0
        %v1976 = vand.u32 %v1823, 4294901760
        %v1977 = vsub.f32 %v1823, %v1976
        %v1978 = vand.u32 %v1977, 4294901760
        %1979 = vmatpush.msra.mxu0 %v1978
        %v1980 = vand.u32 %v1822, 4294901760
        %v1981 = vsub.f32 %v1822, %v1980
        %v1982 = vand.u32 %v1981, 4294901760
        %1983 = vmatpush.msra.mxu0 %v1982
        %v1984 = vand.u32 %v1825, 4294901760
        %1985 = vmatmul.f32.gmra.mxu0 %v1984
        %v1986 = vpop.f32.mrf.mxu0
        %v1987 = vadd.f32 %v1954, %v1986
        %v1988 = vand.u32 %v1828, 4294901760
        %1989 = vmatmul.f32.gmra.mxu0 %v1988
        %v1990 = vpop.f32.mrf.mxu0
        %v1991 = vadd.f32 %v1960, %v1990
        %1992 = vdwg.mxu0
        %1993 = vmatpush.msra.mxu0 0.0
        %1994 = vmatpush.msra.mxu0 0.0
        %1995 = vmatpush.msra.mxu0 0.0
        %1996 = vmatpush.msra.mxu0 0.0
        %1997 = vmatpush.msra.mxu0 0.0
        %1998 = vmatpush.msra.mxu0 0.0
        %1999 = vmatpush.msra.mxu0 0.0
        %2000 = vmatpush.msra.mxu0 0.0
        %2001 = vmatpush.msra.mxu0 0.0
        %2002 = vmatpush.msra.mxu0 0.0
        %2003 = vmatpush.msra.mxu0 0.0
        %2004 = vmatpush.msra.mxu0 0.0
        %2005 = vmatpush.msra.mxu0 0.0
        %2006 = vmatpush.msra.mxu0 0.0
        %v2007 = vand.u32 %v1823, 4294901760
        %2008 = vmatpush.msra.mxu0 %v2007
        %v2009 = vand.u32 %v1822, 4294901760
        %2010 = vmatpush.msra.mxu0 %v2009
        %v2011 = vand.u32 %v1825, 4294901760
        %2012 = vmatmul.f32.gmra.mxu0 %v2011
        %v2013 = vpop.f32.mrf.mxu0
        %v2014 = vadd.f32 %v1987, %v2013
        %v2015 = vand.u32 %v1828, 4294901760
        %2016 = vmatmul.f32.gmra.mxu0 %v2015
        %v2017 = vpop.f32.mrf.mxu0
        %v2018 = vadd.f32 %v1991, %v2017
        %2019 = vdwg.mxu0
        %v2020 = vadd.f32 %v1817, %v2014
        %v2021 = vadd.f32 %v1818, %v2018
        %2022 = vmatpush.msra.mxu0 0.0
        %2023 = vmatpush.msra.mxu0 0.0
        %2024 = vmatpush.msra.mxu0 0.0
        %2025 = vmatpush.msra.mxu0 0.0
        %2026 = vmatpush.msra.mxu0 0.0
        %2027 = vmatpush.msra.mxu0 0.0
        %2028 = vmatpush.msra.mxu0 0.0
        %2029 = vmatpush.msra.mxu0 0.0
        %2030 = vmatpush.msra.mxu0 0.0
        %2031 = vmatpush.msra.mxu0 0.0
        %2032 = vmatpush.msra.mxu0 0.0
        %2033 = vmatpush.msra.mxu0 0.0
        %2034 = vmatpush.msra.mxu0 0.0
        %2035 = vmatpush.msra.mxu0 0.0
        %v2036 = vand.u32 %v201, 4294901760
        %2037 = vmatpush.msra.mxu0 %v2036
        %v2038 = vand.u32 %v200, 4294901760
        %2039 = vmatpush.msra.mxu0 %v2038
        %v2040 = vand.u32 %v1010, 4294901760
        %v2041 = vsub.f32 %v1010, %v2040
        %v2042 = vand.u32 %v2041, 4294901760
        %v2043 = vsub.f32 %v2041, %v2042
        %v2044 = vand.u32 %v2043, 4294901760
        %2045 = vmatmul.f32.gmra.mxu0 %v2044
        %v2046 = vpop.f32.mrf.mxu0
        %v2047 = vadd.f32 0.0, %v2046
        %v2048 = vand.u32 %v1013, 4294901760
        %v2049 = vsub.f32 %v1013, %v2048
        %v2050 = vand.u32 %v2049, 4294901760
        %v2051 = vsub.f32 %v2049, %v2050
        %v2052 = vand.u32 %v2051, 4294901760
        %2053 = vmatmul.f32.gmra.mxu0 %v2052
        %v2054 = vpop.f32.mrf.mxu0
        %v2055 = vadd.f32 0.0, %v2054
        %2056 = vdwg.mxu0
        %2057 = vmatpush.msra.mxu0 0.0
        %2058 = vmatpush.msra.mxu0 0.0
        %2059 = vmatpush.msra.mxu0 0.0
        %2060 = vmatpush.msra.mxu0 0.0
        %2061 = vmatpush.msra.mxu0 0.0
        %2062 = vmatpush.msra.mxu0 0.0
        %2063 = vmatpush.msra.mxu0 0.0
        %2064 = vmatpush.msra.mxu0 0.0
        %2065 = vmatpush.msra.mxu0 0.0
        %2066 = vmatpush.msra.mxu0 0.0
        %2067 = vmatpush.msra.mxu0 0.0
        %2068 = vmatpush.msra.mxu0 0.0
        %2069 = vmatpush.msra.mxu0 0.0
        %2070 = vmatpush.msra.mxu0 0.0
        %v2071 = vand.u32 %v201, 4294901760
        %v2072 = vsub.f32 %v201, %v2071
        %v2073 = vand.u32 %v2072, 4294901760
        %v2074 = vsub.f32 %v2072, %v2073
        %v2075 = vand.u32 %v2074, 4294901760
        %2076 = vmatpush.msra.mxu0 %v2075
        %v2077 = vand.u32 %v200, 4294901760
        %v2078 = vsub.f32 %v200, %v2077
        %v2079 = vand.u32 %v2078, 4294901760
        %v2080 = vsub.f32 %v2078, %v2079
        %v2081 = vand.u32 %v2080, 4294901760
        %2082 = vmatpush.msra.mxu0 %v2081
        %v2083 = vand.u32 %v1010, 4294901760
        %2084 = vmatmul.f32.gmra.mxu0 %v2083
        %v2085 = vpop.f32.mrf.mxu0
        %v2086 = vadd.f32 %v2047, %v2085
        %v2087 = vand.u32 %v1013, 4294901760
        %2088 = vmatmul.f32.gmra.mxu0 %v2087
        %v2089 = vpop.f32.mrf.mxu0
        %v2090 = vadd.f32 %v2055, %v2089
        %2091 = vdwg.mxu0
        %2092 = vmatpush.msra.mxu0 0.0
        %2093 = vmatpush.msra.mxu0 0.0
        %2094 = vmatpush.msra.mxu0 0.0
        %2095 = vmatpush.msra.mxu0 0.0
        %2096 = vmatpush.msra.mxu0 0.0
        %2097 = vmatpush.msra.mxu0 0.0
        %2098 = vmatpush.msra.mxu0 0.0
        %2099 = vmatpush.msra.mxu0 0.0
        %2100 = vmatpush.msra.mxu0 0.0
        %2101 = vmatpush.msra.mxu0 0.0
        %2102 = vmatpush.msra.mxu0 0.0
        %2103 = vmatpush.msra.mxu0 0.0
        %2104 = vmatpush.msra.mxu0 0.0
        %2105 = vmatpush.msra.mxu0 0.0
        %v2106 = vand.u32 %v201, 4294901760
        %v2107 = vsub.f32 %v201, %v2106
        %2108 = vmatpush.msra.mxu0 %v2107
        %v2109 = vand.u32 %v200, 4294901760
        %v2110 = vsub.f32 %v200, %v2109
        %2111 = vmatpush.msra.mxu0 %v2110
        %v2112 = vand.u32 %v1010, 4294901760
        %v2113 = vsub.f32 %v1010, %v2112
        %2114 = vmatmul.f32.gmra.mxu0 %v2113
        %v2115 = vpop.f32.mrf.mxu0
        %v2116 = vadd.f32 %v2086, %v2115
        %v2117 = vand.u32 %v1013, 4294901760
        %v2118 = vsub.f32 %v1013, %v2117
        %2119 = vmatmul.f32.gmra.mxu0 %v2118
        %v2120 = vpop.f32.mrf.mxu0
        %v2121 = vadd.f32 %v2090, %v2120
        %2122 = vdwg.mxu0
        %2123 = vmatpush.msra.mxu0 0.0
        %2124 = vmatpush.msra.mxu0 0.0
        %2125 = vmatpush.msra.mxu0 0.0
        %2126 = vmatpush.msra.mxu0 0.0
        %2127 = vmatpush.msra.mxu0 0.0
        %2128 = vmatpush.msra.mxu0 0.0
        %2129 = vmatpush.msra.mxu0 0.0
        %2130 = vmatpush.msra.mxu0 0.0
        %2131 = vmatpush.msra.mxu0 0.0
        %2132 = vmatpush.msra.mxu0 0.0
        %2133 = vmatpush.msra.mxu0 0.0
        %2134 = vmatpush.msra.mxu0 0.0
        %2135 = vmatpush.msra.mxu0 0.0
        %2136 = vmatpush.msra.mxu0 0.0
        %v2137 = vand.u32 %v201, 4294901760
        %2138 = vmatpush.msra.mxu0 %v2137
        %v2139 = vand.u32 %v200, 4294901760
        %2140 = vmatpush.msra.mxu0 %v2139
        %v2141 = vand.u32 %v1010, 4294901760
        %v2142 = vsub.f32 %v1010, %v2141
        %v2143 = vand.u32 %v2142, 4294901760
        %2144 = vmatmul.f32.gmra.mxu0 %v2143
        %v2145 = vpop.f32.mrf.mxu0
        %v2146 = vadd.f32 %v2116, %v2145
        %v2147 = vand.u32 %v1013, 4294901760
        %v2148 = vsub.f32 %v1013, %v2147
        %v2149 = vand.u32 %v2148, 4294901760
        %2150 = vmatmul.f32.gmra.mxu0 %v2149
        %v2151 = vpop.f32.mrf.mxu0
        %v2152 = vadd.f32 %v2121, %v2151
        %2153 = vdwg.mxu0
        %2154 = vmatpush.msra.mxu0 0.0
        %2155 = vmatpush.msra.mxu0 0.0
        %2156 = vmatpush.msra.mxu0 0.0
        %2157 = vmatpush.msra.mxu0 0.0
        %2158 = vmatpush.msra.mxu0 0.0
        %2159 = vmatpush.msra.mxu0 0.0
        %2160 = vmatpush.msra.mxu0 0.0
        %2161 = vmatpush.msra.mxu0 0.0
        %2162 = vmatpush.msra.mxu0 0.0
        %2163 = vmatpush.msra.mxu0 0.0
        %2164 = vmatpush.msra.mxu0 0.0
        %2165 = vmatpush.msra.mxu0 0.0
        %2166 = vmatpush.msra.mxu0 0.0
        %2167 = vmatpush.msra.mxu0 0.0
        %v2168 = vand.u32 %v201, 4294901760
        %v2169 = vsub.f32 %v201, %v2168
        %v2170 = vand.u32 %v2169, 4294901760
        %2171 = vmatpush.msra.mxu0 %v2170
        %v2172 = vand.u32 %v200, 4294901760
        %v2173 = vsub.f32 %v200, %v2172
        %v2174 = vand.u32 %v2173, 4294901760
        %2175 = vmatpush.msra.mxu0 %v2174
        %v2176 = vand.u32 %v1010, 4294901760
        %2177 = vmatmul.f32.gmra.mxu0 %v2176
        %v2178 = vpop.f32.mrf.mxu0
        %v2179 = vadd.f32 %v2146, %v2178
        %v2180 = vand.u32 %v1013, 4294901760
        %2181 = vmatmul.f32.gmra.mxu0 %v2180
        %v2182 = vpop.f32.mrf.mxu0
        %v2183 = vadd.f32 %v2152, %v2182
        %2184 = vdwg.mxu0
        %2185 = vmatpush.msra.mxu0 0.0
        %2186 = vmatpush.msra.mxu0 0.0
        %2187 = vmatpush.msra.mxu0 0.0
        %2188 = vmatpush.msra.mxu0 0.0
        %2189 = vmatpush.msra.mxu0 0.0
        %2190 = vmatpush.msra.mxu0 0.0
        %2191 = vmatpush.msra.mxu0 0.0
        %2192 = vmatpush.msra.mxu0 0.0
        %2193 = vmatpush.msra.mxu0 0.0
        %2194 = vmatpush.msra.mxu0 0.0
        %2195 = vmatpush.msra.mxu0 0.0
        %2196 = vmatpush.msra.mxu0 0.0
        %2197 = vmatpush.msra.mxu0 0.0
        %2198 = vmatpush.msra.mxu0 0.0
        %v2199 = vand.u32 %v201, 4294901760
        %2200 = vmatpush.msra.mxu0 %v2199
        %v2201 = vand.u32 %v200, 4294901760
        %2202 = vmatpush.msra.mxu0 %v2201
        %v2203 = vand.u32 %v1010, 4294901760
        %2204 = vmatmul.f32.gmra.mxu0 %v2203
        %v2205 = vpop.f32.mrf.mxu0
        %v2206 = vadd.f32 %v2179, %v2205
        %v2207 = vand.u32 %v1013, 4294901760
        %2208 = vmatmul.f32.gmra.mxu0 %v2207
        %v2209 = vpop.f32.mrf.mxu0
        %v2210 = vadd.f32 %v2183, %v2209
        %2211 = vdwg.mxu0
        %2212 = vmatpush.msra.mxu0 0.0
        %2213 = vmatpush.msra.mxu0 0.0
        %2214 = vmatpush.msra.mxu0 0.0
        %2215 = vmatpush.msra.mxu0 0.0
        %2216 = vmatpush.msra.mxu0 0.0
        %2217 = vmatpush.msra.mxu0 0.0
        %2218 = vmatpush.msra.mxu0 0.0
        %2219 = vmatpush.msra.mxu0 0.0
        %2220 = vmatpush.msra.mxu0 0.0
        %2221 = vmatpush.msra.mxu0 0.0
        %2222 = vmatpush.msra.mxu0 0.0
        %2223 = vmatpush.msra.mxu0 0.0
        %2224 = vmatpush.msra.mxu0 0.0
        %2225 = vmatpush.msra.mxu0 0.0
        %v2226 = vand.u32 %v196, 4294901760
        %2227 = vmatpush.msra.mxu0 %v2226
        %v2228 = vand.u32 %v195, 4294901760
        %2229 = vmatpush.msra.mxu0 %v2228
        %v2230 = vand.u32 %v807, 4294901760
        %v2231 = vsub.f32 %v807, %v2230
        %v2232 = vand.u32 %v2231, 4294901760
        %v2233 = vsub.f32 %v2231, %v2232
        %v2234 = vand.u32 %v2233, 4294901760
        %2235 = vmatmul.f32.gmra.mxu0 %v2234
        %v2236 = vpop.f32.mrf.mxu0
        %v2237 = vadd.f32 %v2206, %v2236
        %v2238 = vand.u32 %v810, 4294901760
        %v2239 = vsub.f32 %v810, %v2238
        %v2240 = vand.u32 %v2239, 4294901760
        %v2241 = vsub.f32 %v2239, %v2240
        %v2242 = vand.u32 %v2241, 4294901760
        %2243 = vmatmul.f32.gmra.mxu0 %v2242
        %v2244 = vpop.f32.mrf.mxu0
        %v2245 = vadd.f32 %v2210, %v2244
        %2246 = vdwg.mxu0
        %2247 = vmatpush.msra.mxu0 0.0
        %2248 = vmatpush.msra.mxu0 0.0
        %2249 = vmatpush.msra.mxu0 0.0
        %2250 = vmatpush.msra.mxu0 0.0
        %2251 = vmatpush.msra.mxu0 0.0
        %2252 = vmatpush.msra.mxu0 0.0
        %2253 = vmatpush.msra.mxu0 0.0
        %2254 = vmatpush.msra.mxu0 0.0
        %2255 = vmatpush.msra.mxu0 0.0
        %2256 = vmatpush.msra.mxu0 0.0
        %2257 = vmatpush.msra.mxu0 0.0
        %2258 = vmatpush.msra.mxu0 0.0
        %2259 = vmatpush.msra.mxu0 0.0
        %2260 = vmatpush.msra.mxu0 0.0
        %v2261 = vand.u32 %v196, 4294901760
        %v2262 = vsub.f32 %v196, %v2261
        %v2263 = vand.u32 %v2262, 4294901760
        %v2264 = vsub.f32 %v2262, %v2263
        %v2265 = vand.u32 %v2264, 4294901760
        %2266 = vmatpush.msra.mxu0 %v2265
        %v2267 = vand.u32 %v195, 4294901760
        %v2268 = vsub.f32 %v195, %v2267
        %v2269 = vand.u32 %v2268, 4294901760
        %v2270 = vsub.f32 %v2268, %v2269
        %v2271 = vand.u32 %v2270, 4294901760
        %2272 = vmatpush.msra.mxu0 %v2271
        %v2273 = vand.u32 %v807, 4294901760
        %2274 = vmatmul.f32.gmra.mxu0 %v2273
        %v2275 = vpop.f32.mrf.mxu0
        %v2276 = vadd.f32 %v2237, %v2275
        %v2277 = vand.u32 %v810, 4294901760
        %2278 = vmatmul.f32.gmra.mxu0 %v2277
        %v2279 = vpop.f32.mrf.mxu0
        %v2280 = vadd.f32 %v2245, %v2279
        %2281 = vdwg.mxu0
        %2282 = vmatpush.msra.mxu0 0.0
        %2283 = vmatpush.msra.mxu0 0.0
        %2284 = vmatpush.msra.mxu0 0.0
        %2285 = vmatpush.msra.mxu0 0.0
        %2286 = vmatpush.msra.mxu0 0.0
        %2287 = vmatpush.msra.mxu0 0.0
        %2288 = vmatpush.msra.mxu0 0.0
        %2289 = vmatpush.msra.mxu0 0.0
        %2290 = vmatpush.msra.mxu0 0.0
        %2291 = vmatpush.msra.mxu0 0.0
        %2292 = vmatpush.msra.mxu0 0.0
        %2293 = vmatpush.msra.mxu0 0.0
        %2294 = vmatpush.msra.mxu0 0.0
        %2295 = vmatpush.msra.mxu0 0.0
        %v2296 = vand.u32 %v196, 4294901760
        %v2297 = vsub.f32 %v196, %v2296
        %2298 = vmatpush.msra.mxu0 %v2297
        %v2299 = vand.u32 %v195, 4294901760
        %v2300 = vsub.f32 %v195, %v2299
        %2301 = vmatpush.msra.mxu0 %v2300
        %v2302 = vand.u32 %v807, 4294901760
        %v2303 = vsub.f32 %v807, %v2302
        %2304 = vmatmul.f32.gmra.mxu0 %v2303
        %v2305 = vpop.f32.mrf.mxu0
        %v2306 = vadd.f32 %v2276, %v2305
        %v2307 = vand.u32 %v810, 4294901760
        %v2308 = vsub.f32 %v810, %v2307
        %2309 = vmatmul.f32.gmra.mxu0 %v2308
        %v2310 = vpop.f32.mrf.mxu0
        %v2311 = vadd.f32 %v2280, %v2310
        %2312 = vdwg.mxu0
        %2313 = vmatpush.msra.mxu0 0.0
        %2314 = vmatpush.msra.mxu0 0.0
        %2315 = vmatpush.msra.mxu0 0.0
        %2316 = vmatpush.msra.mxu0 0.0
        %2317 = vmatpush.msra.mxu0 0.0
        %2318 = vmatpush.msra.mxu0 0.0
        %2319 = vmatpush.msra.mxu0 0.0
        %2320 = vmatpush.msra.mxu0 0.0
        %2321 = vmatpush.msra.mxu0 0.0
        %2322 = vmatpush.msra.mxu0 0.0
        %2323 = vmatpush.msra.mxu0 0.0
        %2324 = vmatpush.msra.mxu0 0.0
        %2325 = vmatpush.msra.mxu0 0.0
        %2326 = vmatpush.msra.mxu0 0.0
        %v2327 = vand.u32 %v196, 4294901760
        %2328 = vmatpush.msra.mxu0 %v2327
        %v2329 = vand.u32 %v195, 4294901760
        %2330 = vmatpush.msra.mxu0 %v2329
        %v2331 = vand.u32 %v807, 4294901760
        %v2332 = vsub.f32 %v807, %v2331
        %v2333 = vand.u32 %v2332, 4294901760
        %2334 = vmatmul.f32.gmra.mxu0 %v2333
        %v2335 = vpop.f32.mrf.mxu0
        %v2336 = vadd.f32 %v2306, %v2335
        %v2337 = vand.u32 %v810, 4294901760
        %v2338 = vsub.f32 %v810, %v2337
        %v2339 = vand.u32 %v2338, 4294901760
        %2340 = vmatmul.f32.gmra.mxu0 %v2339
        %v2341 = vpop.f32.mrf.mxu0
        %v2342 = vadd.f32 %v2311, %v2341
        %2343 = vdwg.mxu0
        %2344 = vmatpush.msra.mxu0 0.0
        %2345 = vmatpush.msra.mxu0 0.0
        %2346 = vmatpush.msra.mxu0 0.0
        %2347 = vmatpush.msra.mxu0 0.0
        %2348 = vmatpush.msra.mxu0 0.0
        %2349 = vmatpush.msra.mxu0 0.0
        %2350 = vmatpush.msra.mxu0 0.0
        %2351 = vmatpush.msra.mxu0 0.0
        %2352 = vmatpush.msra.mxu0 0.0
        %2353 = vmatpush.msra.mxu0 0.0
        %2354 = vmatpush.msra.mxu0 0.0
        %2355 = vmatpush.msra.mxu0 0.0
        %2356 = vmatpush.msra.mxu0 0.0
        %2357 = vmatpush.msra.mxu0 0.0
        %v2358 = vand.u32 %v196, 4294901760
        %v2359 = vsub.f32 %v196, %v2358
        %v2360 = vand.u32 %v2359, 4294901760
        %2361 = vmatpush.msra.mxu0 %v2360
        %v2362 = vand.u32 %v195, 4294901760
        %v2363 = vsub.f32 %v195, %v2362
        %v2364 = vand.u32 %v2363, 4294901760
        %2365 = vmatpush.msra.mxu0 %v2364
        %v2366 = vand.u32 %v807, 4294901760
        %2367 = vmatmul.f32.gmra.mxu0 %v2366
        %v2368 = vpop.f32.mrf.mxu0
        %v2369 = vadd.f32 %v2336, %v2368
        %v2370 = vand.u32 %v810, 4294901760
        %2371 = vmatmul.f32.gmra.mxu0 %v2370
        %v2372 = vpop.f32.mrf.mxu0
        %v2373 = vadd.f32 %v2342, %v2372
        %2374 = vdwg.mxu0
        %2375 = vmatpush.msra.mxu0 0.0
        %2376 = vmatpush.msra.mxu0 0.0
        %2377 = vmatpush.msra.mxu0 0.0
        %2378 = vmatpush.msra.mxu0 0.0
        %2379 = vmatpush.msra.mxu0 0.0
        %2380 = vmatpush.msra.mxu0 0.0
        %2381 = vmatpush.msra.mxu0 0.0
        %2382 = vmatpush.msra.mxu0 0.0
        %2383 = vmatpush.msra.mxu0 0.0
        %2384 = vmatpush.msra.mxu0 0.0
        %2385 = vmatpush.msra.mxu0 0.0
        %2386 = vmatpush.msra.mxu0 0.0
        %2387 = vmatpush.msra.mxu0 0.0
        %2388 = vmatpush.msra.mxu0 0.0
        %v2389 = vand.u32 %v196, 4294901760
        %2390 = vmatpush.msra.mxu0 %v2389
        %v2391 = vand.u32 %v195, 4294901760
        %2392 = vmatpush.msra.mxu0 %v2391
        %v2393 = vand.u32 %v807, 4294901760
        %2394 = vmatmul.f32.gmra.mxu0 %v2393
        %v2395 = vpop.f32.mrf.mxu0
        %v2396 = vadd.f32 %v2369, %v2395
        %v2397 = vand.u32 %v810, 4294901760
        %2398 = vmatmul.f32.gmra.mxu0 %v2397
        %v2399 = vpop.f32.mrf.mxu0
        %v2400 = vadd.f32 %v2373, %v2399
        %2401 = vdwg.mxu0
        %2402 = vmatpush.msra.mxu0 0.0
        %2403 = vmatpush.msra.mxu0 0.0
        %2404 = vmatpush.msra.mxu0 0.0
        %2405 = vmatpush.msra.mxu0 0.0
        %2406 = vmatpush.msra.mxu0 0.0
        %2407 = vmatpush.msra.mxu0 0.0
        %2408 = vmatpush.msra.mxu0 0.0
        %2409 = vmatpush.msra.mxu0 0.0
        %2410 = vmatpush.msra.mxu0 0.0
        %2411 = vmatpush.msra.mxu0 0.0
        %2412 = vmatpush.msra.mxu0 0.0
        %2413 = vmatpush.msra.mxu0 0.0
        %2414 = vmatpush.msra.mxu0 0.0
        %2415 = vmatpush.msra.mxu0 0.0
        %v2416 = vand.u32 %v599, 4294901760
        %2417 = vmatpush.msra.mxu0 %v2416
        %v2418 = vand.u32 %v598, 4294901760
        %2419 = vmatpush.msra.mxu0 %v2418
        %v2420 = vand.u32 %v1213, 4294901760
        %v2421 = vsub.f32 %v1213, %v2420
        %v2422 = vand.u32 %v2421, 4294901760
        %v2423 = vsub.f32 %v2421, %v2422
        %v2424 = vand.u32 %v2423, 4294901760
        %2425 = vmatmul.f32.gmra.mxu0 %v2424
        %v2426 = vpop.f32.mrf.mxu0
        %v2427 = vadd.f32 0.0, %v2426
        %v2428 = vand.u32 %v1216, 4294901760
        %v2429 = vsub.f32 %v1216, %v2428
        %v2430 = vand.u32 %v2429, 4294901760
        %v2431 = vsub.f32 %v2429, %v2430
        %v2432 = vand.u32 %v2431, 4294901760
        %2433 = vmatmul.f32.gmra.mxu0 %v2432
        %v2434 = vpop.f32.mrf.mxu0
        %v2435 = vadd.f32 0.0, %v2434
        %2436 = vdwg.mxu0
        %2437 = vmatpush.msra.mxu0 0.0
        %2438 = vmatpush.msra.mxu0 0.0
        %2439 = vmatpush.msra.mxu0 0.0
        %2440 = vmatpush.msra.mxu0 0.0
        %2441 = vmatpush.msra.mxu0 0.0
        %2442 = vmatpush.msra.mxu0 0.0
        %2443 = vmatpush.msra.mxu0 0.0
        %2444 = vmatpush.msra.mxu0 0.0
        %2445 = vmatpush.msra.mxu0 0.0
        %2446 = vmatpush.msra.mxu0 0.0
        %2447 = vmatpush.msra.mxu0 0.0
        %2448 = vmatpush.msra.mxu0 0.0
        %2449 = vmatpush.msra.mxu0 0.0
        %2450 = vmatpush.msra.mxu0 0.0
        %v2451 = vand.u32 %v599, 4294901760
        %v2452 = vsub.f32 %v599, %v2451
        %v2453 = vand.u32 %v2452, 4294901760
        %v2454 = vsub.f32 %v2452, %v2453
        %v2455 = vand.u32 %v2454, 4294901760
        %2456 = vmatpush.msra.mxu0 %v2455
        %v2457 = vand.u32 %v598, 4294901760
        %v2458 = vsub.f32 %v598, %v2457
        %v2459 = vand.u32 %v2458, 4294901760
        %v2460 = vsub.f32 %v2458, %v2459
        %v2461 = vand.u32 %v2460, 4294901760
        %2462 = vmatpush.msra.mxu0 %v2461
        %v2463 = vand.u32 %v1213, 4294901760
        %2464 = vmatmul.f32.gmra.mxu0 %v2463
        %v2465 = vpop.f32.mrf.mxu0
        %v2466 = vadd.f32 %v2427, %v2465
        %v2467 = vand.u32 %v1216, 4294901760
        %2468 = vmatmul.f32.gmra.mxu0 %v2467
        %v2469 = vpop.f32.mrf.mxu0
        %v2470 = vadd.f32 %v2435, %v2469
        %2471 = vdwg.mxu0
        %2472 = vmatpush.msra.mxu0 0.0
        %2473 = vmatpush.msra.mxu0 0.0
        %2474 = vmatpush.msra.mxu0 0.0
        %2475 = vmatpush.msra.mxu0 0.0
        %2476 = vmatpush.msra.mxu0 0.0
        %2477 = vmatpush.msra.mxu0 0.0
        %2478 = vmatpush.msra.mxu0 0.0
        %2479 = vmatpush.msra.mxu0 0.0
        %2480 = vmatpush.msra.mxu0 0.0
        %2481 = vmatpush.msra.mxu0 0.0
        %2482 = vmatpush.msra.mxu0 0.0
        %2483 = vmatpush.msra.mxu0 0.0
        %2484 = vmatpush.msra.mxu0 0.0
        %2485 = vmatpush.msra.mxu0 0.0
        %v2486 = vand.u32 %v599, 4294901760
        %v2487 = vsub.f32 %v599, %v2486
        %2488 = vmatpush.msra.mxu0 %v2487
        %v2489 = vand.u32 %v598, 4294901760
        %v2490 = vsub.f32 %v598, %v2489
        %2491 = vmatpush.msra.mxu0 %v2490
        %v2492 = vand.u32 %v1213, 4294901760
        %v2493 = vsub.f32 %v1213, %v2492
        %2494 = vmatmul.f32.gmra.mxu0 %v2493
        %v2495 = vpop.f32.mrf.mxu0
        %v2496 = vadd.f32 %v2466, %v2495
        %v2497 = vand.u32 %v1216, 4294901760
        %v2498 = vsub.f32 %v1216, %v2497
        %2499 = vmatmul.f32.gmra.mxu0 %v2498
        %v2500 = vpop.f32.mrf.mxu0
        %v2501 = vadd.f32 %v2470, %v2500
        %2502 = vdwg.mxu0
        %2503 = vmatpush.msra.mxu0 0.0
        %2504 = vmatpush.msra.mxu0 0.0
        %2505 = vmatpush.msra.mxu0 0.0
        %2506 = vmatpush.msra.mxu0 0.0
        %2507 = vmatpush.msra.mxu0 0.0
        %2508 = vmatpush.msra.mxu0 0.0
        %2509 = vmatpush.msra.mxu0 0.0
        %2510 = vmatpush.msra.mxu0 0.0
        %2511 = vmatpush.msra.mxu0 0.0
        %2512 = vmatpush.msra.mxu0 0.0
        %2513 = vmatpush.msra.mxu0 0.0
        %2514 = vmatpush.msra.mxu0 0.0
        %2515 = vmatpush.msra.mxu0 0.0
        %2516 = vmatpush.msra.mxu0 0.0
        %v2517 = vand.u32 %v599, 4294901760
        %2518 = vmatpush.msra.mxu0 %v2517
        %v2519 = vand.u32 %v598, 4294901760
        %2520 = vmatpush.msra.mxu0 %v2519
        %v2521 = vand.u32 %v1213, 4294901760
        %v2522 = vsub.f32 %v1213, %v2521
        %v2523 = vand.u32 %v2522, 4294901760
        %2524 = vmatmul.f32.gmra.mxu0 %v2523
        %v2525 = vpop.f32.mrf.mxu0
        %v2526 = vadd.f32 %v2496, %v2525
        %v2527 = vand.u32 %v1216, 4294901760
        %v2528 = vsub.f32 %v1216, %v2527
        %v2529 = vand.u32 %v2528, 4294901760
        %2530 = vmatmul.f32.gmra.mxu0 %v2529
        %v2531 = vpop.f32.mrf.mxu0
        %v2532 = vadd.f32 %v2501, %v2531
        %2533 = vdwg.mxu0
        %2534 = vmatpush.msra.mxu0 0.0
        %2535 = vmatpush.msra.mxu0 0.0
        %2536 = vmatpush.msra.mxu0 0.0
        %2537 = vmatpush.msra.mxu0 0.0
        %2538 = vmatpush.msra.mxu0 0.0
        %2539 = vmatpush.msra.mxu0 0.0
        %2540 = vmatpush.msra.mxu0 0.0
        %2541 = vmatpush.msra.mxu0 0.0
        %2542 = vmatpush.msra.mxu0 0.0
        %2543 = vmatpush.msra.mxu0 0.0
        %2544 = vmatpush.msra.mxu0 0.0
        %2545 = vmatpush.msra.mxu0 0.0
        %2546 = vmatpush.msra.mxu0 0.0
        %2547 = vmatpush.msra.mxu0 0.0
        %v2548 = vand.u32 %v599, 4294901760
        %v2549 = vsub.f32 %v599, %v2548
        %v2550 = vand.u32 %v2549, 4294901760
        %2551 = vmatpush.msra.mxu0 %v2550
        %v2552 = vand.u32 %v598, 4294901760
        %v2553 = vsub.f32 %v598, %v2552
        %v2554 = vand.u32 %v2553, 4294901760
        %2555 = vmatpush.msra.mxu0 %v2554
        %v2556 = vand.u32 %v1213, 4294901760
        %2557 = vmatmul.f32.gmra.mxu0 %v2556
        %v2558 = vpop.f32.mrf.mxu0
        %v2559 = vadd.f32 %v2526, %v2558
        %v2560 = vand.u32 %v1216, 4294901760
        %2561 = vmatmul.f32.gmra.mxu0 %v2560
        %v2562 = vpop.f32.mrf.mxu0
        %v2563 = vadd.f32 %v2532, %v2562
        %2564 = vdwg.mxu0
        %2565 = vmatpush.msra.mxu0 0.0
        %2566 = vmatpush.msra.mxu0 0.0
        %2567 = vmatpush.msra.mxu0 0.0
        %2568 = vmatpush.msra.mxu0 0.0
        %2569 = vmatpush.msra.mxu0 0.0
        %2570 = vmatpush.msra.mxu0 0.0
        %2571 = vmatpush.msra.mxu0 0.0
        %2572 = vmatpush.msra.mxu0 0.0
        %2573 = vmatpush.msra.mxu0 0.0
        %2574 = vmatpush.msra.mxu0 0.0
        %2575 = vmatpush.msra.mxu0 0.0
        %2576 = vmatpush.msra.mxu0 0.0
        %2577 = vmatpush.msra.mxu0 0.0
        %2578 = vmatpush.msra.mxu0 0.0
        %v2579 = vand.u32 %v599, 4294901760
        %2580 = vmatpush.msra.mxu0 %v2579
        %v2581 = vand.u32 %v598, 4294901760
        %2582 = vmatpush.msra.mxu0 %v2581
        %v2583 = vand.u32 %v1213, 4294901760
        %2584 = vmatmul.f32.gmra.mxu0 %v2583
        %v2585 = vpop.f32.mrf.mxu0
        %v2586 = vadd.f32 %v2559, %v2585
        %v2587 = vand.u32 %v1216, 4294901760
        %2588 = vmatmul.f32.gmra.mxu0 %v2587
        %v2589 = vpop.f32.mrf.mxu0
        %v2590 = vadd.f32 %v2563, %v2589
        %2591 = vdwg.mxu0
        %v2592 = vadd.f32 %v2396, %v2586
        %v2593 = vadd.f32 %v2400, %v2590
        %2594 = vmatpush.msra.mxu0 0.0
        %2595 = vmatpush.msra.mxu0 0.0
        %2596 = vmatpush.msra.mxu0 0.0
        %2597 = vmatpush.msra.mxu0 0.0
        %2598 = vmatpush.msra.mxu0 0.0
        %2599 = vmatpush.msra.mxu0 0.0
        %2600 = vmatpush.msra.mxu0 0.0
        %2601 = vmatpush.msra.mxu0 0.0
        %2602 = vmatpush.msra.mxu0 0.0
        %2603 = vmatpush.msra.mxu0 0.0
        %2604 = vmatpush.msra.mxu0 0.0
        %2605 = vmatpush.msra.mxu0 0.0
        %2606 = vmatpush.msra.mxu0 0.0
        %2607 = vmatpush.msra.mxu0 0.0
        %v2608 = vand.u32 %v805, 4294901760
        %2609 = vmatpush.msra.mxu0 %v2608
        %v2610 = vand.u32 %v804, 4294901760
        %2611 = vmatpush.msra.mxu0 %v2610
        %v2612 = vand.u32 %v1419, 4294901760
        %v2613 = vsub.f32 %v1419, %v2612
        %v2614 = vand.u32 %v2613, 4294901760
        %v2615 = vsub.f32 %v2613, %v2614
        %v2616 = vand.u32 %v2615, 4294901760
        %2617 = vmatmul.f32.gmra.mxu0 %v2616
        %v2618 = vpop.f32.mrf.mxu0
        %v2619 = vadd.f32 0.0, %v2618
        %v2620 = vand.u32 %v1422, 4294901760
        %v2621 = vsub.f32 %v1422, %v2620
        %v2622 = vand.u32 %v2621, 4294901760
        %v2623 = vsub.f32 %v2621, %v2622
        %v2624 = vand.u32 %v2623, 4294901760
        %2625 = vmatmul.f32.gmra.mxu0 %v2624
        %v2626 = vpop.f32.mrf.mxu0
        %v2627 = vadd.f32 0.0, %v2626
        %2628 = vdwg.mxu0
        %2629 = vmatpush.msra.mxu0 0.0
        %2630 = vmatpush.msra.mxu0 0.0
        %2631 = vmatpush.msra.mxu0 0.0
        %2632 = vmatpush.msra.mxu0 0.0
        %2633 = vmatpush.msra.mxu0 0.0
        %2634 = vmatpush.msra.mxu0 0.0
        %2635 = vmatpush.msra.mxu0 0.0
        %2636 = vmatpush.msra.mxu0 0.0
        %2637 = vmatpush.msra.mxu0 0.0
        %2638 = vmatpush.msra.mxu0 0.0
        %2639 = vmatpush.msra.mxu0 0.0
        %2640 = vmatpush.msra.mxu0 0.0
        %2641 = vmatpush.msra.mxu0 0.0
        %2642 = vmatpush.msra.mxu0 0.0
        %v2643 = vand.u32 %v805, 4294901760
        %v2644 = vsub.f32 %v805, %v2643
        %v2645 = vand.u32 %v2644, 4294901760
        %v2646 = vsub.f32 %v2644, %v2645
        %v2647 = vand.u32 %v2646, 4294901760
        %2648 = vmatpush.msra.mxu0 %v2647
        %v2649 = vand.u32 %v804, 4294901760
        %v2650 = vsub.f32 %v804, %v2649
        %v2651 = vand.u32 %v2650, 4294901760
        %v2652 = vsub.f32 %v2650, %v2651
        %v2653 = vand.u32 %v2652, 4294901760
        %2654 = vmatpush.msra.mxu0 %v2653
        %v2655 = vand.u32 %v1419, 4294901760
        %2656 = vmatmul.f32.gmra.mxu0 %v2655
        %v2657 = vpop.f32.mrf.mxu0
        %v2658 = vadd.f32 %v2619, %v2657
        %v2659 = vand.u32 %v1422, 4294901760
        %2660 = vmatmul.f32.gmra.mxu0 %v2659
        %v2661 = vpop.f32.mrf.mxu0
        %v2662 = vadd.f32 %v2627, %v2661
        %2663 = vdwg.mxu0
        %2664 = vmatpush.msra.mxu0 0.0
        %2665 = vmatpush.msra.mxu0 0.0
        %2666 = vmatpush.msra.mxu0 0.0
        %2667 = vmatpush.msra.mxu0 0.0
        %2668 = vmatpush.msra.mxu0 0.0
        %2669 = vmatpush.msra.mxu0 0.0
        %2670 = vmatpush.msra.mxu0 0.0
        %2671 = vmatpush.msra.mxu0 0.0
        %2672 = vmatpush.msra.mxu0 0.0
        %2673 = vmatpush.msra.mxu0 0.0
        %2674 = vmatpush.msra.mxu0 0.0
        %2675 = vmatpush.msra.mxu0 0.0
        %2676 = vmatpush.msra.mxu0 0.0
        %2677 = vmatpush.msra.mxu0 0.0
        %v2678 = vand.u32 %v805, 4294901760
        %v2679 = vsub.f32 %v805, %v2678
        %2680 = vmatpush.msra.mxu0 %v2679
        %v2681 = vand.u32 %v804, 4294901760
        %v2682 = vsub.f32 %v804, %v2681
        %2683 = vmatpush.msra.mxu0 %v2682
        %v2684 = vand.u32 %v1419, 4294901760
        %v2685 = vsub.f32 %v1419, %v2684
        %2686 = vmatmul.f32.gmra.mxu0 %v2685
        %v2687 = vpop.f32.mrf.mxu0
        %v2688 = vadd.f32 %v2658, %v2687
        %v2689 = vand.u32 %v1422, 4294901760
        %v2690 = vsub.f32 %v1422, %v2689
        %2691 = vmatmul.f32.gmra.mxu0 %v2690
        %v2692 = vpop.f32.mrf.mxu0
        %v2693 = vadd.f32 %v2662, %v2692
        %2694 = vdwg.mxu0
        %2695 = vmatpush.msra.mxu0 0.0
        %2696 = vmatpush.msra.mxu0 0.0
        %2697 = vmatpush.msra.mxu0 0.0
        %2698 = vmatpush.msra.mxu0 0.0
        %2699 = vmatpush.msra.mxu0 0.0
        %2700 = vmatpush.msra.mxu0 0.0
        %2701 = vmatpush.msra.mxu0 0.0
        %2702 = vmatpush.msra.mxu0 0.0
        %2703 = vmatpush.msra.mxu0 0.0
        %2704 = vmatpush.msra.mxu0 0.0
        %2705 = vmatpush.msra.mxu0 0.0
        %2706 = vmatpush.msra.mxu0 0.0
        %2707 = vmatpush.msra.mxu0 0.0
        %2708 = vmatpush.msra.mxu0 0.0
        %v2709 = vand.u32 %v805, 4294901760
        %2710 = vmatpush.msra.mxu0 %v2709
        %v2711 = vand.u32 %v804, 4294901760
        %2712 = vmatpush.msra.mxu0 %v2711
        %v2713 = vand.u32 %v1419, 4294901760
        %v2714 = vsub.f32 %v1419, %v2713
        %v2715 = vand.u32 %v2714, 4294901760
        %2716 = vmatmul.f32.gmra.mxu0 %v2715
        %v2717 = vpop.f32.mrf.mxu0
        %v2718 = vadd.f32 %v2688, %v2717
        %v2719 = vand.u32 %v1422, 4294901760
        %v2720 = vsub.f32 %v1422, %v2719
        %v2721 = vand.u32 %v2720, 4294901760
        %2722 = vmatmul.f32.gmra.mxu0 %v2721
        %v2723 = vpop.f32.mrf.mxu0
        %v2724 = vadd.f32 %v2693, %v2723
        %2725 = vdwg.mxu0
        %2726 = vmatpush.msra.mxu0 0.0
        %2727 = vmatpush.msra.mxu0 0.0
        %2728 = vmatpush.msra.mxu0 0.0
        %2729 = vmatpush.msra.mxu0 0.0
        %2730 = vmatpush.msra.mxu0 0.0
        %2731 = vmatpush.msra.mxu0 0.0
        %2732 = vmatpush.msra.mxu0 0.0
        %2733 = vmatpush.msra.mxu0 0.0
        %2734 = vmatpush.msra.mxu0 0.0
        %2735 = vmatpush.msra.mxu0 0.0
        %2736 = vmatpush.msra.mxu0 0.0
        %2737 = vmatpush.msra.mxu0 0.0
        %2738 = vmatpush.msra.mxu0 0.0
        %2739 = vmatpush.msra.mxu0 0.0
        %v2740 = vand.u32 %v805, 4294901760
        %v2741 = vsub.f32 %v805, %v2740
        %v2742 = vand.u32 %v2741, 4294901760
        %2743 = vmatpush.msra.mxu0 %v2742
        %v2744 = vand.u32 %v804, 4294901760
        %v2745 = vsub.f32 %v804, %v2744
        %v2746 = vand.u32 %v2745, 4294901760
        %2747 = vmatpush.msra.mxu0 %v2746
        %v2748 = vand.u32 %v1419, 4294901760
        %2749 = vmatmul.f32.gmra.mxu0 %v2748
        %v2750 = vpop.f32.mrf.mxu0
        %v2751 = vadd.f32 %v2718, %v2750
        %v2752 = vand.u32 %v1422, 4294901760
        %2753 = vmatmul.f32.gmra.mxu0 %v2752
        %v2754 = vpop.f32.mrf.mxu0
        %v2755 = vadd.f32 %v2724, %v2754
        %2756 = vdwg.mxu0
        %2757 = vmatpush.msra.mxu0 0.0
        %2758 = vmatpush.msra.mxu0 0.0
        %2759 = vmatpush.msra.mxu0 0.0
        %2760 = vmatpush.msra.mxu0 0.0
        %2761 = vmatpush.msra.mxu0 0.0
        %2762 = vmatpush.msra.mxu0 0.0
        %2763 = vmatpush.msra.mxu0 0.0
        %2764 = vmatpush.msra.mxu0 0.0
        %2765 = vmatpush.msra.mxu0 0.0
        %2766 = vmatpush.msra.mxu0 0.0
        %2767 = vmatpush.msra.mxu0 0.0
        %2768 = vmatpush.msra.mxu0 0.0
        %2769 = vmatpush.msra.mxu0 0.0
        %2770 = vmatpush.msra.mxu0 0.0
        %v2771 = vand.u32 %v805, 4294901760
        %2772 = vmatpush.msra.mxu0 %v2771
        %v2773 = vand.u32 %v804, 4294901760
        %2774 = vmatpush.msra.mxu0 %v2773
        %v2775 = vand.u32 %v1419, 4294901760
        %2776 = vmatmul.f32.gmra.mxu0 %v2775
        %v2777 = vpop.f32.mrf.mxu0
        %v2778 = vadd.f32 %v2751, %v2777
        %v2779 = vand.u32 %v1422, 4294901760
        %2780 = vmatmul.f32.gmra.mxu0 %v2779
        %v2781 = vpop.f32.mrf.mxu0
        %v2782 = vadd.f32 %v2755, %v2781
        %2783 = vdwg.mxu0
        %v2784 = vadd.f32 %v2592, %v2778
        %v2785 = vadd.f32 %v2593, %v2782
        %2786 = vmatpush.msra.mxu0 0.0
        %2787 = vmatpush.msra.mxu0 0.0
        %2788 = vmatpush.msra.mxu0 0.0
        %2789 = vmatpush.msra.mxu0 0.0
        %2790 = vmatpush.msra.mxu0 0.0
        %2791 = vmatpush.msra.mxu0 0.0
        %2792 = vmatpush.msra.mxu0 0.0
        %2793 = vmatpush.msra.mxu0 0.0
        %2794 = vmatpush.msra.mxu0 0.0
        %2795 = vmatpush.msra.mxu0 0.0
        %2796 = vmatpush.msra.mxu0 0.0
        %2797 = vmatpush.msra.mxu0 0.0
        %2798 = vmatpush.msra.mxu0 0.0
        %2799 = vmatpush.msra.mxu0 0.0
        %v2800 = vand.u32 %v1008, 4294901760
        %2801 = vmatpush.msra.mxu0 %v2800
        %v2802 = vand.u32 %v1007, 4294901760
        %2803 = vmatpush.msra.mxu0 %v2802
        %v2804 = vand.u32 %v1622, 4294901760
        %v2805 = vsub.f32 %v1622, %v2804
        %v2806 = vand.u32 %v2805, 4294901760
        %v2807 = vsub.f32 %v2805, %v2806
        %v2808 = vand.u32 %v2807, 4294901760
        %2809 = vmatmul.f32.gmra.mxu0 %v2808
        %v2810 = vpop.f32.mrf.mxu0
        %v2811 = vadd.f32 0.0, %v2810
        %v2812 = vand.u32 %v1625, 4294901760
        %v2813 = vsub.f32 %v1625, %v2812
        %v2814 = vand.u32 %v2813, 4294901760
        %v2815 = vsub.f32 %v2813, %v2814
        %v2816 = vand.u32 %v2815, 4294901760
        %2817 = vmatmul.f32.gmra.mxu0 %v2816
        %v2818 = vpop.f32.mrf.mxu0
        %v2819 = vadd.f32 0.0, %v2818
        %2820 = vdwg.mxu0
        %2821 = vmatpush.msra.mxu0 0.0
        %2822 = vmatpush.msra.mxu0 0.0
        %2823 = vmatpush.msra.mxu0 0.0
        %2824 = vmatpush.msra.mxu0 0.0
        %2825 = vmatpush.msra.mxu0 0.0
        %2826 = vmatpush.msra.mxu0 0.0
        %2827 = vmatpush.msra.mxu0 0.0
        %2828 = vmatpush.msra.mxu0 0.0
        %2829 = vmatpush.msra.mxu0 0.0
        %2830 = vmatpush.msra.mxu0 0.0
        %2831 = vmatpush.msra.mxu0 0.0
        %2832 = vmatpush.msra.mxu0 0.0
        %2833 = vmatpush.msra.mxu0 0.0
        %2834 = vmatpush.msra.mxu0 0.0
        %v2835 = vand.u32 %v1008, 4294901760
        %v2836 = vsub.f32 %v1008, %v2835
        %v2837 = vand.u32 %v2836, 4294901760
        %v2838 = vsub.f32 %v2836, %v2837
        %v2839 = vand.u32 %v2838, 4294901760
        %2840 = vmatpush.msra.mxu0 %v2839
        %v2841 = vand.u32 %v1007, 4294901760
        %v2842 = vsub.f32 %v1007, %v2841
        %v2843 = vand.u32 %v2842, 4294901760
        %v2844 = vsub.f32 %v2842, %v2843
        %v2845 = vand.u32 %v2844, 4294901760
        %2846 = vmatpush.msra.mxu0 %v2845
        %v2847 = vand.u32 %v1622, 4294901760
        %2848 = vmatmul.f32.gmra.mxu0 %v2847
        %v2849 = vpop.f32.mrf.mxu0
        %v2850 = vadd.f32 %v2811, %v2849
        %v2851 = vand.u32 %v1625, 4294901760
        %2852 = vmatmul.f32.gmra.mxu0 %v2851
        %v2853 = vpop.f32.mrf.mxu0
        %v2854 = vadd.f32 %v2819, %v2853
        %2855 = vdwg.mxu0
        %2856 = vmatpush.msra.mxu0 0.0
        %2857 = vmatpush.msra.mxu0 0.0
        %2858 = vmatpush.msra.mxu0 0.0
        %2859 = vmatpush.msra.mxu0 0.0
        %2860 = vmatpush.msra.mxu0 0.0
        %2861 = vmatpush.msra.mxu0 0.0
        %2862 = vmatpush.msra.mxu0 0.0
        %2863 = vmatpush.msra.mxu0 0.0
        %2864 = vmatpush.msra.mxu0 0.0
        %2865 = vmatpush.msra.mxu0 0.0
        %2866 = vmatpush.msra.mxu0 0.0
        %2867 = vmatpush.msra.mxu0 0.0
        %2868 = vmatpush.msra.mxu0 0.0
        %2869 = vmatpush.msra.mxu0 0.0
        %v2870 = vand.u32 %v1008, 4294901760
        %v2871 = vsub.f32 %v1008, %v2870
        %2872 = vmatpush.msra.mxu0 %v2871
        %v2873 = vand.u32 %v1007, 4294901760
        %v2874 = vsub.f32 %v1007, %v2873
        %2875 = vmatpush.msra.mxu0 %v2874
        %v2876 = vand.u32 %v1622, 4294901760
        %v2877 = vsub.f32 %v1622, %v2876
        %2878 = vmatmul.f32.gmra.mxu0 %v2877
        %v2879 = vpop.f32.mrf.mxu0
        %v2880 = vadd.f32 %v2850, %v2879
        %v2881 = vand.u32 %v1625, 4294901760
        %v2882 = vsub.f32 %v1625, %v2881
        %2883 = vmatmul.f32.gmra.mxu0 %v2882
        %v2884 = vpop.f32.mrf.mxu0
        %v2885 = vadd.f32 %v2854, %v2884
        %2886 = vdwg.mxu0
        %2887 = vmatpush.msra.mxu0 0.0
        %2888 = vmatpush.msra.mxu0 0.0
        %2889 = vmatpush.msra.mxu0 0.0
        %2890 = vmatpush.msra.mxu0 0.0
        %2891 = vmatpush.msra.mxu0 0.0
        %2892 = vmatpush.msra.mxu0 0.0
        %2893 = vmatpush.msra.mxu0 0.0
        %2894 = vmatpush.msra.mxu0 0.0
        %2895 = vmatpush.msra.mxu0 0.0
        %2896 = vmatpush.msra.mxu0 0.0
        %2897 = vmatpush.msra.mxu0 0.0
        %2898 = vmatpush.msra.mxu0 0.0
        %2899 = vmatpush.msra.mxu0 0.0
        %2900 = vmatpush.msra.mxu0 0.0
        %v2901 = vand.u32 %v1008, 4294901760
        %2902 = vmatpush.msra.mxu0 %v2901
        %v2903 = vand.u32 %v1007, 4294901760
        %2904 = vmatpush.msra.mxu0 %v2903
        %v2905 = vand.u32 %v1622, 4294901760
        %v2906 = vsub.f32 %v1622, %v2905
        %v2907 = vand.u32 %v2906, 4294901760
        %2908 = vmatmul.f32.gmra.mxu0 %v2907
        %v2909 = vpop.f32.mrf.mxu0
        %v2910 = vadd.f32 %v2880, %v2909
        %v2911 = vand.u32 %v1625, 4294901760
        %v2912 = vsub.f32 %v1625, %v2911
        %v2913 = vand.u32 %v2912, 4294901760
        %2914 = vmatmul.f32.gmra.mxu0 %v2913
        %v2915 = vpop.f32.mrf.mxu0
        %v2916 = vadd.f32 %v2885, %v2915
        %2917 = vdwg.mxu0
        %2918 = vmatpush.msra.mxu0 0.0
        %2919 = vmatpush.msra.mxu0 0.0
        %2920 = vmatpush.msra.mxu0 0.0
        %2921 = vmatpush.msra.mxu0 0.0
        %2922 = vmatpush.msra.mxu0 0.0
        %2923 = vmatpush.msra.mxu0 0.0
        %2924 = vmatpush.msra.mxu0 0.0
        %2925 = vmatpush.msra.mxu0 0.0
        %2926 = vmatpush.msra.mxu0 0.0
        %2927 = vmatpush.msra.mxu0 0.0
        %2928 = vmatpush.msra.mxu0 0.0
        %2929 = vmatpush.msra.mxu0 0.0
        %2930 = vmatpush.msra.mxu0 0.0
        %2931 = vmatpush.msra.mxu0 0.0
        %v2932 = vand.u32 %v1008, 4294901760
        %v2933 = vsub.f32 %v1008, %v2932
        %v2934 = vand.u32 %v2933, 4294901760
        %2935 = vmatpush.msra.mxu0 %v2934
        %v2936 = vand.u32 %v1007, 4294901760
        %v2937 = vsub.f32 %v1007, %v2936
        %v2938 = vand.u32 %v2937, 4294901760
        %2939 = vmatpush.msra.mxu0 %v2938
        %v2940 = vand.u32 %v1622, 4294901760
        %2941 = vmatmul.f32.gmra.mxu0 %v2940
        %v2942 = vpop.f32.mrf.mxu0
        %v2943 = vadd.f32 %v2910, %v2942
        %v2944 = vand.u32 %v1625, 4294901760
        %2945 = vmatmul.f32.gmra.mxu0 %v2944
        %v2946 = vpop.f32.mrf.mxu0
        %v2947 = vadd.f32 %v2916, %v2946
        %2948 = vdwg.mxu0
        %2949 = vmatpush.msra.mxu0 0.0
        %2950 = vmatpush.msra.mxu0 0.0
        %2951 = vmatpush.msra.mxu0 0.0
        %2952 = vmatpush.msra.mxu0 0.0
        %2953 = vmatpush.msra.mxu0 0.0
        %2954 = vmatpush.msra.mxu0 0.0
        %2955 = vmatpush.msra.mxu0 0.0
        %2956 = vmatpush.msra.mxu0 0.0
        %2957 = vmatpush.msra.mxu0 0.0
        %2958 = vmatpush.msra.mxu0 0.0
        %2959 = vmatpush.msra.mxu0 0.0
        %2960 = vmatpush.msra.mxu0 0.0
        %2961 = vmatpush.msra.mxu0 0.0
        %2962 = vmatpush.msra.mxu0 0.0
        %v2963 = vand.u32 %v1008, 4294901760
        %2964 = vmatpush.msra.mxu0 %v2963
        %v2965 = vand.u32 %v1007, 4294901760
        %2966 = vmatpush.msra.mxu0 %v2965
        %v2967 = vand.u32 %v1622, 4294901760
        %2968 = vmatmul.f32.gmra.mxu0 %v2967
        %v2969 = vpop.f32.mrf.mxu0
        %v2970 = vadd.f32 %v2943, %v2969
        %v2971 = vand.u32 %v1625, 4294901760
        %2972 = vmatmul.f32.gmra.mxu0 %v2971
        %v2973 = vpop.f32.mrf.mxu0
        %v2974 = vadd.f32 %v2947, %v2973
        %2975 = vdwg.mxu0
        %v2976 = vadd.f32 %v2784, %v2970
        %v2977 = vadd.f32 %v2785, %v2974
        %2978 = vmatpush.msra.mxu0 0.0
        %2979 = vmatpush.msra.mxu0 0.0
        %2980 = vmatpush.msra.mxu0 0.0
        %2981 = vmatpush.msra.mxu0 0.0
        %2982 = vmatpush.msra.mxu0 0.0
        %2983 = vmatpush.msra.mxu0 0.0
        %2984 = vmatpush.msra.mxu0 0.0
        %2985 = vmatpush.msra.mxu0 0.0
        %2986 = vmatpush.msra.mxu0 0.0
        %2987 = vmatpush.msra.mxu0 0.0
        %2988 = vmatpush.msra.mxu0 0.0
        %2989 = vmatpush.msra.mxu0 0.0
        %2990 = vmatpush.msra.mxu0 0.0
        %2991 = vmatpush.msra.mxu0 0.0
        %v2992 = vand.u32 %v1211, 4294901760
        %2993 = vmatpush.msra.mxu0 %v2992
        %v2994 = vand.u32 %v1210, 4294901760
        %2995 = vmatpush.msra.mxu0 %v2994
        %v2996 = vand.u32 %v1825, 4294901760
        %v2997 = vsub.f32 %v1825, %v2996
        %v2998 = vand.u32 %v2997, 4294901760
        %v2999 = vsub.f32 %v2997, %v2998
        %v3000 = vand.u32 %v2999, 4294901760
        %3001 = vmatmul.f32.gmra.mxu0 %v3000
        %v3002 = vpop.f32.mrf.mxu0
        %v3003 = vadd.f32 0.0, %v3002
        %v3004 = vand.u32 %v1828, 4294901760
        %v3005 = vsub.f32 %v1828, %v3004
        %v3006 = vand.u32 %v3005, 4294901760
        %v3007 = vsub.f32 %v3005, %v3006
        %v3008 = vand.u32 %v3007, 4294901760
        %3009 = vmatmul.f32.gmra.mxu0 %v3008
        %v3010 = vpop.f32.mrf.mxu0
        %v3011 = vadd.f32 0.0, %v3010
        %3012 = vdwg.mxu0
        %3013 = vmatpush.msra.mxu0 0.0
        %3014 = vmatpush.msra.mxu0 0.0
        %3015 = vmatpush.msra.mxu0 0.0
        %3016 = vmatpush.msra.mxu0 0.0
        %3017 = vmatpush.msra.mxu0 0.0
        %3018 = vmatpush.msra.mxu0 0.0
        %3019 = vmatpush.msra.mxu0 0.0
        %3020 = vmatpush.msra.mxu0 0.0
        %3021 = vmatpush.msra.mxu0 0.0
        %3022 = vmatpush.msra.mxu0 0.0
        %3023 = vmatpush.msra.mxu0 0.0
        %3024 = vmatpush.msra.mxu0 0.0
        %3025 = vmatpush.msra.mxu0 0.0
        %3026 = vmatpush.msra.mxu0 0.0
        %v3027 = vand.u32 %v1211, 4294901760
        %v3028 = vsub.f32 %v1211, %v3027
        %v3029 = vand.u32 %v3028, 4294901760
        %v3030 = vsub.f32 %v3028, %v3029
        %v3031 = vand.u32 %v3030, 4294901760
        %3032 = vmatpush.msra.mxu0 %v3031
        %v3033 = vand.u32 %v1210, 4294901760
        %v3034 = vsub.f32 %v1210, %v3033
        %v3035 = vand.u32 %v3034, 4294901760
        %v3036 = vsub.f32 %v3034, %v3035
        %v3037 = vand.u32 %v3036, 4294901760
        %3038 = vmatpush.msra.mxu0 %v3037
        %v3039 = vand.u32 %v1825, 4294901760
        %3040 = vmatmul.f32.gmra.mxu0 %v3039
        %v3041 = vpop.f32.mrf.mxu0
        %v3042 = vadd.f32 %v3003, %v3041
        %v3043 = vand.u32 %v1828, 4294901760
        %3044 = vmatmul.f32.gmra.mxu0 %v3043
        %v3045 = vpop.f32.mrf.mxu0
        %v3046 = vadd.f32 %v3011, %v3045
        %3047 = vdwg.mxu0
        %3048 = vmatpush.msra.mxu0 0.0
        %3049 = vmatpush.msra.mxu0 0.0
        %3050 = vmatpush.msra.mxu0 0.0
        %3051 = vmatpush.msra.mxu0 0.0
        %3052 = vmatpush.msra.mxu0 0.0
        %3053 = vmatpush.msra.mxu0 0.0
        %3054 = vmatpush.msra.mxu0 0.0
        %3055 = vmatpush.msra.mxu0 0.0
        %3056 = vmatpush.msra.mxu0 0.0
        %3057 = vmatpush.msra.mxu0 0.0
        %3058 = vmatpush.msra.mxu0 0.0
        %3059 = vmatpush.msra.mxu0 0.0
        %3060 = vmatpush.msra.mxu0 0.0
        %3061 = vmatpush.msra.mxu0 0.0
        %v3062 = vand.u32 %v1211, 4294901760
        %v3063 = vsub.f32 %v1211, %v3062
        %3064 = vmatpush.msra.mxu0 %v3063
        %v3065 = vand.u32 %v1210, 4294901760
        %v3066 = vsub.f32 %v1210, %v3065
        %3067 = vmatpush.msra.mxu0 %v3066
        %v3068 = vand.u32 %v1825, 4294901760
        %v3069 = vsub.f32 %v1825, %v3068
        %3070 = vmatmul.f32.gmra.mxu0 %v3069
        %v3071 = vpop.f32.mrf.mxu0
        %v3072 = vadd.f32 %v3042, %v3071
        %v3073 = vand.u32 %v1828, 4294901760
        %v3074 = vsub.f32 %v1828, %v3073
        %3075 = vmatmul.f32.gmra.mxu0 %v3074
        %v3076 = vpop.f32.mrf.mxu0
        %v3077 = vadd.f32 %v3046, %v3076
        %3078 = vdwg.mxu0
        %3079 = vmatpush.msra.mxu0 0.0
        %3080 = vmatpush.msra.mxu0 0.0
        %3081 = vmatpush.msra.mxu0 0.0
        %3082 = vmatpush.msra.mxu0 0.0
        %3083 = vmatpush.msra.mxu0 0.0
        %3084 = vmatpush.msra.mxu0 0.0
        %3085 = vmatpush.msra.mxu0 0.0
        %3086 = vmatpush.msra.mxu0 0.0
        %3087 = vmatpush.msra.mxu0 0.0
        %3088 = vmatpush.msra.mxu0 0.0
        %3089 = vmatpush.msra.mxu0 0.0
        %3090 = vmatpush.msra.mxu0 0.0
        %3091 = vmatpush.msra.mxu0 0.0
        %3092 = vmatpush.msra.mxu0 0.0
        %v3093 = vand.u32 %v1211, 4294901760
        %3094 = vmatpush.msra.mxu0 %v3093
        %v3095 = vand.u32 %v1210, 4294901760
        %3096 = vmatpush.msra.mxu0 %v3095
        %v3097 = vand.u32 %v1825, 4294901760
        %v3098 = vsub.f32 %v1825, %v3097
        %v3099 = vand.u32 %v3098, 4294901760
        %3100 = vmatmul.f32.gmra.mxu0 %v3099
        %v3101 = vpop.f32.mrf.mxu0
        %v3102 = vadd.f32 %v3072, %v3101
        %v3103 = vand.u32 %v1828, 4294901760
        %v3104 = vsub.f32 %v1828, %v3103
        %v3105 = vand.u32 %v3104, 4294901760
        %3106 = vmatmul.f32.gmra.mxu0 %v3105
        %v3107 = vpop.f32.mrf.mxu0
        %v3108 = vadd.f32 %v3077, %v3107
        %3109 = vdwg.mxu0
        %3110 = vmatpush.msra.mxu0 0.0
        %3111 = vmatpush.msra.mxu0 0.0
        %3112 = vmatpush.msra.mxu0 0.0
        %3113 = vmatpush.msra.mxu0 0.0
        %3114 = vmatpush.msra.mxu0 0.0
        %3115 = vmatpush.msra.mxu0 0.0
        %3116 = vmatpush.msra.mxu0 0.0
        %3117 = vmatpush.msra.mxu0 0.0
        %3118 = vmatpush.msra.mxu0 0.0
        %3119 = vmatpush.msra.mxu0 0.0
        %3120 = vmatpush.msra.mxu0 0.0
        %3121 = vmatpush.msra.mxu0 0.0
        %3122 = vmatpush.msra.mxu0 0.0
        %3123 = vmatpush.msra.mxu0 0.0
        %v3124 = vand.u32 %v1211, 4294901760
        %v3125 = vsub.f32 %v1211, %v3124
        %v3126 = vand.u32 %v3125, 4294901760
        %3127 = vmatpush.msra.mxu0 %v3126
        %v3128 = vand.u32 %v1210, 4294901760
        %v3129 = vsub.f32 %v1210, %v3128
        %v3130 = vand.u32 %v3129, 4294901760
        %3131 = vmatpush.msra.mxu0 %v3130
        %v3132 = vand.u32 %v1825, 4294901760
        %3133 = vmatmul.f32.gmra.mxu0 %v3132
        %v3134 = vpop.f32.mrf.mxu0
        %v3135 = vadd.f32 %v3102, %v3134
        %v3136 = vand.u32 %v1828, 4294901760
        %3137 = vmatmul.f32.gmra.mxu0 %v3136
        %v3138 = vpop.f32.mrf.mxu0
        %v3139 = vadd.f32 %v3108, %v3138
        %3140 = vdwg.mxu0
        %3141 = vmatpush.msra.mxu0 0.0
        %3142 = vmatpush.msra.mxu0 0.0
        %3143 = vmatpush.msra.mxu0 0.0
        %3144 = vmatpush.msra.mxu0 0.0
        %3145 = vmatpush.msra.mxu0 0.0
        %3146 = vmatpush.msra.mxu0 0.0
        %3147 = vmatpush.msra.mxu0 0.0
        %3148 = vmatpush.msra.mxu0 0.0
        %3149 = vmatpush.msra.mxu0 0.0
        %3150 = vmatpush.msra.mxu0 0.0
        %3151 = vmatpush.msra.mxu0 0.0
        %3152 = vmatpush.msra.mxu0 0.0
        %3153 = vmatpush.msra.mxu0 0.0
        %3154 = vmatpush.msra.mxu0 0.0
        %v3155 = vand.u32 %v1211, 4294901760
        %3156 = vmatpush.msra.mxu0 %v3155
        %v3157 = vand.u32 %v1210, 4294901760
        %3158 = vmatpush.msra.mxu0 %v3157
        %v3159 = vand.u32 %v1825, 4294901760
        %3160 = vmatmul.f32.gmra.mxu0 %v3159
        %v3161 = vpop.f32.mrf.mxu0
        %v3162 = vadd.f32 %v3135, %v3161
        %v3163 = vand.u32 %v1828, 4294901760
        %3164 = vmatmul.f32.gmra.mxu0 %v3163
        %v3165 = vpop.f32.mrf.mxu0
        %v3166 = vadd.f32 %v3139, %v3165
        %3167 = vdwg.mxu0
        %v3168 = vadd.f32 %v2976, %v3162
        %v3169 = vadd.f32 %v2977, %v3166
        %s3170 = sadd.s32 %s190, 3
        %s3171 = smul.u32 %s3170, 16
        %s3172 = scalar_lea.vmem %s165, %s3171
        %v3173 = vld [vmem:[%s3172] sm:$0xff]
        %v3174 = vld [vmem:[%s3172 + $0x8] sm:$0x7]
        %v3176 = vsel %vm202, %v3173, 0
        %v3179 = vsel %vm202, %v3174, 0
        %3181 = vmatpush.msra.mxu0 0.0
        %3182 = vmatpush.msra.mxu0 0.0
        %3183 = vmatpush.msra.mxu0 0.0
        %3184 = vmatpush.msra.mxu0 0.0
        %3185 = vmatpush.msra.mxu0 0.0
        %3186 = vmatpush.msra.mxu0 0.0
        %3187 = vmatpush.msra.mxu0 0.0
        %3188 = vmatpush.msra.mxu0 0.0
        %3189 = vmatpush.msra.mxu0 0.0
        %3190 = vmatpush.msra.mxu0 0.0
        %3191 = vmatpush.msra.mxu0 0.0
        %3192 = vmatpush.msra.mxu0 0.0
        %3193 = vmatpush.msra.mxu0 0.0
        %3194 = vmatpush.msra.mxu0 0.0
        %v3195 = vand.u32 %v1417, 4294901760
        %3196 = vmatpush.msra.mxu0 %v3195
        %v3197 = vand.u32 %v1416, 4294901760
        %3198 = vmatpush.msra.mxu0 %v3197
        %v3199 = vand.u32 %v3176, 4294901760
        %v3200 = vsub.f32 %v3176, %v3199
        %v3201 = vand.u32 %v3200, 4294901760
        %v3202 = vsub.f32 %v3200, %v3201
        %v3203 = vand.u32 %v3202, 4294901760
        %3204 = vmatmul.f32.gmra.mxu0 %v3203
        %v3205 = vpop.f32.mrf.mxu0
        %v3206 = vadd.f32 0.0, %v3205
        %v3207 = vand.u32 %v3179, 4294901760
        %v3208 = vsub.f32 %v3179, %v3207
        %v3209 = vand.u32 %v3208, 4294901760
        %v3210 = vsub.f32 %v3208, %v3209
        %v3211 = vand.u32 %v3210, 4294901760
        %3212 = vmatmul.f32.gmra.mxu0 %v3211
        %v3213 = vpop.f32.mrf.mxu0
        %v3214 = vadd.f32 0.0, %v3213
        %3215 = vdwg.mxu0
        %3216 = vmatpush.msra.mxu0 0.0
        %3217 = vmatpush.msra.mxu0 0.0
        %3218 = vmatpush.msra.mxu0 0.0
        %3219 = vmatpush.msra.mxu0 0.0
        %3220 = vmatpush.msra.mxu0 0.0
        %3221 = vmatpush.msra.mxu0 0.0
        %3222 = vmatpush.msra.mxu0 0.0
        %3223 = vmatpush.msra.mxu0 0.0
        %3224 = vmatpush.msra.mxu0 0.0
        %3225 = vmatpush.msra.mxu0 0.0
        %3226 = vmatpush.msra.mxu0 0.0
        %3227 = vmatpush.msra.mxu0 0.0
        %3228 = vmatpush.msra.mxu0 0.0
        %3229 = vmatpush.msra.mxu0 0.0
        %v3230 = vand.u32 %v1417, 4294901760
        %v3231 = vsub.f32 %v1417, %v3230
        %v3232 = vand.u32 %v3231, 4294901760
        %v3233 = vsub.f32 %v3231, %v3232
        %v3234 = vand.u32 %v3233, 4294901760
        %3235 = vmatpush.msra.mxu0 %v3234
        %v3236 = vand.u32 %v1416, 4294901760
        %v3237 = vsub.f32 %v1416, %v3236
        %v3238 = vand.u32 %v3237, 4294901760
        %v3239 = vsub.f32 %v3237, %v3238
        %v3240 = vand.u32 %v3239, 4294901760
        %3241 = vmatpush.msra.mxu0 %v3240
        %v3242 = vand.u32 %v3176, 4294901760
        %3243 = vmatmul.f32.gmra.mxu0 %v3242
        %v3244 = vpop.f32.mrf.mxu0
        %v3245 = vadd.f32 %v3206, %v3244
        %v3246 = vand.u32 %v3179, 4294901760
        %3247 = vmatmul.f32.gmra.mxu0 %v3246
        %v3248 = vpop.f32.mrf.mxu0
        %v3249 = vadd.f32 %v3214, %v3248
        %3250 = vdwg.mxu0
        %3251 = vmatpush.msra.mxu0 0.0
        %3252 = vmatpush.msra.mxu0 0.0
        %3253 = vmatpush.msra.mxu0 0.0
        %3254 = vmatpush.msra.mxu0 0.0
        %3255 = vmatpush.msra.mxu0 0.0
        %3256 = vmatpush.msra.mxu0 0.0
        %3257 = vmatpush.msra.mxu0 0.0
        %3258 = vmatpush.msra.mxu0 0.0
        %3259 = vmatpush.msra.mxu0 0.0
        %3260 = vmatpush.msra.mxu0 0.0
        %3261 = vmatpush.msra.mxu0 0.0
        %3262 = vmatpush.msra.mxu0 0.0
        %3263 = vmatpush.msra.mxu0 0.0
        %3264 = vmatpush.msra.mxu0 0.0
        %v3265 = vand.u32 %v1417, 4294901760
        %v3266 = vsub.f32 %v1417, %v3265
        %3267 = vmatpush.msra.mxu0 %v3266
        %v3268 = vand.u32 %v1416, 4294901760
        %v3269 = vsub.f32 %v1416, %v3268
        %3270 = vmatpush.msra.mxu0 %v3269
        %v3271 = vand.u32 %v3176, 4294901760
        %v3272 = vsub.f32 %v3176, %v3271
        %3273 = vmatmul.f32.gmra.mxu0 %v3272
        %v3274 = vpop.f32.mrf.mxu0
        %v3275 = vadd.f32 %v3245, %v3274
        %v3276 = vand.u32 %v3179, 4294901760
        %v3277 = vsub.f32 %v3179, %v3276
        %3278 = vmatmul.f32.gmra.mxu0 %v3277
        %v3279 = vpop.f32.mrf.mxu0
        %v3280 = vadd.f32 %v3249, %v3279
        %3281 = vdwg.mxu0
        %3282 = vmatpush.msra.mxu0 0.0
        %3283 = vmatpush.msra.mxu0 0.0
        %3284 = vmatpush.msra.mxu0 0.0
        %3285 = vmatpush.msra.mxu0 0.0
        %3286 = vmatpush.msra.mxu0 0.0
        %3287 = vmatpush.msra.mxu0 0.0
        %3288 = vmatpush.msra.mxu0 0.0
        %3289 = vmatpush.msra.mxu0 0.0
        %3290 = vmatpush.msra.mxu0 0.0
        %3291 = vmatpush.msra.mxu0 0.0
        %3292 = vmatpush.msra.mxu0 0.0
        %3293 = vmatpush.msra.mxu0 0.0
        %3294 = vmatpush.msra.mxu0 0.0
        %3295 = vmatpush.msra.mxu0 0.0
        %v3296 = vand.u32 %v1417, 4294901760
        %3297 = vmatpush.msra.mxu0 %v3296
        %v3298 = vand.u32 %v1416, 4294901760
        %3299 = vmatpush.msra.mxu0 %v3298
        %v3300 = vand.u32 %v3176, 4294901760
        %v3301 = vsub.f32 %v3176, %v3300
        %v3302 = vand.u32 %v3301, 4294901760
        %3303 = vmatmul.f32.gmra.mxu0 %v3302
        %v3304 = vpop.f32.mrf.mxu0
        %v3305 = vadd.f32 %v3275, %v3304
        %v3306 = vand.u32 %v3179, 4294901760
        %v3307 = vsub.f32 %v3179, %v3306
        %v3308 = vand.u32 %v3307, 4294901760
        %3309 = vmatmul.f32.gmra.mxu0 %v3308
        %v3310 = vpop.f32.mrf.mxu0
        %v3311 = vadd.f32 %v3280, %v3310
        %3312 = vdwg.mxu0
        %3313 = vmatpush.msra.mxu0 0.0
        %3314 = vmatpush.msra.mxu0 0.0
        %3315 = vmatpush.msra.mxu0 0.0
        %3316 = vmatpush.msra.mxu0 0.0
        %3317 = vmatpush.msra.mxu0 0.0
        %3318 = vmatpush.msra.mxu0 0.0
        %3319 = vmatpush.msra.mxu0 0.0
        %3320 = vmatpush.msra.mxu0 0.0
        %3321 = vmatpush.msra.mxu0 0.0
        %3322 = vmatpush.msra.mxu0 0.0
        %3323 = vmatpush.msra.mxu0 0.0
        %3324 = vmatpush.msra.mxu0 0.0
        %3325 = vmatpush.msra.mxu0 0.0
        %3326 = vmatpush.msra.mxu0 0.0
        %v3327 = vand.u32 %v1417, 4294901760
        %v3328 = vsub.f32 %v1417, %v3327
        %v3329 = vand.u32 %v3328, 4294901760
        %3330 = vmatpush.msra.mxu0 %v3329
        %v3331 = vand.u32 %v1416, 4294901760
        %v3332 = vsub.f32 %v1416, %v3331
        %v3333 = vand.u32 %v3332, 4294901760
        %3334 = vmatpush.msra.mxu0 %v3333
        %v3335 = vand.u32 %v3176, 4294901760
        %3336 = vmatmul.f32.gmra.mxu0 %v3335
        %v3337 = vpop.f32.mrf.mxu0
        %v3338 = vadd.f32 %v3305, %v3337
        %v3339 = vand.u32 %v3179, 4294901760
        %3340 = vmatmul.f32.gmra.mxu0 %v3339
        %v3341 = vpop.f32.mrf.mxu0
        %v3342 = vadd.f32 %v3311, %v3341
        %3343 = vdwg.mxu0
        %3344 = vmatpush.msra.mxu0 0.0
        %3345 = vmatpush.msra.mxu0 0.0
        %3346 = vmatpush.msra.mxu0 0.0
        %3347 = vmatpush.msra.mxu0 0.0
        %3348 = vmatpush.msra.mxu0 0.0
        %3349 = vmatpush.msra.mxu0 0.0
        %3350 = vmatpush.msra.mxu0 0.0
        %3351 = vmatpush.msra.mxu0 0.0
        %3352 = vmatpush.msra.mxu0 0.0
        %3353 = vmatpush.msra.mxu0 0.0
        %3354 = vmatpush.msra.mxu0 0.0
        %3355 = vmatpush.msra.mxu0 0.0
        %3356 = vmatpush.msra.mxu0 0.0
        %3357 = vmatpush.msra.mxu0 0.0
        %v3358 = vand.u32 %v1417, 4294901760
        %3359 = vmatpush.msra.mxu0 %v3358
        %v3360 = vand.u32 %v1416, 4294901760
        %3361 = vmatpush.msra.mxu0 %v3360
        %v3362 = vand.u32 %v3176, 4294901760
        %3363 = vmatmul.f32.gmra.mxu0 %v3362
        %v3364 = vpop.f32.mrf.mxu0
        %v3365 = vadd.f32 %v3338, %v3364
        %v3366 = vand.u32 %v3179, 4294901760
        %3367 = vmatmul.f32.gmra.mxu0 %v3366
        %v3368 = vpop.f32.mrf.mxu0
        %v3369 = vadd.f32 %v3342, %v3368
        %3370 = vdwg.mxu0
        %v3371 = vadd.f32 %v3168, %v3365
        %v3372 = vadd.f32 %v3169, %v3369
        %v3373 = vld [vmem:[%s3172 + $0x1] sm:$0xff]
        %v3374 = vld [vmem:[%s3172 + $0x9] sm:$0x7]
        %v3376 = vsel %vm202, %v3373, 0
        %v3379 = vsel %vm202, %v3374, 0
        %3381 = vmatpush.msra.mxu0 0.0
        %3382 = vmatpush.msra.mxu0 0.0
        %3383 = vmatpush.msra.mxu0 0.0
        %3384 = vmatpush.msra.mxu0 0.0
        %3385 = vmatpush.msra.mxu0 0.0
        %3386 = vmatpush.msra.mxu0 0.0
        %3387 = vmatpush.msra.mxu0 0.0
        %3388 = vmatpush.msra.mxu0 0.0
        %3389 = vmatpush.msra.mxu0 0.0
        %3390 = vmatpush.msra.mxu0 0.0
        %3391 = vmatpush.msra.mxu0 0.0
        %3392 = vmatpush.msra.mxu0 0.0
        %3393 = vmatpush.msra.mxu0 0.0
        %3394 = vmatpush.msra.mxu0 0.0
        %v3395 = vand.u32 %v1620, 4294901760
        %3396 = vmatpush.msra.mxu0 %v3395
        %v3397 = vand.u32 %v1619, 4294901760
        %3398 = vmatpush.msra.mxu0 %v3397
        %v3399 = vand.u32 %v3376, 4294901760
        %v3400 = vsub.f32 %v3376, %v3399
        %v3401 = vand.u32 %v3400, 4294901760
        %v3402 = vsub.f32 %v3400, %v3401
        %v3403 = vand.u32 %v3402, 4294901760
        %3404 = vmatmul.f32.gmra.mxu0 %v3403
        %v3405 = vpop.f32.mrf.mxu0
        %v3406 = vadd.f32 0.0, %v3405
        %v3407 = vand.u32 %v3379, 4294901760
        %v3408 = vsub.f32 %v3379, %v3407
        %v3409 = vand.u32 %v3408, 4294901760
        %v3410 = vsub.f32 %v3408, %v3409
        %v3411 = vand.u32 %v3410, 4294901760
        %3412 = vmatmul.f32.gmra.mxu0 %v3411
        %v3413 = vpop.f32.mrf.mxu0
        %v3414 = vadd.f32 0.0, %v3413
        %3415 = vdwg.mxu0
        %3416 = vmatpush.msra.mxu0 0.0
        %3417 = vmatpush.msra.mxu0 0.0
        %3418 = vmatpush.msra.mxu0 0.0
        %3419 = vmatpush.msra.mxu0 0.0
        %3420 = vmatpush.msra.mxu0 0.0
        %3421 = vmatpush.msra.mxu0 0.0
        %3422 = vmatpush.msra.mxu0 0.0
        %3423 = vmatpush.msra.mxu0 0.0
        %3424 = vmatpush.msra.mxu0 0.0
        %3425 = vmatpush.msra.mxu0 0.0
        %3426 = vmatpush.msra.mxu0 0.0
        %3427 = vmatpush.msra.mxu0 0.0
        %3428 = vmatpush.msra.mxu0 0.0
        %3429 = vmatpush.msra.mxu0 0.0
        %v3430 = vand.u32 %v1620, 4294901760
        %v3431 = vsub.f32 %v1620, %v3430
        %v3432 = vand.u32 %v3431, 4294901760
        %v3433 = vsub.f32 %v3431, %v3432
        %v3434 = vand.u32 %v3433, 4294901760
        %3435 = vmatpush.msra.mxu0 %v3434
        %v3436 = vand.u32 %v1619, 4294901760
        %v3437 = vsub.f32 %v1619, %v3436
        %v3438 = vand.u32 %v3437, 4294901760
        %v3439 = vsub.f32 %v3437, %v3438
        %v3440 = vand.u32 %v3439, 4294901760
        %3441 = vmatpush.msra.mxu0 %v3440
        %v3442 = vand.u32 %v3376, 4294901760
        %3443 = vmatmul.f32.gmra.mxu0 %v3442
        %v3444 = vpop.f32.mrf.mxu0
        %v3445 = vadd.f32 %v3406, %v3444
        %v3446 = vand.u32 %v3379, 4294901760
        %3447 = vmatmul.f32.gmra.mxu0 %v3446
        %v3448 = vpop.f32.mrf.mxu0
        %v3449 = vadd.f32 %v3414, %v3448
        %3450 = vdwg.mxu0
        %3451 = vmatpush.msra.mxu0 0.0
        %3452 = vmatpush.msra.mxu0 0.0
        %3453 = vmatpush.msra.mxu0 0.0
        %3454 = vmatpush.msra.mxu0 0.0
        %3455 = vmatpush.msra.mxu0 0.0
        %3456 = vmatpush.msra.mxu0 0.0
        %3457 = vmatpush.msra.mxu0 0.0
        %3458 = vmatpush.msra.mxu0 0.0
        %3459 = vmatpush.msra.mxu0 0.0
        %3460 = vmatpush.msra.mxu0 0.0
        %3461 = vmatpush.msra.mxu0 0.0
        %3462 = vmatpush.msra.mxu0 0.0
        %3463 = vmatpush.msra.mxu0 0.0
        %3464 = vmatpush.msra.mxu0 0.0
        %v3465 = vand.u32 %v1620, 4294901760
        %v3466 = vsub.f32 %v1620, %v3465
        %3467 = vmatpush.msra.mxu0 %v3466
        %v3468 = vand.u32 %v1619, 4294901760
        %v3469 = vsub.f32 %v1619, %v3468
        %3470 = vmatpush.msra.mxu0 %v3469
        %v3471 = vand.u32 %v3376, 4294901760
        %v3472 = vsub.f32 %v3376, %v3471
        %3473 = vmatmul.f32.gmra.mxu0 %v3472
        %v3474 = vpop.f32.mrf.mxu0
        %v3475 = vadd.f32 %v3445, %v3474
        %v3476 = vand.u32 %v3379, 4294901760
        %v3477 = vsub.f32 %v3379, %v3476
        %3478 = vmatmul.f32.gmra.mxu0 %v3477
        %v3479 = vpop.f32.mrf.mxu0
        %v3480 = vadd.f32 %v3449, %v3479
        %3481 = vdwg.mxu0
        %3482 = vmatpush.msra.mxu0 0.0
        %3483 = vmatpush.msra.mxu0 0.0
        %3484 = vmatpush.msra.mxu0 0.0
        %3485 = vmatpush.msra.mxu0 0.0
        %3486 = vmatpush.msra.mxu0 0.0
        %3487 = vmatpush.msra.mxu0 0.0
        %3488 = vmatpush.msra.mxu0 0.0
        %3489 = vmatpush.msra.mxu0 0.0
        %3490 = vmatpush.msra.mxu0 0.0
        %3491 = vmatpush.msra.mxu0 0.0
        %3492 = vmatpush.msra.mxu0 0.0
        %3493 = vmatpush.msra.mxu0 0.0
        %3494 = vmatpush.msra.mxu0 0.0
        %3495 = vmatpush.msra.mxu0 0.0
        %v3496 = vand.u32 %v1620, 4294901760
        %3497 = vmatpush.msra.mxu0 %v3496
        %v3498 = vand.u32 %v1619, 4294901760
        %3499 = vmatpush.msra.mxu0 %v3498
        %v3500 = vand.u32 %v3376, 4294901760
        %v3501 = vsub.f32 %v3376, %v3500
        %v3502 = vand.u32 %v3501, 4294901760
        %3503 = vmatmul.f32.gmra.mxu0 %v3502
        %v3504 = vpop.f32.mrf.mxu0
        %v3505 = vadd.f32 %v3475, %v3504
        %v3506 = vand.u32 %v3379, 4294901760
        %v3507 = vsub.f32 %v3379, %v3506
        %v3508 = vand.u32 %v3507, 4294901760
        %3509 = vmatmul.f32.gmra.mxu0 %v3508
        %v3510 = vpop.f32.mrf.mxu0
        %v3511 = vadd.f32 %v3480, %v3510
        %3512 = vdwg.mxu0
        %3513 = vmatpush.msra.mxu0 0.0
        %3514 = vmatpush.msra.mxu0 0.0
        %3515 = vmatpush.msra.mxu0 0.0
        %3516 = vmatpush.msra.mxu0 0.0
        %3517 = vmatpush.msra.mxu0 0.0
        %3518 = vmatpush.msra.mxu0 0.0
        %3519 = vmatpush.msra.mxu0 0.0
        %3520 = vmatpush.msra.mxu0 0.0
        %3521 = vmatpush.msra.mxu0 0.0
        %3522 = vmatpush.msra.mxu0 0.0
        %3523 = vmatpush.msra.mxu0 0.0
        %3524 = vmatpush.msra.mxu0 0.0
        %3525 = vmatpush.msra.mxu0 0.0
        %3526 = vmatpush.msra.mxu0 0.0
        %v3527 = vand.u32 %v1620, 4294901760
        %v3528 = vsub.f32 %v1620, %v3527
        %v3529 = vand.u32 %v3528, 4294901760
        %3530 = vmatpush.msra.mxu0 %v3529
        %v3531 = vand.u32 %v1619, 4294901760
        %v3532 = vsub.f32 %v1619, %v3531
        %v3533 = vand.u32 %v3532, 4294901760
        %3534 = vmatpush.msra.mxu0 %v3533
        %v3535 = vand.u32 %v3376, 4294901760
        %3536 = vmatmul.f32.gmra.mxu0 %v3535
        %v3537 = vpop.f32.mrf.mxu0
        %v3538 = vadd.f32 %v3505, %v3537
        %v3539 = vand.u32 %v3379, 4294901760
        %3540 = vmatmul.f32.gmra.mxu0 %v3539
        %v3541 = vpop.f32.mrf.mxu0
        %v3542 = vadd.f32 %v3511, %v3541
        %3543 = vdwg.mxu0
        %3544 = vmatpush.msra.mxu0 0.0
        %3545 = vmatpush.msra.mxu0 0.0
        %3546 = vmatpush.msra.mxu0 0.0
        %3547 = vmatpush.msra.mxu0 0.0
        %3548 = vmatpush.msra.mxu0 0.0
        %3549 = vmatpush.msra.mxu0 0.0
        %3550 = vmatpush.msra.mxu0 0.0
        %3551 = vmatpush.msra.mxu0 0.0
        %3552 = vmatpush.msra.mxu0 0.0
        %3553 = vmatpush.msra.mxu0 0.0
        %3554 = vmatpush.msra.mxu0 0.0
        %3555 = vmatpush.msra.mxu0 0.0
        %3556 = vmatpush.msra.mxu0 0.0
        %3557 = vmatpush.msra.mxu0 0.0
        %v3558 = vand.u32 %v1620, 4294901760
        %3559 = vmatpush.msra.mxu0 %v3558
        %v3560 = vand.u32 %v1619, 4294901760
        %3561 = vmatpush.msra.mxu0 %v3560
        %v3562 = vand.u32 %v3376, 4294901760
        %3563 = vmatmul.f32.gmra.mxu0 %v3562
        %v3564 = vpop.f32.mrf.mxu0
        %v3565 = vadd.f32 %v3538, %v3564
        %v3566 = vand.u32 %v3379, 4294901760
        %3567 = vmatmul.f32.gmra.mxu0 %v3566
        %v3568 = vpop.f32.mrf.mxu0
        %v3569 = vadd.f32 %v3542, %v3568
        %3570 = vdwg.mxu0
        %v3571 = vadd.f32 %v3371, %v3565
        %v3572 = vadd.f32 %v3372, %v3569
        %v3573 = vld [vmem:[%s3172 + $0x2] sm:$0xff]
        %v3574 = vld [vmem:[%s3172 + $0xa] sm:$0x7]
        %v3576 = vsel %vm202, %v3573, 0
        %v3579 = vsel %vm202, %v3574, 0
        %3581 = vmatpush.msra.mxu0 0.0
        %3582 = vmatpush.msra.mxu0 0.0
        %3583 = vmatpush.msra.mxu0 0.0
        %3584 = vmatpush.msra.mxu0 0.0
        %3585 = vmatpush.msra.mxu0 0.0
        %3586 = vmatpush.msra.mxu0 0.0
        %3587 = vmatpush.msra.mxu0 0.0
        %3588 = vmatpush.msra.mxu0 0.0
        %3589 = vmatpush.msra.mxu0 0.0
        %3590 = vmatpush.msra.mxu0 0.0
        %3591 = vmatpush.msra.mxu0 0.0
        %3592 = vmatpush.msra.mxu0 0.0
        %3593 = vmatpush.msra.mxu0 0.0
        %3594 = vmatpush.msra.mxu0 0.0
        %v3595 = vand.u32 %v1823, 4294901760
        %3596 = vmatpush.msra.mxu0 %v3595
        %v3597 = vand.u32 %v1822, 4294901760
        %3598 = vmatpush.msra.mxu0 %v3597
        %v3599 = vand.u32 %v3576, 4294901760
        %v3600 = vsub.f32 %v3576, %v3599
        %v3601 = vand.u32 %v3600, 4294901760
        %v3602 = vsub.f32 %v3600, %v3601
        %v3603 = vand.u32 %v3602, 4294901760
        %3604 = vmatmul.f32.gmra.mxu0 %v3603
        %v3605 = vpop.f32.mrf.mxu0
        %v3606 = vadd.f32 0.0, %v3605
        %v3607 = vand.u32 %v3579, 4294901760
        %v3608 = vsub.f32 %v3579, %v3607
        %v3609 = vand.u32 %v3608, 4294901760
        %v3610 = vsub.f32 %v3608, %v3609
        %v3611 = vand.u32 %v3610, 4294901760
        %3612 = vmatmul.f32.gmra.mxu0 %v3611
        %v3613 = vpop.f32.mrf.mxu0
        %v3614 = vadd.f32 0.0, %v3613
        %3615 = vdwg.mxu0
        %3616 = vmatpush.msra.mxu0 0.0
        %3617 = vmatpush.msra.mxu0 0.0
        %3618 = vmatpush.msra.mxu0 0.0
        %3619 = vmatpush.msra.mxu0 0.0
        %3620 = vmatpush.msra.mxu0 0.0
        %3621 = vmatpush.msra.mxu0 0.0
        %3622 = vmatpush.msra.mxu0 0.0
        %3623 = vmatpush.msra.mxu0 0.0
        %3624 = vmatpush.msra.mxu0 0.0
        %3625 = vmatpush.msra.mxu0 0.0
        %3626 = vmatpush.msra.mxu0 0.0
        %3627 = vmatpush.msra.mxu0 0.0
        %3628 = vmatpush.msra.mxu0 0.0
        %3629 = vmatpush.msra.mxu0 0.0
        %v3630 = vand.u32 %v1823, 4294901760
        %v3631 = vsub.f32 %v1823, %v3630
        %v3632 = vand.u32 %v3631, 4294901760
        %v3633 = vsub.f32 %v3631, %v3632
        %v3634 = vand.u32 %v3633, 4294901760
        %3635 = vmatpush.msra.mxu0 %v3634
        %v3636 = vand.u32 %v1822, 4294901760
        %v3637 = vsub.f32 %v1822, %v3636
        %v3638 = vand.u32 %v3637, 4294901760
        %v3639 = vsub.f32 %v3637, %v3638
        %v3640 = vand.u32 %v3639, 4294901760
        %3641 = vmatpush.msra.mxu0 %v3640
        %v3642 = vand.u32 %v3576, 4294901760
        %3643 = vmatmul.f32.gmra.mxu0 %v3642
        %v3644 = vpop.f32.mrf.mxu0
        %v3645 = vadd.f32 %v3606, %v3644
        %v3646 = vand.u32 %v3579, 4294901760
        %3647 = vmatmul.f32.gmra.mxu0 %v3646
        %v3648 = vpop.f32.mrf.mxu0
        %v3649 = vadd.f32 %v3614, %v3648
        %3650 = vdwg.mxu0
        %3651 = vmatpush.msra.mxu0 0.0
        %3652 = vmatpush.msra.mxu0 0.0
        %3653 = vmatpush.msra.mxu0 0.0
        %3654 = vmatpush.msra.mxu0 0.0
        %3655 = vmatpush.msra.mxu0 0.0
        %3656 = vmatpush.msra.mxu0 0.0
        %3657 = vmatpush.msra.mxu0 0.0
        %3658 = vmatpush.msra.mxu0 0.0
        %3659 = vmatpush.msra.mxu0 0.0
        %3660 = vmatpush.msra.mxu0 0.0
        %3661 = vmatpush.msra.mxu0 0.0
        %3662 = vmatpush.msra.mxu0 0.0
        %3663 = vmatpush.msra.mxu0 0.0
        %3664 = vmatpush.msra.mxu0 0.0
        %v3665 = vand.u32 %v1823, 4294901760
        %v3666 = vsub.f32 %v1823, %v3665
        %3667 = vmatpush.msra.mxu0 %v3666
        %v3668 = vand.u32 %v1822, 4294901760
        %v3669 = vsub.f32 %v1822, %v3668
        %3670 = vmatpush.msra.mxu0 %v3669
        %v3671 = vand.u32 %v3576, 4294901760
        %v3672 = vsub.f32 %v3576, %v3671
        %3673 = vmatmul.f32.gmra.mxu0 %v3672
        %v3674 = vpop.f32.mrf.mxu0
        %v3675 = vadd.f32 %v3645, %v3674
        %v3676 = vand.u32 %v3579, 4294901760
        %v3677 = vsub.f32 %v3579, %v3676
        %3678 = vmatmul.f32.gmra.mxu0 %v3677
        %v3679 = vpop.f32.mrf.mxu0
        %v3680 = vadd.f32 %v3649, %v3679
        %3681 = vdwg.mxu0
        %3682 = vmatpush.msra.mxu0 0.0
        %3683 = vmatpush.msra.mxu0 0.0
        %3684 = vmatpush.msra.mxu0 0.0
        %3685 = vmatpush.msra.mxu0 0.0
        %3686 = vmatpush.msra.mxu0 0.0
        %3687 = vmatpush.msra.mxu0 0.0
        %3688 = vmatpush.msra.mxu0 0.0
        %3689 = vmatpush.msra.mxu0 0.0
        %3690 = vmatpush.msra.mxu0 0.0
        %3691 = vmatpush.msra.mxu0 0.0
        %3692 = vmatpush.msra.mxu0 0.0
        %3693 = vmatpush.msra.mxu0 0.0
        %3694 = vmatpush.msra.mxu0 0.0
        %3695 = vmatpush.msra.mxu0 0.0
        %v3696 = vand.u32 %v1823, 4294901760
        %3697 = vmatpush.msra.mxu0 %v3696
        %v3698 = vand.u32 %v1822, 4294901760
        %3699 = vmatpush.msra.mxu0 %v3698
        %v3700 = vand.u32 %v3576, 4294901760
        %v3701 = vsub.f32 %v3576, %v3700
        %v3702 = vand.u32 %v3701, 4294901760
        %3703 = vmatmul.f32.gmra.mxu0 %v3702
        %v3704 = vpop.f32.mrf.mxu0
        %v3705 = vadd.f32 %v3675, %v3704
        %v3706 = vand.u32 %v3579, 4294901760
        %v3707 = vsub.f32 %v3579, %v3706
        %v3708 = vand.u32 %v3707, 4294901760
        %3709 = vmatmul.f32.gmra.mxu0 %v3708
        %v3710 = vpop.f32.mrf.mxu0
        %v3711 = vadd.f32 %v3680, %v3710
        %3712 = vdwg.mxu0
        %3713 = vmatpush.msra.mxu0 0.0
        %3714 = vmatpush.msra.mxu0 0.0
        %3715 = vmatpush.msra.mxu0 0.0
        %3716 = vmatpush.msra.mxu0 0.0
        %3717 = vmatpush.msra.mxu0 0.0
        %3718 = vmatpush.msra.mxu0 0.0
        %3719 = vmatpush.msra.mxu0 0.0
        %3720 = vmatpush.msra.mxu0 0.0
        %3721 = vmatpush.msra.mxu0 0.0
        %3722 = vmatpush.msra.mxu0 0.0
        %3723 = vmatpush.msra.mxu0 0.0
        %3724 = vmatpush.msra.mxu0 0.0
        %3725 = vmatpush.msra.mxu0 0.0
        %3726 = vmatpush.msra.mxu0 0.0
        %v3727 = vand.u32 %v1823, 4294901760
        %v3728 = vsub.f32 %v1823, %v3727
        %v3729 = vand.u32 %v3728, 4294901760
        %3730 = vmatpush.msra.mxu0 %v3729
        %v3731 = vand.u32 %v1822, 4294901760
        %v3732 = vsub.f32 %v1822, %v3731
        %v3733 = vand.u32 %v3732, 4294901760
        %3734 = vmatpush.msra.mxu0 %v3733
        %v3735 = vand.u32 %v3576, 4294901760
        %3736 = vmatmul.f32.gmra.mxu0 %v3735
        %v3737 = vpop.f32.mrf.mxu0
        %v3738 = vadd.f32 %v3705, %v3737
        %v3739 = vand.u32 %v3579, 4294901760
        %3740 = vmatmul.f32.gmra.mxu0 %v3739
        %v3741 = vpop.f32.mrf.mxu0
        %v3742 = vadd.f32 %v3711, %v3741
        %3743 = vdwg.mxu0
        %3744 = vmatpush.msra.mxu0 0.0
        %3745 = vmatpush.msra.mxu0 0.0
        %3746 = vmatpush.msra.mxu0 0.0
        %3747 = vmatpush.msra.mxu0 0.0
        %3748 = vmatpush.msra.mxu0 0.0
        %3749 = vmatpush.msra.mxu0 0.0
        %3750 = vmatpush.msra.mxu0 0.0
        %3751 = vmatpush.msra.mxu0 0.0
        %3752 = vmatpush.msra.mxu0 0.0
        %3753 = vmatpush.msra.mxu0 0.0
        %3754 = vmatpush.msra.mxu0 0.0
        %3755 = vmatpush.msra.mxu0 0.0
        %3756 = vmatpush.msra.mxu0 0.0
        %3757 = vmatpush.msra.mxu0 0.0
        %v3758 = vand.u32 %v1823, 4294901760
        %3759 = vmatpush.msra.mxu0 %v3758
        %v3760 = vand.u32 %v1822, 4294901760
        %3761 = vmatpush.msra.mxu0 %v3760
        %v3762 = vand.u32 %v3576, 4294901760
        %3763 = vmatmul.f32.gmra.mxu0 %v3762
        %v3764 = vpop.f32.mrf.mxu0
        %v3765 = vadd.f32 %v3738, %v3764
        %v3766 = vand.u32 %v3579, 4294901760
        %3767 = vmatmul.f32.gmra.mxu0 %v3766
        %v3768 = vpop.f32.mrf.mxu0
        %v3769 = vadd.f32 %v3742, %v3768
        %3770 = vdwg.mxu0
        %v3771 = vadd.f32 %v3571, %v3765
        %v3772 = vadd.f32 %v3572, %v3769
        %v3773 = vmax.f32 %v2020, %v3771
        %v3774 = vmax.f32 %v2021, %v3772
        %vm3775 = vcmask 89088
        %v3777 = vsel %vm3775, %v178, 0
        %vm3779 = vcmask 1042432
        %v3781 = vsel %vm3779, %v3774, 0
        %3783 = vmatpush.msra.mxu0 0.0
        %3784 = vmatpush.msra.mxu0 0.0
        %3785 = vmatpush.msra.mxu0 0.0
        %3786 = vmatpush.msra.mxu0 0.0
        %3787 = vmatpush.msra.mxu0 0.0
        %3788 = vmatpush.msra.mxu0 0.0
        %3789 = vmatpush.msra.mxu0 0.0
        %3790 = vmatpush.msra.mxu0 0.0
        %3791 = vmatpush.msra.mxu0 0.0
        %3792 = vmatpush.msra.mxu0 0.0
        %3793 = vmatpush.msra.mxu0 0.0
        %3794 = vmatpush.msra.mxu0 0.0
        %3795 = vmatpush.msra.mxu0 0.0
        %3796 = vmatpush.msra.mxu0 0.0
        %v3797 = vand.u32 %v3781, 4294901760
        %3798 = vmatpush.msra.mxu0 %v3797
        %v3799 = vand.u32 %v3773, 4294901760
        %3800 = vmatpush.msra.mxu0 %v3799
        %v3801 = vand.u32 %v3777, 4294901760
        %v3802 = vsub.f32 %v3777, %v3801
        %v3803 = vand.u32 %v3802, 4294901760
        %v3804 = vsub.f32 %v3802, %v3803
        %v3805 = vand.u32 %v3804, 4294901760
        %3806 = vmatmul.f32.gmra.mxu0 %v3805
        %v3807 = vpop.f32.mrf.mxu0
        %v3808 = vadd.f32 0.0, %v3807
        %3809 = vdwg.mxu0
        %3810 = vmatpush.msra.mxu0 0.0
        %3811 = vmatpush.msra.mxu0 0.0
        %3812 = vmatpush.msra.mxu0 0.0
        %3813 = vmatpush.msra.mxu0 0.0
        %3814 = vmatpush.msra.mxu0 0.0
        %3815 = vmatpush.msra.mxu0 0.0
        %3816 = vmatpush.msra.mxu0 0.0
        %3817 = vmatpush.msra.mxu0 0.0
        %3818 = vmatpush.msra.mxu0 0.0
        %3819 = vmatpush.msra.mxu0 0.0
        %3820 = vmatpush.msra.mxu0 0.0
        %3821 = vmatpush.msra.mxu0 0.0
        %3822 = vmatpush.msra.mxu0 0.0
        %3823 = vmatpush.msra.mxu0 0.0
        %v3824 = vand.u32 %v3781, 4294901760
        %v3825 = vsub.f32 %v3781, %v3824
        %v3826 = vand.u32 %v3825, 4294901760
        %v3827 = vsub.f32 %v3825, %v3826
        %v3828 = vand.u32 %v3827, 4294901760
        %3829 = vmatpush.msra.mxu0 %v3828
        %v3830 = vand.u32 %v3773, 4294901760
        %v3831 = vsub.f32 %v3773, %v3830
        %v3832 = vand.u32 %v3831, 4294901760
        %v3833 = vsub.f32 %v3831, %v3832
        %v3834 = vand.u32 %v3833, 4294901760
        %3835 = vmatpush.msra.mxu0 %v3834
        %v3836 = vand.u32 %v3777, 4294901760
        %3837 = vmatmul.f32.gmra.mxu0 %v3836
        %v3838 = vpop.f32.mrf.mxu0
        %v3839 = vadd.f32 %v3808, %v3838
        %3840 = vdwg.mxu0
        %3841 = vmatpush.msra.mxu0 0.0
        %3842 = vmatpush.msra.mxu0 0.0
        %3843 = vmatpush.msra.mxu0 0.0
        %3844 = vmatpush.msra.mxu0 0.0
        %3845 = vmatpush.msra.mxu0 0.0
        %3846 = vmatpush.msra.mxu0 0.0
        %3847 = vmatpush.msra.mxu0 0.0
        %3848 = vmatpush.msra.mxu0 0.0
        %3849 = vmatpush.msra.mxu0 0.0
        %3850 = vmatpush.msra.mxu0 0.0
        %3851 = vmatpush.msra.mxu0 0.0
        %3852 = vmatpush.msra.mxu0 0.0
        %3853 = vmatpush.msra.mxu0 0.0
        %3854 = vmatpush.msra.mxu0 0.0
        %v3855 = vand.u32 %v3781, 4294901760
        %v3856 = vsub.f32 %v3781, %v3855
        %3857 = vmatpush.msra.mxu0 %v3856
        %v3858 = vand.u32 %v3773, 4294901760
        %v3859 = vsub.f32 %v3773, %v3858
        %3860 = vmatpush.msra.mxu0 %v3859
        %v3861 = vand.u32 %v3777, 4294901760
        %v3862 = vsub.f32 %v3777, %v3861
        %3863 = vmatmul.f32.gmra.mxu0 %v3862
        %v3864 = vpop.f32.mrf.mxu0
        %v3865 = vadd.f32 %v3839, %v3864
        %3866 = vdwg.mxu0
        %3867 = vmatpush.msra.mxu0 0.0
        %3868 = vmatpush.msra.mxu0 0.0
        %3869 = vmatpush.msra.mxu0 0.0
        %3870 = vmatpush.msra.mxu0 0.0
        %3871 = vmatpush.msra.mxu0 0.0
        %3872 = vmatpush.msra.mxu0 0.0
        %3873 = vmatpush.msra.mxu0 0.0
        %3874 = vmatpush.msra.mxu0 0.0
        %3875 = vmatpush.msra.mxu0 0.0
        %3876 = vmatpush.msra.mxu0 0.0
        %3877 = vmatpush.msra.mxu0 0.0
        %3878 = vmatpush.msra.mxu0 0.0
        %3879 = vmatpush.msra.mxu0 0.0
        %3880 = vmatpush.msra.mxu0 0.0
        %v3881 = vand.u32 %v3781, 4294901760
        %3882 = vmatpush.msra.mxu0 %v3881
        %v3883 = vand.u32 %v3773, 4294901760
        %3884 = vmatpush.msra.mxu0 %v3883
        %v3885 = vand.u32 %v3777, 4294901760
        %v3886 = vsub.f32 %v3777, %v3885
        %v3887 = vand.u32 %v3886, 4294901760
        %3888 = vmatmul.f32.gmra.mxu0 %v3887
        %v3889 = vpop.f32.mrf.mxu0
        %v3890 = vadd.f32 %v3865, %v3889
        %3891 = vdwg.mxu0
        %3892 = vmatpush.msra.mxu0 0.0
        %3893 = vmatpush.msra.mxu0 0.0
        %3894 = vmatpush.msra.mxu0 0.0
        %3895 = vmatpush.msra.mxu0 0.0
        %3896 = vmatpush.msra.mxu0 0.0
        %3897 = vmatpush.msra.mxu0 0.0
        %3898 = vmatpush.msra.mxu0 0.0
        %3899 = vmatpush.msra.mxu0 0.0
        %3900 = vmatpush.msra.mxu0 0.0
        %3901 = vmatpush.msra.mxu0 0.0
        %3902 = vmatpush.msra.mxu0 0.0
        %3903 = vmatpush.msra.mxu0 0.0
        %3904 = vmatpush.msra.mxu0 0.0
        %3905 = vmatpush.msra.mxu0 0.0
        %v3906 = vand.u32 %v3781, 4294901760
        %v3907 = vsub.f32 %v3781, %v3906
        %v3908 = vand.u32 %v3907, 4294901760
        %3909 = vmatpush.msra.mxu0 %v3908
        %v3910 = vand.u32 %v3773, 4294901760
        %v3911 = vsub.f32 %v3773, %v3910
        %v3912 = vand.u32 %v3911, 4294901760
        %3913 = vmatpush.msra.mxu0 %v3912
        %v3914 = vand.u32 %v3777, 4294901760
        %3915 = vmatmul.f32.gmra.mxu0 %v3914
        %v3916 = vpop.f32.mrf.mxu0
        %v3917 = vadd.f32 %v3890, %v3916
        %3918 = vdwg.mxu0
        %3919 = vmatpush.msra.mxu0 0.0
        %3920 = vmatpush.msra.mxu0 0.0
        %3921 = vmatpush.msra.mxu0 0.0
        %3922 = vmatpush.msra.mxu0 0.0
        %3923 = vmatpush.msra.mxu0 0.0
        %3924 = vmatpush.msra.mxu0 0.0
        %3925 = vmatpush.msra.mxu0 0.0
        %3926 = vmatpush.msra.mxu0 0.0
        %3927 = vmatpush.msra.mxu0 0.0
        %3928 = vmatpush.msra.mxu0 0.0
        %3929 = vmatpush.msra.mxu0 0.0
        %3930 = vmatpush.msra.mxu0 0.0
        %3931 = vmatpush.msra.mxu0 0.0
        %3932 = vmatpush.msra.mxu0 0.0
        %v3933 = vand.u32 %v3781, 4294901760
        %3934 = vmatpush.msra.mxu0 %v3933
        %v3935 = vand.u32 %v3773, 4294901760
        %3936 = vmatpush.msra.mxu0 %v3935
        %v3937 = vand.u32 %v3777, 4294901760
        %3938 = vmatmul.f32.gmra.mxu0 %v3937
        %v3939 = vpop.f32.mrf.mxu0
        %v3940 = vadd.f32 %v3917, %v3939
        %3941 = vdwg.mxu0
        %v3943 = vsel %vm3775, %v182, 0
        %3945 = vmatpush.msra.mxu0 0.0
        %3946 = vmatpush.msra.mxu0 0.0
        %3947 = vmatpush.msra.mxu0 0.0
        %3948 = vmatpush.msra.mxu0 0.0
        %3949 = vmatpush.msra.mxu0 0.0
        %3950 = vmatpush.msra.mxu0 0.0
        %3951 = vmatpush.msra.mxu0 0.0
        %3952 = vmatpush.msra.mxu0 0.0
        %3953 = vmatpush.msra.mxu0 0.0
        %3954 = vmatpush.msra.mxu0 0.0
        %3955 = vmatpush.msra.mxu0 0.0
        %3956 = vmatpush.msra.mxu0 0.0
        %3957 = vmatpush.msra.mxu0 0.0
        %3958 = vmatpush.msra.mxu0 0.0
        %v3959 = vand.u32 %v3781, 4294901760
        %3960 = vmatpush.msra.mxu0 %v3959
        %v3961 = vand.u32 %v3773, 4294901760
        %3962 = vmatpush.msra.mxu0 %v3961
        %v3963 = vand.u32 %v3943, 4294901760
        %v3964 = vsub.f32 %v3943, %v3963
        %v3965 = vand.u32 %v3964, 4294901760
        %v3966 = vsub.f32 %v3964, %v3965
        %v3967 = vand.u32 %v3966, 4294901760
        %3968 = vmatmul.f32.gmra.mxu0 %v3967
        %v3969 = vpop.f32.mrf.mxu0
        %v3970 = vadd.f32 0.0, %v3969
        %3971 = vdwg.mxu0
        %3972 = vmatpush.msra.mxu0 0.0
        %3973 = vmatpush.msra.mxu0 0.0
        %3974 = vmatpush.msra.mxu0 0.0
        %3975 = vmatpush.msra.mxu0 0.0
        %3976 = vmatpush.msra.mxu0 0.0
        %3977 = vmatpush.msra.mxu0 0.0
        %3978 = vmatpush.msra.mxu0 0.0
        %3979 = vmatpush.msra.mxu0 0.0
        %3980 = vmatpush.msra.mxu0 0.0
        %3981 = vmatpush.msra.mxu0 0.0
        %3982 = vmatpush.msra.mxu0 0.0
        %3983 = vmatpush.msra.mxu0 0.0
        %3984 = vmatpush.msra.mxu0 0.0
        %3985 = vmatpush.msra.mxu0 0.0
        %v3986 = vand.u32 %v3781, 4294901760
        %v3987 = vsub.f32 %v3781, %v3986
        %v3988 = vand.u32 %v3987, 4294901760
        %v3989 = vsub.f32 %v3987, %v3988
        %v3990 = vand.u32 %v3989, 4294901760
        %3991 = vmatpush.msra.mxu0 %v3990
        %v3992 = vand.u32 %v3773, 4294901760
        %v3993 = vsub.f32 %v3773, %v3992
        %v3994 = vand.u32 %v3993, 4294901760
        %v3995 = vsub.f32 %v3993, %v3994
        %v3996 = vand.u32 %v3995, 4294901760
        %3997 = vmatpush.msra.mxu0 %v3996
        %v3998 = vand.u32 %v3943, 4294901760
        %3999 = vmatmul.f32.gmra.mxu0 %v3998
        %v4000 = vpop.f32.mrf.mxu0
        %v4001 = vadd.f32 %v3970, %v4000
        %4002 = vdwg.mxu0
        %4003 = vmatpush.msra.mxu0 0.0
        %4004 = vmatpush.msra.mxu0 0.0
        %4005 = vmatpush.msra.mxu0 0.0
        %4006 = vmatpush.msra.mxu0 0.0
        %4007 = vmatpush.msra.mxu0 0.0
        %4008 = vmatpush.msra.mxu0 0.0
        %4009 = vmatpush.msra.mxu0 0.0
        %4010 = vmatpush.msra.mxu0 0.0
        %4011 = vmatpush.msra.mxu0 0.0
        %4012 = vmatpush.msra.mxu0 0.0
        %4013 = vmatpush.msra.mxu0 0.0
        %4014 = vmatpush.msra.mxu0 0.0
        %4015 = vmatpush.msra.mxu0 0.0
        %4016 = vmatpush.msra.mxu0 0.0
        %v4017 = vand.u32 %v3781, 4294901760
        %v4018 = vsub.f32 %v3781, %v4017
        %4019 = vmatpush.msra.mxu0 %v4018
        %v4020 = vand.u32 %v3773, 4294901760
        %v4021 = vsub.f32 %v3773, %v4020
        %4022 = vmatpush.msra.mxu0 %v4021
        %v4023 = vand.u32 %v3943, 4294901760
        %v4024 = vsub.f32 %v3943, %v4023
        %4025 = vmatmul.f32.gmra.mxu0 %v4024
        %v4026 = vpop.f32.mrf.mxu0
        %v4027 = vadd.f32 %v4001, %v4026
        %4028 = vdwg.mxu0
        %4029 = vmatpush.msra.mxu0 0.0
        %4030 = vmatpush.msra.mxu0 0.0
        %4031 = vmatpush.msra.mxu0 0.0
        %4032 = vmatpush.msra.mxu0 0.0
        %4033 = vmatpush.msra.mxu0 0.0
        %4034 = vmatpush.msra.mxu0 0.0
        %4035 = vmatpush.msra.mxu0 0.0
        %4036 = vmatpush.msra.mxu0 0.0
        %4037 = vmatpush.msra.mxu0 0.0
        %4038 = vmatpush.msra.mxu0 0.0
        %4039 = vmatpush.msra.mxu0 0.0
        %4040 = vmatpush.msra.mxu0 0.0
        %4041 = vmatpush.msra.mxu0 0.0
        %4042 = vmatpush.msra.mxu0 0.0
        %v4043 = vand.u32 %v3781, 4294901760
        %4044 = vmatpush.msra.mxu0 %v4043
        %v4045 = vand.u32 %v3773, 4294901760
        %4046 = vmatpush.msra.mxu0 %v4045
        %v4047 = vand.u32 %v3943, 4294901760
        %v4048 = vsub.f32 %v3943, %v4047
        %v4049 = vand.u32 %v4048, 4294901760
        %4050 = vmatmul.f32.gmra.mxu0 %v4049
        %v4051 = vpop.f32.mrf.mxu0
        %v4052 = vadd.f32 %v4027, %v4051
        %4053 = vdwg.mxu0
        %4054 = vmatpush.msra.mxu0 0.0
        %4055 = vmatpush.msra.mxu0 0.0
        %4056 = vmatpush.msra.mxu0 0.0
        %4057 = vmatpush.msra.mxu0 0.0
        %4058 = vmatpush.msra.mxu0 0.0
        %4059 = vmatpush.msra.mxu0 0.0
        %4060 = vmatpush.msra.mxu0 0.0
        %4061 = vmatpush.msra.mxu0 0.0
        %4062 = vmatpush.msra.mxu0 0.0
        %4063 = vmatpush.msra.mxu0 0.0
        %4064 = vmatpush.msra.mxu0 0.0
        %4065 = vmatpush.msra.mxu0 0.0
        %4066 = vmatpush.msra.mxu0 0.0
        %4067 = vmatpush.msra.mxu0 0.0
        %v4068 = vand.u32 %v3781, 4294901760
        %v4069 = vsub.f32 %v3781, %v4068
        %v4070 = vand.u32 %v4069, 4294901760
        %4071 = vmatpush.msra.mxu0 %v4070
        %v4072 = vand.u32 %v3773, 4294901760
        %v4073 = vsub.f32 %v3773, %v4072
        %v4074 = vand.u32 %v4073, 4294901760
        %4075 = vmatpush.msra.mxu0 %v4074
        %v4076 = vand.u32 %v3943, 4294901760
        %4077 = vmatmul.f32.gmra.mxu0 %v4076
        %v4078 = vpop.f32.mrf.mxu0
        %v4079 = vadd.f32 %v4052, %v4078
        %4080 = vdwg.mxu0
        %4081 = vmatpush.msra.mxu0 0.0
        %4082 = vmatpush.msra.mxu0 0.0
        %4083 = vmatpush.msra.mxu0 0.0
        %4084 = vmatpush.msra.mxu0 0.0
        %4085 = vmatpush.msra.mxu0 0.0
        %4086 = vmatpush.msra.mxu0 0.0
        %4087 = vmatpush.msra.mxu0 0.0
        %4088 = vmatpush.msra.mxu0 0.0
        %4089 = vmatpush.msra.mxu0 0.0
        %4090 = vmatpush.msra.mxu0 0.0
        %4091 = vmatpush.msra.mxu0 0.0
        %4092 = vmatpush.msra.mxu0 0.0
        %4093 = vmatpush.msra.mxu0 0.0
        %4094 = vmatpush.msra.mxu0 0.0
        %v4095 = vand.u32 %v3781, 4294901760
        %4096 = vmatpush.msra.mxu0 %v4095
        %v4097 = vand.u32 %v3773, 4294901760
        %4098 = vmatpush.msra.mxu0 %v4097
        %v4099 = vand.u32 %v3943, 4294901760
        %4100 = vmatmul.f32.gmra.mxu0 %v4099
        %v4101 = vpop.f32.mrf.mxu0
        %v4102 = vadd.f32 %v4079, %v4101
        %4103 = vdwg.mxu0
        %v4104 = vmax.f32 %v3940, %v4102
        %v4106 = vperm.slane %v183, 0
        %v4108 = vadd.f32 %v4104, %v4106
        %v4109 = vmax.f32 %v4108, 0.0
        %s4110 = smul.u32 %s185, 8
        %s4111 = scalar_lea.vmem %s170, %s4110
        %vm4112 = vcmask 258048
        %4113 = vst.msk [vmem:[%s4111] sm:$0x1f] %vm4112, %v4109
      $region37: #{simple_cnn_forward.4} parent=31 // loop_footer
        %s189 = sadd.s32 1, %s185
      $region38: #{simple_cnn_forward.4} parent=31 // loop_footer_branch
        %184 = sbr.rel target = $region34
      $region39: #{simple_cnn_forward.4} parent=31 // loop_exit
        _
      %p4114 = scmp.lt.s32.totalorder %s14, 1
      %s4115 = scalar_select %p4114, %s14, 1
      %s4116 = smul.addr %s4115, 5
      %s4117 = smul.addr %s4116, 8
      %s4118 = scalar_lea.vmem %s3, %s4117
      // Predicated region
      $region40: #{simple_cnn_forward.4} parent=31 // pred_check
        %p4119 = pneg %p100
      $region41: #{simple_cnn_forward.4} parent=31 // pred_check_branch
        %4121 = sbr.rel (%p4119) target = $region43
      $region42: #{simple_cnn_forward.4} parent=31 // pred_region
        _
      $region43: #{simple_cnn_forward.4} parent=31 // pred_fallthru
        _
    $region32: #{simple_cnn_forward.4} parent=5 // pred_fallthru
      _
    %p4122 = scmp.le.s32.totalorder 2, %s9
    // Predicated region
    $region44: #{simple_cnn_forward.4} parent=5 // pred_check
      %p4123 = pneg %p4122
    $region45: #{simple_cnn_forward.4} parent=5 // pred_check_branch
      %4125 = sbr.rel (%p4123) target = $region47
    $region46: #{simple_cnn_forward.4} parent=5 // pred_region
      %s4126 = ssub.s32 %s9, 2
      // Predicated region
      $region48: #{simple_cnn_forward.4} parent=46 // pred_check
        %p4127 = pneg %p106
      $region49: #{simple_cnn_forward.4} parent=46 // pred_check_branch
        %4129 = sbr.rel (%p4127) target = $region51
      $region50: #{simple_cnn_forward.4} parent=46 // pred_region
        %p4130 = scmp.lt.s32.totalorder %s15, 1
        %s4131 = scalar_select %p4130, %s15, 1
        %s4132 = smul.addr %s4131, 5
        %s4133 = smul.addr %s4132, 8
        %s4134 = scalar_lea.vmem %s3, %s4133
      $region51: #{simple_cnn_forward.4} parent=46 // pred_fallthru
        _
    $region47: #{simple_cnn_forward.4} parent=5 // pred_fallthru
      _
  $region6: #{simple_cnn_forward.4} parent=0 // loop_footer
    %s13 = sadd.s32 1, %s9
  $region7: #{simple_cnn_forward.4} parent=0 // loop_footer_branch
    %8 = sbr.rel target = $region3
  $region8: #{simple_cnn_forward.4} parent=0 // loop_exit
    _

</llo_original>
